<compile_context>
chip_gen: v7x
topology: tpu7x:2x2x1
jax: 0.10.0
libtpu: 0.0.40
codegen_flags: <defaults>
</compile_context>

<pallas_src>
import functools

import jax
import jax.numpy as jnp
from jax.experimental import pallas as pl
from jax.experimental.pallas import tpu as pltpu


def bottleneck_kernel(x_ref, mask_ref, w1_ref, w2_ref, w3_ref, bias_ref,
                      out_ref, pad_ref, *, dims):
    D, H, W, HWp, G = dims
    Mp = x_ref.shape[2]               # padded spatial size = D * HWp
    P = w1_ref.shape[0]

    b1 = bias_ref[:P, 0:1]            # (P, 1)
    b2 = bias_ref[:P, 1:2]            # (P, 1)
    b3 = bias_ref[:, 2:3]             # (Cout, 1)

    # ---- conv1 (1x1x1, BN scale folded into weights) + bias + ReLU ---------
    xb = x_ref[0].astype(jnp.bfloat16)                        # (Cin, Mp) bf16
    o1 = jnp.dot(w1_ref[...], xb, preferred_element_type=jnp.float32)
    o1 = jnp.maximum(o1 + b1, 0.0)                            # (P, Mp) f32

    # Stage o1 into a lane-aligned halo'd bf16 buffer.  The halo (zeroed every
    # step - scratch is per-core and not zero-initialized, and a NaN bit
    # pattern times a 0 mask would still be NaN) implements the kd zero
    # padding, and HWp/G being multiples of 128 makes every kd shift aligned.
    pad_ref[:, :G] = jnp.zeros((P, G), jnp.bfloat16)
    pad_ref[:, G + Mp:] = jnp.zeros((P, G), jnp.bfloat16)
    pad_ref[:, G:G + Mp] = o1.astype(jnp.bfloat16)

    # ---- conv2 (3x3x3, stride=1, pad=1): 27 per-tap MXU matmuls ------------
    # accumulated in f32 -- no materialized im2col buffer, no extra stores.
    o2 = None
    for kd in range(3):
        for kh in range(3):
            for kw in range(3):
                t = (kd * 3 + kh) * 3 + kw
                off = (kd - 1) * HWp + (kh - 1) * W + (kw - 1)
                tap = pad_ref[:, G + off:G + off + Mp]        # (P, Mp) bf16
                if not (kh == 1 and kw == 1):
                    # h/w boundary mask only; d boundary handled by the halo.
                    tap = tap * mask_ref[kh * 3 + kw:kh * 3 + kw + 1, :]
                part = jnp.dot(w2_ref[:, t * P:(t + 1) * P], tap,
                               preferred_element_type=jnp.float32)
                o2 = part if o2 is None else o2 + part
    o2 = jnp.maximum(o2 + b2, 0.0)                            # (P, Mp) f32

    # ---- conv3 (1x1x1) + bias + identity residual + ReLU -------------------
    o3 = jnp.dot(w3_ref[...], o2.astype(jnp.bfloat16),
                 preferred_element_type=jnp.float32)          # (Cout, Mp) f32
    o3 = o3 + b3 + x_ref[0]           # residual re-read here, f32 exact
    out_ref[0] = jnp.maximum(o3, 0.0)


def bottleneck_forward(x_ncdhw, w1, w2, w3, s1, b1, s2, b2, s3, b3):
    """x_ncdhw: (N, Cin, D, H, W) float32 (PyTorch layout). Returns same layout.
    BN params are eval-mode (gamma/var already folded to scale s, bias b)."""
    N, Cin, D, H, W = x_ncdhw.shape
    P = w1.shape[1]
    Cout = w3.shape[1]
    assert Cout == Cin, "identity residual requires inplanes == planes * 4"

    HW = H * W
    HWp = pl.cdiv(HW, 128) * 128          # lane-aligned per-plane stride
    Mp = D * HWp                          # padded spatial extent (lane axis)
    G = HWp + pl.cdiv(W + 1, 128) * 128   # aligned halo per side (covers kh/kw)

    # Fold eval-mode BN scales into conv weights; transpose for the lane-dense
    # (C_out, C_in) @ (C_in, M) formulation; cast weights to bf16 for the MXU.
    w1k = (w1 * s1[None, :]).T.astype(jnp.bfloat16)                  # (P, Cin)
    w2k = (w2 * s2[None, None, None, None, :]).reshape(27 * P, P).T \
        .astype(jnp.bfloat16)                                        # (P, 27P)
    w3k = (w3 * s3[None, :]).T.astype(jnp.bfloat16)                  # (Cout, P)

    bias = jnp.zeros((Cout, 3), jnp.float32)
    bias = bias.at[:P, 0].set(b1).at[:P, 1].set(b2).at[:, 2].set(b3)

    # 9 h/w-boundary tap masks in the padded layout (d handled by the halo).
    h_i = jnp.arange(H).reshape(H, 1)
    w_i = jnp.arange(W).reshape(1, W)
    rows = []
    for kh in range(3):
        for kw in range(3):
            valid = ((h_i + kh - 1 >= 0) & (h_i + kh - 1 < H) &
                     (w_i + kw - 1 >= 0) & (w_i + kw - 1 < W))
            m = jnp.pad(valid.reshape(HW), (0, HWp - HW))
            rows.append(jnp.tile(m, D))
    mask = jnp.stack(rows, axis=0).astype(jnp.bfloat16)              # (9, Mp)

    # NCDHW is channel-major: flatten spatial dims and pad each depth plane to
    # the 128-aligned stride HWp (gap lanes are never used for valid outputs).
    x_pad = jnp.pad(x_ncdhw.reshape(N, Cin, D, HW),
                    ((0, 0), (0, 0), (0, 0), (0, HWp - HW))).reshape(N, Cin, Mp)

    flops = 2 * N * Mp * (P * Cin + 27 * P * P + Cout * P)
    bytes_accessed = (4 * N * Mp * (Cin + Cout) + 2 * int(mask.size)
                      + 2 * (int(w1k.size) + int(w2k.size) + int(w3k.size))
                      + 4 * int(bias.size))

    kernel = functools.partial(bottleneck_kernel, dims=(D, H, W, HWp, G))
    out = pl.pallas_call(
        kernel,
        out_shape=jax.ShapeDtypeStruct((N, Cout, Mp), jnp.float32),
        grid=(N,),
        in_specs=[
            pl.BlockSpec((1, Cin, Mp), lambda n: (n, 0, 0)),   # x (one image)
            pl.BlockSpec((9, Mp), lambda n: (0, 0)),           # h/w tap masks
            pl.BlockSpec((P, Cin), lambda n: (0, 0)),          # w1 (folded)
            pl.BlockSpec((P, 27 * P), lambda n: (0, 0)),       # w2 (per-tap)
            pl.BlockSpec((Cout, P), lambda n: (0, 0)),         # w3 (folded)
            pl.BlockSpec((Cout, 3), lambda n: (0, 0)),         # packed biases
        ],
        out_specs=pl.BlockSpec((1, Cout, Mp), lambda n: (n, 0, 0)),
        scratch_shapes=[
            pltpu.VMEM((P, Mp + 2 * G), jnp.bfloat16),         # halo'd o1
        ],
        compiler_params=pltpu.CompilerParams(
            dimension_semantics=("parallel",),                 # megacore over N
            vmem_limit_bytes=48 * 1024 * 1024),                # fits v7x 64 MiB
        cost_estimate=pl.CostEstimate(flops=flops, transcendentals=0,
                                      bytes_accessed=bytes_accessed),
    )(x_pad, mask, w1k, w2k, w3k, bias)

    out = out.reshape(N, Cout, D, HWp)[..., :HW]
    return out.reshape(N, Cout, D, H, W)


def reference_forward(x, w1, w2, w3, s1, b1, s2, b2, s3, b3):
    """Pure-JAX NCDHW reference mirroring the PyTorch module (eval-mode BN)."""
    dn = ('NCDHW', 'OIDHW', 'NCDHW')
    hi = jax.lax.Precision.HIGHEST
    Cin, P = w1.shape
    Cout = w3.shape[1]
    w1_o = jnp.transpose(w1, (1, 0)).reshape(P, Cin, 1, 1, 1)
    w2_o = jnp.transpose(w2, (4, 3, 0, 1, 2))
    w3_o = jnp.transpose(w3, (1, 0)).reshape(Cout, P, 1, 1, 1)

    def bn(t, s, b):
        return t * s.reshape(1, -1, 1, 1, 1) + b.reshape(1, -1, 1, 1, 1)

    o = jax.lax.conv_general_dilated(x, w1_o, (1, 1, 1), [(0, 0)] * 3,
                                     dimension_numbers=dn, precision=hi)
    o = jnp.maximum(bn(o, s1, b1), 0.0)
    o = jax.lax.conv_general_dilated(o, w2_o, (1, 1, 1), [(1, 1)] * 3,
                                     dimension_numbers=dn, precision=hi)
    o = jnp.maximum(bn(o, s2, b2), 0.0)
    o = jax.lax.conv_general_dilated(o, w3_o, (1, 1, 1), [(0, 0)] * 3,
                                     dimension_numbers=dn, precision=hi)
    o = bn(o, s3, b3) + x
    return jnp.maximum(o, 0.0)


def make_bn_params(kg, kb, km, kv, c, eps=1e-5):
    gamma = jax.random.uniform(kg, (c,), jnp.float32, 0.5, 1.5)
    beta = jax.random.normal(kb, (c,), jnp.float32) * 0.1
    mean = jax.random.normal(km, (c,), jnp.float32) * 0.1
    var = jax.random.uniform(kv, (c,), jnp.float32, 0.5, 1.5)
    scale = gamma / jnp.sqrt(var + eps)
    bias = beta - mean * scale
    return scale, bias


if __name__ == "__main__":
    # Bottleneck(inplanes=16, planes=4, stride=1, downsample=None)
    N, Cin, D, H, W = 2, 16, 8, 8, 8
    P = 4                      # planes; expansion=4 -> Cout = 16 == Cin

    key = jax.random.PRNGKey(0)
    ks = jax.random.split(key, 16)

    x = jax.random.normal(ks[0], (N, Cin, D, H, W), jnp.float32)

    # conv weights: conv1 (Cin,P), conv2 (3,3,3,Cin=P,Cout=P), conv3 (P,4P)
    w1 = jax.random.normal(ks[1], (Cin, P), jnp.float32) * 0.1
    w2 = jax.random.normal(ks[2], (3, 3, 3, P, P), jnp.float32) * 0.1
    w3 = jax.random.normal(ks[3], (P, 4 * P), jnp.float32) * 0.1

    s1, b1 = make_bn_params(ks[4], ks[5], ks[6], ks[7], P)
    s2, b2 = make_bn_params(ks[8], ks[9], ks[10], ks[11], P)
    s3, b3 = make_bn_params(ks[12], ks[13], ks[14], ks[15], 4 * P)

    out = bottleneck_forward(x, w1, w2, w3, s1, b1, s2, b2, s3, b3)
    out = jax.block_until_ready(out)

    ref = reference_forward(x, w1, w2, w3, s1, b1, s2, b2, s3, b3)
    ref = jax.block_until_ready(ref)

    assert out.shape == (N, Cin, D, H, W) and out.dtype == jnp.float32
    err = float(jnp.max(jnp.abs(out - ref)))
    # bf16 MXU operands with f32 accumulation vs f32 HIGHEST reference.
    assert jnp.allclose(out, ref, atol=1e-2, rtol=1e-2), f"max abs diff {err}"

    print("KERNEL_OK")
</pallas_src>

<mosaic_0001>
module attributes {stable_mosaic.version = 11 : i64} {
  func.func @bottleneck_kernel(%arg0: i32, %arg1: memref<1x16x1024xf32, #tpu.memory_space<vmem>>, %arg2: memref<9x1024xbf16, #tpu.memory_space<vmem>>, %arg3: memref<4x16xbf16, #tpu.memory_space<vmem>>, %arg4: memref<4x108xbf16, #tpu.memory_space<vmem>>, %arg5: memref<16x4xbf16, #tpu.memory_space<vmem>>, %arg6: memref<16x3xf32, #tpu.memory_space<vmem>>, %arg7: memref<1x16x1024xf32, #tpu.memory_space<vmem>>, %arg8: memref<4x1536xbf16, #tpu.memory_space<vmem>>) attributes {dimension_semantics = [#tpu.dimension_semantics<parallel>], iteration_bounds = array<i64: 2>, scalar_prefetch = 0 : i64, scratch_operands = 1 : i64, tpu.core_type = #tpu.core_type<tc>, window_params = [{transform_indices = @transform_0, window_bounds = array<i64: 1, 16, 1024>}, {pipeline_mode = #tpu.pipeline_mode<synchronous>, transform_indices = @transform_1, window_bounds = array<i64: 9, 1024>}, {pipeline_mode = #tpu.pipeline_mode<synchronous>, transform_indices = @transform_2, window_bounds = array<i64: 4, 16>}, {pipeline_mode = #tpu.pipeline_mode<synchronous>, transform_indices = @transform_3, window_bounds = array<i64: 4, 108>}, {pipeline_mode = #tpu.pipeline_mode<synchronous>, transform_indices = @transform_4, window_bounds = array<i64: 16, 4>}, {pipeline_mode = #tpu.pipeline_mode<synchronous>, transform_indices = @transform_5, window_bounds = array<i64: 16, 3>}, {transform_indices = @transform_6, window_bounds = array<i64: 1, 16, 1024>}]} {
    %c0 = arith.constant 0 : index
    %c0_0 = arith.constant 0 : index
    %0 = vector.load %arg6[%c0, %c0_0] : memref<16x3xf32, #tpu.memory_space<vmem>>, vector<4x1xf32>
    %c0_1 = arith.constant 0 : index
    %c1 = arith.constant 1 : index
    %1 = vector.load %arg6[%c0_1, %c1] : memref<16x3xf32, #tpu.memory_space<vmem>>, vector<4x1xf32>
    %c0_2 = arith.constant 0 : index
    %c2 = arith.constant 2 : index
    %2 = vector.load %arg6[%c0_2, %c2] : memref<16x3xf32, #tpu.memory_space<vmem>>, vector<16x1xf32>
    %c0_3 = arith.constant 0 : index
    %c0_4 = arith.constant 0 : index
    %c0_5 = arith.constant 0 : index
    %3 = vector.load %arg1[%c0_3, %c0_4, %c0_5] : memref<1x16x1024xf32, #tpu.memory_space<vmem>>, vector<1x16x1024xf32>
    %4 = vector.shape_cast %3 : vector<1x16x1024xf32> to vector<16x1024xf32>
    %5 = arith.truncf %4 : vector<16x1024xf32> to vector<16x1024xbf16>
    %c0_6 = arith.constant 0 : index
    %c0_7 = arith.constant 0 : index
    %6 = vector.load %arg3[%c0_6, %c0_7] : memref<4x16xbf16, #tpu.memory_space<vmem>>, vector<4x16xbf16>
    %cst = arith.constant dense<0.000000e+00> : vector<4x1024xf32>
    %7 = tpu.matmul %6, %5, %cst {dimension_numbers = #tpu.dot_dimension_numbers<[1], [0], [0], [1], [0, 0, 1, 1], [], []>} : vector<4x16xbf16>, vector<16x1024xbf16>, vector<4x1024xf32> -> vector<4x1024xf32>
    %8 = vector.broadcast %0 : vector<4x1xf32> to vector<4x1024xf32>
    %9 = arith.addf %7, %8 : vector<4x1024xf32>
    %cst_8 = arith.constant 0.000000e+00 : f32
    %10 = vector.broadcast %cst_8 : f32 to vector<4x1024xf32>
    %11 = arith.maximumf %9, %10 : vector<4x1024xf32>
    %cst_9 = arith.constant 0.000000e+00 : bf16
    %12 = vector.broadcast %cst_9 : bf16 to vector<4x256xbf16>
    %c0_10 = arith.constant 0 : index
    %c0_11 = arith.constant 0 : index
    %13 = vector.load %arg8[%c0_10, %c0_11] : memref<4x1536xbf16, #tpu.memory_space<vmem>>, vector<4x256xbf16>
    tpu.vector_store %arg8[%c0_10, %c0_11], %12 {strides = array<i32>} : memref<4x1536xbf16, #tpu.memory_space<vmem>>, vector<4x256xbf16>,
    %cst_12 = arith.constant 0.000000e+00 : bf16
    %14 = vector.broadcast %cst_12 : bf16 to vector<4x256xbf16>
    %c0_13 = arith.constant 0 : index
    %c1280 = arith.constant 1280 : index
    %15 = vector.load %arg8[%c0_13, %c1280] : memref<4x1536xbf16, #tpu.memory_space<vmem>>, vector<4x256xbf16>
    tpu.vector_store %arg8[%c0_13, %c1280], %14 {strides = array<i32>} : memref<4x1536xbf16, #tpu.memory_space<vmem>>, vector<4x256xbf16>,
    %16 = arith.truncf %11 : vector<4x1024xf32> to vector<4x1024xbf16>
    %c0_14 = arith.constant 0 : index
    %c256 = arith.constant 256 : index
    %17 = vector.load %arg8[%c0_14, %c256] : memref<4x1536xbf16, #tpu.memory_space<vmem>>, vector<4x1024xbf16>
    tpu.vector_store %arg8[%c0_14, %c256], %16 {strides = array<i32>} : memref<4x1536xbf16, #tpu.memory_space<vmem>>, vector<4x1024xbf16>,
    %c0_15 = arith.constant 0 : index
    %c119 = arith.constant 119 : index
    %18 = vector.load %arg8[%c0_15, %c119] : memref<4x1536xbf16, #tpu.memory_space<vmem>>, vector<4x1024xbf16>
    %c0_16 = arith.constant 0 : index
    %c0_17 = arith.constant 0 : index
    %19 = vector.load %arg2[%c0_16, %c0_17] : memref<9x1024xbf16, #tpu.memory_space<vmem>>, vector<1x1024xbf16>
    %20 = vector.broadcast %19 : vector<1x1024xbf16> to vector<4x1024xbf16>
    %21 = arith.mulf %18, %20 : vector<4x1024xbf16>
    %c0_18 = arith.constant 0 : index
    %c0_19 = arith.constant 0 : index
    %22 = vector.load %arg4[%c0_18, %c0_19] : memref<4x108xbf16, #tpu.memory_space<vmem>>, vector<4x4xbf16>
    %cst_20 = arith.constant dense<0.000000e+00> : vector<4x1024xf32>
    %23 = tpu.matmul %22, %21, %cst_20 {dimension_numbers = #tpu.dot_dimension_numbers<[1], [0], [0], [1], [0, 0, 1, 1], [], []>} : vector<4x4xbf16>, vector<4x1024xbf16>, vector<4x1024xf32> -> vector<4x1024xf32>
    %c0_21 = arith.constant 0 : index
    %c120 = arith.constant 120 : index
    %24 = vector.load %arg8[%c0_21, %c120] : memref<4x1536xbf16, #tpu.memory_space<vmem>>, vector<4x1024xbf16>
    %c1_22 = arith.constant 1 : index
    %c0_23 = arith.constant 0 : index
    %25 = vector.load %arg2[%c1_22, %c0_23] : memref<9x1024xbf16, #tpu.memory_space<vmem>>, vector<1x1024xbf16>
    %26 = vector.broadcast %25 : vector<1x1024xbf16> to vector<4x1024xbf16>
    %27 = arith.mulf %24, %26 : vector<4x1024xbf16>
    %c0_24 = arith.constant 0 : index
    %c4 = arith.constant 4 : index
    %28 = vector.load %arg4[%c0_24, %c4] : memref<4x108xbf16, #tpu.memory_space<vmem>>, vector<4x4xbf16>
    %cst_25 = arith.constant dense<0.000000e+00> : vector<4x1024xf32>
    %29 = tpu.matmul %28, %27, %cst_25 {dimension_numbers = #tpu.dot_dimension_numbers<[1], [0], [0], [1], [0, 0, 1, 1], [], []>} : vector<4x4xbf16>, vector<4x1024xbf16>, vector<4x1024xf32> -> vector<4x1024xf32>
    %30 = arith.addf %23, %29 : vector<4x1024xf32>
    %c0_26 = arith.constant 0 : index
    %c121 = arith.constant 121 : index
    %31 = vector.load %arg8[%c0_26, %c121] : memref<4x1536xbf16, #tpu.memory_space<vmem>>, vector<4x1024xbf16>
    %c2_27 = arith.constant 2 : index
    %c0_28 = arith.constant 0 : index
    %32 = vector.load %arg2[%c2_27, %c0_28] : memref<9x1024xbf16, #tpu.memory_space<vmem>>, vector<1x1024xbf16>
    %33 = vector.broadcast %32 : vector<1x1024xbf16> to vector<4x1024xbf16>
    %34 = arith.mulf %31, %33 : vector<4x1024xbf16>
    %c0_29 = arith.constant 0 : index
    %c8 = arith.constant 8 : index
    %35 = vector.load %arg4[%c0_29, %c8] : memref<4x108xbf16, #tpu.memory_space<vmem>>, vector<4x4xbf16>
    %cst_30 = arith.constant dense<0.000000e+00> : vector<4x1024xf32>
    %36 = tpu.matmul %35, %34, %cst_30 {dimension_numbers = #tpu.dot_dimension_numbers<[1], [0], [0], [1], [0, 0, 1, 1], [], []>} : vector<4x4xbf16>, vector<4x1024xbf16>, vector<4x1024xf32> -> vector<4x1024xf32>
    %37 = arith.addf %30, %36 : vector<4x1024xf32>
    %c0_31 = arith.constant 0 : index
    %c127 = arith.constant 127 : index
    %38 = vector.load %arg8[%c0_31, %c127] : memref<4x1536xbf16, #tpu.memory_space<vmem>>, vector<4x1024xbf16>
    %c3 = arith.constant 3 : index
    %c0_32 = arith.constant 0 : index
    %39 = vector.load %arg2[%c3, %c0_32] : memref<9x1024xbf16, #tpu.memory_space<vmem>>, vector<1x1024xbf16>
    %40 = vector.broadcast %39 : vector<1x1024xbf16> to vector<4x1024xbf16>
    %41 = arith.mulf %38, %40 : vector<4x1024xbf16>
    %c0_33 = arith.constant 0 : index
    %c12 = arith.constant 12 : index
    %42 = vector.load %arg4[%c0_33, %c12] : memref<4x108xbf16, #tpu.memory_space<vmem>>, vector<4x4xbf16>
    %cst_34 = arith.constant dense<0.000000e+00> : vector<4x1024xf32>
    %43 = tpu.matmul %42, %41, %cst_34 {dimension_numbers = #tpu.dot_dimension_numbers<[1], [0], [0], [1], [0, 0, 1, 1], [], []>} : vector<4x4xbf16>, vector<4x1024xbf16>, vector<4x1024xf32> -> vector<4x1024xf32>
    %44 = arith.addf %37, %43 : vector<4x1024xf32>
    %c0_35 = arith.constant 0 : index
    %c128 = arith.constant 128 : index
    %45 = vector.load %arg8[%c0_35, %c128] : memref<4x1536xbf16, #tpu.memory_space<vmem>>, vector<4x1024xbf16>
    %c0_36 = arith.constant 0 : index
    %c16 = arith.constant 16 : index
    %46 = vector.load %arg4[%c0_36, %c16] : memref<4x108xbf16, #tpu.memory_space<vmem>>, vector<4x4xbf16>
    %cst_37 = arith.constant dense<0.000000e+00> : vector<4x1024xf32>
    %47 = tpu.matmul %46, %45, %cst_37 {dimension_numbers = #tpu.dot_dimension_numbers<[1], [0], [0], [1], [0, 0, 1, 1], [], []>} : vector<4x4xbf16>, vector<4x1024xbf16>, vector<4x1024xf32> -> vector<4x1024xf32>
    %48 = arith.addf %44, %47 : vector<4x1024xf32>
    %c0_38 = arith.constant 0 : index
    %c129 = arith.constant 129 : index
    %49 = vector.load %arg8[%c0_38, %c129] : memref<4x1536xbf16, #tpu.memory_space<vmem>>, vector<4x1024xbf16>
    %c5 = arith.constant 5 : index
    %c0_39 = arith.constant 0 : index
    %50 = vector.load %arg2[%c5, %c0_39] : memref<9x1024xbf16, #tpu.memory_space<vmem>>, vector<1x1024xbf16>
    %51 = vector.broadcast %50 : vector<1x1024xbf16> to vector<4x1024xbf16>
    %52 = arith.mulf %49, %51 : vector<4x1024xbf16>
    %c0_40 = arith.constant 0 : index
    %c20 = arith.constant 20 : index
    %53 = vector.load %arg4[%c0_40, %c20] : memref<4x108xbf16, #tpu.memory_space<vmem>>, vector<4x4xbf16>
    %cst_41 = arith.constant dense<0.000000e+00> : vector<4x1024xf32>
    %54 = tpu.matmul %53, %52, %cst_41 {dimension_numbers = #tpu.dot_dimension_numbers<[1], [0], [0], [1], [0, 0, 1, 1], [], []>} : vector<4x4xbf16>, vector<4x1024xbf16>, vector<4x1024xf32> -> vector<4x1024xf32>
    %55 = arith.addf %48, %54 : vector<4x1024xf32>
    %c0_42 = arith.constant 0 : index
    %c135 = arith.constant 135 : index
    %56 = vector.load %arg8[%c0_42, %c135] : memref<4x1536xbf16, #tpu.memory_space<vmem>>, vector<4x1024xbf16>
    %c6 = arith.constant 6 : index
    %c0_43 = arith.constant 0 : index
    %57 = vector.load %arg2[%c6, %c0_43] : memref<9x1024xbf16, #tpu.memory_space<vmem>>, vector<1x1024xbf16>
    %58 = vector.broadcast %57 : vector<1x1024xbf16> to vector<4x1024xbf16>
    %59 = arith.mulf %56, %58 : vector<4x1024xbf16>
    %c0_44 = arith.constant 0 : index
    %c24 = arith.constant 24 : index
    %60 = vector.load %arg4[%c0_44, %c24] : memref<4x108xbf16, #tpu.memory_space<vmem>>, vector<4x4xbf16>
    %cst_45 = arith.constant dense<0.000000e+00> : vector<4x1024xf32>
    %61 = tpu.matmul %60, %59, %cst_45 {dimension_numbers = #tpu.dot_dimension_numbers<[1], [0], [0], [1], [0, 0, 1, 1], [], []>} : vector<4x4xbf16>, vector<4x1024xbf16>, vector<4x1024xf32> -> vector<4x1024xf32>
    %62 = arith.addf %55, %61 : vector<4x1024xf32>
    %c0_46 = arith.constant 0 : index
    %c136 = arith.constant 136 : index
    %63 = vector.load %arg8[%c0_46, %c136] : memref<4x1536xbf16, #tpu.memory_space<vmem>>, vector<4x1024xbf16>
    %c7 = arith.constant 7 : index
    %c0_47 = arith.constant 0 : index
    %64 = vector.load %arg2[%c7, %c0_47] : memref<9x1024xbf16, #tpu.memory_space<vmem>>, vector<1x1024xbf16>
    %65 = vector.broadcast %64 : vector<1x1024xbf16> to vector<4x1024xbf16>
    %66 = arith.mulf %63, %65 : vector<4x1024xbf16>
    %c0_48 = arith.constant 0 : index
    %c28 = arith.constant 28 : index
    %67 = vector.load %arg4[%c0_48, %c28] : memref<4x108xbf16, #tpu.memory_space<vmem>>, vector<4x4xbf16>
    %cst_49 = arith.constant dense<0.000000e+00> : vector<4x1024xf32>
    %68 = tpu.matmul %67, %66, %cst_49 {dimension_numbers = #tpu.dot_dimension_numbers<[1], [0], [0], [1], [0, 0, 1, 1], [], []>} : vector<4x4xbf16>, vector<4x1024xbf16>, vector<4x1024xf32> -> vector<4x1024xf32>
    %69 = arith.addf %62, %68 : vector<4x1024xf32>
    %c0_50 = arith.constant 0 : index
    %c137 = arith.constant 137 : index
    %70 = vector.load %arg8[%c0_50, %c137] : memref<4x1536xbf16, #tpu.memory_space<vmem>>, vector<4x1024xbf16>
    %c8_51 = arith.constant 8 : index
    %c0_52 = arith.constant 0 : index
    %71 = vector.load %arg2[%c8_51, %c0_52] : memref<9x1024xbf16, #tpu.memory_space<vmem>>, vector<1x1024xbf16>
    %72 = vector.broadcast %71 : vector<1x1024xbf16> to vector<4x1024xbf16>
    %73 = arith.mulf %70, %72 : vector<4x1024xbf16>
    %c0_53 = arith.constant 0 : index
    %c32 = arith.constant 32 : index
    %74 = vector.load %arg4[%c0_53, %c32] : memref<4x108xbf16, #tpu.memory_space<vmem>>, vector<4x4xbf16>
    %cst_54 = arith.constant dense<0.000000e+00> : vector<4x1024xf32>
    %75 = tpu.matmul %74, %73, %cst_54 {dimension_numbers = #tpu.dot_dimension_numbers<[1], [0], [0], [1], [0, 0, 1, 1], [], []>} : vector<4x4xbf16>, vector<4x1024xbf16>, vector<4x1024xf32> -> vector<4x1024xf32>
    %76 = arith.addf %69, %75 : vector<4x1024xf32>
    %c0_55 = arith.constant 0 : index
    %c247 = arith.constant 247 : index
    %77 = vector.load %arg8[%c0_55, %c247] : memref<4x1536xbf16, #tpu.memory_space<vmem>>, vector<4x1024xbf16>
    %c0_56 = arith.constant 0 : index
    %c0_57 = arith.constant 0 : index
    %78 = vector.load %arg2[%c0_56, %c0_57] : memref<9x1024xbf16, #tpu.memory_space<vmem>>, vector<1x1024xbf16>
    %79 = vector.broadcast %78 : vector<1x1024xbf16> to vector<4x1024xbf16>
    %80 = arith.mulf %77, %79 : vector<4x1024xbf16>
    %c0_58 = arith.constant 0 : index
    %c36 = arith.constant 36 : index
    %81 = vector.load %arg4[%c0_58, %c36] : memref<4x108xbf16, #tpu.memory_space<vmem>>, vector<4x4xbf16>
    %cst_59 = arith.constant dense<0.000000e+00> : vector<4x1024xf32>
    %82 = tpu.matmul %81, %80, %cst_59 {dimension_numbers = #tpu.dot_dimension_numbers<[1], [0], [0], [1], [0, 0, 1, 1], [], []>} : vector<4x4xbf16>, vector<4x1024xbf16>, vector<4x1024xf32> -> vector<4x1024xf32>
    %83 = arith.addf %76, %82 : vector<4x1024xf32>
    %c0_60 = arith.constant 0 : index
    %c248 = arith.constant 248 : index
    %84 = vector.load %arg8[%c0_60, %c248] : memref<4x1536xbf16, #tpu.memory_space<vmem>>, vector<4x1024xbf16>
    %c1_61 = arith.constant 1 : index
    %c0_62 = arith.constant 0 : index
    %85 = vector.load %arg2[%c1_61, %c0_62] : memref<9x1024xbf16, #tpu.memory_space<vmem>>, vector<1x1024xbf16>
    %86 = vector.broadcast %85 : vector<1x1024xbf16> to vector<4x1024xbf16>
    %87 = arith.mulf %84, %86 : vector<4x1024xbf16>
    %c0_63 = arith.constant 0 : index
    %c40 = arith.constant 40 : index
    %88 = vector.load %arg4[%c0_63, %c40] : memref<4x108xbf16, #tpu.memory_space<vmem>>, vector<4x4xbf16>
    %cst_64 = arith.constant dense<0.000000e+00> : vector<4x1024xf32>
    %89 = tpu.matmul %88, %87, %cst_64 {dimension_numbers = #tpu.dot_dimension_numbers<[1], [0], [0], [1], [0, 0, 1, 1], [], []>} : vector<4x4xbf16>, vector<4x1024xbf16>, vector<4x1024xf32> -> vector<4x1024xf32>
    %90 = arith.addf %83, %89 : vector<4x1024xf32>
    %c0_65 = arith.constant 0 : index
    %c249 = arith.constant 249 : index
    %91 = vector.load %arg8[%c0_65, %c249] : memref<4x1536xbf16, #tpu.memory_space<vmem>>, vector<4x1024xbf16>
    %c2_66 = arith.constant 2 : index
    %c0_67 = arith.constant 0 : index
    %92 = vector.load %arg2[%c2_66, %c0_67] : memref<9x1024xbf16, #tpu.memory_space<vmem>>, vector<1x1024xbf16>
    %93 = vector.broadcast %92 : vector<1x1024xbf16> to vector<4x1024xbf16>
    %94 = arith.mulf %91, %93 : vector<4x1024xbf16>
    %c0_68 = arith.constant 0 : index
    %c44 = arith.constant 44 : index
    %95 = vector.load %arg4[%c0_68, %c44] : memref<4x108xbf16, #tpu.memory_space<vmem>>, vector<4x4xbf16>
    %cst_69 = arith.constant dense<0.000000e+00> : vector<4x1024xf32>
    %96 = tpu.matmul %95, %94, %cst_69 {dimension_numbers = #tpu.dot_dimension_numbers<[1], [0], [0], [1], [0, 0, 1, 1], [], []>} : vector<4x4xbf16>, vector<4x1024xbf16>, vector<4x1024xf32> -> vector<4x1024xf32>
    %97 = arith.addf %90, %96 : vector<4x1024xf32>
    %c0_70 = arith.constant 0 : index
    %c255 = arith.constant 255 : index
    %98 = vector.load %arg8[%c0_70, %c255] : memref<4x1536xbf16, #tpu.memory_space<vmem>>, vector<4x1024xbf16>
    %c3_71 = arith.constant 3 : index
    %c0_72 = arith.constant 0 : index
    %99 = vector.load %arg2[%c3_71, %c0_72] : memref<9x1024xbf16, #tpu.memory_space<vmem>>, vector<1x1024xbf16>
    %100 = vector.broadcast %99 : vector<1x1024xbf16> to vector<4x1024xbf16>
    %101 = arith.mulf %98, %100 : vector<4x1024xbf16>
    %c0_73 = arith.constant 0 : index
    %c48 = arith.constant 48 : index
    %102 = vector.load %arg4[%c0_73, %c48] : memref<4x108xbf16, #tpu.memory_space<vmem>>, vector<4x4xbf16>
    %cst_74 = arith.constant dense<0.000000e+00> : vector<4x1024xf32>
    %103 = tpu.matmul %102, %101, %cst_74 {dimension_numbers = #tpu.dot_dimension_numbers<[1], [0], [0], [1], [0, 0, 1, 1], [], []>} : vector<4x4xbf16>, vector<4x1024xbf16>, vector<4x1024xf32> -> vector<4x1024xf32>
    %104 = arith.addf %97, %103 : vector<4x1024xf32>
    %c0_75 = arith.constant 0 : index
    %c256_76 = arith.constant 256 : index
    %105 = vector.load %arg8[%c0_75, %c256_76] : memref<4x1536xbf16, #tpu.memory_space<vmem>>, vector<4x1024xbf16>
    %c0_77 = arith.constant 0 : index
    %c52 = arith.constant 52 : index
    %106 = vector.load %arg4[%c0_77, %c52] : memref<4x108xbf16, #tpu.memory_space<vmem>>, vector<4x4xbf16>
    %cst_78 = arith.constant dense<0.000000e+00> : vector<4x1024xf32>
    %107 = tpu.matmul %106, %105, %cst_78 {dimension_numbers = #tpu.dot_dimension_numbers<[1], [0], [0], [1], [0, 0, 1, 1], [], []>} : vector<4x4xbf16>, vector<4x1024xbf16>, vector<4x1024xf32> -> vector<4x1024xf32>
    %108 = arith.addf %104, %107 : vector<4x1024xf32>
    %c0_79 = arith.constant 0 : index
    %c257 = arith.constant 257 : index
    %109 = vector.load %arg8[%c0_79, %c257] : memref<4x1536xbf16, #tpu.memory_space<vmem>>, vector<4x1024xbf16>
    %c5_80 = arith.constant 5 : index
    %c0_81 = arith.constant 0 : index
    %110 = vector.load %arg2[%c5_80, %c0_81] : memref<9x1024xbf16, #tpu.memory_space<vmem>>, vector<1x1024xbf16>
    %111 = vector.broadcast %110 : vector<1x1024xbf16> to vector<4x1024xbf16>
    %112 = arith.mulf %109, %111 : vector<4x1024xbf16>
    %c0_82 = arith.constant 0 : index
    %c56 = arith.constant 56 : index
    %113 = vector.load %arg4[%c0_82, %c56] : memref<4x108xbf16, #tpu.memory_space<vmem>>, vector<4x4xbf16>
    %cst_83 = arith.constant dense<0.000000e+00> : vector<4x1024xf32>
    %114 = tpu.matmul %113, %112, %cst_83 {dimension_numbers = #tpu.dot_dimension_numbers<[1], [0], [0], [1], [0, 0, 1, 1], [], []>} : vector<4x4xbf16>, vector<4x1024xbf16>, vector<4x1024xf32> -> vector<4x1024xf32>
    %115 = arith.addf %108, %114 : vector<4x1024xf32>
    %c0_84 = arith.constant 0 : index
    %c263 = arith.constant 263 : index
    %116 = vector.load %arg8[%c0_84, %c263] : memref<4x1536xbf16, #tpu.memory_space<vmem>>, vector<4x1024xbf16>
    %c6_85 = arith.constant 6 : index
    %c0_86 = arith.constant 0 : index
    %117 = vector.load %arg2[%c6_85, %c0_86] : memref<9x1024xbf16, #tpu.memory_space<vmem>>, vector<1x1024xbf16>
    %118 = vector.broadcast %117 : vector<1x1024xbf16> to vector<4x1024xbf16>
    %119 = arith.mulf %116, %118 : vector<4x1024xbf16>
    %c0_87 = arith.constant 0 : index
    %c60 = arith.constant 60 : index
    %120 = vector.load %arg4[%c0_87, %c60] : memref<4x108xbf16, #tpu.memory_space<vmem>>, vector<4x4xbf16>
    %cst_88 = arith.constant dense<0.000000e+00> : vector<4x1024xf32>
    %121 = tpu.matmul %120, %119, %cst_88 {dimension_numbers = #tpu.dot_dimension_numbers<[1], [0], [0], [1], [0, 0, 1, 1], [], []>} : vector<4x4xbf16>, vector<4x1024xbf16>, vector<4x1024xf32> -> vector<4x1024xf32>
    %122 = arith.addf %115, %121 : vector<4x1024xf32>
    %c0_89 = arith.constant 0 : index
    %c264 = arith.constant 264 : index
    %123 = vector.load %arg8[%c0_89, %c264] : memref<4x1536xbf16, #tpu.memory_space<vmem>>, vector<4x1024xbf16>
    %c7_90 = arith.constant 7 : index
    %c0_91 = arith.constant 0 : index
    %124 = vector.load %arg2[%c7_90, %c0_91] : memref<9x1024xbf16, #tpu.memory_space<vmem>>, vector<1x1024xbf16>
    %125 = vector.broadcast %124 : vector<1x1024xbf16> to vector<4x1024xbf16>
    %126 = arith.mulf %123, %125 : vector<4x1024xbf16>
    %c0_92 = arith.constant 0 : index
    %c64 = arith.constant 64 : index
    %127 = vector.load %arg4[%c0_92, %c64] : memref<4x108xbf16, #tpu.memory_space<vmem>>, vector<4x4xbf16>
    %cst_93 = arith.constant dense<0.000000e+00> : vector<4x1024xf32>
    %128 = tpu.matmul %127, %126, %cst_93 {dimension_numbers = #tpu.dot_dimension_numbers<[1], [0], [0], [1], [0, 0, 1, 1], [], []>} : vector<4x4xbf16>, vector<4x1024xbf16>, vector<4x1024xf32> -> vector<4x1024xf32>
    %129 = arith.addf %122, %128 : vector<4x1024xf32>
    %c0_94 = arith.constant 0 : index
    %c265 = arith.constant 265 : index
    %130 = vector.load %arg8[%c0_94, %c265] : memref<4x1536xbf16, #tpu.memory_space<vmem>>, vector<4x1024xbf16>
    %c8_95 = arith.constant 8 : index
    %c0_96 = arith.constant 0 : index
    %131 = vector.load %arg2[%c8_95, %c0_96] : memref<9x1024xbf16, #tpu.memory_space<vmem>>, vector<1x1024xbf16>
    %132 = vector.broadcast %131 : vector<1x1024xbf16> to vector<4x1024xbf16>
    %133 = arith.mulf %130, %132 : vector<4x1024xbf16>
    %c0_97 = arith.constant 0 : index
    %c68 = arith.constant 68 : index
    %134 = vector.load %arg4[%c0_97, %c68] : memref<4x108xbf16, #tpu.memory_space<vmem>>, vector<4x4xbf16>
    %cst_98 = arith.constant dense<0.000000e+00> : vector<4x1024xf32>
    %135 = tpu.matmul %134, %133, %cst_98 {dimension_numbers = #tpu.dot_dimension_numbers<[1], [0], [0], [1], [0, 0, 1, 1], [], []>} : vector<4x4xbf16>, vector<4x1024xbf16>, vector<4x1024xf32> -> vector<4x1024xf32>
    %136 = arith.addf %129, %135 : vector<4x1024xf32>
    %c0_99 = arith.constant 0 : index
    %c375 = arith.constant 375 : index
    %137 = vector.load %arg8[%c0_99, %c375] : memref<4x1536xbf16, #tpu.memory_space<vmem>>, vector<4x1024xbf16>
    %c0_100 = arith.constant 0 : index
    %c0_101 = arith.constant 0 : index
    %138 = vector.load %arg2[%c0_100, %c0_101] : memref<9x1024xbf16, #tpu.memory_space<vmem>>, vector<1x1024xbf16>
    %139 = vector.broadcast %138 : vector<1x1024xbf16> to vector<4x1024xbf16>
    %140 = arith.mulf %137, %139 : vector<4x1024xbf16>
    %c0_102 = arith.constant 0 : index
    %c72 = arith.constant 72 : index
    %141 = vector.load %arg4[%c0_102, %c72] : memref<4x108xbf16, #tpu.memory_space<vmem>>, vector<4x4xbf16>
    %cst_103 = arith.constant dense<0.000000e+00> : vector<4x1024xf32>
    %142 = tpu.matmul %141, %140, %cst_103 {dimension_numbers = #tpu.dot_dimension_numbers<[1], [0], [0], [1], [0, 0, 1, 1], [], []>} : vector<4x4xbf16>, vector<4x1024xbf16>, vector<4x1024xf32> -> vector<4x1024xf32>
    %143 = arith.addf %136, %142 : vector<4x1024xf32>
    %c0_104 = arith.constant 0 : index
    %c376 = arith.constant 376 : index
    %144 = vector.load %arg8[%c0_104, %c376] : memref<4x1536xbf16, #tpu.memory_space<vmem>>, vector<4x1024xbf16>
    %c1_105 = arith.constant 1 : index
    %c0_106 = arith.constant 0 : index
    %145 = vector.load %arg2[%c1_105, %c0_106] : memref<9x1024xbf16, #tpu.memory_space<vmem>>, vector<1x1024xbf16>
    %146 = vector.broadcast %145 : vector<1x1024xbf16> to vector<4x1024xbf16>
    %147 = arith.mulf %144, %146 : vector<4x1024xbf16>
    %c0_107 = arith.constant 0 : index
    %c76 = arith.constant 76 : index
    %148 = vector.load %arg4[%c0_107, %c76] : memref<4x108xbf16, #tpu.memory_space<vmem>>, vector<4x4xbf16>
    %cst_108 = arith.constant dense<0.000000e+00> : vector<4x1024xf32>
    %149 = tpu.matmul %148, %147, %cst_108 {dimension_numbers = #tpu.dot_dimension_numbers<[1], [0], [0], [1], [0, 0, 1, 1], [], []>} : vector<4x4xbf16>, vector<4x1024xbf16>, vector<4x1024xf32> -> vector<4x1024xf32>
    %150 = arith.addf %143, %149 : vector<4x1024xf32>
    %c0_109 = arith.constant 0 : index
    %c377 = arith.constant 377 : index
    %151 = vector.load %arg8[%c0_109, %c377] : memref<4x1536xbf16, #tpu.memory_space<vmem>>, vector<4x1024xbf16>
    %c2_110 = arith.constant 2 : index
    %c0_111 = arith.constant 0 : index
    %152 = vector.load %arg2[%c2_110, %c0_111] : memref<9x1024xbf16, #tpu.memory_space<vmem>>, vector<1x1024xbf16>
    %153 = vector.broadcast %152 : vector<1x1024xbf16> to vector<4x1024xbf16>
    %154 = arith.mulf %151, %153 : vector<4x1024xbf16>
    %c0_112 = arith.constant 0 : index
    %c80 = arith.constant 80 : index
    %155 = vector.load %arg4[%c0_112, %c80] : memref<4x108xbf16, #tpu.memory_space<vmem>>, vector<4x4xbf16>
    %cst_113 = arith.constant dense<0.000000e+00> : vector<4x1024xf32>
    %156 = tpu.matmul %155, %154, %cst_113 {dimension_numbers = #tpu.dot_dimension_numbers<[1], [0], [0], [1], [0, 0, 1, 1], [], []>} : vector<4x4xbf16>, vector<4x1024xbf16>, vector<4x1024xf32> -> vector<4x1024xf32>
    %157 = arith.addf %150, %156 : vector<4x1024xf32>
    %c0_114 = arith.constant 0 : index
    %c383 = arith.constant 383 : index
    %158 = vector.load %arg8[%c0_114, %c383] : memref<4x1536xbf16, #tpu.memory_space<vmem>>, vector<4x1024xbf16>
    %c3_115 = arith.constant 3 : index
    %c0_116 = arith.constant 0 : index
    %159 = vector.load %arg2[%c3_115, %c0_116] : memref<9x1024xbf16, #tpu.memory_space<vmem>>, vector<1x1024xbf16>
    %160 = vector.broadcast %159 : vector<1x1024xbf16> to vector<4x1024xbf16>
    %161 = arith.mulf %158, %160 : vector<4x1024xbf16>
    %c0_117 = arith.constant 0 : index
    %c84 = arith.constant 84 : index
    %162 = vector.load %arg4[%c0_117, %c84] : memref<4x108xbf16, #tpu.memory_space<vmem>>, vector<4x4xbf16>
    %cst_118 = arith.constant dense<0.000000e+00> : vector<4x1024xf32>
    %163 = tpu.matmul %162, %161, %cst_118 {dimension_numbers = #tpu.dot_dimension_numbers<[1], [0], [0], [1], [0, 0, 1, 1], [], []>} : vector<4x4xbf16>, vector<4x1024xbf16>, vector<4x1024xf32> -> vector<4x1024xf32>
    %164 = arith.addf %157, %163 : vector<4x1024xf32>
    %c0_119 = arith.constant 0 : index
    %c384 = arith.constant 384 : index
    %165 = vector.load %arg8[%c0_119, %c384] : memref<4x1536xbf16, #tpu.memory_space<vmem>>, vector<4x1024xbf16>
    %c0_120 = arith.constant 0 : index
    %c88 = arith.constant 88 : index
    %166 = vector.load %arg4[%c0_120, %c88] : memref<4x108xbf16, #tpu.memory_space<vmem>>, vector<4x4xbf16>
    %cst_121 = arith.constant dense<0.000000e+00> : vector<4x1024xf32>
    %167 = tpu.matmul %166, %165, %cst_121 {dimension_numbers = #tpu.dot_dimension_numbers<[1], [0], [0], [1], [0, 0, 1, 1], [], []>} : vector<4x4xbf16>, vector<4x1024xbf16>, vector<4x1024xf32> -> vector<4x1024xf32>
    %168 = arith.addf %164, %167 : vector<4x1024xf32>
    %c0_122 = arith.constant 0 : index
    %c385 = arith.constant 385 : index
    %169 = vector.load %arg8[%c0_122, %c385] : memref<4x1536xbf16, #tpu.memory_space<vmem>>, vector<4x1024xbf16>
    %c5_123 = arith.constant 5 : index
    %c0_124 = arith.constant 0 : index
    %170 = vector.load %arg2[%c5_123, %c0_124] : memref<9x1024xbf16, #tpu.memory_space<vmem>>, vector<1x1024xbf16>
    %171 = vector.broadcast %170 : vector<1x1024xbf16> to vector<4x1024xbf16>
    %172 = arith.mulf %169, %171 : vector<4x1024xbf16>
    %c0_125 = arith.constant 0 : index
    %c92 = arith.constant 92 : index
    %173 = vector.load %arg4[%c0_125, %c92] : memref<4x108xbf16, #tpu.memory_space<vmem>>, vector<4x4xbf16>
    %cst_126 = arith.constant dense<0.000000e+00> : vector<4x1024xf32>
    %174 = tpu.matmul %173, %172, %cst_126 {dimension_numbers = #tpu.dot_dimension_numbers<[1], [0], [0], [1], [0, 0, 1, 1], [], []>} : vector<4x4xbf16>, vector<4x1024xbf16>, vector<4x1024xf32> -> vector<4x1024xf32>
    %175 = arith.addf %168, %174 : vector<4x1024xf32>
    %c0_127 = arith.constant 0 : index
    %c391 = arith.constant 391 : index
    %176 = vector.load %arg8[%c0_127, %c391] : memref<4x1536xbf16, #tpu.memory_space<vmem>>, vector<4x1024xbf16>
    %c6_128 = arith.constant 6 : index
    %c0_129 = arith.constant 0 : index
    %177 = vector.load %arg2[%c6_128, %c0_129] : memref<9x1024xbf16, #tpu.memory_space<vmem>>, vector<1x1024xbf16>
    %178 = vector.broadcast %177 : vector<1x1024xbf16> to vector<4x1024xbf16>
    %179 = arith.mulf %176, %178 : vector<4x1024xbf16>
    %c0_130 = arith.constant 0 : index
    %c96 = arith.constant 96 : index
    %180 = vector.load %arg4[%c0_130, %c96] : memref<4x108xbf16, #tpu.memory_space<vmem>>, vector<4x4xbf16>
    %cst_131 = arith.constant dense<0.000000e+00> : vector<4x1024xf32>
    %181 = tpu.matmul %180, %179, %cst_131 {dimension_numbers = #tpu.dot_dimension_numbers<[1], [0], [0], [1], [0, 0, 1, 1], [], []>} : vector<4x4xbf16>, vector<4x1024xbf16>, vector<4x1024xf32> -> vector<4x1024xf32>
    %182 = arith.addf %175, %181 : vector<4x1024xf32>
    %c0_132 = arith.constant 0 : index
    %c392 = arith.constant 392 : index
    %183 = vector.load %arg8[%c0_132, %c392] : memref<4x1536xbf16, #tpu.memory_space<vmem>>, vector<4x1024xbf16>
    %c7_133 = arith.constant 7 : index
    %c0_134 = arith.constant 0 : index
    %184 = vector.load %arg2[%c7_133, %c0_134] : memref<9x1024xbf16, #tpu.memory_space<vmem>>, vector<1x1024xbf16>
    %185 = vector.broadcast %184 : vector<1x1024xbf16> to vector<4x1024xbf16>
    %186 = arith.mulf %183, %185 : vector<4x1024xbf16>
    %c0_135 = arith.constant 0 : index
    %c100 = arith.constant 100 : index
    %187 = vector.load %arg4[%c0_135, %c100] : memref<4x108xbf16, #tpu.memory_space<vmem>>, vector<4x4xbf16>
    %cst_136 = arith.constant dense<0.000000e+00> : vector<4x1024xf32>
    %188 = tpu.matmul %187, %186, %cst_136 {dimension_numbers = #tpu.dot_dimension_numbers<[1], [0], [0], [1], [0, 0, 1, 1], [], []>} : vector<4x4xbf16>, vector<4x1024xbf16>, vector<4x1024xf32> -> vector<4x1024xf32>
    %189 = arith.addf %182, %188 : vector<4x1024xf32>
    %c0_137 = arith.constant 0 : index
    %c393 = arith.constant 393 : index
    %190 = vector.load %arg8[%c0_137, %c393] : memref<4x1536xbf16, #tpu.memory_space<vmem>>, vector<4x1024xbf16>
    %c8_138 = arith.constant 8 : index
    %c0_139 = arith.constant 0 : index
    %191 = vector.load %arg2[%c8_138, %c0_139] : memref<9x1024xbf16, #tpu.memory_space<vmem>>, vector<1x1024xbf16>
    %192 = vector.broadcast %191 : vector<1x1024xbf16> to vector<4x1024xbf16>
    %193 = arith.mulf %190, %192 : vector<4x1024xbf16>
    %c0_140 = arith.constant 0 : index
    %c104 = arith.constant 104 : index
    %194 = vector.load %arg4[%c0_140, %c104] : memref<4x108xbf16, #tpu.memory_space<vmem>>, vector<4x4xbf16>
    %cst_141 = arith.constant dense<0.000000e+00> : vector<4x1024xf32>
    %195 = tpu.matmul %194, %193, %cst_141 {dimension_numbers = #tpu.dot_dimension_numbers<[1], [0], [0], [1], [0, 0, 1, 1], [], []>} : vector<4x4xbf16>, vector<4x1024xbf16>, vector<4x1024xf32> -> vector<4x1024xf32>
    %196 = arith.addf %189, %195 : vector<4x1024xf32>
    %197 = vector.broadcast %1 : vector<4x1xf32> to vector<4x1024xf32>
    %198 = arith.addf %196, %197 : vector<4x1024xf32>
    %cst_142 = arith.constant 0.000000e+00 : f32
    %199 = vector.broadcast %cst_142 : f32 to vector<4x1024xf32>
    %200 = arith.maximumf %198, %199 : vector<4x1024xf32>
    %c0_143 = arith.constant 0 : index
    %c0_144 = arith.constant 0 : index
    %201 = vector.load %arg5[%c0_143, %c0_144] : memref<16x4xbf16, #tpu.memory_space<vmem>>, vector<16x4xbf16>
    %202 = arith.truncf %200 : vector<4x1024xf32> to vector<4x1024xbf16>
    %cst_145 = arith.constant dense<0.000000e+00> : vector<16x1024xf32>
    %203 = tpu.matmul %201, %202, %cst_145 {dimension_numbers = #tpu.dot_dimension_numbers<[1], [0], [0], [1], [0, 0, 1, 1], [], []>} : vector<16x4xbf16>, vector<4x1024xbf16>, vector<16x1024xf32> -> vector<16x1024xf32>
    %204 = vector.broadcast %2 : vector<16x1xf32> to vector<16x1024xf32>
    %205 = arith.addf %203, %204 : vector<16x1024xf32>
    %c0_146 = arith.constant 0 : index
    %c0_147 = arith.constant 0 : index
    %c0_148 = arith.constant 0 : index
    %206 = vector.load %arg1[%c0_146, %c0_147, %c0_148] : memref<1x16x1024xf32, #tpu.memory_space<vmem>>, vector<1x16x1024xf32>
    %207 = vector.shape_cast %206 : vector<1x16x1024xf32> to vector<16x1024xf32>
    %208 = arith.addf %205, %207 : vector<16x1024xf32>
    %cst_149 = arith.constant 0.000000e+00 : f32
    %209 = vector.broadcast %cst_149 : f32 to vector<16x1024xf32>
    %210 = arith.maximumf %208, %209 : vector<16x1024xf32>
    %c0_150 = arith.constant 0 : index
    %c0_151 = arith.constant 0 : index
    %c0_152 = arith.constant 0 : index
    %211 = vector.load %arg7[%c0_150, %c0_151, %c0_152] : memref<1x16x1024xf32, #tpu.memory_space<vmem>>, vector<1x16x1024xf32>
    %212 = vector.shape_cast %211 : vector<1x16x1024xf32> to vector<16x1024xf32>
    %213 = vector.shape_cast %210 : vector<16x1024xf32> to vector<1x16x1024xf32>
    tpu.vector_store %arg7[%c0_150, %c0_151, %c0_152], %213 {strides = array<i32>} : memref<1x16x1024xf32, #tpu.memory_space<vmem>>, vector<1x16x1024xf32>,
    return
  }
  func.func @transform_0(%arg0: i32) -> (i32, i32, i32) {
    %c0_i32 = arith.constant 0 : i32
    %c0_i32_0 = arith.constant 0 : i32
    %c0_i32_1 = arith.constant 0 : i32
    return %arg0, %c0_i32, %c0_i32_0 : i32, i32, i32
  }
  func.func @transform_1(%arg0: i32) -> (i32, i32) {
    %c0_i32 = arith.constant 0 : i32
    %c0_i32_0 = arith.constant 0 : i32
    %c0_i32_1 = arith.constant 0 : i32
    return %c0_i32, %c0_i32_0 : i32, i32
  }
  func.func @transform_2(%arg0: i32) -> (i32, i32) {
    %c0_i32 = arith.constant 0 : i32
    %c0_i32_0 = arith.constant 0 : i32
    %c0_i32_1 = arith.constant 0 : i32
    return %c0_i32, %c0_i32_0 : i32, i32
  }
  func.func @transform_3(%arg0: i32) -> (i32, i32) {
    %c0_i32 = arith.constant 0 : i32
    %c0_i32_0 = arith.constant 0 : i32
    %c0_i32_1 = arith.constant 0 : i32
    return %c0_i32, %c0_i32_0 : i32, i32
  }
  func.func @transform_4(%arg0: i32) -> (i32, i32) {
    %c0_i32 = arith.constant 0 : i32
    %c0_i32_0 = arith.constant 0 : i32
    %c0_i32_1 = arith.constant 0 : i32
    return %c0_i32, %c0_i32_0 : i32, i32
  }
  func.func @transform_5(%arg0: i32) -> (i32, i32) {
    %c0_i32 = arith.constant 0 : i32
    %c0_i32_0 = arith.constant 0 : i32
    %c0_i32_1 = arith.constant 0 : i32
    return %c0_i32, %c0_i32_0 : i32, i32
  }
  func.func @transform_6(%arg0: i32) -> (i32, i32, i32) {
    %c0_i32 = arith.constant 0 : i32
    %c0_i32_0 = arith.constant 0 : i32
    %c0_i32_1 = arith.constant 0 : i32
    return %arg0, %c0_i32, %c0_i32_0 : i32, i32, i32
  }
}

</mosaic_0001>

<llo_original>
// kernel: tpu_custom_call.1
$region0: #{tpu_custom_call.1}
  #allocation0 [shape = 'u32[]', space=smem, size = 0x4, offset = 0x4, fixed_abs, tag = 'smem constant byte address 0x4 - core index']
  #allocation1 [shape = 'u32[144,128]{1,0:T(1,128)}', space=vmem, size = 0x12000, scoped, tag = 'internal scratch']
  #allocation2 [shape = 'bf16[4,1536]{1,0:T(4,128)(2,1)}', space=vmem, size = 0x3000, scoped, tag = 'scratch operand']
  %s0 = inlined_call_operand.hbm [shape: f32[2,16,1024], index: 0, kind: input, shape index: {}]
  %s1 = inlined_call_operand.hbm [shape: bf16[9,1024], index: 1, kind: input, shape index: {}]
  %s2 = inlined_call_operand.vmem [shape: bf16[4,16], index: 2, kind: input, shape index: {}]
  %s3 = inlined_call_operand.vmem [shape: bf16[4,108], index: 3, kind: input, shape index: {}]
  %s4 = inlined_call_operand.vmem [shape: bf16[16,4], index: 4, kind: input, shape index: {}]
  %s5 = inlined_call_operand.vmem [shape: f32[16,3], index: 5, kind: input, shape index: {}]
  %s6 = inlined_call_operand.hbm [shape: f32[2,16,1024], index: 6, kind: output, shape index: {}]
  %s7 = sld [smem:[#allocation0]]
  $region65: #{tpu_custom_call.1} parent=0
    _
  %s9 = ssub.s32 1, %s7
  %s10 = scalar_select 0, %s9, %s7
  $region1: #{tpu_custom_call.1} parent=0
    #allocation3 [shape = 'u8[131072]{0}', space=vmem, size = 0x20000, scoped, tag = 'input window, operand 0']
    #allocation4 [shape = 's32[2]{0}', space=sflag, size = 0x8, scoped, tag = 'scoped memory for tpu_custom_call.1']
    #allocation5 [shape = 's32[2]{0}', space=sflag, size = 0x8, scoped, tag = 'scoped memory for tpu_custom_call.1']
    #allocation6 [shape = 'u8[32768]{0}', space=vmem, size = 0x8000, scoped, tag = 'input window, operand 1, single buffered']
    #allocation7 [shape = 's32[1]{0}', space=sflag, size = 0x4, scoped, tag = 'scoped memory for tpu_custom_call.1']
    #allocation8 [shape = 'u8[131072]{0}', space=vmem, size = 0x20000, scoped, tag = 'output window, operand 0']
    %11 = vsyncpa [#allocation4], 0
    %s12 = scalar_lea.sflag [#allocation4], 1
    %13 = vsyncpa %s12, 0
    %14 = vsyncpa [#allocation7], 0
    %15 = vsyncpa [#allocation5], 0
    %s16 = scalar_lea.sflag [#allocation5], 1
    %17 = vsyncpa %s16, 0
    loop: start=0, step=1, limit=4
    $region2: #{tpu_custom_call.1} parent=1 // loop_pre_header
      _
    $region3: #{tpu_custom_call.1} parent=1 // loop_header
      %s19 = sphi 0, %s23
      %p20 = scmp.ge.s32.totalorder %s19, 4
      %s29 = sphi 0, %s31
      %s32 = sphi 0, %s29
      %s33 = sphi 0, %s32
      %s49 = sphi 0, %s33
      %s53 = sphi 0, %s53
      %s55 = sphi 0, %s53
      %s56 = sphi 0, %s55
      %s70 = sphi 0, %s56
      %s74 = sphi 0, %s74
      %s76 = sphi 0, %s74
      %s77 = sphi 0, %s76
      %s91 = sphi 0, %s77
      %s95 = sphi 0, %s95
      %s97 = sphi 0, %s95
      %s98 = sphi 0, %s97
      %s112 = sphi 0, %s98
      %s116 = sphi 0, %s116
      %s118 = sphi 0, %s116
      %s119 = sphi 0, %s118
      %s133 = sphi 0, %s119
      %s137 = sphi 0, %s137
      %s139 = sphi 0, %s137
      %s140 = sphi 0, %s139
      %s154 = sphi 0, %s140
      %s160 = sphi 0, %s162
      %s163 = sphi 0, %s160
      %s164 = sphi 0, %s163
      %s180 = sphi 0, %s164
    $region4: #{tpu_custom_call.1} parent=1 // loop_header_branch
      %22 = sbr.rel (%p20) target = $region8
    $region5: #{tpu_custom_call.1} parent=1 // loop_body
      %s24 = ssub.s32 %s19, 1
      %s25 = ssub.s32 %s19, 2
      %s26 = sadd.s32 %s19, 1
      %s27 = ssub.s32 %s19, %s26
      %p28 = scmp.eq.s32.totalorder %s27, 0
      %s30 = sadd.s32 %s29, 1
      %s31 = scalar_select %p28, %s29, %s30
      %p34 = pneg %p28
      %p35 = scmp.eq.s32.totalorder %s19, 1
      %p36 = por %p34, %p35
      %p37 = scmp.ne.s32.totalorder %s29, %s32
      %p38 = scmp.eq.s32.totalorder %s19, 0
      %p39 = por %p37, %p38
      %p40 = scmp.ne.s32.totalorder %s29, %s32
      %p41 = scmp.eq.s32.totalorder %s24, 1
      %p42 = por %p40, %p41
      %p43 = scmp.ne.s32.totalorder %s32, %s33
      %p44 = scmp.eq.s32.totalorder %s24, 0
      %p45 = por %p43, %p44
      %p46 = scmp.ne.s32.totalorder %s32, %s33
      %p47 = scmp.eq.s32.totalorder %s25, 1
      %p48 = por %p46, %p47
      %p50 = scmp.ne.s32.totalorder %s33, %s49
      %p51 = scmp.eq.s32.totalorder %s25, 0
      %p52 = por %p50, %p51
      %s54 = sadd.s32 %s53, 1
      %p57 = scmp.eq.s32.totalorder %s19, 1
      %p58 = scmp.ne.s32.totalorder %s53, %s55
      %p59 = scmp.eq.s32.totalorder %s19, 0
      %p60 = por %p58, %p59
      %p61 = scmp.ne.s32.totalorder %s53, %s55
      %p62 = scmp.eq.s32.totalorder %s24, 1
      %p63 = por %p61, %p62
      %p64 = scmp.ne.s32.totalorder %s55, %s56
      %p65 = scmp.eq.s32.totalorder %s24, 0
      %p66 = por %p64, %p65
      %p67 = scmp.ne.s32.totalorder %s55, %s56
      %p68 = scmp.eq.s32.totalorder %s25, 1
      %p69 = por %p67, %p68
      %p71 = scmp.ne.s32.totalorder %s56, %s70
      %p72 = scmp.eq.s32.totalorder %s25, 0
      %p73 = por %p71, %p72
      %s75 = sadd.s32 %s74, 1
      %p78 = scmp.eq.s32.totalorder %s19, 1
      %p79 = scmp.ne.s32.totalorder %s74, %s76
      %p80 = scmp.eq.s32.totalorder %s19, 0
      %p81 = por %p79, %p80
      %p82 = scmp.ne.s32.totalorder %s74, %s76
      %p83 = scmp.eq.s32.totalorder %s24, 1
      %p84 = por %p82, %p83
      %p85 = scmp.ne.s32.totalorder %s76, %s77
      %p86 = scmp.eq.s32.totalorder %s24, 0
      %p87 = por %p85, %p86
      %p88 = scmp.ne.s32.totalorder %s76, %s77
      %p89 = scmp.eq.s32.totalorder %s25, 1
      %p90 = por %p88, %p89
      %p92 = scmp.ne.s32.totalorder %s77, %s91
      %p93 = scmp.eq.s32.totalorder %s25, 0
      %p94 = por %p92, %p93
      %s96 = sadd.s32 %s95, 1
      %p99 = scmp.eq.s32.totalorder %s19, 1
      %p100 = scmp.ne.s32.totalorder %s95, %s97
      %p101 = scmp.eq.s32.totalorder %s19, 0
      %p102 = por %p100, %p101
      %p103 = scmp.ne.s32.totalorder %s95, %s97
      %p104 = scmp.eq.s32.totalorder %s24, 1
      %p105 = por %p103, %p104
      %p106 = scmp.ne.s32.totalorder %s97, %s98
      %p107 = scmp.eq.s32.totalorder %s24, 0
      %p108 = por %p106, %p107
      %p109 = scmp.ne.s32.totalorder %s97, %s98
      %p110 = scmp.eq.s32.totalorder %s25, 1
      %p111 = por %p109, %p110
      %p113 = scmp.ne.s32.totalorder %s98, %s112
      %p114 = scmp.eq.s32.totalorder %s25, 0
      %p115 = por %p113, %p114
      %s117 = sadd.s32 %s116, 1
      %p120 = scmp.eq.s32.totalorder %s19, 1
      %p121 = scmp.ne.s32.totalorder %s116, %s118
      %p122 = scmp.eq.s32.totalorder %s19, 0
      %p123 = por %p121, %p122
      %p124 = scmp.ne.s32.totalorder %s116, %s118
      %p125 = scmp.eq.s32.totalorder %s24, 1
      %p126 = por %p124, %p125
      %p127 = scmp.ne.s32.totalorder %s118, %s119
      %p128 = scmp.eq.s32.totalorder %s24, 0
      %p129 = por %p127, %p128
      %p130 = scmp.ne.s32.totalorder %s118, %s119
      %p131 = scmp.eq.s32.totalorder %s25, 1
      %p132 = por %p130, %p131
      %p134 = scmp.ne.s32.totalorder %s119, %s133
      %p135 = scmp.eq.s32.totalorder %s25, 0
      %p136 = por %p134, %p135
      %s138 = sadd.s32 %s137, 1
      %p141 = scmp.eq.s32.totalorder %s19, 1
      %p142 = scmp.ne.s32.totalorder %s137, %s139
      %p143 = scmp.eq.s32.totalorder %s19, 0
      %p144 = por %p142, %p143
      %p145 = scmp.ne.s32.totalorder %s137, %s139
      %p146 = scmp.eq.s32.totalorder %s24, 1
      %p147 = por %p145, %p146
      %p148 = scmp.ne.s32.totalorder %s139, %s140
      %p149 = scmp.eq.s32.totalorder %s24, 0
      %p150 = por %p148, %p149
      %p151 = scmp.ne.s32.totalorder %s139, %s140
      %p152 = scmp.eq.s32.totalorder %s25, 1
      %p153 = por %p151, %p152
      %p155 = scmp.ne.s32.totalorder %s140, %s154
      %p156 = scmp.eq.s32.totalorder %s25, 0
      %p157 = por %p155, %p156
      %s158 = ssub.s32 %s19, %s26
      %p159 = scmp.eq.s32.totalorder %s158, 0
      %s161 = sadd.s32 %s160, 1
      %s162 = scalar_select %p159, %s160, %s161
      %p165 = pneg %p159
      %p166 = scmp.eq.s32.totalorder %s19, 1
      %p167 = por %p165, %p166
      %p168 = scmp.ne.s32.totalorder %s160, %s163
      %p169 = scmp.eq.s32.totalorder %s19, 0
      %p170 = por %p168, %p169
      %p171 = scmp.ne.s32.totalorder %s160, %s163
      %p172 = scmp.eq.s32.totalorder %s24, 1
      %p173 = por %p171, %p172
      %p174 = scmp.ne.s32.totalorder %s163, %s164
      %p175 = scmp.eq.s32.totalorder %s24, 0
      %p176 = por %p174, %p175
      %p177 = scmp.ne.s32.totalorder %s163, %s164
      %p178 = scmp.eq.s32.totalorder %s25, 1
      %p179 = por %p177, %p178
      %p181 = scmp.ne.s32.totalorder %s164, %s180
      %p182 = scmp.eq.s32.totalorder %s25, 0
      %p183 = por %p181, %p182
      %p184 = scmp.le.s32.totalorder 1, %s19
      %p185 = scmp.lt.s32.totalorder %s19, 3
      %p186 = pnand %p184, %p185
      %p187 = pneg %p186
      // Predicated region
      $region9: #{tpu_custom_call.1} parent=5 // pred_check
        _
      $region10: #{tpu_custom_call.1} parent=5 // pred_check_branch
        %189 = sbr.rel (%p186) target = $region12
      $region11: #{tpu_custom_call.1} parent=5 // pred_region
        %s190 = ssub.s32 %s19, 1
        // Predicated region
        $region13: #{tpu_custom_call.1} parent=11 // pred_check
          %p191 = pneg %p66
        $region14: #{tpu_custom_call.1} parent=11 // pred_check_branch
          %193 = sbr.rel (%p191) target = $region16
        $region15: #{tpu_custom_call.1} parent=11 // pred_region
          %s195 = ssub.s32 1024, 1024
          %196 = vsyncadd [#allocation7], %s195
          %s197 = sshll.u32 [#allocation6], 4
          %s198 = int_to_ptr.vmem [resolvable:$true] %s197
          %203 = dma.hbm_to_vmem [thread:$0]  %s1, 1024, %s198, [#allocation7], 512, 512, 32
        $region16: #{tpu_custom_call.1} parent=11 // pred_fallthru
          _
        // Predicated region
        $region17: #{tpu_custom_call.1} parent=11 // pred_check
          %p204 = pneg %p87
        $region18: #{tpu_custom_call.1} parent=11 // pred_check_branch
          %206 = sbr.rel (%p204) target = $region20
        $region19: #{tpu_custom_call.1} parent=11 // pred_region
          _
        $region20: #{tpu_custom_call.1} parent=11 // pred_fallthru
          _
        // Predicated region
        $region21: #{tpu_custom_call.1} parent=11 // pred_check
          %p207 = pneg %p108
        $region22: #{tpu_custom_call.1} parent=11 // pred_check_branch
          %209 = sbr.rel (%p207) target = $region24
        $region23: #{tpu_custom_call.1} parent=11 // pred_region
          _
        $region24: #{tpu_custom_call.1} parent=11 // pred_fallthru
          _
        // Predicated region
        $region25: #{tpu_custom_call.1} parent=11 // pred_check
          %p210 = pneg %p129
        $region26: #{tpu_custom_call.1} parent=11 // pred_check_branch
          %212 = sbr.rel (%p210) target = $region28
        $region27: #{tpu_custom_call.1} parent=11 // pred_region
          _
        $region28: #{tpu_custom_call.1} parent=11 // pred_fallthru
          _
        // Predicated region
        $region29: #{tpu_custom_call.1} parent=11 // pred_check
          %p213 = pneg %p150
        $region30: #{tpu_custom_call.1} parent=11 // pred_check_branch
          %215 = sbr.rel (%p213) target = $region32
        $region31: #{tpu_custom_call.1} parent=11 // pred_region
          _
        $region32: #{tpu_custom_call.1} parent=11 // pred_fallthru
          _
      $region12: #{tpu_custom_call.1} parent=5 // pred_fallthru
        _
      %p216 = scmp.lt.s32.totalorder %s19, 2
      // Predicated region
      $region33: #{tpu_custom_call.1} parent=5 // pred_check
        %p217 = pneg %p216
      $region34: #{tpu_custom_call.1} parent=5 // pred_check_branch
        %219 = sbr.rel (%p217) target = $region36
      $region35: #{tpu_custom_call.1} parent=5 // pred_region
        // Predicated region
        $region37: #{tpu_custom_call.1} parent=35 // pred_check
          %p220 = pneg %p39
        $region38: #{tpu_custom_call.1} parent=35 // pred_check_branch
          %222 = sbr.rel (%p220) target = $region40
        $region39: #{tpu_custom_call.1} parent=35 // pred_region
          %s223 = sand.u32 %s29, 1
          %s224 = scalar_lea.sflag [#allocation4], %s223
          %s225 = sand.u32 %s29, 1
          %s226 = smul.addr %s225, 128
          %s227 = scalar_lea.vmem [#allocation3], %s226
          %s229 = ssub.s32 2048, 2048
          %230 = vsyncadd %s224, %s229
          %s231 = smul.addr %s19, 16
          %s232 = smul.addr %s231, 128
          %s233 = scalar_lea.hbm %s0, %s232
          %s234 = sshll.u32 %s227, 4
          %s235 = int_to_ptr.vmem [resolvable:$true] %s234
          %240 = dma.hbm_to_vmem [thread:$0]  %s233, 2048, %s235, %s224, 1024, 1024, 64
        $region40: #{tpu_custom_call.1} parent=35 // pred_fallthru
          _
      $region36: #{tpu_custom_call.1} parent=5 // pred_fallthru
        _
      %p241 = scmp.le.s32.totalorder 1, %s19
      %p242 = scmp.lt.s32.totalorder %s19, 3
      %p243 = pnand %p241, %p242
      %p244 = pneg %p243
      // Predicated region
      $region41: #{tpu_custom_call.1} parent=5 // pred_check
        _
      $region42: #{tpu_custom_call.1} parent=5 // pred_check_branch
        %246 = sbr.rel (%p243) target = $region44
      $region43: #{tpu_custom_call.1} parent=5 // pred_region
        %s247 = ssub.s32 %s19, 1
        %s248 = sand.u32 %s32, 1
        %s249 = scalar_lea.sflag [#allocation4], %s248
        %s250 = sand.u32 %s32, 1
        %s251 = smul.addr %s250, 128
        %s252 = scalar_lea.vmem [#allocation3], %s251
        // Predicated region
        $region45: #{tpu_custom_call.1} parent=43 // pred_check
          %p253 = pneg %p45
        $region46: #{tpu_custom_call.1} parent=43 // pred_check_branch
          %255 = sbr.rel (%p253) target = $region48
        $region47: #{tpu_custom_call.1} parent=43 // pred_region
          %256 = dma.done %s249, 2048
        $region48: #{tpu_custom_call.1} parent=43 // pred_fallthru
          _
        // Predicated region
        $region49: #{tpu_custom_call.1} parent=43 // pred_check
          %p257 = pneg %p66
        $region50: #{tpu_custom_call.1} parent=43 // pred_check_branch
          %259 = sbr.rel (%p257) target = $region52
        $region51: #{tpu_custom_call.1} parent=43 // pred_region
          %260 = dma.done [#allocation7], 1024
        $region52: #{tpu_custom_call.1} parent=43 // pred_fallthru
          _
        %s261 = sand.u32 %s32, 1
        %s262 = scalar_lea.sflag [#allocation4], %s261
        %s263 = sand.u32 %s32, 1
        %s264 = smul.addr %s263, 128
        %s265 = scalar_lea.vmem [#allocation3], %s264
        %p266 = pneg %p45
        %p267 = pneg %p42
        %p268 = pneg %p66
        %p269 = pneg %p63
        %p270 = pneg %p87
        %p271 = pneg %p84
        %p272 = pneg %p108
        %p273 = pneg %p105
        %p274 = pneg %p129
        %p275 = pneg %p126
        %p276 = pneg %p150
        %p277 = pneg %p147
        %p278 = pneg %p176
        %p279 = pneg %p173
        %s280 = sand.u32 %s163, 1
        %s281 = scalar_lea.sflag [#allocation5], %s280
        %s282 = sand.u32 %s163, 1
        %s283 = smul.addr %s282, 128
        %s284 = scalar_lea.vmem [#allocation8], %s283
        %v286 = vld [vmem:[%s5] sm:$0xf]
        %v287 = vld [vmem:[%s5] sm:$0xff]
        %v288 = vld [vmem:[%s5 + $0x8] sm:$0xff]
        %v289 = vld [vmem:[%s252] sm:$0xff]
        %v290 = vld [vmem:[%s252 + $0x8] sm:$0xff]
        %v291 = vld [vmem:[%s252 + $0x10] sm:$0xff]
        %v292 = vld [vmem:[%s252 + $0x18] sm:$0xff]
        %v293 = vld [vmem:[%s252 + $0x20] sm:$0xff]
        %v294 = vld [vmem:[%s252 + $0x28] sm:$0xff]
        %v295 = vld [vmem:[%s252 + $0x30] sm:$0xff]
        %v296 = vld [vmem:[%s252 + $0x38] sm:$0xff]
        %v297 = vld [vmem:[%s252 + $0x40] sm:$0xff]
        %v298 = vld [vmem:[%s252 + $0x48] sm:$0xff]
        %v299 = vld [vmem:[%s252 + $0x50] sm:$0xff]
        %v300 = vld [vmem:[%s252 + $0x58] sm:$0xff]
        %v301 = vld [vmem:[%s252 + $0x60] sm:$0xff]
        %v302 = vld [vmem:[%s252 + $0x68] sm:$0xff]
        %v303 = vld [vmem:[%s252 + $0x70] sm:$0xff]
        %v304 = vld [vmem:[%s252 + $0x78] sm:$0xff]
        %v305 = vpack.c.bf16 %v297, %v289
        %v306 = vpack.c.bf16 %v298, %v290
        %v307 = vpack.c.bf16 %v299, %v291
        %v308 = vpack.c.bf16 %v300, %v292
        %v309 = vpack.c.bf16 %v301, %v293
        %v310 = vpack.c.bf16 %v302, %v294
        %v311 = vpack.c.bf16 %v303, %v295
        %v312 = vpack.c.bf16 %v304, %v296
        %v313 = vld [vmem:[%s2] sm:$0x3]
        %315 = vset.pattern.permute.xlu0 0
        %316 = vperm.xlu0 %315, %v286
        %v317 = vpop.permute.xlu0 %316
        %vm319 = vcmask 130048
        %v321 = vsel %vm319, %v313, 0
        %323 = vmatprep.subr.bf16.mxu0 %v306
        %324 = vmatpush1.bf16.msra.mxu0 %v305
        %325 = vmatprep.subr.bf16.mxu0 0
        %326 = vmatpush1.bf16.msra.mxu0 0
        %327 = vmatprep.subr.bf16.mxu0 0
        %328 = vmatpush1.bf16.msra.mxu0 0
        %329 = vmatprep.subr.bf16.mxu0 0
        %330 = vmatpush1.bf16.msra.mxu0 0
        %331 = vmatprep.subr.bf16.mxu0 0
        %332 = vmatpush1.bf16.msra.mxu0 0
        %333 = vmatprep.subr.bf16.mxu0 0
        %334 = vmatpush1.bf16.msra.mxu0 0
        %335 = vmatprep.subr.bf16.mxu0 0
        %336 = vmatpush1.bf16.msra.mxu0 0
        %337 = vmatprep.subr.bf16.mxu0 0
        %338 = vmatpush1.bf16.msra.mxu0 0
        %339 = vmatprep.subr.bf16.mxu0 0
        %340 = vmatpush1.bf16.msra.mxu0 0
        %341 = vmatprep.subr.bf16.mxu0 0
        %342 = vmatpush1.bf16.msra.mxu0 0
        %343 = vmatprep.subr.bf16.mxu0 0
        %344 = vmatpush1.bf16.msra.mxu0 0
        %345 = vmatprep.subr.bf16.mxu0 0
        %346 = vmatpush1.bf16.msra.mxu0 0
        %347 = vmatprep.subr.bf16.mxu0 0
        %348 = vmatpush1.bf16.msra.mxu0 0
        %349 = vmatprep.subr.bf16.mxu0 0
        %350 = vmatpush1.bf16.msra.mxu0 0
        %351 = vmatprep.subr.bf16.mxu0 0
        %352 = vmatpush1.bf16.msra.mxu0 0
        %353 = vmatprep.subr.bf16.mxu0 0
        %354 = vmatpush1.bf16.msra.mxu0 0
        %355 = vmatprep.mubr.bf16.mxu0 0
        %356 = vmatmul.mubr.bf16.gmra.mrb[0].mxu0 %v321
        %v357 = vpop.f32.mrb[0].mxu0
        %v358 = vadd.f32 %v317, %v357
        %v359 = vpop.f32.mrb[0].mxu0
        %v360 = vadd.f32 %v317, %v359
        %v361 = vpop.f32.mrb[0].mxu0
        %v362 = vpop.f32.mrb[0].mxu0
        %363 = vdwg.mxu0
        %364 = vmatprep.subr.bf16.mxu0 %v308
        %365 = vmatpush1.bf16.msra.mxu0 %v307
        %366 = vmatprep.subr.bf16.mxu0 0
        %367 = vmatpush1.bf16.msra.mxu0 0
        %368 = vmatprep.subr.bf16.mxu0 0
        %369 = vmatpush1.bf16.msra.mxu0 0
        %370 = vmatprep.subr.bf16.mxu0 0
        %371 = vmatpush1.bf16.msra.mxu0 0
        %372 = vmatprep.subr.bf16.mxu0 0
        %373 = vmatpush1.bf16.msra.mxu0 0
        %374 = vmatprep.subr.bf16.mxu0 0
        %375 = vmatpush1.bf16.msra.mxu0 0
        %376 = vmatprep.subr.bf16.mxu0 0
        %377 = vmatpush1.bf16.msra.mxu0 0
        %378 = vmatprep.subr.bf16.mxu0 0
        %379 = vmatpush1.bf16.msra.mxu0 0
        %380 = vmatprep.subr.bf16.mxu0 0
        %381 = vmatpush1.bf16.msra.mxu0 0
        %382 = vmatprep.subr.bf16.mxu0 0
        %383 = vmatpush1.bf16.msra.mxu0 0
        %384 = vmatprep.subr.bf16.mxu0 0
        %385 = vmatpush1.bf16.msra.mxu0 0
        %386 = vmatprep.subr.bf16.mxu0 0
        %387 = vmatpush1.bf16.msra.mxu0 0
        %388 = vmatprep.subr.bf16.mxu0 0
        %389 = vmatpush1.bf16.msra.mxu0 0
        %390 = vmatprep.subr.bf16.mxu0 0
        %391 = vmatpush1.bf16.msra.mxu0 0
        %392 = vmatprep.subr.bf16.mxu0 0
        %393 = vmatpush1.bf16.msra.mxu0 0
        %394 = vmatprep.subr.bf16.mxu0 0
        %395 = vmatpush1.bf16.msra.mxu0 0
        %396 = vmatprep.mubr.bf16.mxu0 0
        %397 = vmatmul.mubr.bf16.gmra.mrb[0].mxu0 %v321
        %v398 = vpop.f32.mrb[0].mxu0
        %v399 = vadd.f32 %v317, %v398
        %v400 = vpop.f32.mrb[0].mxu0
        %v401 = vadd.f32 %v317, %v400
        %v402 = vpop.f32.mrb[0].mxu0
        %v403 = vpop.f32.mrb[0].mxu0
        %404 = vdwg.mxu0
        %405 = vmatprep.subr.bf16.mxu0 %v310
        %406 = vmatpush1.bf16.msra.mxu0 %v309
        %407 = vmatprep.subr.bf16.mxu0 0
        %408 = vmatpush1.bf16.msra.mxu0 0
        %409 = vmatprep.subr.bf16.mxu0 0
        %410 = vmatpush1.bf16.msra.mxu0 0
        %411 = vmatprep.subr.bf16.mxu0 0
        %412 = vmatpush1.bf16.msra.mxu0 0
        %413 = vmatprep.subr.bf16.mxu0 0
        %414 = vmatpush1.bf16.msra.mxu0 0
        %415 = vmatprep.subr.bf16.mxu0 0
        %416 = vmatpush1.bf16.msra.mxu0 0
        %417 = vmatprep.subr.bf16.mxu0 0
        %418 = vmatpush1.bf16.msra.mxu0 0
        %419 = vmatprep.subr.bf16.mxu0 0
        %420 = vmatpush1.bf16.msra.mxu0 0
        %421 = vmatprep.subr.bf16.mxu0 0
        %422 = vmatpush1.bf16.msra.mxu0 0
        %423 = vmatprep.subr.bf16.mxu0 0
        %424 = vmatpush1.bf16.msra.mxu0 0
        %425 = vmatprep.subr.bf16.mxu0 0
        %426 = vmatpush1.bf16.msra.mxu0 0
        %427 = vmatprep.subr.bf16.mxu0 0
        %428 = vmatpush1.bf16.msra.mxu0 0
        %429 = vmatprep.subr.bf16.mxu0 0
        %430 = vmatpush1.bf16.msra.mxu0 0
        %431 = vmatprep.subr.bf16.mxu0 0
        %432 = vmatpush1.bf16.msra.mxu0 0
        %433 = vmatprep.subr.bf16.mxu0 0
        %434 = vmatpush1.bf16.msra.mxu0 0
        %435 = vmatprep.subr.bf16.mxu0 0
        %436 = vmatpush1.bf16.msra.mxu0 0
        %437 = vmatprep.mubr.bf16.mxu0 0
        %438 = vmatmul.mubr.bf16.gmra.mrb[0].mxu0 %v321
        %v439 = vpop.f32.mrb[0].mxu0
        %v440 = vadd.f32 %v317, %v439
        %v441 = vpop.f32.mrb[0].mxu0
        %v442 = vadd.f32 %v317, %v441
        %v443 = vpop.f32.mrb[0].mxu0
        %v444 = vpop.f32.mrb[0].mxu0
        %445 = vdwg.mxu0
        %446 = vmatprep.subr.bf16.mxu0 %v312
        %447 = vmatpush1.bf16.msra.mxu0 %v311
        %448 = vmatprep.subr.bf16.mxu0 0
        %449 = vmatpush1.bf16.msra.mxu0 0
        %450 = vmatprep.subr.bf16.mxu0 0
        %451 = vmatpush1.bf16.msra.mxu0 0
        %452 = vmatprep.subr.bf16.mxu0 0
        %453 = vmatpush1.bf16.msra.mxu0 0
        %454 = vmatprep.subr.bf16.mxu0 0
        %455 = vmatpush1.bf16.msra.mxu0 0
        %456 = vmatprep.subr.bf16.mxu0 0
        %457 = vmatpush1.bf16.msra.mxu0 0
        %458 = vmatprep.subr.bf16.mxu0 0
        %459 = vmatpush1.bf16.msra.mxu0 0
        %460 = vmatprep.subr.bf16.mxu0 0
        %461 = vmatpush1.bf16.msra.mxu0 0
        %462 = vmatprep.subr.bf16.mxu0 0
        %463 = vmatpush1.bf16.msra.mxu0 0
        %464 = vmatprep.subr.bf16.mxu0 0
        %465 = vmatpush1.bf16.msra.mxu0 0
        %466 = vmatprep.subr.bf16.mxu0 0
        %467 = vmatpush1.bf16.msra.mxu0 0
        %468 = vmatprep.subr.bf16.mxu0 0
        %469 = vmatpush1.bf16.msra.mxu0 0
        %470 = vmatprep.subr.bf16.mxu0 0
        %471 = vmatpush1.bf16.msra.mxu0 0
        %472 = vmatprep.subr.bf16.mxu0 0
        %473 = vmatpush1.bf16.msra.mxu0 0
        %474 = vmatprep.subr.bf16.mxu0 0
        %475 = vmatpush1.bf16.msra.mxu0 0
        %476 = vmatprep.subr.bf16.mxu0 0
        %477 = vmatpush1.bf16.msra.mxu0 0
        %478 = vmatprep.mubr.bf16.mxu0 0
        %479 = vmatmul.mubr.bf16.gmra.mrb[0].mxu0 %v321
        %v480 = vpop.f32.mrb[0].mxu0
        %v481 = vadd.f32 %v317, %v480
        %v482 = vpop.f32.mrb[0].mxu0
        %v483 = vadd.f32 %v317, %v482
        %v484 = vpop.f32.mrb[0].mxu0
        %v485 = vpop.f32.mrb[0].mxu0
        %486 = vdwg.mxu0
        %v487 = vmax.f32 %v358, 0.0
        %v488 = vmax.f32 %v360, 0.0
        %v489 = vmax.f32 %v399, 0.0
        %v490 = vmax.f32 %v401, 0.0
        %v491 = vmax.f32 %v440, 0.0
        %v492 = vmax.f32 %v442, 0.0
        %v493 = vmax.f32 %v481, 0.0
        %v494 = vmax.f32 %v483, 0.0
        %495 = vst [vmem:[#allocation2] sm:$0xf] 0
        %496 = vst [vmem:[#allocation2 + $0x14] sm:$0xf] 0
        %v497 = vpack.c.bf16 %v487, %v487
        %v498 = vpack.c.bf16 %v488, %v488
        %v499 = vpack.c.bf16 %v489, %v489
        %v500 = vpack.c.bf16 %v490, %v490
        %v501 = vpack.c.bf16 %v491, %v491
        %v502 = vpack.c.bf16 %v492, %v492
        %v503 = vpack.c.bf16 %v493, %v493
        %v504 = vpack.c.bf16 %v494, %v494
        %v513 = vcombine.low %v497, %v498
        %v514 = vcombine.low %v499, %v500
        %v516 = vunpack.c.l.s4 1983009808
        %v517 = vunpack.c.0.s8 %v516
        %v518 = vlaneseq
        %v519 = vshrl.u32 %v518, 7
        %v520 = vsub.s32 %v517, %v519
        %v521 = vrot.slane %v513, %v520
        %v523 = vunpack.c.l.s4 1983009808
        %v524 = vunpack.c.0.s8 %v523
        %v525 = vlaneseq
        %v526 = vshrl.u32 %v525, 7
        %v527 = vsub.s32 %v524, %v526
        %v528 = vrot.slane %v514, %v527
        %v529 = vcombine.low %v521, %v528
        %v530 = vcombine.low %v501, %v502
        %v531 = vcombine.low %v503, %v504
        %v533 = vunpack.c.l.s4 1983009808
        %v534 = vunpack.c.0.s8 %v533
        %v535 = vlaneseq
        %v536 = vshrl.u32 %v535, 7
        %v537 = vsub.s32 %v534, %v536
        %v538 = vrot.slane %v530, %v537
        %v540 = vunpack.c.l.s4 1983009808
        %v541 = vunpack.c.0.s8 %v540
        %v542 = vlaneseq
        %v543 = vshrl.u32 %v542, 7
        %v544 = vsub.s32 %v541, %v543
        %v545 = vrot.slane %v531, %v544
        %v546 = vcombine.low %v538, %v545
        %549 = vst [vmem:[#allocation2 + $0x4] sm:$0xff] %v529
        %550 = vst [vmem:[#allocation2 + $0xc] sm:$0xff] %v546
        %v551 = vld [vmem:[#allocation2] sm:$0xff]
        %v552 = vld [vmem:[#allocation2 + $0x8] sm:$0xff]
        %v553 = vld [vmem:[#allocation2 + $0x10] sm:$0x3]
        %v554 = vld [vmem:[#allocation6] sm:$0x11]
        %v555 = vld [vmem:[#allocation6 + $0x8] sm:$0x11]
        %v556 = vld [vmem:[#allocation6 + $0x10] sm:$0x11]
        %v557 = vld [vmem:[#allocation6 + $0x18] sm:$0x11]
        %v562 = vunpack.c.l.b16 %v554
        %v563 = vunpack.c.h.b16 %v554
        %v564 = vunpack.c.l.b16 %v555
        %v565 = vunpack.c.h.b16 %v555
        %v566 = vunpack.c.l.b16 %v556
        %v567 = vunpack.c.h.b16 %v556
        %v568 = vunpack.c.l.b16 %v557
        %v569 = vunpack.c.h.b16 %v557
        %v570 = vpack.c.b16 %v562, %v562
        %v571 = vpack.c.b16 %v563, %v563
        %v572 = vpack.c.b16 %v564, %v564
        %v573 = vpack.c.b16 %v565, %v565
        %v574 = vpack.c.b16 %v566, %v566
        %v575 = vpack.c.b16 %v567, %v567
        %v576 = vpack.c.b16 %v568, %v568
        %v577 = vpack.c.b16 %v569, %v569
        %v579 = vpack.i.b16 %v570, %v570
        %v581 = vlaneseq
        %v582 = vshrl.u32 %v581, 7
        %v583 = vsub.s32 0, %v582
        %v584 = vrot.slane %v579, %v583
        %v586 = vpack.i.b16 %v571, %v571
        %v588 = vlaneseq
        %v589 = vshrl.u32 %v588, 7
        %v590 = vsub.s32 0, %v589
        %v591 = vrot.slane %v586, %v590
        %v593 = vpack.i.b16 %v572, %v572
        %v595 = vlaneseq
        %v596 = vshrl.u32 %v595, 7
        %v597 = vsub.s32 0, %v596
        %v598 = vrot.slane %v593, %v597
        %v600 = vpack.i.b16 %v573, %v573
        %v602 = vlaneseq
        %v603 = vshrl.u32 %v602, 7
        %v604 = vsub.s32 0, %v603
        %v605 = vrot.slane %v600, %v604
        %v607 = vpack.i.b16 %v574, %v574
        %v609 = vlaneseq
        %v610 = vshrl.u32 %v609, 7
        %v611 = vsub.s32 0, %v610
        %v612 = vrot.slane %v607, %v611
        %v614 = vpack.i.b16 %v575, %v575
        %v616 = vlaneseq
        %v617 = vshrl.u32 %v616, 7
        %v618 = vsub.s32 0, %v617
        %v619 = vrot.slane %v614, %v618
        %v621 = vpack.i.b16 %v576, %v576
        %v623 = vlaneseq
        %v624 = vshrl.u32 %v623, 7
        %v625 = vsub.s32 0, %v624
        %v626 = vrot.slane %v621, %v625
        %v628 = vpack.i.b16 %v577, %v577
        %v630 = vlaneseq
        %v631 = vshrl.u32 %v630, 7
        %v632 = vsub.s32 0, %v631
        %v633 = vrot.slane %v628, %v632
        %v642 = vcombine.low %v584, %v591
        %v643 = vcombine.low %v598, %v605
        %v645 = vunpack.c.l.s4 1983009808
        %v646 = vunpack.c.0.s8 %v645
        %v647 = vlaneseq
        %v648 = vshrl.u32 %v647, 7
        %v649 = vsub.s32 %v646, %v648
        %v650 = vrot.slane %v642, %v649
        %v652 = vunpack.c.l.s4 1983009808
        %v653 = vunpack.c.0.s8 %v652
        %v654 = vlaneseq
        %v655 = vshrl.u32 %v654, 7
        %v656 = vsub.s32 %v653, %v655
        %v657 = vrot.slane %v643, %v656
        %v658 = vcombine.low %v650, %v657
        %v659 = vcombine.low %v612, %v619
        %v660 = vcombine.low %v626, %v633
        %v662 = vunpack.c.l.s4 1983009808
        %v663 = vunpack.c.0.s8 %v662
        %v664 = vlaneseq
        %v665 = vshrl.u32 %v664, 7
        %v666 = vsub.s32 %v663, %v665
        %v667 = vrot.slane %v659, %v666
        %v669 = vunpack.c.l.s4 1983009808
        %v670 = vunpack.c.0.s8 %v669
        %v671 = vlaneseq
        %v672 = vshrl.u32 %v671, 7
        %v673 = vsub.s32 %v670, %v672
        %v674 = vrot.slane %v660, %v673
        %v675 = vcombine.low %v667, %v674
        %676 = vrot.lane.b32.xlu0 %v658, 119
        %v677 = vpop.permute.xlu0 %676
        %678 = vrot.lane.b32.xlu0 %v675, 119
        %v679 = vpop.permute.xlu0 %678
        %v680 = vrot.slane %v677, 6
        %v681 = vrot.slane %v679, 6
        %vm682 = vcmask 973824
        %v683 = vsel %vm682, %v680, %v677
        %vm684 = vcmask 1041408
        %v685 = vsel %vm684, %v680, %v681
        %v686 = vsel %vm682, %v685, %v679
        %v690 = vmul.bf16 %v551, %v683
        %v691 = vmul.bf16 %v552, %v686
        %v692 = vmul.bf16 %v553, %v681
        %v693 = vld [vmem:[%s3] sm:$0x3]
        %v694 = vshrl.u32 %v570, 16
        %v695 = vpack.i.b16 %v694, %v694
        %v697 = vlaneseq
        %v698 = vshrl.u32 %v697, 7
        %v699 = vsub.s32 0, %v698
        %v700 = vrot.slane %v695, %v699
        %v701 = vshrl.u32 %v571, 16
        %v702 = vpack.i.b16 %v701, %v701
        %v704 = vlaneseq
        %v705 = vshrl.u32 %v704, 7
        %v706 = vsub.s32 0, %v705
        %v707 = vrot.slane %v702, %v706
        %v708 = vshrl.u32 %v572, 16
        %v709 = vpack.i.b16 %v708, %v708
        %v711 = vlaneseq
        %v712 = vshrl.u32 %v711, 7
        %v713 = vsub.s32 0, %v712
        %v714 = vrot.slane %v709, %v713
        %v715 = vshrl.u32 %v573, 16
        %v716 = vpack.i.b16 %v715, %v715
        %v718 = vlaneseq
        %v719 = vshrl.u32 %v718, 7
        %v720 = vsub.s32 0, %v719
        %v721 = vrot.slane %v716, %v720
        %v722 = vshrl.u32 %v574, 16
        %v723 = vpack.i.b16 %v722, %v722
        %v725 = vlaneseq
        %v726 = vshrl.u32 %v725, 7
        %v727 = vsub.s32 0, %v726
        %v728 = vrot.slane %v723, %v727
        %v729 = vshrl.u32 %v575, 16
        %v730 = vpack.i.b16 %v729, %v729
        %v732 = vlaneseq
        %v733 = vshrl.u32 %v732, 7
        %v734 = vsub.s32 0, %v733
        %v735 = vrot.slane %v730, %v734
        %v736 = vshrl.u32 %v576, 16
        %v737 = vpack.i.b16 %v736, %v736
        %v739 = vlaneseq
        %v740 = vshrl.u32 %v739, 7
        %v741 = vsub.s32 0, %v740
        %v742 = vrot.slane %v737, %v741
        %v743 = vshrl.u32 %v577, 16
        %v744 = vpack.i.b16 %v743, %v743
        %v746 = vlaneseq
        %v747 = vshrl.u32 %v746, 7
        %v748 = vsub.s32 0, %v747
        %v749 = vrot.slane %v744, %v748
        %v758 = vcombine.low %v700, %v707
        %v759 = vcombine.low %v714, %v721
        %v761 = vunpack.c.l.s4 1983009808
        %v762 = vunpack.c.0.s8 %v761
        %v763 = vlaneseq
        %v764 = vshrl.u32 %v763, 7
        %v765 = vsub.s32 %v762, %v764
        %v766 = vrot.slane %v758, %v765
        %v768 = vunpack.c.l.s4 1983009808
        %v769 = vunpack.c.0.s8 %v768
        %v770 = vlaneseq
        %v771 = vshrl.u32 %v770, 7
        %v772 = vsub.s32 %v769, %v771
        %v773 = vrot.slane %v759, %v772
        %v774 = vcombine.low %v766, %v773
        %v775 = vcombine.low %v728, %v735
        %v776 = vcombine.low %v742, %v749
        %v778 = vunpack.c.l.s4 1983009808
        %v779 = vunpack.c.0.s8 %v778
        %v780 = vlaneseq
        %v781 = vshrl.u32 %v780, 7
        %v782 = vsub.s32 %v779, %v781
        %v783 = vrot.slane %v775, %v782
        %v785 = vunpack.c.l.s4 1983009808
        %v786 = vunpack.c.0.s8 %v785
        %v787 = vlaneseq
        %v788 = vshrl.u32 %v787, 7
        %v789 = vsub.s32 %v786, %v788
        %v790 = vrot.slane %v776, %v789
        %v791 = vcombine.low %v783, %v790
        %792 = vrot.lane.b32.xlu0 %v774, 120
        %v793 = vpop.permute.xlu0 %792
        %794 = vrot.lane.b32.xlu0 %v791, 120
        %v795 = vpop.permute.xlu0 %794
        %v796 = vrot.slane %v793, 6
        %v797 = vrot.slane %v795, 6
        %vm798 = vcmask 982016
        %v799 = vsel %vm798, %v796, %v793
        %v800 = vsel %vm684, %v796, %v797
        %v801 = vsel %vm798, %v800, %v795
        %v805 = vmul.bf16 %v551, %v799
        %v806 = vmul.bf16 %v552, %v801
        %v807 = vmul.bf16 %v553, %v797
        %v810 = vunpack.c.l.s4 1983009808
        %v811 = vunpack.c.0.s8 %v810
        %v812 = vlaneseq
        %v813 = vshrl.u32 %v812, 7
        %v814 = vsub.s32 %v811, %v813
        %v815 = vrot.slane %v693, %v814
        %816 = vrot.lane.b32.xlu0 %v815, 124
        %v817 = vpop.permute.xlu0 %816
        %v821 = vcombine.high %v805, %v805
        %v823 = vunpack.c.l.s4 1983009808
        %v824 = vunpack.c.0.s8 %v823
        %v825 = vlaneseq
        %v826 = vshrl.u32 %v825, 7
        %v827 = vsub.s32 %v824, %v826
        %v828 = vrot.slane %v805, %v827
        %v830 = vunpack.c.l.s4 1983009808
        %v831 = vunpack.c.0.s8 %v830
        %v832 = vlaneseq
        %v833 = vshrl.u32 %v832, 7
        %v834 = vsub.s32 %v831, %v833
        %v835 = vrot.slane %v821, %v834
        %v836 = vcombine.high %v828, %v828
        %v837 = vcombine.high %v835, %v835
        %v838 = vcombine.high %v806, %v806
        %v840 = vunpack.c.l.s4 1983009808
        %v841 = vunpack.c.0.s8 %v840
        %v842 = vlaneseq
        %v843 = vshrl.u32 %v842, 7
        %v844 = vsub.s32 %v841, %v843
        %v845 = vrot.slane %v806, %v844
        %v847 = vunpack.c.l.s4 1983009808
        %v848 = vunpack.c.0.s8 %v847
        %v849 = vlaneseq
        %v850 = vshrl.u32 %v849, 7
        %v851 = vsub.s32 %v848, %v850
        %v852 = vrot.slane %v838, %v851
        %v853 = vcombine.high %v845, %v845
        %v854 = vcombine.high %v852, %v852
        %v856 = vunpack.c.l.s4 1983009808
        %v857 = vunpack.c.0.s8 %v856
        %v858 = vlaneseq
        %v859 = vshrl.u32 %v858, 7
        %v860 = vsub.s32 %v857, %v859
        %v861 = vrot.slane %v807, %v860
        %862 = vrot.lane.b32.xlu0 %v828, 8
        %v863 = vpop.permute.xlu0 %862
        %864 = vrot.lane.b32.xlu0 %v836, 8
        %v865 = vpop.permute.xlu0 %864
        %866 = vrot.lane.b32.xlu0 %v835, 8
        %v867 = vpop.permute.xlu0 %866
        %868 = vrot.lane.b32.xlu0 %v837, 8
        %v869 = vpop.permute.xlu0 %868
        %870 = vrot.lane.b32.xlu0 %v845, 8
        %v871 = vpop.permute.xlu0 %870
        %872 = vrot.lane.b32.xlu0 %v853, 8
        %v873 = vpop.permute.xlu0 %872
        %874 = vrot.lane.b32.xlu0 %v852, 8
        %v875 = vpop.permute.xlu0 %874
        %876 = vrot.lane.b32.xlu0 %v854, 8
        %v877 = vpop.permute.xlu0 %876
        %878 = vrot.lane.b32.xlu0 %v861, 8
        %v879 = vpop.permute.xlu0 %878
        %vm880 = vcmask 64512
        %v881 = vsel %vm880, %v863, %v865
        %v882 = vsel %vm880, %v865, %v867
        %v883 = vsel %vm880, %v867, %v869
        %v884 = vsel %vm880, %v869, %v871
        %v885 = vsel %vm880, %v871, %v873
        %v886 = vsel %vm880, %v873, %v875
        %v887 = vsel %vm880, %v875, %v877
        %v888 = vsel %vm880, %v877, %v879
        %vm889 = vcmask 31744
        %v891 = vsel %vm889, %v817, 0
        %vm893 = vcmask 1041408
        %v895 = vsel %vm893, %v881, 0
        %v898 = vsel %vm893, %v882, 0
        %v901 = vsel %vm893, %v883, 0
        %v904 = vsel %vm893, %v884, 0
        %v907 = vsel %vm893, %v885, 0
        %v910 = vsel %vm893, %v886, 0
        %v913 = vsel %vm893, %v887, 0
        %v916 = vsel %vm893, %v888, 0
        %918 = vmatprep.subr.bf16.mxu0 %v898
        %919 = vmatpush1.bf16.msra.mxu0 %v895
        %920 = vmatprep.subr.bf16.mxu0 0
        %921 = vmatpush1.bf16.msra.mxu0 0
        %922 = vmatprep.subr.bf16.mxu0 0
        %923 = vmatpush1.bf16.msra.mxu0 0
        %924 = vmatprep.subr.bf16.mxu0 0
        %925 = vmatpush1.bf16.msra.mxu0 0
        %926 = vmatprep.subr.bf16.mxu0 0
        %927 = vmatpush1.bf16.msra.mxu0 0
        %928 = vmatprep.subr.bf16.mxu0 0
        %929 = vmatpush1.bf16.msra.mxu0 0
        %930 = vmatprep.subr.bf16.mxu0 0
        %931 = vmatpush1.bf16.msra.mxu0 0
        %932 = vmatprep.subr.bf16.mxu0 0
        %933 = vmatpush1.bf16.msra.mxu0 0
        %934 = vmatprep.subr.bf16.mxu0 0
        %935 = vmatpush1.bf16.msra.mxu0 0
        %936 = vmatprep.subr.bf16.mxu0 0
        %937 = vmatpush1.bf16.msra.mxu0 0
        %938 = vmatprep.subr.bf16.mxu0 0
        %939 = vmatpush1.bf16.msra.mxu0 0
        %940 = vmatprep.subr.bf16.mxu0 0
        %941 = vmatpush1.bf16.msra.mxu0 0
        %942 = vmatprep.subr.bf16.mxu0 0
        %943 = vmatpush1.bf16.msra.mxu0 0
        %944 = vmatprep.subr.bf16.mxu0 0
        %945 = vmatpush1.bf16.msra.mxu0 0
        %946 = vmatprep.subr.bf16.mxu0 0
        %947 = vmatpush1.bf16.msra.mxu0 0
        %948 = vmatprep.subr.bf16.mxu0 0
        %949 = vmatpush1.bf16.msra.mxu0 0
        %950 = vmatprep.mubr.bf16.mxu0 0
        %951 = vmatmul.mubr.bf16.gmra.mrb[0].mxu0 %v891
        %v952 = vpop.f32.mrb[0].mxu0
        %v953 = vadd.f32 0.0, %v952
        %v954 = vpop.f32.mrb[0].mxu0
        %v955 = vadd.f32 0.0, %v954
        %v956 = vpop.f32.mrb[0].mxu0
        %v957 = vpop.f32.mrb[0].mxu0
        %958 = vdwg.mxu0
        %959 = vmatprep.subr.bf16.mxu0 %v904
        %960 = vmatpush1.bf16.msra.mxu0 %v901
        %961 = vmatprep.subr.bf16.mxu0 0
        %962 = vmatpush1.bf16.msra.mxu0 0
        %963 = vmatprep.subr.bf16.mxu0 0
        %964 = vmatpush1.bf16.msra.mxu0 0
        %965 = vmatprep.subr.bf16.mxu0 0
        %966 = vmatpush1.bf16.msra.mxu0 0
        %967 = vmatprep.subr.bf16.mxu0 0
        %968 = vmatpush1.bf16.msra.mxu0 0
        %969 = vmatprep.subr.bf16.mxu0 0
        %970 = vmatpush1.bf16.msra.mxu0 0
        %971 = vmatprep.subr.bf16.mxu0 0
        %972 = vmatpush1.bf16.msra.mxu0 0
        %973 = vmatprep.subr.bf16.mxu0 0
        %974 = vmatpush1.bf16.msra.mxu0 0
        %975 = vmatprep.subr.bf16.mxu0 0
        %976 = vmatpush1.bf16.msra.mxu0 0
        %977 = vmatprep.subr.bf16.mxu0 0
        %978 = vmatpush1.bf16.msra.mxu0 0
        %979 = vmatprep.subr.bf16.mxu0 0
        %980 = vmatpush1.bf16.msra.mxu0 0
        %981 = vmatprep.subr.bf16.mxu0 0
        %982 = vmatpush1.bf16.msra.mxu0 0
        %983 = vmatprep.subr.bf16.mxu0 0
        %984 = vmatpush1.bf16.msra.mxu0 0
        %985 = vmatprep.subr.bf16.mxu0 0
        %986 = vmatpush1.bf16.msra.mxu0 0
        %987 = vmatprep.subr.bf16.mxu0 0
        %988 = vmatpush1.bf16.msra.mxu0 0
        %989 = vmatprep.subr.bf16.mxu0 0
        %990 = vmatpush1.bf16.msra.mxu0 0
        %991 = vmatprep.mubr.bf16.mxu0 0
        %992 = vmatmul.mubr.bf16.gmra.mrb[0].mxu0 %v891
        %v993 = vpop.f32.mrb[0].mxu0
        %v994 = vadd.f32 0.0, %v993
        %v995 = vpop.f32.mrb[0].mxu0
        %v996 = vadd.f32 0.0, %v995
        %v997 = vpop.f32.mrb[0].mxu0
        %v998 = vpop.f32.mrb[0].mxu0
        %999 = vdwg.mxu0
        %1000 = vmatprep.subr.bf16.mxu0 %v910
        %1001 = vmatpush1.bf16.msra.mxu0 %v907
        %1002 = vmatprep.subr.bf16.mxu0 0
        %1003 = vmatpush1.bf16.msra.mxu0 0
        %1004 = vmatprep.subr.bf16.mxu0 0
        %1005 = vmatpush1.bf16.msra.mxu0 0
        %1006 = vmatprep.subr.bf16.mxu0 0
        %1007 = vmatpush1.bf16.msra.mxu0 0
        %1008 = vmatprep.subr.bf16.mxu0 0
        %1009 = vmatpush1.bf16.msra.mxu0 0
        %1010 = vmatprep.subr.bf16.mxu0 0
        %1011 = vmatpush1.bf16.msra.mxu0 0
        %1012 = vmatprep.subr.bf16.mxu0 0
        %1013 = vmatpush1.bf16.msra.mxu0 0
        %1014 = vmatprep.subr.bf16.mxu0 0
        %1015 = vmatpush1.bf16.msra.mxu0 0
        %1016 = vmatprep.subr.bf16.mxu0 0
        %1017 = vmatpush1.bf16.msra.mxu0 0
        %1018 = vmatprep.subr.bf16.mxu0 0
        %1019 = vmatpush1.bf16.msra.mxu0 0
        %1020 = vmatprep.subr.bf16.mxu0 0
        %1021 = vmatpush1.bf16.msra.mxu0 0
        %1022 = vmatprep.subr.bf16.mxu0 0
        %1023 = vmatpush1.bf16.msra.mxu0 0
        %1024 = vmatprep.subr.bf16.mxu0 0
        %1025 = vmatpush1.bf16.msra.mxu0 0
        %1026 = vmatprep.subr.bf16.mxu0 0
        %1027 = vmatpush1.bf16.msra.mxu0 0
        %1028 = vmatprep.subr.bf16.mxu0 0
        %1029 = vmatpush1.bf16.msra.mxu0 0
        %1030 = vmatprep.subr.bf16.mxu0 0
        %1031 = vmatpush1.bf16.msra.mxu0 0
        %1032 = vmatprep.mubr.bf16.mxu0 0
        %1033 = vmatmul.mubr.bf16.gmra.mrb[0].mxu0 %v891
        %v1034 = vpop.f32.mrb[0].mxu0
        %v1035 = vadd.f32 0.0, %v1034
        %v1036 = vpop.f32.mrb[0].mxu0
        %v1037 = vadd.f32 0.0, %v1036
        %v1038 = vpop.f32.mrb[0].mxu0
        %v1039 = vpop.f32.mrb[0].mxu0
        %1040 = vdwg.mxu0
        %1041 = vmatprep.subr.bf16.mxu0 %v916
        %1042 = vmatpush1.bf16.msra.mxu0 %v913
        %1043 = vmatprep.subr.bf16.mxu0 0
        %1044 = vmatpush1.bf16.msra.mxu0 0
        %1045 = vmatprep.subr.bf16.mxu0 0
        %1046 = vmatpush1.bf16.msra.mxu0 0
        %1047 = vmatprep.subr.bf16.mxu0 0
        %1048 = vmatpush1.bf16.msra.mxu0 0
        %1049 = vmatprep.subr.bf16.mxu0 0
        %1050 = vmatpush1.bf16.msra.mxu0 0
        %1051 = vmatprep.subr.bf16.mxu0 0
        %1052 = vmatpush1.bf16.msra.mxu0 0
        %1053 = vmatprep.subr.bf16.mxu0 0
        %1054 = vmatpush1.bf16.msra.mxu0 0
        %1055 = vmatprep.subr.bf16.mxu0 0
        %1056 = vmatpush1.bf16.msra.mxu0 0
        %1057 = vmatprep.subr.bf16.mxu0 0
        %1058 = vmatpush1.bf16.msra.mxu0 0
        %1059 = vmatprep.subr.bf16.mxu0 0
        %1060 = vmatpush1.bf16.msra.mxu0 0
        %1061 = vmatprep.subr.bf16.mxu0 0
        %1062 = vmatpush1.bf16.msra.mxu0 0
        %1063 = vmatprep.subr.bf16.mxu0 0
        %1064 = vmatpush1.bf16.msra.mxu0 0
        %1065 = vmatprep.subr.bf16.mxu0 0
        %1066 = vmatpush1.bf16.msra.mxu0 0
        %1067 = vmatprep.subr.bf16.mxu0 0
        %1068 = vmatpush1.bf16.msra.mxu0 0
        %1069 = vmatprep.subr.bf16.mxu0 0
        %1070 = vmatpush1.bf16.msra.mxu0 0
        %1071 = vmatprep.subr.bf16.mxu0 0
        %1072 = vmatpush1.bf16.msra.mxu0 0
        %1073 = vmatprep.mubr.bf16.mxu0 0
        %1074 = vmatmul.mubr.bf16.gmra.mrb[0].mxu0 %v891
        %v1075 = vpop.f32.mrb[0].mxu0
        %v1076 = vadd.f32 0.0, %v1075
        %v1077 = vpop.f32.mrb[0].mxu0
        %v1078 = vadd.f32 0.0, %v1077
        %v1079 = vpop.f32.mrb[0].mxu0
        %v1080 = vpop.f32.mrb[0].mxu0
        %1081 = vdwg.mxu0
        %v1085 = vcombine.high %v690, %v690
        %v1087 = vunpack.c.l.s4 1983009808
        %v1088 = vunpack.c.0.s8 %v1087
        %v1089 = vlaneseq
        %v1090 = vshrl.u32 %v1089, 7
        %v1091 = vsub.s32 %v1088, %v1090
        %v1092 = vrot.slane %v690, %v1091
        %v1094 = vunpack.c.l.s4 1983009808
        %v1095 = vunpack.c.0.s8 %v1094
        %v1096 = vlaneseq
        %v1097 = vshrl.u32 %v1096, 7
        %v1098 = vsub.s32 %v1095, %v1097
        %v1099 = vrot.slane %v1085, %v1098
        %v1100 = vcombine.high %v1092, %v1092
        %v1101 = vcombine.high %v1099, %v1099
        %v1102 = vcombine.high %v691, %v691
        %v1104 = vunpack.c.l.s4 1983009808
        %v1105 = vunpack.c.0.s8 %v1104
        %v1106 = vlaneseq
        %v1107 = vshrl.u32 %v1106, 7
        %v1108 = vsub.s32 %v1105, %v1107
        %v1109 = vrot.slane %v691, %v1108
        %v1111 = vunpack.c.l.s4 1983009808
        %v1112 = vunpack.c.0.s8 %v1111
        %v1113 = vlaneseq
        %v1114 = vshrl.u32 %v1113, 7
        %v1115 = vsub.s32 %v1112, %v1114
        %v1116 = vrot.slane %v1102, %v1115
        %v1117 = vcombine.high %v1109, %v1109
        %v1118 = vcombine.high %v1116, %v1116
        %v1120 = vunpack.c.l.s4 1983009808
        %v1121 = vunpack.c.0.s8 %v1120
        %v1122 = vlaneseq
        %v1123 = vshrl.u32 %v1122, 7
        %v1124 = vsub.s32 %v1121, %v1123
        %v1125 = vrot.slane %v692, %v1124
        %1126 = vrot.lane.b32.xlu0 %v1092, 9
        %v1127 = vpop.permute.xlu0 %1126
        %1128 = vrot.lane.b32.xlu0 %v1100, 9
        %v1129 = vpop.permute.xlu0 %1128
        %1130 = vrot.lane.b32.xlu0 %v1099, 9
        %v1131 = vpop.permute.xlu0 %1130
        %1132 = vrot.lane.b32.xlu0 %v1101, 9
        %v1133 = vpop.permute.xlu0 %1132
        %1134 = vrot.lane.b32.xlu0 %v1109, 9
        %v1135 = vpop.permute.xlu0 %1134
        %1136 = vrot.lane.b32.xlu0 %v1117, 9
        %v1137 = vpop.permute.xlu0 %1136
        %1138 = vrot.lane.b32.xlu0 %v1116, 9
        %v1139 = vpop.permute.xlu0 %1138
        %1140 = vrot.lane.b32.xlu0 %v1118, 9
        %v1141 = vpop.permute.xlu0 %1140
        %1142 = vrot.lane.b32.xlu0 %v1125, 9
        %v1143 = vpop.permute.xlu0 %1142
        %vm1144 = vcmask 72704
        %v1145 = vsel %vm1144, %v1127, %v1129
        %v1146 = vsel %vm1144, %v1129, %v1131
        %v1147 = vsel %vm1144, %v1131, %v1133
        %v1148 = vsel %vm1144, %v1133, %v1135
        %v1149 = vsel %vm1144, %v1135, %v1137
        %v1150 = vsel %vm1144, %v1137, %v1139
        %v1151 = vsel %vm1144, %v1139, %v1141
        %v1152 = vsel %vm1144, %v1141, %v1143
        %v1154 = vsel %vm889, %v693, 0
        %v1157 = vsel %vm893, %v1145, 0
        %v1160 = vsel %vm893, %v1146, 0
        %v1163 = vsel %vm893, %v1147, 0
        %v1166 = vsel %vm893, %v1148, 0
        %v1169 = vsel %vm893, %v1149, 0
        %v1172 = vsel %vm893, %v1150, 0
        %v1175 = vsel %vm893, %v1151, 0
        %v1178 = vsel %vm893, %v1152, 0
        %1180 = vmatprep.subr.bf16.mxu0 %v1160
        %1181 = vmatpush1.bf16.msra.mxu0 %v1157
        %1182 = vmatprep.subr.bf16.mxu0 0
        %1183 = vmatpush1.bf16.msra.mxu0 0
        %1184 = vmatprep.subr.bf16.mxu0 0
        %1185 = vmatpush1.bf16.msra.mxu0 0
        %1186 = vmatprep.subr.bf16.mxu0 0
        %1187 = vmatpush1.bf16.msra.mxu0 0
        %1188 = vmatprep.subr.bf16.mxu0 0
        %1189 = vmatpush1.bf16.msra.mxu0 0
        %1190 = vmatprep.subr.bf16.mxu0 0
        %1191 = vmatpush1.bf16.msra.mxu0 0
        %1192 = vmatprep.subr.bf16.mxu0 0
        %1193 = vmatpush1.bf16.msra.mxu0 0
        %1194 = vmatprep.subr.bf16.mxu0 0
        %1195 = vmatpush1.bf16.msra.mxu0 0
        %1196 = vmatprep.subr.bf16.mxu0 0
        %1197 = vmatpush1.bf16.msra.mxu0 0
        %1198 = vmatprep.subr.bf16.mxu0 0
        %1199 = vmatpush1.bf16.msra.mxu0 0
        %1200 = vmatprep.subr.bf16.mxu0 0
        %1201 = vmatpush1.bf16.msra.mxu0 0
        %1202 = vmatprep.subr.bf16.mxu0 0
        %1203 = vmatpush1.bf16.msra.mxu0 0
        %1204 = vmatprep.subr.bf16.mxu0 0
        %1205 = vmatpush1.bf16.msra.mxu0 0
        %1206 = vmatprep.subr.bf16.mxu0 0
        %1207 = vmatpush1.bf16.msra.mxu0 0
        %1208 = vmatprep.subr.bf16.mxu0 0
        %1209 = vmatpush1.bf16.msra.mxu0 0
        %1210 = vmatprep.subr.bf16.mxu0 0
        %1211 = vmatpush1.bf16.msra.mxu0 0
        %1212 = vmatprep.mubr.bf16.mxu0 0
        %1213 = vmatmul.mubr.bf16.gmra.mrb[0].mxu0 %v1154
        %v1214 = vpop.f32.mrb[0].mxu0
        %v1215 = vadd.f32 %v953, %v1214
        %v1216 = vpop.f32.mrb[0].mxu0
        %v1217 = vadd.f32 %v955, %v1216
        %v1218 = vpop.f32.mrb[0].mxu0
        %v1219 = vpop.f32.mrb[0].mxu0
        %1220 = vdwg.mxu0
        %1221 = vmatprep.subr.bf16.mxu0 %v1166
        %1222 = vmatpush1.bf16.msra.mxu0 %v1163
        %1223 = vmatprep.subr.bf16.mxu0 0
        %1224 = vmatpush1.bf16.msra.mxu0 0
        %1225 = vmatprep.subr.bf16.mxu0 0
        %1226 = vmatpush1.bf16.msra.mxu0 0
        %1227 = vmatprep.subr.bf16.mxu0 0
        %1228 = vmatpush1.bf16.msra.mxu0 0
        %1229 = vmatprep.subr.bf16.mxu0 0
        %1230 = vmatpush1.bf16.msra.mxu0 0
        %1231 = vmatprep.subr.bf16.mxu0 0
        %1232 = vmatpush1.bf16.msra.mxu0 0
        %1233 = vmatprep.subr.bf16.mxu0 0
        %1234 = vmatpush1.bf16.msra.mxu0 0
        %1235 = vmatprep.subr.bf16.mxu0 0
        %1236 = vmatpush1.bf16.msra.mxu0 0
        %1237 = vmatprep.subr.bf16.mxu0 0
        %1238 = vmatpush1.bf16.msra.mxu0 0
        %1239 = vmatprep.subr.bf16.mxu0 0
        %1240 = vmatpush1.bf16.msra.mxu0 0
        %1241 = vmatprep.subr.bf16.mxu0 0
        %1242 = vmatpush1.bf16.msra.mxu0 0
        %1243 = vmatprep.subr.bf16.mxu0 0
        %1244 = vmatpush1.bf16.msra.mxu0 0
        %1245 = vmatprep.subr.bf16.mxu0 0
        %1246 = vmatpush1.bf16.msra.mxu0 0
        %1247 = vmatprep.subr.bf16.mxu0 0
        %1248 = vmatpush1.bf16.msra.mxu0 0
        %1249 = vmatprep.subr.bf16.mxu0 0
        %1250 = vmatpush1.bf16.msra.mxu0 0
        %1251 = vmatprep.subr.bf16.mxu0 0
        %1252 = vmatpush1.bf16.msra.mxu0 0
        %1253 = vmatprep.mubr.bf16.mxu0 0
        %1254 = vmatmul.mubr.bf16.gmra.mrb[0].mxu0 %v1154
        %v1255 = vpop.f32.mrb[0].mxu0
        %v1256 = vadd.f32 %v994, %v1255
        %v1257 = vpop.f32.mrb[0].mxu0
        %v1258 = vadd.f32 %v996, %v1257
        %v1259 = vpop.f32.mrb[0].mxu0
        %v1260 = vpop.f32.mrb[0].mxu0
        %1261 = vdwg.mxu0
        %1262 = vmatprep.subr.bf16.mxu0 %v1172
        %1263 = vmatpush1.bf16.msra.mxu0 %v1169
        %1264 = vmatprep.subr.bf16.mxu0 0
        %1265 = vmatpush1.bf16.msra.mxu0 0
        %1266 = vmatprep.subr.bf16.mxu0 0
        %1267 = vmatpush1.bf16.msra.mxu0 0
        %1268 = vmatprep.subr.bf16.mxu0 0
        %1269 = vmatpush1.bf16.msra.mxu0 0
        %1270 = vmatprep.subr.bf16.mxu0 0
        %1271 = vmatpush1.bf16.msra.mxu0 0
        %1272 = vmatprep.subr.bf16.mxu0 0
        %1273 = vmatpush1.bf16.msra.mxu0 0
        %1274 = vmatprep.subr.bf16.mxu0 0
        %1275 = vmatpush1.bf16.msra.mxu0 0
        %1276 = vmatprep.subr.bf16.mxu0 0
        %1277 = vmatpush1.bf16.msra.mxu0 0
        %1278 = vmatprep.subr.bf16.mxu0 0
        %1279 = vmatpush1.bf16.msra.mxu0 0
        %1280 = vmatprep.subr.bf16.mxu0 0
        %1281 = vmatpush1.bf16.msra.mxu0 0
        %1282 = vmatprep.subr.bf16.mxu0 0
        %1283 = vmatpush1.bf16.msra.mxu0 0
        %1284 = vmatprep.subr.bf16.mxu0 0
        %1285 = vmatpush1.bf16.msra.mxu0 0
        %1286 = vmatprep.subr.bf16.mxu0 0
        %1287 = vmatpush1.bf16.msra.mxu0 0
        %1288 = vmatprep.subr.bf16.mxu0 0
        %1289 = vmatpush1.bf16.msra.mxu0 0
        %1290 = vmatprep.subr.bf16.mxu0 0
        %1291 = vmatpush1.bf16.msra.mxu0 0
        %1292 = vmatprep.subr.bf16.mxu0 0
        %1293 = vmatpush1.bf16.msra.mxu0 0
        %1294 = vmatprep.mubr.bf16.mxu0 0
        %1295 = vmatmul.mubr.bf16.gmra.mrb[0].mxu0 %v1154
        %v1296 = vpop.f32.mrb[0].mxu0
        %v1297 = vadd.f32 %v1035, %v1296
        %v1298 = vpop.f32.mrb[0].mxu0
        %v1299 = vadd.f32 %v1037, %v1298
        %v1300 = vpop.f32.mrb[0].mxu0
        %v1301 = vpop.f32.mrb[0].mxu0
        %1302 = vdwg.mxu0
        %1303 = vmatprep.subr.bf16.mxu0 %v1178
        %1304 = vmatpush1.bf16.msra.mxu0 %v1175
        %1305 = vmatprep.subr.bf16.mxu0 0
        %1306 = vmatpush1.bf16.msra.mxu0 0
        %1307 = vmatprep.subr.bf16.mxu0 0
        %1308 = vmatpush1.bf16.msra.mxu0 0
        %1309 = vmatprep.subr.bf16.mxu0 0
        %1310 = vmatpush1.bf16.msra.mxu0 0
        %1311 = vmatprep.subr.bf16.mxu0 0
        %1312 = vmatpush1.bf16.msra.mxu0 0
        %1313 = vmatprep.subr.bf16.mxu0 0
        %1314 = vmatpush1.bf16.msra.mxu0 0
        %1315 = vmatprep.subr.bf16.mxu0 0
        %1316 = vmatpush1.bf16.msra.mxu0 0
        %1317 = vmatprep.subr.bf16.mxu0 0
        %1318 = vmatpush1.bf16.msra.mxu0 0
        %1319 = vmatprep.subr.bf16.mxu0 0
        %1320 = vmatpush1.bf16.msra.mxu0 0
        %1321 = vmatprep.subr.bf16.mxu0 0
        %1322 = vmatpush1.bf16.msra.mxu0 0
        %1323 = vmatprep.subr.bf16.mxu0 0
        %1324 = vmatpush1.bf16.msra.mxu0 0
        %1325 = vmatprep.subr.bf16.mxu0 0
        %1326 = vmatpush1.bf16.msra.mxu0 0
        %1327 = vmatprep.subr.bf16.mxu0 0
        %1328 = vmatpush1.bf16.msra.mxu0 0
        %1329 = vmatprep.subr.bf16.mxu0 0
        %1330 = vmatpush1.bf16.msra.mxu0 0
        %1331 = vmatprep.subr.bf16.mxu0 0
        %1332 = vmatpush1.bf16.msra.mxu0 0
        %1333 = vmatprep.subr.bf16.mxu0 0
        %1334 = vmatpush1.bf16.msra.mxu0 0
        %1335 = vmatprep.mubr.bf16.mxu0 0
        %1336 = vmatmul.mubr.bf16.gmra.mrb[0].mxu0 %v1154
        %v1337 = vpop.f32.mrb[0].mxu0
        %v1338 = vadd.f32 %v1076, %v1337
        %v1339 = vpop.f32.mrb[0].mxu0
        %v1340 = vadd.f32 %v1078, %v1339
        %v1341 = vpop.f32.mrb[0].mxu0
        %v1342 = vpop.f32.mrb[0].mxu0
        %1343 = vdwg.mxu0
        %v1344 = vld [vmem:[#allocation2] sm:$0xff]
        %v1345 = vld [vmem:[#allocation2 + $0x8] sm:$0xff]
        %v1346 = vld [vmem:[#allocation2 + $0x10] sm:$0x3]
        %v1347 = vld [vmem:[#allocation6] sm:$0x22]
        %v1348 = vld [vmem:[#allocation6 + $0x8] sm:$0x22]
        %v1349 = vld [vmem:[#allocation6 + $0x10] sm:$0x22]
        %v1350 = vld [vmem:[#allocation6 + $0x18] sm:$0x22]
        %v1355 = vunpack.c.l.b16 %v1347
        %v1356 = vunpack.c.h.b16 %v1347
        %v1357 = vunpack.c.l.b16 %v1348
        %v1358 = vunpack.c.h.b16 %v1348
        %v1359 = vunpack.c.l.b16 %v1349
        %v1360 = vunpack.c.h.b16 %v1349
        %v1361 = vunpack.c.l.b16 %v1350
        %v1362 = vunpack.c.h.b16 %v1350
        %v1363 = vpack.c.b16 %v1355, %v1355
        %v1364 = vpack.c.b16 %v1356, %v1356
        %v1365 = vpack.c.b16 %v1357, %v1357
        %v1366 = vpack.c.b16 %v1358, %v1358
        %v1367 = vpack.c.b16 %v1359, %v1359
        %v1368 = vpack.c.b16 %v1360, %v1360
        %v1369 = vpack.c.b16 %v1361, %v1361
        %v1370 = vpack.c.b16 %v1362, %v1362
        %v1372 = vpack.i.b16 %v1363, %v1363
        %v1374 = vlaneseq
        %v1375 = vshrl.u32 %v1374, 7
        %v1376 = vsub.s32 1, %v1375
        %v1377 = vrot.slane %v1372, %v1376
        %v1379 = vpack.i.b16 %v1364, %v1364
        %v1381 = vlaneseq
        %v1382 = vshrl.u32 %v1381, 7
        %v1383 = vsub.s32 1, %v1382
        %v1384 = vrot.slane %v1379, %v1383
        %v1386 = vpack.i.b16 %v1365, %v1365
        %v1388 = vlaneseq
        %v1389 = vshrl.u32 %v1388, 7
        %v1390 = vsub.s32 1, %v1389
        %v1391 = vrot.slane %v1386, %v1390
        %v1393 = vpack.i.b16 %v1366, %v1366
        %v1395 = vlaneseq
        %v1396 = vshrl.u32 %v1395, 7
        %v1397 = vsub.s32 1, %v1396
        %v1398 = vrot.slane %v1393, %v1397
        %v1400 = vpack.i.b16 %v1367, %v1367
        %v1402 = vlaneseq
        %v1403 = vshrl.u32 %v1402, 7
        %v1404 = vsub.s32 1, %v1403
        %v1405 = vrot.slane %v1400, %v1404
        %v1407 = vpack.i.b16 %v1368, %v1368
        %v1409 = vlaneseq
        %v1410 = vshrl.u32 %v1409, 7
        %v1411 = vsub.s32 1, %v1410
        %v1412 = vrot.slane %v1407, %v1411
        %v1414 = vpack.i.b16 %v1369, %v1369
        %v1416 = vlaneseq
        %v1417 = vshrl.u32 %v1416, 7
        %v1418 = vsub.s32 1, %v1417
        %v1419 = vrot.slane %v1414, %v1418
        %v1421 = vpack.i.b16 %v1370, %v1370
        %v1423 = vlaneseq
        %v1424 = vshrl.u32 %v1423, 7
        %v1425 = vsub.s32 1, %v1424
        %v1426 = vrot.slane %v1421, %v1425
        %v1435 = vcombine.low %v1377, %v1384
        %v1436 = vcombine.low %v1391, %v1398
        %v1438 = vunpack.c.l.s4 1983009808
        %v1439 = vunpack.c.0.s8 %v1438
        %v1440 = vlaneseq
        %v1441 = vshrl.u32 %v1440, 7
        %v1442 = vsub.s32 %v1439, %v1441
        %v1443 = vrot.slane %v1435, %v1442
        %v1445 = vunpack.c.l.s4 1983009808
        %v1446 = vunpack.c.0.s8 %v1445
        %v1447 = vlaneseq
        %v1448 = vshrl.u32 %v1447, 7
        %v1449 = vsub.s32 %v1446, %v1448
        %v1450 = vrot.slane %v1436, %v1449
        %v1451 = vcombine.low %v1443, %v1450
        %v1452 = vcombine.low %v1405, %v1412
        %v1453 = vcombine.low %v1419, %v1426
        %v1455 = vunpack.c.l.s4 1983009808
        %v1456 = vunpack.c.0.s8 %v1455
        %v1457 = vlaneseq
        %v1458 = vshrl.u32 %v1457, 7
        %v1459 = vsub.s32 %v1456, %v1458
        %v1460 = vrot.slane %v1452, %v1459
        %v1462 = vunpack.c.l.s4 1983009808
        %v1463 = vunpack.c.0.s8 %v1462
        %v1464 = vlaneseq
        %v1465 = vshrl.u32 %v1464, 7
        %v1466 = vsub.s32 %v1463, %v1465
        %v1467 = vrot.slane %v1453, %v1466
        %v1468 = vcombine.low %v1460, %v1467
        %1469 = vrot.lane.b32.xlu0 %v1451, 121
        %v1470 = vpop.permute.xlu0 %1469
        %1471 = vrot.lane.b32.xlu0 %v1468, 121
        %v1472 = vpop.permute.xlu0 %1471
        %v1473 = vrot.slane %v1470, 6
        %v1474 = vrot.slane %v1472, 6
        %vm1475 = vcmask 990208
        %v1476 = vsel %vm1475, %v1473, %v1470
        %v1477 = vsel %vm684, %v1473, %v1474
        %v1478 = vsel %vm1475, %v1477, %v1472
        %v1482 = vmul.bf16 %v1344, %v1476
        %v1483 = vmul.bf16 %v1345, %v1478
        %v1484 = vmul.bf16 %v1346, %v1474
        %v1485 = vld [vmem:[%s3] sm:$0x3]
        %v1488 = vunpack.c.l.s4 1983009808
        %v1489 = vunpack.c.0.s8 %v1488
        %v1490 = vlaneseq
        %v1491 = vshrl.u32 %v1490, 7
        %v1492 = vsub.s32 %v1489, %v1491
        %v1493 = vrot.slane %v1485, %v1492
        %1494 = vrot.lane.b32.xlu0 %v1493, 120
        %v1495 = vpop.permute.xlu0 %1494
        %v1499 = vcombine.high %v1482, %v1482
        %v1501 = vunpack.c.l.s4 1983009808
        %v1502 = vunpack.c.0.s8 %v1501
        %v1503 = vlaneseq
        %v1504 = vshrl.u32 %v1503, 7
        %v1505 = vsub.s32 %v1502, %v1504
        %v1506 = vrot.slane %v1482, %v1505
        %v1508 = vunpack.c.l.s4 1983009808
        %v1509 = vunpack.c.0.s8 %v1508
        %v1510 = vlaneseq
        %v1511 = vshrl.u32 %v1510, 7
        %v1512 = vsub.s32 %v1509, %v1511
        %v1513 = vrot.slane %v1499, %v1512
        %v1514 = vcombine.high %v1506, %v1506
        %v1515 = vcombine.high %v1513, %v1513
        %v1516 = vcombine.high %v1483, %v1483
        %v1518 = vunpack.c.l.s4 1983009808
        %v1519 = vunpack.c.0.s8 %v1518
        %v1520 = vlaneseq
        %v1521 = vshrl.u32 %v1520, 7
        %v1522 = vsub.s32 %v1519, %v1521
        %v1523 = vrot.slane %v1483, %v1522
        %v1525 = vunpack.c.l.s4 1983009808
        %v1526 = vunpack.c.0.s8 %v1525
        %v1527 = vlaneseq
        %v1528 = vshrl.u32 %v1527, 7
        %v1529 = vsub.s32 %v1526, %v1528
        %v1530 = vrot.slane %v1516, %v1529
        %v1531 = vcombine.high %v1523, %v1523
        %v1532 = vcombine.high %v1530, %v1530
        %v1534 = vunpack.c.l.s4 1983009808
        %v1535 = vunpack.c.0.s8 %v1534
        %v1536 = vlaneseq
        %v1537 = vshrl.u32 %v1536, 7
        %v1538 = vsub.s32 %v1535, %v1537
        %v1539 = vrot.slane %v1484, %v1538
        %1540 = vrot.lane.b32.xlu0 %v1506, 7
        %v1541 = vpop.permute.xlu0 %1540
        %1542 = vrot.lane.b32.xlu0 %v1514, 7
        %v1543 = vpop.permute.xlu0 %1542
        %1544 = vrot.lane.b32.xlu0 %v1513, 7
        %v1545 = vpop.permute.xlu0 %1544
        %1546 = vrot.lane.b32.xlu0 %v1515, 7
        %v1547 = vpop.permute.xlu0 %1546
        %1548 = vrot.lane.b32.xlu0 %v1523, 7
        %v1549 = vpop.permute.xlu0 %1548
        %1550 = vrot.lane.b32.xlu0 %v1531, 7
        %v1551 = vpop.permute.xlu0 %1550
        %1552 = vrot.lane.b32.xlu0 %v1530, 7
        %v1553 = vpop.permute.xlu0 %1552
        %1554 = vrot.lane.b32.xlu0 %v1532, 7
        %v1555 = vpop.permute.xlu0 %1554
        %1556 = vrot.lane.b32.xlu0 %v1539, 7
        %v1557 = vpop.permute.xlu0 %1556
        %vm1558 = vcmask 56320
        %v1559 = vsel %vm1558, %v1541, %v1543
        %v1560 = vsel %vm1558, %v1543, %v1545
        %v1561 = vsel %vm1558, %v1545, %v1547
        %v1562 = vsel %vm1558, %v1547, %v1549
        %v1563 = vsel %vm1558, %v1549, %v1551
        %v1564 = vsel %vm1558, %v1551, %v1553
        %v1565 = vsel %vm1558, %v1553, %v1555
        %v1566 = vsel %vm1558, %v1555, %v1557
        %v1568 = vsel %vm889, %v1495, 0
        %v1571 = vsel %vm893, %v1559, 0
        %v1574 = vsel %vm893, %v1560, 0
        %v1577 = vsel %vm893, %v1561, 0
        %v1580 = vsel %vm893, %v1562, 0
        %v1583 = vsel %vm893, %v1563, 0
        %v1586 = vsel %vm893, %v1564, 0
        %v1589 = vsel %vm893, %v1565, 0
        %v1592 = vsel %vm893, %v1566, 0
        %1594 = vmatprep.subr.bf16.mxu0 %v1574
        %1595 = vmatpush1.bf16.msra.mxu0 %v1571
        %1596 = vmatprep.subr.bf16.mxu0 0
        %1597 = vmatpush1.bf16.msra.mxu0 0
        %1598 = vmatprep.subr.bf16.mxu0 0
        %1599 = vmatpush1.bf16.msra.mxu0 0
        %1600 = vmatprep.subr.bf16.mxu0 0
        %1601 = vmatpush1.bf16.msra.mxu0 0
        %1602 = vmatprep.subr.bf16.mxu0 0
        %1603 = vmatpush1.bf16.msra.mxu0 0
        %1604 = vmatprep.subr.bf16.mxu0 0
        %1605 = vmatpush1.bf16.msra.mxu0 0
        %1606 = vmatprep.subr.bf16.mxu0 0
        %1607 = vmatpush1.bf16.msra.mxu0 0
        %1608 = vmatprep.subr.bf16.mxu0 0
        %1609 = vmatpush1.bf16.msra.mxu0 0
        %1610 = vmatprep.subr.bf16.mxu0 0
        %1611 = vmatpush1.bf16.msra.mxu0 0
        %1612 = vmatprep.subr.bf16.mxu0 0
        %1613 = vmatpush1.bf16.msra.mxu0 0
        %1614 = vmatprep.subr.bf16.mxu0 0
        %1615 = vmatpush1.bf16.msra.mxu0 0
        %1616 = vmatprep.subr.bf16.mxu0 0
        %1617 = vmatpush1.bf16.msra.mxu0 0
        %1618 = vmatprep.subr.bf16.mxu0 0
        %1619 = vmatpush1.bf16.msra.mxu0 0
        %1620 = vmatprep.subr.bf16.mxu0 0
        %1621 = vmatpush1.bf16.msra.mxu0 0
        %1622 = vmatprep.subr.bf16.mxu0 0
        %1623 = vmatpush1.bf16.msra.mxu0 0
        %1624 = vmatprep.subr.bf16.mxu0 0
        %1625 = vmatpush1.bf16.msra.mxu0 0
        %1626 = vmatprep.mubr.bf16.mxu0 0
        %1627 = vmatmul.mubr.bf16.gmra.mrb[0].mxu0 %v1568
        %v1628 = vpop.f32.mrb[0].mxu0
        %v1629 = vadd.f32 0.0, %v1628
        %v1630 = vpop.f32.mrb[0].mxu0
        %v1631 = vadd.f32 0.0, %v1630
        %v1632 = vpop.f32.mrb[0].mxu0
        %v1633 = vpop.f32.mrb[0].mxu0
        %1634 = vdwg.mxu0
        %1635 = vmatprep.subr.bf16.mxu0 %v1580
        %1636 = vmatpush1.bf16.msra.mxu0 %v1577
        %1637 = vmatprep.subr.bf16.mxu0 0
        %1638 = vmatpush1.bf16.msra.mxu0 0
        %1639 = vmatprep.subr.bf16.mxu0 0
        %1640 = vmatpush1.bf16.msra.mxu0 0
        %1641 = vmatprep.subr.bf16.mxu0 0
        %1642 = vmatpush1.bf16.msra.mxu0 0
        %1643 = vmatprep.subr.bf16.mxu0 0
        %1644 = vmatpush1.bf16.msra.mxu0 0
        %1645 = vmatprep.subr.bf16.mxu0 0
        %1646 = vmatpush1.bf16.msra.mxu0 0
        %1647 = vmatprep.subr.bf16.mxu0 0
        %1648 = vmatpush1.bf16.msra.mxu0 0
        %1649 = vmatprep.subr.bf16.mxu0 0
        %1650 = vmatpush1.bf16.msra.mxu0 0
        %1651 = vmatprep.subr.bf16.mxu0 0
        %1652 = vmatpush1.bf16.msra.mxu0 0
        %1653 = vmatprep.subr.bf16.mxu0 0
        %1654 = vmatpush1.bf16.msra.mxu0 0
        %1655 = vmatprep.subr.bf16.mxu0 0
        %1656 = vmatpush1.bf16.msra.mxu0 0
        %1657 = vmatprep.subr.bf16.mxu0 0
        %1658 = vmatpush1.bf16.msra.mxu0 0
        %1659 = vmatprep.subr.bf16.mxu0 0
        %1660 = vmatpush1.bf16.msra.mxu0 0
        %1661 = vmatprep.subr.bf16.mxu0 0
        %1662 = vmatpush1.bf16.msra.mxu0 0
        %1663 = vmatprep.subr.bf16.mxu0 0
        %1664 = vmatpush1.bf16.msra.mxu0 0
        %1665 = vmatprep.subr.bf16.mxu0 0
        %1666 = vmatpush1.bf16.msra.mxu0 0
        %1667 = vmatprep.mubr.bf16.mxu0 0
        %1668 = vmatmul.mubr.bf16.gmra.mrb[0].mxu0 %v1568
        %v1669 = vpop.f32.mrb[0].mxu0
        %v1670 = vadd.f32 0.0, %v1669
        %v1671 = vpop.f32.mrb[0].mxu0
        %v1672 = vadd.f32 0.0, %v1671
        %v1673 = vpop.f32.mrb[0].mxu0
        %v1674 = vpop.f32.mrb[0].mxu0
        %1675 = vdwg.mxu0
        %1676 = vmatprep.subr.bf16.mxu0 %v1586
        %1677 = vmatpush1.bf16.msra.mxu0 %v1583
        %1678 = vmatprep.subr.bf16.mxu0 0
        %1679 = vmatpush1.bf16.msra.mxu0 0
        %1680 = vmatprep.subr.bf16.mxu0 0
        %1681 = vmatpush1.bf16.msra.mxu0 0
        %1682 = vmatprep.subr.bf16.mxu0 0
        %1683 = vmatpush1.bf16.msra.mxu0 0
        %1684 = vmatprep.subr.bf16.mxu0 0
        %1685 = vmatpush1.bf16.msra.mxu0 0
        %1686 = vmatprep.subr.bf16.mxu0 0
        %1687 = vmatpush1.bf16.msra.mxu0 0
        %1688 = vmatprep.subr.bf16.mxu0 0
        %1689 = vmatpush1.bf16.msra.mxu0 0
        %1690 = vmatprep.subr.bf16.mxu0 0
        %1691 = vmatpush1.bf16.msra.mxu0 0
        %1692 = vmatprep.subr.bf16.mxu0 0
        %1693 = vmatpush1.bf16.msra.mxu0 0
        %1694 = vmatprep.subr.bf16.mxu0 0
        %1695 = vmatpush1.bf16.msra.mxu0 0
        %1696 = vmatprep.subr.bf16.mxu0 0
        %1697 = vmatpush1.bf16.msra.mxu0 0
        %1698 = vmatprep.subr.bf16.mxu0 0
        %1699 = vmatpush1.bf16.msra.mxu0 0
        %1700 = vmatprep.subr.bf16.mxu0 0
        %1701 = vmatpush1.bf16.msra.mxu0 0
        %1702 = vmatprep.subr.bf16.mxu0 0
        %1703 = vmatpush1.bf16.msra.mxu0 0
        %1704 = vmatprep.subr.bf16.mxu0 0
        %1705 = vmatpush1.bf16.msra.mxu0 0
        %1706 = vmatprep.subr.bf16.mxu0 0
        %1707 = vmatpush1.bf16.msra.mxu0 0
        %1708 = vmatprep.mubr.bf16.mxu0 0
        %1709 = vmatmul.mubr.bf16.gmra.mrb[0].mxu0 %v1568
        %v1710 = vpop.f32.mrb[0].mxu0
        %v1711 = vadd.f32 0.0, %v1710
        %v1712 = vpop.f32.mrb[0].mxu0
        %v1713 = vadd.f32 0.0, %v1712
        %v1714 = vpop.f32.mrb[0].mxu0
        %v1715 = vpop.f32.mrb[0].mxu0
        %1716 = vdwg.mxu0
        %1717 = vmatprep.subr.bf16.mxu0 %v1592
        %1718 = vmatpush1.bf16.msra.mxu0 %v1589
        %1719 = vmatprep.subr.bf16.mxu0 0
        %1720 = vmatpush1.bf16.msra.mxu0 0
        %1721 = vmatprep.subr.bf16.mxu0 0
        %1722 = vmatpush1.bf16.msra.mxu0 0
        %1723 = vmatprep.subr.bf16.mxu0 0
        %1724 = vmatpush1.bf16.msra.mxu0 0
        %1725 = vmatprep.subr.bf16.mxu0 0
        %1726 = vmatpush1.bf16.msra.mxu0 0
        %1727 = vmatprep.subr.bf16.mxu0 0
        %1728 = vmatpush1.bf16.msra.mxu0 0
        %1729 = vmatprep.subr.bf16.mxu0 0
        %1730 = vmatpush1.bf16.msra.mxu0 0
        %1731 = vmatprep.subr.bf16.mxu0 0
        %1732 = vmatpush1.bf16.msra.mxu0 0
        %1733 = vmatprep.subr.bf16.mxu0 0
        %1734 = vmatpush1.bf16.msra.mxu0 0
        %1735 = vmatprep.subr.bf16.mxu0 0
        %1736 = vmatpush1.bf16.msra.mxu0 0
        %1737 = vmatprep.subr.bf16.mxu0 0
        %1738 = vmatpush1.bf16.msra.mxu0 0
        %1739 = vmatprep.subr.bf16.mxu0 0
        %1740 = vmatpush1.bf16.msra.mxu0 0
        %1741 = vmatprep.subr.bf16.mxu0 0
        %1742 = vmatpush1.bf16.msra.mxu0 0
        %1743 = vmatprep.subr.bf16.mxu0 0
        %1744 = vmatpush1.bf16.msra.mxu0 0
        %1745 = vmatprep.subr.bf16.mxu0 0
        %1746 = vmatpush1.bf16.msra.mxu0 0
        %1747 = vmatprep.subr.bf16.mxu0 0
        %1748 = vmatpush1.bf16.msra.mxu0 0
        %1749 = vmatprep.mubr.bf16.mxu0 0
        %1750 = vmatmul.mubr.bf16.gmra.mrb[0].mxu0 %v1568
        %v1751 = vpop.f32.mrb[0].mxu0
        %v1752 = vadd.f32 0.0, %v1751
        %v1753 = vpop.f32.mrb[0].mxu0
        %v1754 = vadd.f32 0.0, %v1753
        %v1755 = vpop.f32.mrb[0].mxu0
        %v1756 = vpop.f32.mrb[0].mxu0
        %1757 = vdwg.mxu0
        %v1758 = vadd.f32 %v1215, %v1629
        %v1759 = vadd.f32 %v1217, %v1631
        %v1760 = vadd.f32 %v1256, %v1670
        %v1761 = vadd.f32 %v1258, %v1672
        %v1762 = vadd.f32 %v1297, %v1711
        %v1763 = vadd.f32 %v1299, %v1713
        %v1764 = vadd.f32 %v1338, %v1752
        %v1765 = vadd.f32 %v1340, %v1754
        %v1766 = vld [vmem:[#allocation2] sm:$0xff]
        %v1767 = vld [vmem:[#allocation2 + $0x8] sm:$0xff]
        %v1768 = vld [vmem:[#allocation2 + $0x10] sm:$0x3]
        %v1769 = vld [vmem:[#allocation6] sm:$0x22]
        %v1770 = vld [vmem:[#allocation6 + $0x8] sm:$0x22]
        %v1771 = vld [vmem:[#allocation6 + $0x10] sm:$0x22]
        %v1772 = vld [vmem:[#allocation6 + $0x18] sm:$0x22]
        %v1777 = vunpack.c.l.b16 %v1769
        %v1778 = vunpack.c.h.b16 %v1769
        %v1779 = vunpack.c.l.b16 %v1770
        %v1780 = vunpack.c.h.b16 %v1770
        %v1781 = vunpack.c.l.b16 %v1771
        %v1782 = vunpack.c.h.b16 %v1771
        %v1783 = vunpack.c.l.b16 %v1772
        %v1784 = vunpack.c.h.b16 %v1772
        %v1785 = vpack.c.b16 %v1777, %v1777
        %v1786 = vpack.c.b16 %v1778, %v1778
        %v1787 = vpack.c.b16 %v1779, %v1779
        %v1788 = vpack.c.b16 %v1780, %v1780
        %v1789 = vpack.c.b16 %v1781, %v1781
        %v1790 = vpack.c.b16 %v1782, %v1782
        %v1791 = vpack.c.b16 %v1783, %v1783
        %v1792 = vpack.c.b16 %v1784, %v1784
        %v1794 = vshrl.u32 %v1785, 16
        %v1795 = vpack.i.b16 %v1794, %v1794
        %v1797 = vlaneseq
        %v1798 = vshrl.u32 %v1797, 7
        %v1799 = vsub.s32 1, %v1798
        %v1800 = vrot.slane %v1795, %v1799
        %v1802 = vshrl.u32 %v1786, 16
        %v1803 = vpack.i.b16 %v1802, %v1802
        %v1805 = vlaneseq
        %v1806 = vshrl.u32 %v1805, 7
        %v1807 = vsub.s32 1, %v1806
        %v1808 = vrot.slane %v1803, %v1807
        %v1810 = vshrl.u32 %v1787, 16
        %v1811 = vpack.i.b16 %v1810, %v1810
        %v1813 = vlaneseq
        %v1814 = vshrl.u32 %v1813, 7
        %v1815 = vsub.s32 1, %v1814
        %v1816 = vrot.slane %v1811, %v1815
        %v1818 = vshrl.u32 %v1788, 16
        %v1819 = vpack.i.b16 %v1818, %v1818
        %v1821 = vlaneseq
        %v1822 = vshrl.u32 %v1821, 7
        %v1823 = vsub.s32 1, %v1822
        %v1824 = vrot.slane %v1819, %v1823
        %v1826 = vshrl.u32 %v1789, 16
        %v1827 = vpack.i.b16 %v1826, %v1826
        %v1829 = vlaneseq
        %v1830 = vshrl.u32 %v1829, 7
        %v1831 = vsub.s32 1, %v1830
        %v1832 = vrot.slane %v1827, %v1831
        %v1834 = vshrl.u32 %v1790, 16
        %v1835 = vpack.i.b16 %v1834, %v1834
        %v1837 = vlaneseq
        %v1838 = vshrl.u32 %v1837, 7
        %v1839 = vsub.s32 1, %v1838
        %v1840 = vrot.slane %v1835, %v1839
        %v1842 = vshrl.u32 %v1791, 16
        %v1843 = vpack.i.b16 %v1842, %v1842
        %v1845 = vlaneseq
        %v1846 = vshrl.u32 %v1845, 7
        %v1847 = vsub.s32 1, %v1846
        %v1848 = vrot.slane %v1843, %v1847
        %v1850 = vshrl.u32 %v1792, 16
        %v1851 = vpack.i.b16 %v1850, %v1850
        %v1853 = vlaneseq
        %v1854 = vshrl.u32 %v1853, 7
        %v1855 = vsub.s32 1, %v1854
        %v1856 = vrot.slane %v1851, %v1855
        %v1865 = vcombine.low %v1800, %v1808
        %v1866 = vcombine.low %v1816, %v1824
        %v1868 = vunpack.c.l.s4 1983009808
        %v1869 = vunpack.c.0.s8 %v1868
        %v1870 = vlaneseq
        %v1871 = vshrl.u32 %v1870, 7
        %v1872 = vsub.s32 %v1869, %v1871
        %v1873 = vrot.slane %v1865, %v1872
        %v1875 = vunpack.c.l.s4 1983009808
        %v1876 = vunpack.c.0.s8 %v1875
        %v1877 = vlaneseq
        %v1878 = vshrl.u32 %v1877, 7
        %v1879 = vsub.s32 %v1876, %v1878
        %v1880 = vrot.slane %v1866, %v1879
        %v1881 = vcombine.low %v1873, %v1880
        %v1882 = vcombine.low %v1832, %v1840
        %v1883 = vcombine.low %v1848, %v1856
        %v1885 = vunpack.c.l.s4 1983009808
        %v1886 = vunpack.c.0.s8 %v1885
        %v1887 = vlaneseq
        %v1888 = vshrl.u32 %v1887, 7
        %v1889 = vsub.s32 %v1886, %v1888
        %v1890 = vrot.slane %v1882, %v1889
        %v1892 = vunpack.c.l.s4 1983009808
        %v1893 = vunpack.c.0.s8 %v1892
        %v1894 = vlaneseq
        %v1895 = vshrl.u32 %v1894, 7
        %v1896 = vsub.s32 %v1893, %v1895
        %v1897 = vrot.slane %v1883, %v1896
        %v1898 = vcombine.low %v1890, %v1897
        %1899 = vrot.lane.b32.xlu0 %v1881, 127
        %v1900 = vpop.permute.xlu0 %1899
        %1901 = vrot.lane.b32.xlu0 %v1898, 127
        %v1902 = vpop.permute.xlu0 %1901
        %v1903 = vrot.slane %v1900, 6
        %v1904 = vrot.slane %v1902, 6
        %vm1905 = vcmask 1039360
        %v1906 = vsel %vm1905, %v1903, %v1900
        %v1907 = vsel %vm684, %v1903, %v1904
        %v1908 = vsel %vm1905, %v1907, %v1902
        %v1912 = vmul.bf16 %v1766, %v1906
        %v1913 = vmul.bf16 %v1767, %v1908
        %v1914 = vmul.bf16 %v1768, %v1904
        %v1915 = vld [vmem:[%s3] sm:$0x3]
        %v1918 = vunpack.c.l.s4 1983009808
        %v1919 = vunpack.c.0.s8 %v1918
        %v1920 = vlaneseq
        %v1921 = vshrl.u32 %v1920, 7
        %v1922 = vsub.s32 %v1919, %v1921
        %v1923 = vrot.slane %v1915, %v1922
        %1924 = vrot.lane.b32.xlu0 %v1923, 116
        %v1925 = vpop.permute.xlu0 %1924
        %v1929 = vcombine.high %v1912, %v1912
        %v1931 = vunpack.c.l.s4 1983009808
        %v1932 = vunpack.c.0.s8 %v1931
        %v1933 = vlaneseq
        %v1934 = vshrl.u32 %v1933, 7
        %v1935 = vsub.s32 %v1932, %v1934
        %v1936 = vrot.slane %v1912, %v1935
        %v1938 = vunpack.c.l.s4 1983009808
        %v1939 = vunpack.c.0.s8 %v1938
        %v1940 = vlaneseq
        %v1941 = vshrl.u32 %v1940, 7
        %v1942 = vsub.s32 %v1939, %v1941
        %v1943 = vrot.slane %v1929, %v1942
        %v1944 = vcombine.high %v1936, %v1936
        %v1945 = vcombine.high %v1943, %v1943
        %v1946 = vcombine.high %v1913, %v1913
        %v1948 = vunpack.c.l.s4 1983009808
        %v1949 = vunpack.c.0.s8 %v1948
        %v1950 = vlaneseq
        %v1951 = vshrl.u32 %v1950, 7
        %v1952 = vsub.s32 %v1949, %v1951
        %v1953 = vrot.slane %v1913, %v1952
        %v1955 = vunpack.c.l.s4 1983009808
        %v1956 = vunpack.c.0.s8 %v1955
        %v1957 = vlaneseq
        %v1958 = vshrl.u32 %v1957, 7
        %v1959 = vsub.s32 %v1956, %v1958
        %v1960 = vrot.slane %v1946, %v1959
        %v1961 = vcombine.high %v1953, %v1953
        %v1962 = vcombine.high %v1960, %v1960
        %v1964 = vunpack.c.l.s4 1983009808
        %v1965 = vunpack.c.0.s8 %v1964
        %v1966 = vlaneseq
        %v1967 = vshrl.u32 %v1966, 7
        %v1968 = vsub.s32 %v1965, %v1967
        %v1969 = vrot.slane %v1914, %v1968
        %1970 = vrot.lane.b32.xlu0 %v1936, 1
        %v1971 = vpop.permute.xlu0 %1970
        %1972 = vrot.lane.b32.xlu0 %v1944, 1
        %v1973 = vpop.permute.xlu0 %1972
        %1974 = vrot.lane.b32.xlu0 %v1943, 1
        %v1975 = vpop.permute.xlu0 %1974
        %1976 = vrot.lane.b32.xlu0 %v1945, 1
        %v1977 = vpop.permute.xlu0 %1976
        %1978 = vrot.lane.b32.xlu0 %v1953, 1
        %v1979 = vpop.permute.xlu0 %1978
        %1980 = vrot.lane.b32.xlu0 %v1961, 1
        %v1981 = vpop.permute.xlu0 %1980
        %1982 = vrot.lane.b32.xlu0 %v1960, 1
        %v1983 = vpop.permute.xlu0 %1982
        %1984 = vrot.lane.b32.xlu0 %v1962, 1
        %v1985 = vpop.permute.xlu0 %1984
        %1986 = vrot.lane.b32.xlu0 %v1969, 1
        %v1987 = vpop.permute.xlu0 %1986
        %vm1988 = vcmask 7168
        %v1989 = vsel %vm1988, %v1971, %v1973
        %v1990 = vsel %vm1988, %v1973, %v1975
        %v1991 = vsel %vm1988, %v1975, %v1977
        %v1992 = vsel %vm1988, %v1977, %v1979
        %v1993 = vsel %vm1988, %v1979, %v1981
        %v1994 = vsel %vm1988, %v1981, %v1983
        %v1995 = vsel %vm1988, %v1983, %v1985
        %v1996 = vsel %vm1988, %v1985, %v1987
        %v1998 = vsel %vm889, %v1925, 0
        %v2001 = vsel %vm893, %v1989, 0
        %v2004 = vsel %vm893, %v1990, 0
        %v2007 = vsel %vm893, %v1991, 0
        %v2010 = vsel %vm893, %v1992, 0
        %v2013 = vsel %vm893, %v1993, 0
        %v2016 = vsel %vm893, %v1994, 0
        %v2019 = vsel %vm893, %v1995, 0
        %v2022 = vsel %vm893, %v1996, 0
        %2024 = vmatprep.subr.bf16.mxu0 %v2004
        %2025 = vmatpush1.bf16.msra.mxu0 %v2001
        %2026 = vmatprep.subr.bf16.mxu0 0
        %2027 = vmatpush1.bf16.msra.mxu0 0
        %2028 = vmatprep.subr.bf16.mxu0 0
        %2029 = vmatpush1.bf16.msra.mxu0 0
        %2030 = vmatprep.subr.bf16.mxu0 0
        %2031 = vmatpush1.bf16.msra.mxu0 0
        %2032 = vmatprep.subr.bf16.mxu0 0
        %2033 = vmatpush1.bf16.msra.mxu0 0
        %2034 = vmatprep.subr.bf16.mxu0 0
        %2035 = vmatpush1.bf16.msra.mxu0 0
        %2036 = vmatprep.subr.bf16.mxu0 0
        %2037 = vmatpush1.bf16.msra.mxu0 0
        %2038 = vmatprep.subr.bf16.mxu0 0
        %2039 = vmatpush1.bf16.msra.mxu0 0
        %2040 = vmatprep.subr.bf16.mxu0 0
        %2041 = vmatpush1.bf16.msra.mxu0 0
        %2042 = vmatprep.subr.bf16.mxu0 0
        %2043 = vmatpush1.bf16.msra.mxu0 0
        %2044 = vmatprep.subr.bf16.mxu0 0
        %2045 = vmatpush1.bf16.msra.mxu0 0
        %2046 = vmatprep.subr.bf16.mxu0 0
        %2047 = vmatpush1.bf16.msra.mxu0 0
        %2048 = vmatprep.subr.bf16.mxu0 0
        %2049 = vmatpush1.bf16.msra.mxu0 0
        %2050 = vmatprep.subr.bf16.mxu0 0
        %2051 = vmatpush1.bf16.msra.mxu0 0
        %2052 = vmatprep.subr.bf16.mxu0 0
        %2053 = vmatpush1.bf16.msra.mxu0 0
        %2054 = vmatprep.subr.bf16.mxu0 0
        %2055 = vmatpush1.bf16.msra.mxu0 0
        %2056 = vmatprep.mubr.bf16.mxu0 0
        %2057 = vmatmul.mubr.bf16.gmra.mrb[0].mxu0 %v1998
        %v2058 = vpop.f32.mrb[0].mxu0
        %v2059 = vadd.f32 0.0, %v2058
        %v2060 = vpop.f32.mrb[0].mxu0
        %v2061 = vadd.f32 0.0, %v2060
        %v2062 = vpop.f32.mrb[0].mxu0
        %v2063 = vpop.f32.mrb[0].mxu0
        %2064 = vdwg.mxu0
        %2065 = vmatprep.subr.bf16.mxu0 %v2010
        %2066 = vmatpush1.bf16.msra.mxu0 %v2007
        %2067 = vmatprep.subr.bf16.mxu0 0
        %2068 = vmatpush1.bf16.msra.mxu0 0
        %2069 = vmatprep.subr.bf16.mxu0 0
        %2070 = vmatpush1.bf16.msra.mxu0 0
        %2071 = vmatprep.subr.bf16.mxu0 0
        %2072 = vmatpush1.bf16.msra.mxu0 0
        %2073 = vmatprep.subr.bf16.mxu0 0
        %2074 = vmatpush1.bf16.msra.mxu0 0
        %2075 = vmatprep.subr.bf16.mxu0 0
        %2076 = vmatpush1.bf16.msra.mxu0 0
        %2077 = vmatprep.subr.bf16.mxu0 0
        %2078 = vmatpush1.bf16.msra.mxu0 0
        %2079 = vmatprep.subr.bf16.mxu0 0
        %2080 = vmatpush1.bf16.msra.mxu0 0
        %2081 = vmatprep.subr.bf16.mxu0 0
        %2082 = vmatpush1.bf16.msra.mxu0 0
        %2083 = vmatprep.subr.bf16.mxu0 0
        %2084 = vmatpush1.bf16.msra.mxu0 0
        %2085 = vmatprep.subr.bf16.mxu0 0
        %2086 = vmatpush1.bf16.msra.mxu0 0
        %2087 = vmatprep.subr.bf16.mxu0 0
        %2088 = vmatpush1.bf16.msra.mxu0 0
        %2089 = vmatprep.subr.bf16.mxu0 0
        %2090 = vmatpush1.bf16.msra.mxu0 0
        %2091 = vmatprep.subr.bf16.mxu0 0
        %2092 = vmatpush1.bf16.msra.mxu0 0
        %2093 = vmatprep.subr.bf16.mxu0 0
        %2094 = vmatpush1.bf16.msra.mxu0 0
        %2095 = vmatprep.subr.bf16.mxu0 0
        %2096 = vmatpush1.bf16.msra.mxu0 0
        %2097 = vmatprep.mubr.bf16.mxu0 0
        %2098 = vmatmul.mubr.bf16.gmra.mrb[0].mxu0 %v1998
        %v2099 = vpop.f32.mrb[0].mxu0
        %v2100 = vadd.f32 0.0, %v2099
        %v2101 = vpop.f32.mrb[0].mxu0
        %v2102 = vadd.f32 0.0, %v2101
        %v2103 = vpop.f32.mrb[0].mxu0
        %v2104 = vpop.f32.mrb[0].mxu0
        %2105 = vdwg.mxu0
        %2106 = vmatprep.subr.bf16.mxu0 %v2016
        %2107 = vmatpush1.bf16.msra.mxu0 %v2013
        %2108 = vmatprep.subr.bf16.mxu0 0
        %2109 = vmatpush1.bf16.msra.mxu0 0
        %2110 = vmatprep.subr.bf16.mxu0 0
        %2111 = vmatpush1.bf16.msra.mxu0 0
        %2112 = vmatprep.subr.bf16.mxu0 0
        %2113 = vmatpush1.bf16.msra.mxu0 0
        %2114 = vmatprep.subr.bf16.mxu0 0
        %2115 = vmatpush1.bf16.msra.mxu0 0
        %2116 = vmatprep.subr.bf16.mxu0 0
        %2117 = vmatpush1.bf16.msra.mxu0 0
        %2118 = vmatprep.subr.bf16.mxu0 0
        %2119 = vmatpush1.bf16.msra.mxu0 0
        %2120 = vmatprep.subr.bf16.mxu0 0
        %2121 = vmatpush1.bf16.msra.mxu0 0
        %2122 = vmatprep.subr.bf16.mxu0 0
        %2123 = vmatpush1.bf16.msra.mxu0 0
        %2124 = vmatprep.subr.bf16.mxu0 0
        %2125 = vmatpush1.bf16.msra.mxu0 0
        %2126 = vmatprep.subr.bf16.mxu0 0
        %2127 = vmatpush1.bf16.msra.mxu0 0
        %2128 = vmatprep.subr.bf16.mxu0 0
        %2129 = vmatpush1.bf16.msra.mxu0 0
        %2130 = vmatprep.subr.bf16.mxu0 0
        %2131 = vmatpush1.bf16.msra.mxu0 0
        %2132 = vmatprep.subr.bf16.mxu0 0
        %2133 = vmatpush1.bf16.msra.mxu0 0
        %2134 = vmatprep.subr.bf16.mxu0 0
        %2135 = vmatpush1.bf16.msra.mxu0 0
        %2136 = vmatprep.subr.bf16.mxu0 0
        %2137 = vmatpush1.bf16.msra.mxu0 0
        %2138 = vmatprep.mubr.bf16.mxu0 0
        %2139 = vmatmul.mubr.bf16.gmra.mrb[0].mxu0 %v1998
        %v2140 = vpop.f32.mrb[0].mxu0
        %v2141 = vadd.f32 0.0, %v2140
        %v2142 = vpop.f32.mrb[0].mxu0
        %v2143 = vadd.f32 0.0, %v2142
        %v2144 = vpop.f32.mrb[0].mxu0
        %v2145 = vpop.f32.mrb[0].mxu0
        %2146 = vdwg.mxu0
        %2147 = vmatprep.subr.bf16.mxu0 %v2022
        %2148 = vmatpush1.bf16.msra.mxu0 %v2019
        %2149 = vmatprep.subr.bf16.mxu0 0
        %2150 = vmatpush1.bf16.msra.mxu0 0
        %2151 = vmatprep.subr.bf16.mxu0 0
        %2152 = vmatpush1.bf16.msra.mxu0 0
        %2153 = vmatprep.subr.bf16.mxu0 0
        %2154 = vmatpush1.bf16.msra.mxu0 0
        %2155 = vmatprep.subr.bf16.mxu0 0
        %2156 = vmatpush1.bf16.msra.mxu0 0
        %2157 = vmatprep.subr.bf16.mxu0 0
        %2158 = vmatpush1.bf16.msra.mxu0 0
        %2159 = vmatprep.subr.bf16.mxu0 0
        %2160 = vmatpush1.bf16.msra.mxu0 0
        %2161 = vmatprep.subr.bf16.mxu0 0
        %2162 = vmatpush1.bf16.msra.mxu0 0
        %2163 = vmatprep.subr.bf16.mxu0 0
        %2164 = vmatpush1.bf16.msra.mxu0 0
        %2165 = vmatprep.subr.bf16.mxu0 0
        %2166 = vmatpush1.bf16.msra.mxu0 0
        %2167 = vmatprep.subr.bf16.mxu0 0
        %2168 = vmatpush1.bf16.msra.mxu0 0
        %2169 = vmatprep.subr.bf16.mxu0 0
        %2170 = vmatpush1.bf16.msra.mxu0 0
        %2171 = vmatprep.subr.bf16.mxu0 0
        %2172 = vmatpush1.bf16.msra.mxu0 0
        %2173 = vmatprep.subr.bf16.mxu0 0
        %2174 = vmatpush1.bf16.msra.mxu0 0
        %2175 = vmatprep.subr.bf16.mxu0 0
        %2176 = vmatpush1.bf16.msra.mxu0 0
        %2177 = vmatprep.subr.bf16.mxu0 0
        %2178 = vmatpush1.bf16.msra.mxu0 0
        %2179 = vmatprep.mubr.bf16.mxu0 0
        %2180 = vmatmul.mubr.bf16.gmra.mrb[0].mxu0 %v1998
        %v2181 = vpop.f32.mrb[0].mxu0
        %v2182 = vadd.f32 0.0, %v2181
        %v2183 = vpop.f32.mrb[0].mxu0
        %v2184 = vadd.f32 0.0, %v2183
        %v2185 = vpop.f32.mrb[0].mxu0
        %v2186 = vpop.f32.mrb[0].mxu0
        %2187 = vdwg.mxu0
        %v2188 = vadd.f32 %v1758, %v2059
        %v2189 = vadd.f32 %v1759, %v2061
        %v2190 = vadd.f32 %v1760, %v2100
        %v2191 = vadd.f32 %v1761, %v2102
        %v2192 = vadd.f32 %v1762, %v2141
        %v2193 = vadd.f32 %v1763, %v2143
        %v2194 = vadd.f32 %v1764, %v2182
        %v2195 = vadd.f32 %v1765, %v2184
        %v2196 = vld [vmem:[#allocation2 + $0x2] sm:$0xff]
        %v2197 = vld [vmem:[#allocation2 + $0xa] sm:$0xff]
        %v2198 = vld [vmem:[%s3] sm:$0x3]
        %v2201 = vunpack.c.l.s4 1983009808
        %v2202 = vunpack.c.0.s8 %v2201
        %v2203 = vlaneseq
        %v2204 = vshrl.u32 %v2203, 7
        %v2205 = vsub.s32 %v2202, %v2204
        %v2206 = vrot.slane %v2198, %v2205
        %2207 = vrot.lane.b32.xlu0 %v2206, 112
        %v2208 = vpop.permute.xlu0 %2207
        %v2211 = vcombine.high %v2196, %v2196
        %v2213 = vunpack.c.l.s4 1983009808
        %v2214 = vunpack.c.0.s8 %v2213
        %v2215 = vlaneseq
        %v2216 = vshrl.u32 %v2215, 7
        %v2217 = vsub.s32 %v2214, %v2216
        %v2218 = vrot.slane %v2196, %v2217
        %v2220 = vunpack.c.l.s4 1983009808
        %v2221 = vunpack.c.0.s8 %v2220
        %v2222 = vlaneseq
        %v2223 = vshrl.u32 %v2222, 7
        %v2224 = vsub.s32 %v2221, %v2223
        %v2225 = vrot.slane %v2211, %v2224
        %v2226 = vcombine.high %v2218, %v2218
        %v2227 = vcombine.high %v2225, %v2225
        %v2228 = vcombine.high %v2197, %v2197
        %v2230 = vunpack.c.l.s4 1983009808
        %v2231 = vunpack.c.0.s8 %v2230
        %v2232 = vlaneseq
        %v2233 = vshrl.u32 %v2232, 7
        %v2234 = vsub.s32 %v2231, %v2233
        %v2235 = vrot.slane %v2197, %v2234
        %v2237 = vunpack.c.l.s4 1983009808
        %v2238 = vunpack.c.0.s8 %v2237
        %v2239 = vlaneseq
        %v2240 = vshrl.u32 %v2239, 7
        %v2241 = vsub.s32 %v2238, %v2240
        %v2242 = vrot.slane %v2228, %v2241
        %v2243 = vcombine.high %v2235, %v2235
        %v2244 = vcombine.high %v2242, %v2242
        %v2246 = vsel %vm889, %v2208, 0
        %v2249 = vsel %vm893, %v2218, 0
        %v2252 = vsel %vm893, %v2226, 0
        %v2255 = vsel %vm893, %v2225, 0
        %v2258 = vsel %vm893, %v2227, 0
        %v2261 = vsel %vm893, %v2235, 0
        %v2264 = vsel %vm893, %v2243, 0
        %v2267 = vsel %vm893, %v2242, 0
        %v2270 = vsel %vm893, %v2244, 0
        %2272 = vmatprep.subr.bf16.mxu0 %v2252
        %2273 = vmatpush1.bf16.msra.mxu0 %v2249
        %2274 = vmatprep.subr.bf16.mxu0 0
        %2275 = vmatpush1.bf16.msra.mxu0 0
        %2276 = vmatprep.subr.bf16.mxu0 0
        %2277 = vmatpush1.bf16.msra.mxu0 0
        %2278 = vmatprep.subr.bf16.mxu0 0
        %2279 = vmatpush1.bf16.msra.mxu0 0
        %2280 = vmatprep.subr.bf16.mxu0 0
        %2281 = vmatpush1.bf16.msra.mxu0 0
        %2282 = vmatprep.subr.bf16.mxu0 0
        %2283 = vmatpush1.bf16.msra.mxu0 0
        %2284 = vmatprep.subr.bf16.mxu0 0
        %2285 = vmatpush1.bf16.msra.mxu0 0
        %2286 = vmatprep.subr.bf16.mxu0 0
        %2287 = vmatpush1.bf16.msra.mxu0 0
        %2288 = vmatprep.subr.bf16.mxu0 0
        %2289 = vmatpush1.bf16.msra.mxu0 0
        %2290 = vmatprep.subr.bf16.mxu0 0
        %2291 = vmatpush1.bf16.msra.mxu0 0
        %2292 = vmatprep.subr.bf16.mxu0 0
        %2293 = vmatpush1.bf16.msra.mxu0 0
        %2294 = vmatprep.subr.bf16.mxu0 0
        %2295 = vmatpush1.bf16.msra.mxu0 0
        %2296 = vmatprep.subr.bf16.mxu0 0
        %2297 = vmatpush1.bf16.msra.mxu0 0
        %2298 = vmatprep.subr.bf16.mxu0 0
        %2299 = vmatpush1.bf16.msra.mxu0 0
        %2300 = vmatprep.subr.bf16.mxu0 0
        %2301 = vmatpush1.bf16.msra.mxu0 0
        %2302 = vmatprep.subr.bf16.mxu0 0
        %2303 = vmatpush1.bf16.msra.mxu0 0
        %2304 = vmatprep.mubr.bf16.mxu0 0
        %2305 = vmatmul.mubr.bf16.gmra.mrb[0].mxu0 %v2246
        %v2306 = vpop.f32.mrb[0].mxu0
        %v2307 = vadd.f32 0.0, %v2306
        %v2308 = vpop.f32.mrb[0].mxu0
        %v2309 = vadd.f32 0.0, %v2308
        %v2310 = vpop.f32.mrb[0].mxu0
        %v2311 = vpop.f32.mrb[0].mxu0
        %2312 = vdwg.mxu0
        %2313 = vmatprep.subr.bf16.mxu0 %v2258
        %2314 = vmatpush1.bf16.msra.mxu0 %v2255
        %2315 = vmatprep.subr.bf16.mxu0 0
        %2316 = vmatpush1.bf16.msra.mxu0 0
        %2317 = vmatprep.subr.bf16.mxu0 0
        %2318 = vmatpush1.bf16.msra.mxu0 0
        %2319 = vmatprep.subr.bf16.mxu0 0
        %2320 = vmatpush1.bf16.msra.mxu0 0
        %2321 = vmatprep.subr.bf16.mxu0 0
        %2322 = vmatpush1.bf16.msra.mxu0 0
        %2323 = vmatprep.subr.bf16.mxu0 0
        %2324 = vmatpush1.bf16.msra.mxu0 0
        %2325 = vmatprep.subr.bf16.mxu0 0
        %2326 = vmatpush1.bf16.msra.mxu0 0
        %2327 = vmatprep.subr.bf16.mxu0 0
        %2328 = vmatpush1.bf16.msra.mxu0 0
        %2329 = vmatprep.subr.bf16.mxu0 0
        %2330 = vmatpush1.bf16.msra.mxu0 0
        %2331 = vmatprep.subr.bf16.mxu0 0
        %2332 = vmatpush1.bf16.msra.mxu0 0
        %2333 = vmatprep.subr.bf16.mxu0 0
        %2334 = vmatpush1.bf16.msra.mxu0 0
        %2335 = vmatprep.subr.bf16.mxu0 0
        %2336 = vmatpush1.bf16.msra.mxu0 0
        %2337 = vmatprep.subr.bf16.mxu0 0
        %2338 = vmatpush1.bf16.msra.mxu0 0
        %2339 = vmatprep.subr.bf16.mxu0 0
        %2340 = vmatpush1.bf16.msra.mxu0 0
        %2341 = vmatprep.subr.bf16.mxu0 0
        %2342 = vmatpush1.bf16.msra.mxu0 0
        %2343 = vmatprep.subr.bf16.mxu0 0
        %2344 = vmatpush1.bf16.msra.mxu0 0
        %2345 = vmatprep.mubr.bf16.mxu0 0
        %2346 = vmatmul.mubr.bf16.gmra.mrb[0].mxu0 %v2246
        %v2347 = vpop.f32.mrb[0].mxu0
        %v2348 = vadd.f32 0.0, %v2347
        %v2349 = vpop.f32.mrb[0].mxu0
        %v2350 = vadd.f32 0.0, %v2349
        %v2351 = vpop.f32.mrb[0].mxu0
        %v2352 = vpop.f32.mrb[0].mxu0
        %2353 = vdwg.mxu0
        %2354 = vmatprep.subr.bf16.mxu0 %v2264
        %2355 = vmatpush1.bf16.msra.mxu0 %v2261
        %2356 = vmatprep.subr.bf16.mxu0 0
        %2357 = vmatpush1.bf16.msra.mxu0 0
        %2358 = vmatprep.subr.bf16.mxu0 0
        %2359 = vmatpush1.bf16.msra.mxu0 0
        %2360 = vmatprep.subr.bf16.mxu0 0
        %2361 = vmatpush1.bf16.msra.mxu0 0
        %2362 = vmatprep.subr.bf16.mxu0 0
        %2363 = vmatpush1.bf16.msra.mxu0 0
        %2364 = vmatprep.subr.bf16.mxu0 0
        %2365 = vmatpush1.bf16.msra.mxu0 0
        %2366 = vmatprep.subr.bf16.mxu0 0
        %2367 = vmatpush1.bf16.msra.mxu0 0
        %2368 = vmatprep.subr.bf16.mxu0 0
        %2369 = vmatpush1.bf16.msra.mxu0 0
        %2370 = vmatprep.subr.bf16.mxu0 0
        %2371 = vmatpush1.bf16.msra.mxu0 0
        %2372 = vmatprep.subr.bf16.mxu0 0
        %2373 = vmatpush1.bf16.msra.mxu0 0
        %2374 = vmatprep.subr.bf16.mxu0 0
        %2375 = vmatpush1.bf16.msra.mxu0 0
        %2376 = vmatprep.subr.bf16.mxu0 0
        %2377 = vmatpush1.bf16.msra.mxu0 0
        %2378 = vmatprep.subr.bf16.mxu0 0
        %2379 = vmatpush1.bf16.msra.mxu0 0
        %2380 = vmatprep.subr.bf16.mxu0 0
        %2381 = vmatpush1.bf16.msra.mxu0 0
        %2382 = vmatprep.subr.bf16.mxu0 0
        %2383 = vmatpush1.bf16.msra.mxu0 0
        %2384 = vmatprep.subr.bf16.mxu0 0
        %2385 = vmatpush1.bf16.msra.mxu0 0
        %2386 = vmatprep.mubr.bf16.mxu0 0
        %2387 = vmatmul.mubr.bf16.gmra.mrb[0].mxu0 %v2246
        %v2388 = vpop.f32.mrb[0].mxu0
        %v2389 = vadd.f32 0.0, %v2388
        %v2390 = vpop.f32.mrb[0].mxu0
        %v2391 = vadd.f32 0.0, %v2390
        %v2392 = vpop.f32.mrb[0].mxu0
        %v2393 = vpop.f32.mrb[0].mxu0
        %2394 = vdwg.mxu0
        %2395 = vmatprep.subr.bf16.mxu0 %v2270
        %2396 = vmatpush1.bf16.msra.mxu0 %v2267
        %2397 = vmatprep.subr.bf16.mxu0 0
        %2398 = vmatpush1.bf16.msra.mxu0 0
        %2399 = vmatprep.subr.bf16.mxu0 0
        %2400 = vmatpush1.bf16.msra.mxu0 0
        %2401 = vmatprep.subr.bf16.mxu0 0
        %2402 = vmatpush1.bf16.msra.mxu0 0
        %2403 = vmatprep.subr.bf16.mxu0 0
        %2404 = vmatpush1.bf16.msra.mxu0 0
        %2405 = vmatprep.subr.bf16.mxu0 0
        %2406 = vmatpush1.bf16.msra.mxu0 0
        %2407 = vmatprep.subr.bf16.mxu0 0
        %2408 = vmatpush1.bf16.msra.mxu0 0
        %2409 = vmatprep.subr.bf16.mxu0 0
        %2410 = vmatpush1.bf16.msra.mxu0 0
        %2411 = vmatprep.subr.bf16.mxu0 0
        %2412 = vmatpush1.bf16.msra.mxu0 0
        %2413 = vmatprep.subr.bf16.mxu0 0
        %2414 = vmatpush1.bf16.msra.mxu0 0
        %2415 = vmatprep.subr.bf16.mxu0 0
        %2416 = vmatpush1.bf16.msra.mxu0 0
        %2417 = vmatprep.subr.bf16.mxu0 0
        %2418 = vmatpush1.bf16.msra.mxu0 0
        %2419 = vmatprep.subr.bf16.mxu0 0
        %2420 = vmatpush1.bf16.msra.mxu0 0
        %2421 = vmatprep.subr.bf16.mxu0 0
        %2422 = vmatpush1.bf16.msra.mxu0 0
        %2423 = vmatprep.subr.bf16.mxu0 0
        %2424 = vmatpush1.bf16.msra.mxu0 0
        %2425 = vmatprep.subr.bf16.mxu0 0
        %2426 = vmatpush1.bf16.msra.mxu0 0
        %2427 = vmatprep.mubr.bf16.mxu0 0
        %2428 = vmatmul.mubr.bf16.gmra.mrb[0].mxu0 %v2246
        %v2429 = vpop.f32.mrb[0].mxu0
        %v2430 = vadd.f32 0.0, %v2429
        %v2431 = vpop.f32.mrb[0].mxu0
        %v2432 = vadd.f32 0.0, %v2431
        %v2433 = vpop.f32.mrb[0].mxu0
        %v2434 = vpop.f32.mrb[0].mxu0
        %2435 = vdwg.mxu0
        %v2436 = vadd.f32 %v2188, %v2307
        %v2437 = vadd.f32 %v2189, %v2309
        %v2438 = vadd.f32 %v2190, %v2348
        %v2439 = vadd.f32 %v2191, %v2350
        %v2440 = vadd.f32 %v2192, %v2389
        %v2441 = vadd.f32 %v2193, %v2391
        %v2442 = vadd.f32 %v2194, %v2430
        %v2443 = vadd.f32 %v2195, %v2432
        %v2444 = vld [vmem:[#allocation2 + $0x2] sm:$0xff]
        %v2445 = vld [vmem:[#allocation2 + $0xa] sm:$0xff]
        %v2446 = vld [vmem:[#allocation2 + $0x12] sm:$0x3]
        %v2447 = vld [vmem:[#allocation6] sm:$0x44]
        %v2448 = vld [vmem:[#allocation6 + $0x8] sm:$0x44]
        %v2449 = vld [vmem:[#allocation6 + $0x10] sm:$0x44]
        %v2450 = vld [vmem:[#allocation6 + $0x18] sm:$0x44]
        %v2455 = vunpack.c.l.b16 %v2447
        %v2456 = vunpack.c.h.b16 %v2447
        %v2457 = vunpack.c.l.b16 %v2448
        %v2458 = vunpack.c.h.b16 %v2448
        %v2459 = vunpack.c.l.b16 %v2449
        %v2460 = vunpack.c.h.b16 %v2449
        %v2461 = vunpack.c.l.b16 %v2450
        %v2462 = vunpack.c.h.b16 %v2450
        %v2463 = vpack.c.b16 %v2455, %v2455
        %v2464 = vpack.c.b16 %v2456, %v2456
        %v2465 = vpack.c.b16 %v2457, %v2457
        %v2466 = vpack.c.b16 %v2458, %v2458
        %v2467 = vpack.c.b16 %v2459, %v2459
        %v2468 = vpack.c.b16 %v2460, %v2460
        %v2469 = vpack.c.b16 %v2461, %v2461
        %v2470 = vpack.c.b16 %v2462, %v2462
        %v2472 = vshrl.u32 %v2463, 16
        %v2473 = vpack.i.b16 %v2472, %v2472
        %v2475 = vlaneseq
        %v2476 = vshrl.u32 %v2475, 7
        %v2477 = vsub.s32 2, %v2476
        %v2478 = vrot.slane %v2473, %v2477
        %v2480 = vshrl.u32 %v2464, 16
        %v2481 = vpack.i.b16 %v2480, %v2480
        %v2483 = vlaneseq
        %v2484 = vshrl.u32 %v2483, 7
        %v2485 = vsub.s32 2, %v2484
        %v2486 = vrot.slane %v2481, %v2485
        %v2488 = vshrl.u32 %v2465, 16
        %v2489 = vpack.i.b16 %v2488, %v2488
        %v2491 = vlaneseq
        %v2492 = vshrl.u32 %v2491, 7
        %v2493 = vsub.s32 2, %v2492
        %v2494 = vrot.slane %v2489, %v2493
        %v2496 = vshrl.u32 %v2466, 16
        %v2497 = vpack.i.b16 %v2496, %v2496
        %v2499 = vlaneseq
        %v2500 = vshrl.u32 %v2499, 7
        %v2501 = vsub.s32 2, %v2500
        %v2502 = vrot.slane %v2497, %v2501
        %v2504 = vshrl.u32 %v2467, 16
        %v2505 = vpack.i.b16 %v2504, %v2504
        %v2507 = vlaneseq
        %v2508 = vshrl.u32 %v2507, 7
        %v2509 = vsub.s32 2, %v2508
        %v2510 = vrot.slane %v2505, %v2509
        %v2512 = vshrl.u32 %v2468, 16
        %v2513 = vpack.i.b16 %v2512, %v2512
        %v2515 = vlaneseq
        %v2516 = vshrl.u32 %v2515, 7
        %v2517 = vsub.s32 2, %v2516
        %v2518 = vrot.slane %v2513, %v2517
        %v2520 = vshrl.u32 %v2469, 16
        %v2521 = vpack.i.b16 %v2520, %v2520
        %v2523 = vlaneseq
        %v2524 = vshrl.u32 %v2523, 7
        %v2525 = vsub.s32 2, %v2524
        %v2526 = vrot.slane %v2521, %v2525
        %v2528 = vshrl.u32 %v2470, 16
        %v2529 = vpack.i.b16 %v2528, %v2528
        %v2531 = vlaneseq
        %v2532 = vshrl.u32 %v2531, 7
        %v2533 = vsub.s32 2, %v2532
        %v2534 = vrot.slane %v2529, %v2533
        %v2543 = vcombine.low %v2478, %v2486
        %v2544 = vcombine.low %v2494, %v2502
        %v2546 = vunpack.c.l.s4 1983009808
        %v2547 = vunpack.c.0.s8 %v2546
        %v2548 = vlaneseq
        %v2549 = vshrl.u32 %v2548, 7
        %v2550 = vsub.s32 %v2547, %v2549
        %v2551 = vrot.slane %v2543, %v2550
        %v2553 = vunpack.c.l.s4 1983009808
        %v2554 = vunpack.c.0.s8 %v2553
        %v2555 = vlaneseq
        %v2556 = vshrl.u32 %v2555, 7
        %v2557 = vsub.s32 %v2554, %v2556
        %v2558 = vrot.slane %v2544, %v2557
        %v2559 = vcombine.low %v2551, %v2558
        %v2560 = vcombine.low %v2510, %v2518
        %v2561 = vcombine.low %v2526, %v2534
        %v2563 = vunpack.c.l.s4 1983009808
        %v2564 = vunpack.c.0.s8 %v2563
        %v2565 = vlaneseq
        %v2566 = vshrl.u32 %v2565, 7
        %v2567 = vsub.s32 %v2564, %v2566
        %v2568 = vrot.slane %v2560, %v2567
        %v2570 = vunpack.c.l.s4 1983009808
        %v2571 = vunpack.c.0.s8 %v2570
        %v2572 = vlaneseq
        %v2573 = vshrl.u32 %v2572, 7
        %v2574 = vsub.s32 %v2571, %v2573
        %v2575 = vrot.slane %v2561, %v2574
        %v2576 = vcombine.low %v2568, %v2575
        %2577 = vrot.lane.b32.xlu0 %v2559, 1
        %v2578 = vpop.permute.xlu0 %2577
        %2579 = vrot.lane.b32.xlu0 %v2576, 1
        %v2580 = vpop.permute.xlu0 %2579
        %v2581 = vrot.slane %v2578, 6
        %v2582 = vrot.slane %v2580, 6
        %v2583 = vsel %vm1988, %v2581, %v2578
        %v2584 = vsel %vm684, %v2581, %v2582
        %v2585 = vsel %vm1988, %v2584, %v2580
        %v2589 = vmul.bf16 %v2444, %v2583
        %v2590 = vmul.bf16 %v2445, %v2585
        %v2591 = vmul.bf16 %v2446, %v2582
        %v2592 = vld [vmem:[%s3] sm:$0x3]
        %v2595 = vunpack.c.l.s4 1983009808
        %v2596 = vunpack.c.0.s8 %v2595
        %v2597 = vlaneseq
        %v2598 = vshrl.u32 %v2597, 7
        %v2599 = vsub.s32 %v2596, %v2598
        %v2600 = vrot.slane %v2592, %v2599
        %2601 = vrot.lane.b32.xlu0 %v2600, 108
        %v2602 = vpop.permute.xlu0 %2601
        %v2606 = vcombine.high %v2589, %v2589
        %v2608 = vunpack.c.l.s4 1983009808
        %v2609 = vunpack.c.0.s8 %v2608
        %v2610 = vlaneseq
        %v2611 = vshrl.u32 %v2610, 7
        %v2612 = vsub.s32 %v2609, %v2611
        %v2613 = vrot.slane %v2589, %v2612
        %v2615 = vunpack.c.l.s4 1983009808
        %v2616 = vunpack.c.0.s8 %v2615
        %v2617 = vlaneseq
        %v2618 = vshrl.u32 %v2617, 7
        %v2619 = vsub.s32 %v2616, %v2618
        %v2620 = vrot.slane %v2606, %v2619
        %v2621 = vcombine.high %v2613, %v2613
        %v2622 = vcombine.high %v2620, %v2620
        %v2623 = vcombine.high %v2590, %v2590
        %v2625 = vunpack.c.l.s4 1983009808
        %v2626 = vunpack.c.0.s8 %v2625
        %v2627 = vlaneseq
        %v2628 = vshrl.u32 %v2627, 7
        %v2629 = vsub.s32 %v2626, %v2628
        %v2630 = vrot.slane %v2590, %v2629
        %v2632 = vunpack.c.l.s4 1983009808
        %v2633 = vunpack.c.0.s8 %v2632
        %v2634 = vlaneseq
        %v2635 = vshrl.u32 %v2634, 7
        %v2636 = vsub.s32 %v2633, %v2635
        %v2637 = vrot.slane %v2623, %v2636
        %v2638 = vcombine.high %v2630, %v2630
        %v2639 = vcombine.high %v2637, %v2637
        %v2641 = vunpack.c.l.s4 1983009808
        %v2642 = vunpack.c.0.s8 %v2641
        %v2643 = vlaneseq
        %v2644 = vshrl.u32 %v2643, 7
        %v2645 = vsub.s32 %v2642, %v2644
        %v2646 = vrot.slane %v2591, %v2645
        %2647 = vrot.lane.b32.xlu0 %v2613, 127
        %v2648 = vpop.permute.xlu0 %2647
        %2649 = vrot.lane.b32.xlu0 %v2621, 127
        %v2650 = vpop.permute.xlu0 %2649
        %2651 = vrot.lane.b32.xlu0 %v2620, 127
        %v2652 = vpop.permute.xlu0 %2651
        %2653 = vrot.lane.b32.xlu0 %v2622, 127
        %v2654 = vpop.permute.xlu0 %2653
        %2655 = vrot.lane.b32.xlu0 %v2630, 127
        %v2656 = vpop.permute.xlu0 %2655
        %2657 = vrot.lane.b32.xlu0 %v2638, 127
        %v2658 = vpop.permute.xlu0 %2657
        %2659 = vrot.lane.b32.xlu0 %v2637, 127
        %v2660 = vpop.permute.xlu0 %2659
        %2661 = vrot.lane.b32.xlu0 %v2639, 127
        %v2662 = vpop.permute.xlu0 %2661
        %2663 = vrot.lane.b32.xlu0 %v2646, 127
        %v2664 = vpop.permute.xlu0 %2663
        %v2665 = vsel %vm1905, %v2648, %v2650
        %v2666 = vsel %vm1905, %v2650, %v2652
        %v2667 = vsel %vm1905, %v2652, %v2654
        %v2668 = vsel %vm1905, %v2654, %v2656
        %v2669 = vsel %vm1905, %v2656, %v2658
        %v2670 = vsel %vm1905, %v2658, %v2660
        %v2671 = vsel %vm1905, %v2660, %v2662
        %v2672 = vsel %vm1905, %v2662, %v2664
        %v2674 = vsel %vm889, %v2602, 0
        %v2677 = vsel %vm893, %v2665, 0
        %v2680 = vsel %vm893, %v2666, 0
        %v2683 = vsel %vm893, %v2667, 0
        %v2686 = vsel %vm893, %v2668, 0
        %v2689 = vsel %vm893, %v2669, 0
        %v2692 = vsel %vm893, %v2670, 0
        %v2695 = vsel %vm893, %v2671, 0
        %v2698 = vsel %vm893, %v2672, 0
        %2700 = vmatprep.subr.bf16.mxu0 %v2680
        %2701 = vmatpush1.bf16.msra.mxu0 %v2677
        %2702 = vmatprep.subr.bf16.mxu0 0
        %2703 = vmatpush1.bf16.msra.mxu0 0
        %2704 = vmatprep.subr.bf16.mxu0 0
        %2705 = vmatpush1.bf16.msra.mxu0 0
        %2706 = vmatprep.subr.bf16.mxu0 0
        %2707 = vmatpush1.bf16.msra.mxu0 0
        %2708 = vmatprep.subr.bf16.mxu0 0
        %2709 = vmatpush1.bf16.msra.mxu0 0
        %2710 = vmatprep.subr.bf16.mxu0 0
        %2711 = vmatpush1.bf16.msra.mxu0 0
        %2712 = vmatprep.subr.bf16.mxu0 0
        %2713 = vmatpush1.bf16.msra.mxu0 0
        %2714 = vmatprep.subr.bf16.mxu0 0
        %2715 = vmatpush1.bf16.msra.mxu0 0
        %2716 = vmatprep.subr.bf16.mxu0 0
        %2717 = vmatpush1.bf16.msra.mxu0 0
        %2718 = vmatprep.subr.bf16.mxu0 0
        %2719 = vmatpush1.bf16.msra.mxu0 0
        %2720 = vmatprep.subr.bf16.mxu0 0
        %2721 = vmatpush1.bf16.msra.mxu0 0
        %2722 = vmatprep.subr.bf16.mxu0 0
        %2723 = vmatpush1.bf16.msra.mxu0 0
        %2724 = vmatprep.subr.bf16.mxu0 0
        %2725 = vmatpush1.bf16.msra.mxu0 0
        %2726 = vmatprep.subr.bf16.mxu0 0
        %2727 = vmatpush1.bf16.msra.mxu0 0
        %2728 = vmatprep.subr.bf16.mxu0 0
        %2729 = vmatpush1.bf16.msra.mxu0 0
        %2730 = vmatprep.subr.bf16.mxu0 0
        %2731 = vmatpush1.bf16.msra.mxu0 0
        %2732 = vmatprep.mubr.bf16.mxu0 0
        %2733 = vmatmul.mubr.bf16.gmra.mrb[0].mxu0 %v2674
        %v2734 = vpop.f32.mrb[0].mxu0
        %v2735 = vadd.f32 0.0, %v2734
        %v2736 = vpop.f32.mrb[0].mxu0
        %v2737 = vadd.f32 0.0, %v2736
        %v2738 = vpop.f32.mrb[0].mxu0
        %v2739 = vpop.f32.mrb[0].mxu0
        %2740 = vdwg.mxu0
        %2741 = vmatprep.subr.bf16.mxu0 %v2686
        %2742 = vmatpush1.bf16.msra.mxu0 %v2683
        %2743 = vmatprep.subr.bf16.mxu0 0
        %2744 = vmatpush1.bf16.msra.mxu0 0
        %2745 = vmatprep.subr.bf16.mxu0 0
        %2746 = vmatpush1.bf16.msra.mxu0 0
        %2747 = vmatprep.subr.bf16.mxu0 0
        %2748 = vmatpush1.bf16.msra.mxu0 0
        %2749 = vmatprep.subr.bf16.mxu0 0
        %2750 = vmatpush1.bf16.msra.mxu0 0
        %2751 = vmatprep.subr.bf16.mxu0 0
        %2752 = vmatpush1.bf16.msra.mxu0 0
        %2753 = vmatprep.subr.bf16.mxu0 0
        %2754 = vmatpush1.bf16.msra.mxu0 0
        %2755 = vmatprep.subr.bf16.mxu0 0
        %2756 = vmatpush1.bf16.msra.mxu0 0
        %2757 = vmatprep.subr.bf16.mxu0 0
        %2758 = vmatpush1.bf16.msra.mxu0 0
        %2759 = vmatprep.subr.bf16.mxu0 0
        %2760 = vmatpush1.bf16.msra.mxu0 0
        %2761 = vmatprep.subr.bf16.mxu0 0
        %2762 = vmatpush1.bf16.msra.mxu0 0
        %2763 = vmatprep.subr.bf16.mxu0 0
        %2764 = vmatpush1.bf16.msra.mxu0 0
        %2765 = vmatprep.subr.bf16.mxu0 0
        %2766 = vmatpush1.bf16.msra.mxu0 0
        %2767 = vmatprep.subr.bf16.mxu0 0
        %2768 = vmatpush1.bf16.msra.mxu0 0
        %2769 = vmatprep.subr.bf16.mxu0 0
        %2770 = vmatpush1.bf16.msra.mxu0 0
        %2771 = vmatprep.subr.bf16.mxu0 0
        %2772 = vmatpush1.bf16.msra.mxu0 0
        %2773 = vmatprep.mubr.bf16.mxu0 0
        %2774 = vmatmul.mubr.bf16.gmra.mrb[0].mxu0 %v2674
        %v2775 = vpop.f32.mrb[0].mxu0
        %v2776 = vadd.f32 0.0, %v2775
        %v2777 = vpop.f32.mrb[0].mxu0
        %v2778 = vadd.f32 0.0, %v2777
        %v2779 = vpop.f32.mrb[0].mxu0
        %v2780 = vpop.f32.mrb[0].mxu0
        %2781 = vdwg.mxu0
        %2782 = vmatprep.subr.bf16.mxu0 %v2692
        %2783 = vmatpush1.bf16.msra.mxu0 %v2689
        %2784 = vmatprep.subr.bf16.mxu0 0
        %2785 = vmatpush1.bf16.msra.mxu0 0
        %2786 = vmatprep.subr.bf16.mxu0 0
        %2787 = vmatpush1.bf16.msra.mxu0 0
        %2788 = vmatprep.subr.bf16.mxu0 0
        %2789 = vmatpush1.bf16.msra.mxu0 0
        %2790 = vmatprep.subr.bf16.mxu0 0
        %2791 = vmatpush1.bf16.msra.mxu0 0
        %2792 = vmatprep.subr.bf16.mxu0 0
        %2793 = vmatpush1.bf16.msra.mxu0 0
        %2794 = vmatprep.subr.bf16.mxu0 0
        %2795 = vmatpush1.bf16.msra.mxu0 0
        %2796 = vmatprep.subr.bf16.mxu0 0
        %2797 = vmatpush1.bf16.msra.mxu0 0
        %2798 = vmatprep.subr.bf16.mxu0 0
        %2799 = vmatpush1.bf16.msra.mxu0 0
        %2800 = vmatprep.subr.bf16.mxu0 0
        %2801 = vmatpush1.bf16.msra.mxu0 0
        %2802 = vmatprep.subr.bf16.mxu0 0
        %2803 = vmatpush1.bf16.msra.mxu0 0
        %2804 = vmatprep.subr.bf16.mxu0 0
        %2805 = vmatpush1.bf16.msra.mxu0 0
        %2806 = vmatprep.subr.bf16.mxu0 0
        %2807 = vmatpush1.bf16.msra.mxu0 0
        %2808 = vmatprep.subr.bf16.mxu0 0
        %2809 = vmatpush1.bf16.msra.mxu0 0
        %2810 = vmatprep.subr.bf16.mxu0 0
        %2811 = vmatpush1.bf16.msra.mxu0 0
        %2812 = vmatprep.subr.bf16.mxu0 0
        %2813 = vmatpush1.bf16.msra.mxu0 0
        %2814 = vmatprep.mubr.bf16.mxu0 0
        %2815 = vmatmul.mubr.bf16.gmra.mrb[0].mxu0 %v2674
        %v2816 = vpop.f32.mrb[0].mxu0
        %v2817 = vadd.f32 0.0, %v2816
        %v2818 = vpop.f32.mrb[0].mxu0
        %v2819 = vadd.f32 0.0, %v2818
        %v2820 = vpop.f32.mrb[0].mxu0
        %v2821 = vpop.f32.mrb[0].mxu0
        %2822 = vdwg.mxu0
        %2823 = vmatprep.subr.bf16.mxu0 %v2698
        %2824 = vmatpush1.bf16.msra.mxu0 %v2695
        %2825 = vmatprep.subr.bf16.mxu0 0
        %2826 = vmatpush1.bf16.msra.mxu0 0
        %2827 = vmatprep.subr.bf16.mxu0 0
        %2828 = vmatpush1.bf16.msra.mxu0 0
        %2829 = vmatprep.subr.bf16.mxu0 0
        %2830 = vmatpush1.bf16.msra.mxu0 0
        %2831 = vmatprep.subr.bf16.mxu0 0
        %2832 = vmatpush1.bf16.msra.mxu0 0
        %2833 = vmatprep.subr.bf16.mxu0 0
        %2834 = vmatpush1.bf16.msra.mxu0 0
        %2835 = vmatprep.subr.bf16.mxu0 0
        %2836 = vmatpush1.bf16.msra.mxu0 0
        %2837 = vmatprep.subr.bf16.mxu0 0
        %2838 = vmatpush1.bf16.msra.mxu0 0
        %2839 = vmatprep.subr.bf16.mxu0 0
        %2840 = vmatpush1.bf16.msra.mxu0 0
        %2841 = vmatprep.subr.bf16.mxu0 0
        %2842 = vmatpush1.bf16.msra.mxu0 0
        %2843 = vmatprep.subr.bf16.mxu0 0
        %2844 = vmatpush1.bf16.msra.mxu0 0
        %2845 = vmatprep.subr.bf16.mxu0 0
        %2846 = vmatpush1.bf16.msra.mxu0 0
        %2847 = vmatprep.subr.bf16.mxu0 0
        %2848 = vmatpush1.bf16.msra.mxu0 0
        %2849 = vmatprep.subr.bf16.mxu0 0
        %2850 = vmatpush1.bf16.msra.mxu0 0
        %2851 = vmatprep.subr.bf16.mxu0 0
        %2852 = vmatpush1.bf16.msra.mxu0 0
        %2853 = vmatprep.subr.bf16.mxu0 0
        %2854 = vmatpush1.bf16.msra.mxu0 0
        %2855 = vmatprep.mubr.bf16.mxu0 0
        %2856 = vmatmul.mubr.bf16.gmra.mrb[0].mxu0 %v2674
        %v2857 = vpop.f32.mrb[0].mxu0
        %v2858 = vadd.f32 0.0, %v2857
        %v2859 = vpop.f32.mrb[0].mxu0
        %v2860 = vadd.f32 0.0, %v2859
        %v2861 = vpop.f32.mrb[0].mxu0
        %v2862 = vpop.f32.mrb[0].mxu0
        %2863 = vdwg.mxu0
        %v2864 = vadd.f32 %v2436, %v2735
        %v2865 = vadd.f32 %v2437, %v2737
        %v2866 = vadd.f32 %v2438, %v2776
        %v2867 = vadd.f32 %v2439, %v2778
        %v2868 = vadd.f32 %v2440, %v2817
        %v2869 = vadd.f32 %v2441, %v2819
        %v2870 = vadd.f32 %v2442, %v2858
        %v2871 = vadd.f32 %v2443, %v2860
        %v2872 = vld [vmem:[#allocation2 + $0x2] sm:$0xff]
        %v2873 = vld [vmem:[#allocation2 + $0xa] sm:$0xff]
        %v2874 = vld [vmem:[#allocation2 + $0x12] sm:$0x3]
        %v2875 = vld [vmem:[#allocation6] sm:$0x88]
        %v2876 = vld [vmem:[#allocation6 + $0x8] sm:$0x88]
        %v2877 = vld [vmem:[#allocation6 + $0x10] sm:$0x88]
        %v2878 = vld [vmem:[#allocation6 + $0x18] sm:$0x88]
        %v2883 = vunpack.c.l.b16 %v2875
        %v2884 = vunpack.c.h.b16 %v2875
        %v2885 = vunpack.c.l.b16 %v2876
        %v2886 = vunpack.c.h.b16 %v2876
        %v2887 = vunpack.c.l.b16 %v2877
        %v2888 = vunpack.c.h.b16 %v2877
        %v2889 = vunpack.c.l.b16 %v2878
        %v2890 = vunpack.c.h.b16 %v2878
        %v2891 = vpack.c.b16 %v2883, %v2883
        %v2892 = vpack.c.b16 %v2884, %v2884
        %v2893 = vpack.c.b16 %v2885, %v2885
        %v2894 = vpack.c.b16 %v2886, %v2886
        %v2895 = vpack.c.b16 %v2887, %v2887
        %v2896 = vpack.c.b16 %v2888, %v2888
        %v2897 = vpack.c.b16 %v2889, %v2889
        %v2898 = vpack.c.b16 %v2890, %v2890
        %v2900 = vpack.i.b16 %v2891, %v2891
        %v2902 = vlaneseq
        %v2903 = vshrl.u32 %v2902, 7
        %v2904 = vsub.s32 3, %v2903
        %v2905 = vrot.slane %v2900, %v2904
        %v2907 = vpack.i.b16 %v2892, %v2892
        %v2909 = vlaneseq
        %v2910 = vshrl.u32 %v2909, 7
        %v2911 = vsub.s32 3, %v2910
        %v2912 = vrot.slane %v2907, %v2911
        %v2914 = vpack.i.b16 %v2893, %v2893
        %v2916 = vlaneseq
        %v2917 = vshrl.u32 %v2916, 7
        %v2918 = vsub.s32 3, %v2917
        %v2919 = vrot.slane %v2914, %v2918
        %v2921 = vpack.i.b16 %v2894, %v2894
        %v2923 = vlaneseq
        %v2924 = vshrl.u32 %v2923, 7
        %v2925 = vsub.s32 3, %v2924
        %v2926 = vrot.slane %v2921, %v2925
        %v2928 = vpack.i.b16 %v2895, %v2895
        %v2930 = vlaneseq
        %v2931 = vshrl.u32 %v2930, 7
        %v2932 = vsub.s32 3, %v2931
        %v2933 = vrot.slane %v2928, %v2932
        %v2935 = vpack.i.b16 %v2896, %v2896
        %v2937 = vlaneseq
        %v2938 = vshrl.u32 %v2937, 7
        %v2939 = vsub.s32 3, %v2938
        %v2940 = vrot.slane %v2935, %v2939
        %v2942 = vpack.i.b16 %v2897, %v2897
        %v2944 = vlaneseq
        %v2945 = vshrl.u32 %v2944, 7
        %v2946 = vsub.s32 3, %v2945
        %v2947 = vrot.slane %v2942, %v2946
        %v2949 = vpack.i.b16 %v2898, %v2898
        %v2951 = vlaneseq
        %v2952 = vshrl.u32 %v2951, 7
        %v2953 = vsub.s32 3, %v2952
        %v2954 = vrot.slane %v2949, %v2953
        %v2963 = vcombine.low %v2905, %v2912
        %v2964 = vcombine.low %v2919, %v2926
        %v2966 = vunpack.c.l.s4 1983009808
        %v2967 = vunpack.c.0.s8 %v2966
        %v2968 = vlaneseq
        %v2969 = vshrl.u32 %v2968, 7
        %v2970 = vsub.s32 %v2967, %v2969
        %v2971 = vrot.slane %v2963, %v2970
        %v2973 = vunpack.c.l.s4 1983009808
        %v2974 = vunpack.c.0.s8 %v2973
        %v2975 = vlaneseq
        %v2976 = vshrl.u32 %v2975, 7
        %v2977 = vsub.s32 %v2974, %v2976
        %v2978 = vrot.slane %v2964, %v2977
        %v2979 = vcombine.low %v2971, %v2978
        %v2980 = vcombine.low %v2933, %v2940
        %v2981 = vcombine.low %v2947, %v2954
        %v2983 = vunpack.c.l.s4 1983009808
        %v2984 = vunpack.c.0.s8 %v2983
        %v2985 = vlaneseq
        %v2986 = vshrl.u32 %v2985, 7
        %v2987 = vsub.s32 %v2984, %v2986
        %v2988 = vrot.slane %v2980, %v2987
        %v2990 = vunpack.c.l.s4 1983009808
        %v2991 = vunpack.c.0.s8 %v2990
        %v2992 = vlaneseq
        %v2993 = vshrl.u32 %v2992, 7
        %v2994 = vsub.s32 %v2991, %v2993
        %v2995 = vrot.slane %v2981, %v2994
        %v2996 = vcombine.low %v2988, %v2995
        %2997 = vrot.lane.b32.xlu0 %v2979, 7
        %v2998 = vpop.permute.xlu0 %2997
        %2999 = vrot.lane.b32.xlu0 %v2996, 7
        %v3000 = vpop.permute.xlu0 %2999
        %v3001 = vrot.slane %v2998, 6
        %v3002 = vrot.slane %v3000, 6
        %v3003 = vsel %vm1558, %v3001, %v2998
        %v3004 = vsel %vm684, %v3001, %v3002
        %v3005 = vsel %vm1558, %v3004, %v3000
        %v3009 = vmul.bf16 %v2872, %v3003
        %v3010 = vmul.bf16 %v2873, %v3005
        %v3011 = vmul.bf16 %v2874, %v3002
        %v3012 = vld [vmem:[%s3] sm:$0x3]
        %v3015 = vunpack.c.l.s4 1983009808
        %v3016 = vunpack.c.0.s8 %v3015
        %v3017 = vlaneseq
        %v3018 = vshrl.u32 %v3017, 7
        %v3019 = vsub.s32 %v3016, %v3018
        %v3020 = vrot.slane %v3012, %v3019
        %3021 = vrot.lane.b32.xlu0 %v3020, 104
        %v3022 = vpop.permute.xlu0 %3021
        %v3026 = vcombine.high %v3009, %v3009
        %v3028 = vunpack.c.l.s4 1983009808
        %v3029 = vunpack.c.0.s8 %v3028
        %v3030 = vlaneseq
        %v3031 = vshrl.u32 %v3030, 7
        %v3032 = vsub.s32 %v3029, %v3031
        %v3033 = vrot.slane %v3009, %v3032
        %v3035 = vunpack.c.l.s4 1983009808
        %v3036 = vunpack.c.0.s8 %v3035
        %v3037 = vlaneseq
        %v3038 = vshrl.u32 %v3037, 7
        %v3039 = vsub.s32 %v3036, %v3038
        %v3040 = vrot.slane %v3026, %v3039
        %v3041 = vcombine.high %v3033, %v3033
        %v3042 = vcombine.high %v3040, %v3040
        %v3043 = vcombine.high %v3010, %v3010
        %v3045 = vunpack.c.l.s4 1983009808
        %v3046 = vunpack.c.0.s8 %v3045
        %v3047 = vlaneseq
        %v3048 = vshrl.u32 %v3047, 7
        %v3049 = vsub.s32 %v3046, %v3048
        %v3050 = vrot.slane %v3010, %v3049
        %v3052 = vunpack.c.l.s4 1983009808
        %v3053 = vunpack.c.0.s8 %v3052
        %v3054 = vlaneseq
        %v3055 = vshrl.u32 %v3054, 7
        %v3056 = vsub.s32 %v3053, %v3055
        %v3057 = vrot.slane %v3043, %v3056
        %v3058 = vcombine.high %v3050, %v3050
        %v3059 = vcombine.high %v3057, %v3057
        %v3061 = vunpack.c.l.s4 1983009808
        %v3062 = vunpack.c.0.s8 %v3061
        %v3063 = vlaneseq
        %v3064 = vshrl.u32 %v3063, 7
        %v3065 = vsub.s32 %v3062, %v3064
        %v3066 = vrot.slane %v3011, %v3065
        %3067 = vrot.lane.b32.xlu0 %v3033, 121
        %v3068 = vpop.permute.xlu0 %3067
        %3069 = vrot.lane.b32.xlu0 %v3041, 121
        %v3070 = vpop.permute.xlu0 %3069
        %3071 = vrot.lane.b32.xlu0 %v3040, 121
        %v3072 = vpop.permute.xlu0 %3071
        %3073 = vrot.lane.b32.xlu0 %v3042, 121
        %v3074 = vpop.permute.xlu0 %3073
        %3075 = vrot.lane.b32.xlu0 %v3050, 121
        %v3076 = vpop.permute.xlu0 %3075
        %3077 = vrot.lane.b32.xlu0 %v3058, 121
        %v3078 = vpop.permute.xlu0 %3077
        %3079 = vrot.lane.b32.xlu0 %v3057, 121
        %v3080 = vpop.permute.xlu0 %3079
        %3081 = vrot.lane.b32.xlu0 %v3059, 121
        %v3082 = vpop.permute.xlu0 %3081
        %3083 = vrot.lane.b32.xlu0 %v3066, 121
        %v3084 = vpop.permute.xlu0 %3083
        %v3085 = vsel %vm1475, %v3068, %v3070
        %v3086 = vsel %vm1475, %v3070, %v3072
        %v3087 = vsel %vm1475, %v3072, %v3074
        %v3088 = vsel %vm1475, %v3074, %v3076
        %v3089 = vsel %vm1475, %v3076, %v3078
        %v3090 = vsel %vm1475, %v3078, %v3080
        %v3091 = vsel %vm1475, %v3080, %v3082
        %v3092 = vsel %vm1475, %v3082, %v3084
        %v3094 = vsel %vm889, %v3022, 0
        %v3097 = vsel %vm893, %v3085, 0
        %v3100 = vsel %vm893, %v3086, 0
        %v3103 = vsel %vm893, %v3087, 0
        %v3106 = vsel %vm893, %v3088, 0
        %v3109 = vsel %vm893, %v3089, 0
        %v3112 = vsel %vm893, %v3090, 0
        %v3115 = vsel %vm893, %v3091, 0
        %v3118 = vsel %vm893, %v3092, 0
        %3120 = vmatprep.subr.bf16.mxu0 %v3100
        %3121 = vmatpush1.bf16.msra.mxu0 %v3097
        %3122 = vmatprep.subr.bf16.mxu0 0
        %3123 = vmatpush1.bf16.msra.mxu0 0
        %3124 = vmatprep.subr.bf16.mxu0 0
        %3125 = vmatpush1.bf16.msra.mxu0 0
        %3126 = vmatprep.subr.bf16.mxu0 0
        %3127 = vmatpush1.bf16.msra.mxu0 0
        %3128 = vmatprep.subr.bf16.mxu0 0
        %3129 = vmatpush1.bf16.msra.mxu0 0
        %3130 = vmatprep.subr.bf16.mxu0 0
        %3131 = vmatpush1.bf16.msra.mxu0 0
        %3132 = vmatprep.subr.bf16.mxu0 0
        %3133 = vmatpush1.bf16.msra.mxu0 0
        %3134 = vmatprep.subr.bf16.mxu0 0
        %3135 = vmatpush1.bf16.msra.mxu0 0
        %3136 = vmatprep.subr.bf16.mxu0 0
        %3137 = vmatpush1.bf16.msra.mxu0 0
        %3138 = vmatprep.subr.bf16.mxu0 0
        %3139 = vmatpush1.bf16.msra.mxu0 0
        %3140 = vmatprep.subr.bf16.mxu0 0
        %3141 = vmatpush1.bf16.msra.mxu0 0
        %3142 = vmatprep.subr.bf16.mxu0 0
        %3143 = vmatpush1.bf16.msra.mxu0 0
        %3144 = vmatprep.subr.bf16.mxu0 0
        %3145 = vmatpush1.bf16.msra.mxu0 0
        %3146 = vmatprep.subr.bf16.mxu0 0
        %3147 = vmatpush1.bf16.msra.mxu0 0
        %3148 = vmatprep.subr.bf16.mxu0 0
        %3149 = vmatpush1.bf16.msra.mxu0 0
        %3150 = vmatprep.subr.bf16.mxu0 0
        %3151 = vmatpush1.bf16.msra.mxu0 0
        %3152 = vmatprep.mubr.bf16.mxu0 0
        %3153 = vmatmul.mubr.bf16.gmra.mrb[0].mxu0 %v3094
        %v3154 = vpop.f32.mrb[0].mxu0
        %v3155 = vadd.f32 0.0, %v3154
        %v3156 = vpop.f32.mrb[0].mxu0
        %v3157 = vadd.f32 0.0, %v3156
        %v3158 = vpop.f32.mrb[0].mxu0
        %v3159 = vpop.f32.mrb[0].mxu0
        %3160 = vdwg.mxu0
        %3161 = vmatprep.subr.bf16.mxu0 %v3106
        %3162 = vmatpush1.bf16.msra.mxu0 %v3103
        %3163 = vmatprep.subr.bf16.mxu0 0
        %3164 = vmatpush1.bf16.msra.mxu0 0
        %3165 = vmatprep.subr.bf16.mxu0 0
        %3166 = vmatpush1.bf16.msra.mxu0 0
        %3167 = vmatprep.subr.bf16.mxu0 0
        %3168 = vmatpush1.bf16.msra.mxu0 0
        %3169 = vmatprep.subr.bf16.mxu0 0
        %3170 = vmatpush1.bf16.msra.mxu0 0
        %3171 = vmatprep.subr.bf16.mxu0 0
        %3172 = vmatpush1.bf16.msra.mxu0 0
        %3173 = vmatprep.subr.bf16.mxu0 0
        %3174 = vmatpush1.bf16.msra.mxu0 0
        %3175 = vmatprep.subr.bf16.mxu0 0
        %3176 = vmatpush1.bf16.msra.mxu0 0
        %3177 = vmatprep.subr.bf16.mxu0 0
        %3178 = vmatpush1.bf16.msra.mxu0 0
        %3179 = vmatprep.subr.bf16.mxu0 0
        %3180 = vmatpush1.bf16.msra.mxu0 0
        %3181 = vmatprep.subr.bf16.mxu0 0
        %3182 = vmatpush1.bf16.msra.mxu0 0
        %3183 = vmatprep.subr.bf16.mxu0 0
        %3184 = vmatpush1.bf16.msra.mxu0 0
        %3185 = vmatprep.subr.bf16.mxu0 0
        %3186 = vmatpush1.bf16.msra.mxu0 0
        %3187 = vmatprep.subr.bf16.mxu0 0
        %3188 = vmatpush1.bf16.msra.mxu0 0
        %3189 = vmatprep.subr.bf16.mxu0 0
        %3190 = vmatpush1.bf16.msra.mxu0 0
        %3191 = vmatprep.subr.bf16.mxu0 0
        %3192 = vmatpush1.bf16.msra.mxu0 0
        %3193 = vmatprep.mubr.bf16.mxu0 0
        %3194 = vmatmul.mubr.bf16.gmra.mrb[0].mxu0 %v3094
        %v3195 = vpop.f32.mrb[0].mxu0
        %v3196 = vadd.f32 0.0, %v3195
        %v3197 = vpop.f32.mrb[0].mxu0
        %v3198 = vadd.f32 0.0, %v3197
        %v3199 = vpop.f32.mrb[0].mxu0
        %v3200 = vpop.f32.mrb[0].mxu0
        %3201 = vdwg.mxu0
        %3202 = vmatprep.subr.bf16.mxu0 %v3112
        %3203 = vmatpush1.bf16.msra.mxu0 %v3109
        %3204 = vmatprep.subr.bf16.mxu0 0
        %3205 = vmatpush1.bf16.msra.mxu0 0
        %3206 = vmatprep.subr.bf16.mxu0 0
        %3207 = vmatpush1.bf16.msra.mxu0 0
        %3208 = vmatprep.subr.bf16.mxu0 0
        %3209 = vmatpush1.bf16.msra.mxu0 0
        %3210 = vmatprep.subr.bf16.mxu0 0
        %3211 = vmatpush1.bf16.msra.mxu0 0
        %3212 = vmatprep.subr.bf16.mxu0 0
        %3213 = vmatpush1.bf16.msra.mxu0 0
        %3214 = vmatprep.subr.bf16.mxu0 0
        %3215 = vmatpush1.bf16.msra.mxu0 0
        %3216 = vmatprep.subr.bf16.mxu0 0
        %3217 = vmatpush1.bf16.msra.mxu0 0
        %3218 = vmatprep.subr.bf16.mxu0 0
        %3219 = vmatpush1.bf16.msra.mxu0 0
        %3220 = vmatprep.subr.bf16.mxu0 0
        %3221 = vmatpush1.bf16.msra.mxu0 0
        %3222 = vmatprep.subr.bf16.mxu0 0
        %3223 = vmatpush1.bf16.msra.mxu0 0
        %3224 = vmatprep.subr.bf16.mxu0 0
        %3225 = vmatpush1.bf16.msra.mxu0 0
        %3226 = vmatprep.subr.bf16.mxu0 0
        %3227 = vmatpush1.bf16.msra.mxu0 0
        %3228 = vmatprep.subr.bf16.mxu0 0
        %3229 = vmatpush1.bf16.msra.mxu0 0
        %3230 = vmatprep.subr.bf16.mxu0 0
        %3231 = vmatpush1.bf16.msra.mxu0 0
        %3232 = vmatprep.subr.bf16.mxu0 0
        %3233 = vmatpush1.bf16.msra.mxu0 0
        %3234 = vmatprep.mubr.bf16.mxu0 0
        %3235 = vmatmul.mubr.bf16.gmra.mrb[0].mxu0 %v3094
        %v3236 = vpop.f32.mrb[0].mxu0
        %v3237 = vadd.f32 0.0, %v3236
        %v3238 = vpop.f32.mrb[0].mxu0
        %v3239 = vadd.f32 0.0, %v3238
        %v3240 = vpop.f32.mrb[0].mxu0
        %v3241 = vpop.f32.mrb[0].mxu0
        %3242 = vdwg.mxu0
        %3243 = vmatprep.subr.bf16.mxu0 %v3118
        %3244 = vmatpush1.bf16.msra.mxu0 %v3115
        %3245 = vmatprep.subr.bf16.mxu0 0
        %3246 = vmatpush1.bf16.msra.mxu0 0
        %3247 = vmatprep.subr.bf16.mxu0 0
        %3248 = vmatpush1.bf16.msra.mxu0 0
        %3249 = vmatprep.subr.bf16.mxu0 0
        %3250 = vmatpush1.bf16.msra.mxu0 0
        %3251 = vmatprep.subr.bf16.mxu0 0
        %3252 = vmatpush1.bf16.msra.mxu0 0
        %3253 = vmatprep.subr.bf16.mxu0 0
        %3254 = vmatpush1.bf16.msra.mxu0 0
        %3255 = vmatprep.subr.bf16.mxu0 0
        %3256 = vmatpush1.bf16.msra.mxu0 0
        %3257 = vmatprep.subr.bf16.mxu0 0
        %3258 = vmatpush1.bf16.msra.mxu0 0
        %3259 = vmatprep.subr.bf16.mxu0 0
        %3260 = vmatpush1.bf16.msra.mxu0 0
        %3261 = vmatprep.subr.bf16.mxu0 0
        %3262 = vmatpush1.bf16.msra.mxu0 0
        %3263 = vmatprep.subr.bf16.mxu0 0
        %3264 = vmatpush1.bf16.msra.mxu0 0
        %3265 = vmatprep.subr.bf16.mxu0 0
        %3266 = vmatpush1.bf16.msra.mxu0 0
        %3267 = vmatprep.subr.bf16.mxu0 0
        %3268 = vmatpush1.bf16.msra.mxu0 0
        %3269 = vmatprep.subr.bf16.mxu0 0
        %3270 = vmatpush1.bf16.msra.mxu0 0
        %3271 = vmatprep.subr.bf16.mxu0 0
        %3272 = vmatpush1.bf16.msra.mxu0 0
        %3273 = vmatprep.subr.bf16.mxu0 0
        %3274 = vmatpush1.bf16.msra.mxu0 0
        %3275 = vmatprep.mubr.bf16.mxu0 0
        %3276 = vmatmul.mubr.bf16.gmra.mrb[0].mxu0 %v3094
        %v3277 = vpop.f32.mrb[0].mxu0
        %v3278 = vadd.f32 0.0, %v3277
        %v3279 = vpop.f32.mrb[0].mxu0
        %v3280 = vadd.f32 0.0, %v3279
        %v3281 = vpop.f32.mrb[0].mxu0
        %v3282 = vpop.f32.mrb[0].mxu0
        %3283 = vdwg.mxu0
        %v3284 = vadd.f32 %v2864, %v3155
        %v3285 = vadd.f32 %v2865, %v3157
        %v3286 = vadd.f32 %v2866, %v3196
        %v3287 = vadd.f32 %v2867, %v3198
        %v3288 = vadd.f32 %v2868, %v3237
        %v3289 = vadd.f32 %v2869, %v3239
        %v3290 = vadd.f32 %v2870, %v3278
        %v3291 = vadd.f32 %v2871, %v3280
        %v3292 = vld [vmem:[#allocation2 + $0x2] sm:$0xff]
        %v3293 = vld [vmem:[#allocation2 + $0xa] sm:$0xff]
        %v3294 = vld [vmem:[#allocation2 + $0x12] sm:$0x3]
        %v3295 = vld [vmem:[#allocation6] sm:$0x88]
        %v3296 = vld [vmem:[#allocation6 + $0x8] sm:$0x88]
        %v3297 = vld [vmem:[#allocation6 + $0x10] sm:$0x88]
        %v3298 = vld [vmem:[#allocation6 + $0x18] sm:$0x88]
        %v3303 = vunpack.c.l.b16 %v3295
        %v3304 = vunpack.c.h.b16 %v3295
        %v3305 = vunpack.c.l.b16 %v3296
        %v3306 = vunpack.c.h.b16 %v3296
        %v3307 = vunpack.c.l.b16 %v3297
        %v3308 = vunpack.c.h.b16 %v3297
        %v3309 = vunpack.c.l.b16 %v3298
        %v3310 = vunpack.c.h.b16 %v3298
        %v3311 = vpack.c.b16 %v3303, %v3303
        %v3312 = vpack.c.b16 %v3304, %v3304
        %v3313 = vpack.c.b16 %v3305, %v3305
        %v3314 = vpack.c.b16 %v3306, %v3306
        %v3315 = vpack.c.b16 %v3307, %v3307
        %v3316 = vpack.c.b16 %v3308, %v3308
        %v3317 = vpack.c.b16 %v3309, %v3309
        %v3318 = vpack.c.b16 %v3310, %v3310
        %v3320 = vshrl.u32 %v3311, 16
        %v3321 = vpack.i.b16 %v3320, %v3320
        %v3323 = vlaneseq
        %v3324 = vshrl.u32 %v3323, 7
        %v3325 = vsub.s32 3, %v3324
        %v3326 = vrot.slane %v3321, %v3325
        %v3328 = vshrl.u32 %v3312, 16
        %v3329 = vpack.i.b16 %v3328, %v3328
        %v3331 = vlaneseq
        %v3332 = vshrl.u32 %v3331, 7
        %v3333 = vsub.s32 3, %v3332
        %v3334 = vrot.slane %v3329, %v3333
        %v3336 = vshrl.u32 %v3313, 16
        %v3337 = vpack.i.b16 %v3336, %v3336
        %v3339 = vlaneseq
        %v3340 = vshrl.u32 %v3339, 7
        %v3341 = vsub.s32 3, %v3340
        %v3342 = vrot.slane %v3337, %v3341
        %v3344 = vshrl.u32 %v3314, 16
        %v3345 = vpack.i.b16 %v3344, %v3344
        %v3347 = vlaneseq
        %v3348 = vshrl.u32 %v3347, 7
        %v3349 = vsub.s32 3, %v3348
        %v3350 = vrot.slane %v3345, %v3349
        %v3352 = vshrl.u32 %v3315, 16
        %v3353 = vpack.i.b16 %v3352, %v3352
        %v3355 = vlaneseq
        %v3356 = vshrl.u32 %v3355, 7
        %v3357 = vsub.s32 3, %v3356
        %v3358 = vrot.slane %v3353, %v3357
        %v3360 = vshrl.u32 %v3316, 16
        %v3361 = vpack.i.b16 %v3360, %v3360
        %v3363 = vlaneseq
        %v3364 = vshrl.u32 %v3363, 7
        %v3365 = vsub.s32 3, %v3364
        %v3366 = vrot.slane %v3361, %v3365
        %v3368 = vshrl.u32 %v3317, 16
        %v3369 = vpack.i.b16 %v3368, %v3368
        %v3371 = vlaneseq
        %v3372 = vshrl.u32 %v3371, 7
        %v3373 = vsub.s32 3, %v3372
        %v3374 = vrot.slane %v3369, %v3373
        %v3376 = vshrl.u32 %v3318, 16
        %v3377 = vpack.i.b16 %v3376, %v3376
        %v3379 = vlaneseq
        %v3380 = vshrl.u32 %v3379, 7
        %v3381 = vsub.s32 3, %v3380
        %v3382 = vrot.slane %v3377, %v3381
        %v3391 = vcombine.low %v3326, %v3334
        %v3392 = vcombine.low %v3342, %v3350
        %v3394 = vunpack.c.l.s4 1983009808
        %v3395 = vunpack.c.0.s8 %v3394
        %v3396 = vlaneseq
        %v3397 = vshrl.u32 %v3396, 7
        %v3398 = vsub.s32 %v3395, %v3397
        %v3399 = vrot.slane %v3391, %v3398
        %v3401 = vunpack.c.l.s4 1983009808
        %v3402 = vunpack.c.0.s8 %v3401
        %v3403 = vlaneseq
        %v3404 = vshrl.u32 %v3403, 7
        %v3405 = vsub.s32 %v3402, %v3404
        %v3406 = vrot.slane %v3392, %v3405
        %v3407 = vcombine.low %v3399, %v3406
        %v3408 = vcombine.low %v3358, %v3366
        %v3409 = vcombine.low %v3374, %v3382
        %v3411 = vunpack.c.l.s4 1983009808
        %v3412 = vunpack.c.0.s8 %v3411
        %v3413 = vlaneseq
        %v3414 = vshrl.u32 %v3413, 7
        %v3415 = vsub.s32 %v3412, %v3414
        %v3416 = vrot.slane %v3408, %v3415
        %v3418 = vunpack.c.l.s4 1983009808
        %v3419 = vunpack.c.0.s8 %v3418
        %v3420 = vlaneseq
        %v3421 = vshrl.u32 %v3420, 7
        %v3422 = vsub.s32 %v3419, %v3421
        %v3423 = vrot.slane %v3409, %v3422
        %v3424 = vcombine.low %v3416, %v3423
        %3425 = vrot.lane.b32.xlu0 %v3407, 8
        %v3426 = vpop.permute.xlu0 %3425
        %3427 = vrot.lane.b32.xlu0 %v3424, 8
        %v3428 = vpop.permute.xlu0 %3427
        %v3429 = vrot.slane %v3426, 6
        %v3430 = vrot.slane %v3428, 6
        %v3431 = vsel %vm880, %v3429, %v3426
        %v3432 = vsel %vm684, %v3429, %v3430
        %v3433 = vsel %vm880, %v3432, %v3428
        %v3437 = vmul.bf16 %v3292, %v3431
        %v3438 = vmul.bf16 %v3293, %v3433
        %v3439 = vmul.bf16 %v3294, %v3430
        %v3440 = vld [vmem:[%s3] sm:$0x3]
        %v3443 = vunpack.c.l.s4 1983009808
        %v3444 = vunpack.c.0.s8 %v3443
        %v3445 = vlaneseq
        %v3446 = vshrl.u32 %v3445, 7
        %v3447 = vsub.s32 %v3444, %v3446
        %v3448 = vrot.slane %v3440, %v3447
        %3449 = vrot.lane.b32.xlu0 %v3448, 100
        %v3450 = vpop.permute.xlu0 %3449
        %v3454 = vcombine.high %v3437, %v3437
        %v3456 = vunpack.c.l.s4 1983009808
        %v3457 = vunpack.c.0.s8 %v3456
        %v3458 = vlaneseq
        %v3459 = vshrl.u32 %v3458, 7
        %v3460 = vsub.s32 %v3457, %v3459
        %v3461 = vrot.slane %v3437, %v3460
        %v3463 = vunpack.c.l.s4 1983009808
        %v3464 = vunpack.c.0.s8 %v3463
        %v3465 = vlaneseq
        %v3466 = vshrl.u32 %v3465, 7
        %v3467 = vsub.s32 %v3464, %v3466
        %v3468 = vrot.slane %v3454, %v3467
        %v3469 = vcombine.high %v3461, %v3461
        %v3470 = vcombine.high %v3468, %v3468
        %v3471 = vcombine.high %v3438, %v3438
        %v3473 = vunpack.c.l.s4 1983009808
        %v3474 = vunpack.c.0.s8 %v3473
        %v3475 = vlaneseq
        %v3476 = vshrl.u32 %v3475, 7
        %v3477 = vsub.s32 %v3474, %v3476
        %v3478 = vrot.slane %v3438, %v3477
        %v3480 = vunpack.c.l.s4 1983009808
        %v3481 = vunpack.c.0.s8 %v3480
        %v3482 = vlaneseq
        %v3483 = vshrl.u32 %v3482, 7
        %v3484 = vsub.s32 %v3481, %v3483
        %v3485 = vrot.slane %v3471, %v3484
        %v3486 = vcombine.high %v3478, %v3478
        %v3487 = vcombine.high %v3485, %v3485
        %v3489 = vunpack.c.l.s4 1983009808
        %v3490 = vunpack.c.0.s8 %v3489
        %v3491 = vlaneseq
        %v3492 = vshrl.u32 %v3491, 7
        %v3493 = vsub.s32 %v3490, %v3492
        %v3494 = vrot.slane %v3439, %v3493
        %3495 = vrot.lane.b32.xlu0 %v3461, 120
        %v3496 = vpop.permute.xlu0 %3495
        %3497 = vrot.lane.b32.xlu0 %v3469, 120
        %v3498 = vpop.permute.xlu0 %3497
        %3499 = vrot.lane.b32.xlu0 %v3468, 120
        %v3500 = vpop.permute.xlu0 %3499
        %3501 = vrot.lane.b32.xlu0 %v3470, 120
        %v3502 = vpop.permute.xlu0 %3501
        %3503 = vrot.lane.b32.xlu0 %v3478, 120
        %v3504 = vpop.permute.xlu0 %3503
        %3505 = vrot.lane.b32.xlu0 %v3486, 120
        %v3506 = vpop.permute.xlu0 %3505
        %3507 = vrot.lane.b32.xlu0 %v3485, 120
        %v3508 = vpop.permute.xlu0 %3507
        %3509 = vrot.lane.b32.xlu0 %v3487, 120
        %v3510 = vpop.permute.xlu0 %3509
        %3511 = vrot.lane.b32.xlu0 %v3494, 120
        %v3512 = vpop.permute.xlu0 %3511
        %v3513 = vsel %vm798, %v3496, %v3498
        %v3514 = vsel %vm798, %v3498, %v3500
        %v3515 = vsel %vm798, %v3500, %v3502
        %v3516 = vsel %vm798, %v3502, %v3504
        %v3517 = vsel %vm798, %v3504, %v3506
        %v3518 = vsel %vm798, %v3506, %v3508
        %v3519 = vsel %vm798, %v3508, %v3510
        %v3520 = vsel %vm798, %v3510, %v3512
        %v3522 = vsel %vm889, %v3450, 0
        %v3525 = vsel %vm893, %v3513, 0
        %v3528 = vsel %vm893, %v3514, 0
        %v3531 = vsel %vm893, %v3515, 0
        %v3534 = vsel %vm893, %v3516, 0
        %v3537 = vsel %vm893, %v3517, 0
        %v3540 = vsel %vm893, %v3518, 0
        %v3543 = vsel %vm893, %v3519, 0
        %v3546 = vsel %vm893, %v3520, 0
        %3548 = vmatprep.subr.bf16.mxu0 %v3528
        %3549 = vmatpush1.bf16.msra.mxu0 %v3525
        %3550 = vmatprep.subr.bf16.mxu0 0
        %3551 = vmatpush1.bf16.msra.mxu0 0
        %3552 = vmatprep.subr.bf16.mxu0 0
        %3553 = vmatpush1.bf16.msra.mxu0 0
        %3554 = vmatprep.subr.bf16.mxu0 0
        %3555 = vmatpush1.bf16.msra.mxu0 0
        %3556 = vmatprep.subr.bf16.mxu0 0
        %3557 = vmatpush1.bf16.msra.mxu0 0
        %3558 = vmatprep.subr.bf16.mxu0 0
        %3559 = vmatpush1.bf16.msra.mxu0 0
        %3560 = vmatprep.subr.bf16.mxu0 0
        %3561 = vmatpush1.bf16.msra.mxu0 0
        %3562 = vmatprep.subr.bf16.mxu0 0
        %3563 = vmatpush1.bf16.msra.mxu0 0
        %3564 = vmatprep.subr.bf16.mxu0 0
        %3565 = vmatpush1.bf16.msra.mxu0 0
        %3566 = vmatprep.subr.bf16.mxu0 0
        %3567 = vmatpush1.bf16.msra.mxu0 0
        %3568 = vmatprep.subr.bf16.mxu0 0
        %3569 = vmatpush1.bf16.msra.mxu0 0
        %3570 = vmatprep.subr.bf16.mxu0 0
        %3571 = vmatpush1.bf16.msra.mxu0 0
        %3572 = vmatprep.subr.bf16.mxu0 0
        %3573 = vmatpush1.bf16.msra.mxu0 0
        %3574 = vmatprep.subr.bf16.mxu0 0
        %3575 = vmatpush1.bf16.msra.mxu0 0
        %3576 = vmatprep.subr.bf16.mxu0 0
        %3577 = vmatpush1.bf16.msra.mxu0 0
        %3578 = vmatprep.subr.bf16.mxu0 0
        %3579 = vmatpush1.bf16.msra.mxu0 0
        %3580 = vmatprep.mubr.bf16.mxu0 0
        %3581 = vmatmul.mubr.bf16.gmra.mrb[0].mxu0 %v3522
        %v3582 = vpop.f32.mrb[0].mxu0
        %v3583 = vadd.f32 0.0, %v3582
        %v3584 = vpop.f32.mrb[0].mxu0
        %v3585 = vadd.f32 0.0, %v3584
        %v3586 = vpop.f32.mrb[0].mxu0
        %v3587 = vpop.f32.mrb[0].mxu0
        %3588 = vdwg.mxu0
        %3589 = vmatprep.subr.bf16.mxu0 %v3534
        %3590 = vmatpush1.bf16.msra.mxu0 %v3531
        %3591 = vmatprep.subr.bf16.mxu0 0
        %3592 = vmatpush1.bf16.msra.mxu0 0
        %3593 = vmatprep.subr.bf16.mxu0 0
        %3594 = vmatpush1.bf16.msra.mxu0 0
        %3595 = vmatprep.subr.bf16.mxu0 0
        %3596 = vmatpush1.bf16.msra.mxu0 0
        %3597 = vmatprep.subr.bf16.mxu0 0
        %3598 = vmatpush1.bf16.msra.mxu0 0
        %3599 = vmatprep.subr.bf16.mxu0 0
        %3600 = vmatpush1.bf16.msra.mxu0 0
        %3601 = vmatprep.subr.bf16.mxu0 0
        %3602 = vmatpush1.bf16.msra.mxu0 0
        %3603 = vmatprep.subr.bf16.mxu0 0
        %3604 = vmatpush1.bf16.msra.mxu0 0
        %3605 = vmatprep.subr.bf16.mxu0 0
        %3606 = vmatpush1.bf16.msra.mxu0 0
        %3607 = vmatprep.subr.bf16.mxu0 0
        %3608 = vmatpush1.bf16.msra.mxu0 0
        %3609 = vmatprep.subr.bf16.mxu0 0
        %3610 = vmatpush1.bf16.msra.mxu0 0
        %3611 = vmatprep.subr.bf16.mxu0 0
        %3612 = vmatpush1.bf16.msra.mxu0 0
        %3613 = vmatprep.subr.bf16.mxu0 0
        %3614 = vmatpush1.bf16.msra.mxu0 0
        %3615 = vmatprep.subr.bf16.mxu0 0
        %3616 = vmatpush1.bf16.msra.mxu0 0
        %3617 = vmatprep.subr.bf16.mxu0 0
        %3618 = vmatpush1.bf16.msra.mxu0 0
        %3619 = vmatprep.subr.bf16.mxu0 0
        %3620 = vmatpush1.bf16.msra.mxu0 0
        %3621 = vmatprep.mubr.bf16.mxu0 0
        %3622 = vmatmul.mubr.bf16.gmra.mrb[0].mxu0 %v3522
        %v3623 = vpop.f32.mrb[0].mxu0
        %v3624 = vadd.f32 0.0, %v3623
        %v3625 = vpop.f32.mrb[0].mxu0
        %v3626 = vadd.f32 0.0, %v3625
        %v3627 = vpop.f32.mrb[0].mxu0
        %v3628 = vpop.f32.mrb[0].mxu0
        %3629 = vdwg.mxu0
        %3630 = vmatprep.subr.bf16.mxu0 %v3540
        %3631 = vmatpush1.bf16.msra.mxu0 %v3537
        %3632 = vmatprep.subr.bf16.mxu0 0
        %3633 = vmatpush1.bf16.msra.mxu0 0
        %3634 = vmatprep.subr.bf16.mxu0 0
        %3635 = vmatpush1.bf16.msra.mxu0 0
        %3636 = vmatprep.subr.bf16.mxu0 0
        %3637 = vmatpush1.bf16.msra.mxu0 0
        %3638 = vmatprep.subr.bf16.mxu0 0
        %3639 = vmatpush1.bf16.msra.mxu0 0
        %3640 = vmatprep.subr.bf16.mxu0 0
        %3641 = vmatpush1.bf16.msra.mxu0 0
        %3642 = vmatprep.subr.bf16.mxu0 0
        %3643 = vmatpush1.bf16.msra.mxu0 0
        %3644 = vmatprep.subr.bf16.mxu0 0
        %3645 = vmatpush1.bf16.msra.mxu0 0
        %3646 = vmatprep.subr.bf16.mxu0 0
        %3647 = vmatpush1.bf16.msra.mxu0 0
        %3648 = vmatprep.subr.bf16.mxu0 0
        %3649 = vmatpush1.bf16.msra.mxu0 0
        %3650 = vmatprep.subr.bf16.mxu0 0
        %3651 = vmatpush1.bf16.msra.mxu0 0
        %3652 = vmatprep.subr.bf16.mxu0 0
        %3653 = vmatpush1.bf16.msra.mxu0 0
        %3654 = vmatprep.subr.bf16.mxu0 0
        %3655 = vmatpush1.bf16.msra.mxu0 0
        %3656 = vmatprep.subr.bf16.mxu0 0
        %3657 = vmatpush1.bf16.msra.mxu0 0
        %3658 = vmatprep.subr.bf16.mxu0 0
        %3659 = vmatpush1.bf16.msra.mxu0 0
        %3660 = vmatprep.subr.bf16.mxu0 0
        %3661 = vmatpush1.bf16.msra.mxu0 0
        %3662 = vmatprep.mubr.bf16.mxu0 0
        %3663 = vmatmul.mubr.bf16.gmra.mrb[0].mxu0 %v3522
        %v3664 = vpop.f32.mrb[0].mxu0
        %v3665 = vadd.f32 0.0, %v3664
        %v3666 = vpop.f32.mrb[0].mxu0
        %v3667 = vadd.f32 0.0, %v3666
        %v3668 = vpop.f32.mrb[0].mxu0
        %v3669 = vpop.f32.mrb[0].mxu0
        %3670 = vdwg.mxu0
        %3671 = vmatprep.subr.bf16.mxu0 %v3546
        %3672 = vmatpush1.bf16.msra.mxu0 %v3543
        %3673 = vmatprep.subr.bf16.mxu0 0
        %3674 = vmatpush1.bf16.msra.mxu0 0
        %3675 = vmatprep.subr.bf16.mxu0 0
        %3676 = vmatpush1.bf16.msra.mxu0 0
        %3677 = vmatprep.subr.bf16.mxu0 0
        %3678 = vmatpush1.bf16.msra.mxu0 0
        %3679 = vmatprep.subr.bf16.mxu0 0
        %3680 = vmatpush1.bf16.msra.mxu0 0
        %3681 = vmatprep.subr.bf16.mxu0 0
        %3682 = vmatpush1.bf16.msra.mxu0 0
        %3683 = vmatprep.subr.bf16.mxu0 0
        %3684 = vmatpush1.bf16.msra.mxu0 0
        %3685 = vmatprep.subr.bf16.mxu0 0
        %3686 = vmatpush1.bf16.msra.mxu0 0
        %3687 = vmatprep.subr.bf16.mxu0 0
        %3688 = vmatpush1.bf16.msra.mxu0 0
        %3689 = vmatprep.subr.bf16.mxu0 0
        %3690 = vmatpush1.bf16.msra.mxu0 0
        %3691 = vmatprep.subr.bf16.mxu0 0
        %3692 = vmatpush1.bf16.msra.mxu0 0
        %3693 = vmatprep.subr.bf16.mxu0 0
        %3694 = vmatpush1.bf16.msra.mxu0 0
        %3695 = vmatprep.subr.bf16.mxu0 0
        %3696 = vmatpush1.bf16.msra.mxu0 0
        %3697 = vmatprep.subr.bf16.mxu0 0
        %3698 = vmatpush1.bf16.msra.mxu0 0
        %3699 = vmatprep.subr.bf16.mxu0 0
        %3700 = vmatpush1.bf16.msra.mxu0 0
        %3701 = vmatprep.subr.bf16.mxu0 0
        %3702 = vmatpush1.bf16.msra.mxu0 0
        %3703 = vmatprep.mubr.bf16.mxu0 0
        %3704 = vmatmul.mubr.bf16.gmra.mrb[0].mxu0 %v3522
        %v3705 = vpop.f32.mrb[0].mxu0
        %v3706 = vadd.f32 0.0, %v3705
        %v3707 = vpop.f32.mrb[0].mxu0
        %v3708 = vadd.f32 0.0, %v3707
        %v3709 = vpop.f32.mrb[0].mxu0
        %v3710 = vpop.f32.mrb[0].mxu0
        %3711 = vdwg.mxu0
        %v3712 = vadd.f32 %v3284, %v3583
        %v3713 = vadd.f32 %v3285, %v3585
        %v3714 = vadd.f32 %v3286, %v3624
        %v3715 = vadd.f32 %v3287, %v3626
        %v3716 = vadd.f32 %v3288, %v3665
        %v3717 = vadd.f32 %v3289, %v3667
        %v3718 = vadd.f32 %v3290, %v3706
        %v3719 = vadd.f32 %v3291, %v3708
        %v3720 = vld [vmem:[#allocation2 + $0x2] sm:$0xff]
        %v3721 = vld [vmem:[#allocation2 + $0xa] sm:$0xff]
        %v3722 = vld [vmem:[#allocation2 + $0x12] sm:$0x3]
        %v3723 = vld [vmem:[#allocation6 + $0x20] sm:$0x11]
        %v3724 = vld [vmem:[#allocation6 + $0x28] sm:$0x11]
        %v3725 = vld [vmem:[#allocation6 + $0x30] sm:$0x11]
        %v3726 = vld [vmem:[#allocation6 + $0x38] sm:$0x11]
        %v3731 = vunpack.c.l.b16 %v3723
        %v3732 = vunpack.c.h.b16 %v3723
        %v3733 = vunpack.c.l.b16 %v3724
        %v3734 = vunpack.c.h.b16 %v3724
        %v3735 = vunpack.c.l.b16 %v3725
        %v3736 = vunpack.c.h.b16 %v3725
        %v3737 = vunpack.c.l.b16 %v3726
        %v3738 = vunpack.c.h.b16 %v3726
        %v3739 = vpack.c.b16 %v3731, %v3731
        %v3740 = vpack.c.b16 %v3732, %v3732
        %v3741 = vpack.c.b16 %v3733, %v3733
        %v3742 = vpack.c.b16 %v3734, %v3734
        %v3743 = vpack.c.b16 %v3735, %v3735
        %v3744 = vpack.c.b16 %v3736, %v3736
        %v3745 = vpack.c.b16 %v3737, %v3737
        %v3746 = vpack.c.b16 %v3738, %v3738
        %v3748 = vpack.i.b16 %v3739, %v3739
        %v3750 = vlaneseq
        %v3751 = vshrl.u32 %v3750, 7
        %v3752 = vsub.s32 0, %v3751
        %v3753 = vrot.slane %v3748, %v3752
        %v3755 = vpack.i.b16 %v3740, %v3740
        %v3757 = vlaneseq
        %v3758 = vshrl.u32 %v3757, 7
        %v3759 = vsub.s32 0, %v3758
        %v3760 = vrot.slane %v3755, %v3759
        %v3762 = vpack.i.b16 %v3741, %v3741
        %v3764 = vlaneseq
        %v3765 = vshrl.u32 %v3764, 7
        %v3766 = vsub.s32 0, %v3765
        %v3767 = vrot.slane %v3762, %v3766
        %v3769 = vpack.i.b16 %v3742, %v3742
        %v3771 = vlaneseq
        %v3772 = vshrl.u32 %v3771, 7
        %v3773 = vsub.s32 0, %v3772
        %v3774 = vrot.slane %v3769, %v3773
        %v3776 = vpack.i.b16 %v3743, %v3743
        %v3778 = vlaneseq
        %v3779 = vshrl.u32 %v3778, 7
        %v3780 = vsub.s32 0, %v3779
        %v3781 = vrot.slane %v3776, %v3780
        %v3783 = vpack.i.b16 %v3744, %v3744
        %v3785 = vlaneseq
        %v3786 = vshrl.u32 %v3785, 7
        %v3787 = vsub.s32 0, %v3786
        %v3788 = vrot.slane %v3783, %v3787
        %v3790 = vpack.i.b16 %v3745, %v3745
        %v3792 = vlaneseq
        %v3793 = vshrl.u32 %v3792, 7
        %v3794 = vsub.s32 0, %v3793
        %v3795 = vrot.slane %v3790, %v3794
        %v3797 = vpack.i.b16 %v3746, %v3746
        %v3799 = vlaneseq
        %v3800 = vshrl.u32 %v3799, 7
        %v3801 = vsub.s32 0, %v3800
        %v3802 = vrot.slane %v3797, %v3801
        %v3811 = vcombine.low %v3753, %v3760
        %v3812 = vcombine.low %v3767, %v3774
        %v3814 = vunpack.c.l.s4 1983009808
        %v3815 = vunpack.c.0.s8 %v3814
        %v3816 = vlaneseq
        %v3817 = vshrl.u32 %v3816, 7
        %v3818 = vsub.s32 %v3815, %v3817
        %v3819 = vrot.slane %v3811, %v3818
        %v3821 = vunpack.c.l.s4 1983009808
        %v3822 = vunpack.c.0.s8 %v3821
        %v3823 = vlaneseq
        %v3824 = vshrl.u32 %v3823, 7
        %v3825 = vsub.s32 %v3822, %v3824
        %v3826 = vrot.slane %v3812, %v3825
        %v3827 = vcombine.low %v3819, %v3826
        %v3828 = vcombine.low %v3781, %v3788
        %v3829 = vcombine.low %v3795, %v3802
        %v3831 = vunpack.c.l.s4 1983009808
        %v3832 = vunpack.c.0.s8 %v3831
        %v3833 = vlaneseq
        %v3834 = vshrl.u32 %v3833, 7
        %v3835 = vsub.s32 %v3832, %v3834
        %v3836 = vrot.slane %v3828, %v3835
        %v3838 = vunpack.c.l.s4 1983009808
        %v3839 = vunpack.c.0.s8 %v3838
        %v3840 = vlaneseq
        %v3841 = vshrl.u32 %v3840, 7
        %v3842 = vsub.s32 %v3839, %v3841
        %v3843 = vrot.slane %v3829, %v3842
        %v3844 = vcombine.low %v3836, %v3843
        %3845 = vrot.lane.b32.xlu0 %v3827, 9
        %v3846 = vpop.permute.xlu0 %3845
        %3847 = vrot.lane.b32.xlu0 %v3844, 9
        %v3848 = vpop.permute.xlu0 %3847
        %v3849 = vrot.slane %v3846, 6
        %v3850 = vrot.slane %v3848, 6
        %v3851 = vsel %vm1144, %v3849, %v3846
        %v3852 = vsel %vm684, %v3849, %v3850
        %v3853 = vsel %vm1144, %v3852, %v3848
        %v3857 = vmul.bf16 %v3720, %v3851
        %v3858 = vmul.bf16 %v3721, %v3853
        %v3859 = vmul.bf16 %v3722, %v3850
        %v3860 = vld [vmem:[%s3] sm:$0x3]
        %v3863 = vunpack.c.l.s4 1983009808
        %v3864 = vunpack.c.0.s8 %v3863
        %v3865 = vlaneseq
        %v3866 = vshrl.u32 %v3865, 7
        %v3867 = vsub.s32 %v3864, %v3866
        %v3868 = vrot.slane %v3860, %v3867
        %3869 = vrot.lane.b32.xlu0 %v3868, 96
        %v3870 = vpop.permute.xlu0 %3869
        %v3874 = vcombine.high %v3857, %v3857
        %v3876 = vunpack.c.l.s4 1983009808
        %v3877 = vunpack.c.0.s8 %v3876
        %v3878 = vlaneseq
        %v3879 = vshrl.u32 %v3878, 7
        %v3880 = vsub.s32 %v3877, %v3879
        %v3881 = vrot.slane %v3857, %v3880
        %v3883 = vunpack.c.l.s4 1983009808
        %v3884 = vunpack.c.0.s8 %v3883
        %v3885 = vlaneseq
        %v3886 = vshrl.u32 %v3885, 7
        %v3887 = vsub.s32 %v3884, %v3886
        %v3888 = vrot.slane %v3874, %v3887
        %v3889 = vcombine.high %v3881, %v3881
        %v3890 = vcombine.high %v3888, %v3888
        %v3891 = vcombine.high %v3858, %v3858
        %v3893 = vunpack.c.l.s4 1983009808
        %v3894 = vunpack.c.0.s8 %v3893
        %v3895 = vlaneseq
        %v3896 = vshrl.u32 %v3895, 7
        %v3897 = vsub.s32 %v3894, %v3896
        %v3898 = vrot.slane %v3858, %v3897
        %v3900 = vunpack.c.l.s4 1983009808
        %v3901 = vunpack.c.0.s8 %v3900
        %v3902 = vlaneseq
        %v3903 = vshrl.u32 %v3902, 7
        %v3904 = vsub.s32 %v3901, %v3903
        %v3905 = vrot.slane %v3891, %v3904
        %v3906 = vcombine.high %v3898, %v3898
        %v3907 = vcombine.high %v3905, %v3905
        %v3909 = vunpack.c.l.s4 1983009808
        %v3910 = vunpack.c.0.s8 %v3909
        %v3911 = vlaneseq
        %v3912 = vshrl.u32 %v3911, 7
        %v3913 = vsub.s32 %v3910, %v3912
        %v3914 = vrot.slane %v3859, %v3913
        %3915 = vrot.lane.b32.xlu0 %v3881, 119
        %v3916 = vpop.permute.xlu0 %3915
        %3917 = vrot.lane.b32.xlu0 %v3889, 119
        %v3918 = vpop.permute.xlu0 %3917
        %3919 = vrot.lane.b32.xlu0 %v3888, 119
        %v3920 = vpop.permute.xlu0 %3919
        %3921 = vrot.lane.b32.xlu0 %v3890, 119
        %v3922 = vpop.permute.xlu0 %3921
        %3923 = vrot.lane.b32.xlu0 %v3898, 119
        %v3924 = vpop.permute.xlu0 %3923
        %3925 = vrot.lane.b32.xlu0 %v3906, 119
        %v3926 = vpop.permute.xlu0 %3925
        %3927 = vrot.lane.b32.xlu0 %v3905, 119
        %v3928 = vpop.permute.xlu0 %3927
        %3929 = vrot.lane.b32.xlu0 %v3907, 119
        %v3930 = vpop.permute.xlu0 %3929
        %3931 = vrot.lane.b32.xlu0 %v3914, 119
        %v3932 = vpop.permute.xlu0 %3931
        %v3933 = vsel %vm682, %v3916, %v3918
        %v3934 = vsel %vm682, %v3918, %v3920
        %v3935 = vsel %vm682, %v3920, %v3922
        %v3936 = vsel %vm682, %v3922, %v3924
        %v3937 = vsel %vm682, %v3924, %v3926
        %v3938 = vsel %vm682, %v3926, %v3928
        %v3939 = vsel %vm682, %v3928, %v3930
        %v3940 = vsel %vm682, %v3930, %v3932
        %v3942 = vsel %vm889, %v3870, 0
        %v3945 = vsel %vm893, %v3933, 0
        %v3948 = vsel %vm893, %v3934, 0
        %v3951 = vsel %vm893, %v3935, 0
        %v3954 = vsel %vm893, %v3936, 0
        %v3957 = vsel %vm893, %v3937, 0
        %v3960 = vsel %vm893, %v3938, 0
        %v3963 = vsel %vm893, %v3939, 0
        %v3966 = vsel %vm893, %v3940, 0
        %3968 = vmatprep.subr.bf16.mxu0 %v3948
        %3969 = vmatpush1.bf16.msra.mxu0 %v3945
        %3970 = vmatprep.subr.bf16.mxu0 0
        %3971 = vmatpush1.bf16.msra.mxu0 0
        %3972 = vmatprep.subr.bf16.mxu0 0
        %3973 = vmatpush1.bf16.msra.mxu0 0
        %3974 = vmatprep.subr.bf16.mxu0 0
        %3975 = vmatpush1.bf16.msra.mxu0 0
        %3976 = vmatprep.subr.bf16.mxu0 0
        %3977 = vmatpush1.bf16.msra.mxu0 0
        %3978 = vmatprep.subr.bf16.mxu0 0
        %3979 = vmatpush1.bf16.msra.mxu0 0
        %3980 = vmatprep.subr.bf16.mxu0 0
        %3981 = vmatpush1.bf16.msra.mxu0 0
        %3982 = vmatprep.subr.bf16.mxu0 0
        %3983 = vmatpush1.bf16.msra.mxu0 0
        %3984 = vmatprep.subr.bf16.mxu0 0
        %3985 = vmatpush1.bf16.msra.mxu0 0
        %3986 = vmatprep.subr.bf16.mxu0 0
        %3987 = vmatpush1.bf16.msra.mxu0 0
        %3988 = vmatprep.subr.bf16.mxu0 0
        %3989 = vmatpush1.bf16.msra.mxu0 0
        %3990 = vmatprep.subr.bf16.mxu0 0
        %3991 = vmatpush1.bf16.msra.mxu0 0
        %3992 = vmatprep.subr.bf16.mxu0 0
        %3993 = vmatpush1.bf16.msra.mxu0 0
        %3994 = vmatprep.subr.bf16.mxu0 0
        %3995 = vmatpush1.bf16.msra.mxu0 0
        %3996 = vmatprep.subr.bf16.mxu0 0
        %3997 = vmatpush1.bf16.msra.mxu0 0
        %3998 = vmatprep.subr.bf16.mxu0 0
        %3999 = vmatpush1.bf16.msra.mxu0 0
        %4000 = vmatprep.mubr.bf16.mxu0 0
        %4001 = vmatmul.mubr.bf16.gmra.mrb[0].mxu0 %v3942
        %v4002 = vpop.f32.mrb[0].mxu0
        %v4003 = vadd.f32 0.0, %v4002
        %v4004 = vpop.f32.mrb[0].mxu0
        %v4005 = vadd.f32 0.0, %v4004
        %v4006 = vpop.f32.mrb[0].mxu0
        %v4007 = vpop.f32.mrb[0].mxu0
        %4008 = vdwg.mxu0
        %4009 = vmatprep.subr.bf16.mxu0 %v3954
        %4010 = vmatpush1.bf16.msra.mxu0 %v3951
        %4011 = vmatprep.subr.bf16.mxu0 0
        %4012 = vmatpush1.bf16.msra.mxu0 0
        %4013 = vmatprep.subr.bf16.mxu0 0
        %4014 = vmatpush1.bf16.msra.mxu0 0
        %4015 = vmatprep.subr.bf16.mxu0 0
        %4016 = vmatpush1.bf16.msra.mxu0 0
        %4017 = vmatprep.subr.bf16.mxu0 0
        %4018 = vmatpush1.bf16.msra.mxu0 0
        %4019 = vmatprep.subr.bf16.mxu0 0
        %4020 = vmatpush1.bf16.msra.mxu0 0
        %4021 = vmatprep.subr.bf16.mxu0 0
        %4022 = vmatpush1.bf16.msra.mxu0 0
        %4023 = vmatprep.subr.bf16.mxu0 0
        %4024 = vmatpush1.bf16.msra.mxu0 0
        %4025 = vmatprep.subr.bf16.mxu0 0
        %4026 = vmatpush1.bf16.msra.mxu0 0
        %4027 = vmatprep.subr.bf16.mxu0 0
        %4028 = vmatpush1.bf16.msra.mxu0 0
        %4029 = vmatprep.subr.bf16.mxu0 0
        %4030 = vmatpush1.bf16.msra.mxu0 0
        %4031 = vmatprep.subr.bf16.mxu0 0
        %4032 = vmatpush1.bf16.msra.mxu0 0
        %4033 = vmatprep.subr.bf16.mxu0 0
        %4034 = vmatpush1.bf16.msra.mxu0 0
        %4035 = vmatprep.subr.bf16.mxu0 0
        %4036 = vmatpush1.bf16.msra.mxu0 0
        %4037 = vmatprep.subr.bf16.mxu0 0
        %4038 = vmatpush1.bf16.msra.mxu0 0
        %4039 = vmatprep.subr.bf16.mxu0 0
        %4040 = vmatpush1.bf16.msra.mxu0 0
        %4041 = vmatprep.mubr.bf16.mxu0 0
        %4042 = vmatmul.mubr.bf16.gmra.mrb[0].mxu0 %v3942
        %v4043 = vpop.f32.mrb[0].mxu0
        %v4044 = vadd.f32 0.0, %v4043
        %v4045 = vpop.f32.mrb[0].mxu0
        %v4046 = vadd.f32 0.0, %v4045
        %v4047 = vpop.f32.mrb[0].mxu0
        %v4048 = vpop.f32.mrb[0].mxu0
        %4049 = vdwg.mxu0
        %4050 = vmatprep.subr.bf16.mxu0 %v3960
        %4051 = vmatpush1.bf16.msra.mxu0 %v3957
        %4052 = vmatprep.subr.bf16.mxu0 0
        %4053 = vmatpush1.bf16.msra.mxu0 0
        %4054 = vmatprep.subr.bf16.mxu0 0
        %4055 = vmatpush1.bf16.msra.mxu0 0
        %4056 = vmatprep.subr.bf16.mxu0 0
        %4057 = vmatpush1.bf16.msra.mxu0 0
        %4058 = vmatprep.subr.bf16.mxu0 0
        %4059 = vmatpush1.bf16.msra.mxu0 0
        %4060 = vmatprep.subr.bf16.mxu0 0
        %4061 = vmatpush1.bf16.msra.mxu0 0
        %4062 = vmatprep.subr.bf16.mxu0 0
        %4063 = vmatpush1.bf16.msra.mxu0 0
        %4064 = vmatprep.subr.bf16.mxu0 0
        %4065 = vmatpush1.bf16.msra.mxu0 0
        %4066 = vmatprep.subr.bf16.mxu0 0
        %4067 = vmatpush1.bf16.msra.mxu0 0
        %4068 = vmatprep.subr.bf16.mxu0 0
        %4069 = vmatpush1.bf16.msra.mxu0 0
        %4070 = vmatprep.subr.bf16.mxu0 0
        %4071 = vmatpush1.bf16.msra.mxu0 0
        %4072 = vmatprep.subr.bf16.mxu0 0
        %4073 = vmatpush1.bf16.msra.mxu0 0
        %4074 = vmatprep.subr.bf16.mxu0 0
        %4075 = vmatpush1.bf16.msra.mxu0 0
        %4076 = vmatprep.subr.bf16.mxu0 0
        %4077 = vmatpush1.bf16.msra.mxu0 0
        %4078 = vmatprep.subr.bf16.mxu0 0
        %4079 = vmatpush1.bf16.msra.mxu0 0
        %4080 = vmatprep.subr.bf16.mxu0 0
        %4081 = vmatpush1.bf16.msra.mxu0 0
        %4082 = vmatprep.mubr.bf16.mxu0 0
        %4083 = vmatmul.mubr.bf16.gmra.mrb[0].mxu0 %v3942
        %v4084 = vpop.f32.mrb[0].mxu0
        %v4085 = vadd.f32 0.0, %v4084
        %v4086 = vpop.f32.mrb[0].mxu0
        %v4087 = vadd.f32 0.0, %v4086
        %v4088 = vpop.f32.mrb[0].mxu0
        %v4089 = vpop.f32.mrb[0].mxu0
        %4090 = vdwg.mxu0
        %4091 = vmatprep.subr.bf16.mxu0 %v3966
        %4092 = vmatpush1.bf16.msra.mxu0 %v3963
        %4093 = vmatprep.subr.bf16.mxu0 0
        %4094 = vmatpush1.bf16.msra.mxu0 0
        %4095 = vmatprep.subr.bf16.mxu0 0
        %4096 = vmatpush1.bf16.msra.mxu0 0
        %4097 = vmatprep.subr.bf16.mxu0 0
        %4098 = vmatpush1.bf16.msra.mxu0 0
        %4099 = vmatprep.subr.bf16.mxu0 0
        %4100 = vmatpush1.bf16.msra.mxu0 0
        %4101 = vmatprep.subr.bf16.mxu0 0
        %4102 = vmatpush1.bf16.msra.mxu0 0
        %4103 = vmatprep.subr.bf16.mxu0 0
        %4104 = vmatpush1.bf16.msra.mxu0 0
        %4105 = vmatprep.subr.bf16.mxu0 0
        %4106 = vmatpush1.bf16.msra.mxu0 0
        %4107 = vmatprep.subr.bf16.mxu0 0
        %4108 = vmatpush1.bf16.msra.mxu0 0
        %4109 = vmatprep.subr.bf16.mxu0 0
        %4110 = vmatpush1.bf16.msra.mxu0 0
        %4111 = vmatprep.subr.bf16.mxu0 0
        %4112 = vmatpush1.bf16.msra.mxu0 0
        %4113 = vmatprep.subr.bf16.mxu0 0
        %4114 = vmatpush1.bf16.msra.mxu0 0
        %4115 = vmatprep.subr.bf16.mxu0 0
        %4116 = vmatpush1.bf16.msra.mxu0 0
        %4117 = vmatprep.subr.bf16.mxu0 0
        %4118 = vmatpush1.bf16.msra.mxu0 0
        %4119 = vmatprep.subr.bf16.mxu0 0
        %4120 = vmatpush1.bf16.msra.mxu0 0
        %4121 = vmatprep.subr.bf16.mxu0 0
        %4122 = vmatpush1.bf16.msra.mxu0 0
        %4123 = vmatprep.mubr.bf16.mxu0 0
        %4124 = vmatmul.mubr.bf16.gmra.mrb[0].mxu0 %v3942
        %v4125 = vpop.f32.mrb[0].mxu0
        %v4126 = vadd.f32 0.0, %v4125
        %v4127 = vpop.f32.mrb[0].mxu0
        %v4128 = vadd.f32 0.0, %v4127
        %v4129 = vpop.f32.mrb[0].mxu0
        %v4130 = vpop.f32.mrb[0].mxu0
        %4131 = vdwg.mxu0
        %v4132 = vadd.f32 %v3712, %v4003
        %v4133 = vadd.f32 %v3713, %v4005
        %v4134 = vadd.f32 %v3714, %v4044
        %v4135 = vadd.f32 %v3715, %v4046
        %v4136 = vadd.f32 %v3716, %v4085
        %v4137 = vadd.f32 %v3717, %v4087
        %v4138 = vadd.f32 %v3718, %v4126
        %v4139 = vadd.f32 %v3719, %v4128
        %v4140 = vld [vmem:[#allocation2 + $0x2] sm:$0xff]
        %v4141 = vld [vmem:[#allocation2 + $0xa] sm:$0xff]
        %v4142 = vld [vmem:[#allocation2 + $0x12] sm:$0x3]
        %v4143 = vmul.bf16 %v4140, %v683
        %v4144 = vmul.bf16 %v4141, %v686
        %v4145 = vmul.bf16 %v4142, %v681
        %v4146 = vld [vmem:[%s3] sm:$0x3]
        %v4149 = vunpack.c.l.s4 1983009808
        %v4150 = vunpack.c.0.s8 %v4149
        %v4151 = vlaneseq
        %v4152 = vshrl.u32 %v4151, 7
        %v4153 = vsub.s32 %v4150, %v4152
        %v4154 = vrot.slane %v4146, %v4153
        %4155 = vrot.lane.b32.xlu0 %v4154, 92
        %v4156 = vpop.permute.xlu0 %4155
        %v4160 = vcombine.high %v4143, %v4143
        %v4162 = vunpack.c.l.s4 1983009808
        %v4163 = vunpack.c.0.s8 %v4162
        %v4164 = vlaneseq
        %v4165 = vshrl.u32 %v4164, 7
        %v4166 = vsub.s32 %v4163, %v4165
        %v4167 = vrot.slane %v4143, %v4166
        %v4169 = vunpack.c.l.s4 1983009808
        %v4170 = vunpack.c.0.s8 %v4169
        %v4171 = vlaneseq
        %v4172 = vshrl.u32 %v4171, 7
        %v4173 = vsub.s32 %v4170, %v4172
        %v4174 = vrot.slane %v4160, %v4173
        %v4175 = vcombine.high %v4167, %v4167
        %v4176 = vcombine.high %v4174, %v4174
        %v4177 = vcombine.high %v4144, %v4144
        %v4179 = vunpack.c.l.s4 1983009808
        %v4180 = vunpack.c.0.s8 %v4179
        %v4181 = vlaneseq
        %v4182 = vshrl.u32 %v4181, 7
        %v4183 = vsub.s32 %v4180, %v4182
        %v4184 = vrot.slane %v4144, %v4183
        %v4186 = vunpack.c.l.s4 1983009808
        %v4187 = vunpack.c.0.s8 %v4186
        %v4188 = vlaneseq
        %v4189 = vshrl.u32 %v4188, 7
        %v4190 = vsub.s32 %v4187, %v4189
        %v4191 = vrot.slane %v4177, %v4190
        %v4192 = vcombine.high %v4184, %v4184
        %v4193 = vcombine.high %v4191, %v4191
        %v4195 = vunpack.c.l.s4 1983009808
        %v4196 = vunpack.c.0.s8 %v4195
        %v4197 = vlaneseq
        %v4198 = vshrl.u32 %v4197, 7
        %v4199 = vsub.s32 %v4196, %v4198
        %v4200 = vrot.slane %v4145, %v4199
        %4201 = vrot.lane.b32.xlu0 %v4167, 9
        %v4202 = vpop.permute.xlu0 %4201
        %4203 = vrot.lane.b32.xlu0 %v4175, 9
        %v4204 = vpop.permute.xlu0 %4203
        %4205 = vrot.lane.b32.xlu0 %v4174, 9
        %v4206 = vpop.permute.xlu0 %4205
        %4207 = vrot.lane.b32.xlu0 %v4176, 9
        %v4208 = vpop.permute.xlu0 %4207
        %4209 = vrot.lane.b32.xlu0 %v4184, 9
        %v4210 = vpop.permute.xlu0 %4209
        %4211 = vrot.lane.b32.xlu0 %v4192, 9
        %v4212 = vpop.permute.xlu0 %4211
        %4213 = vrot.lane.b32.xlu0 %v4191, 9
        %v4214 = vpop.permute.xlu0 %4213
        %4215 = vrot.lane.b32.xlu0 %v4193, 9
        %v4216 = vpop.permute.xlu0 %4215
        %4217 = vrot.lane.b32.xlu0 %v4200, 9
        %v4218 = vpop.permute.xlu0 %4217
        %v4219 = vsel %vm1144, %v4202, %v4204
        %v4220 = vsel %vm1144, %v4204, %v4206
        %v4221 = vsel %vm1144, %v4206, %v4208
        %v4222 = vsel %vm1144, %v4208, %v4210
        %v4223 = vsel %vm1144, %v4210, %v4212
        %v4224 = vsel %vm1144, %v4212, %v4214
        %v4225 = vsel %vm1144, %v4214, %v4216
        %v4226 = vsel %vm1144, %v4216, %v4218
        %v4228 = vsel %vm889, %v4156, 0
        %v4231 = vsel %vm893, %v4219, 0
        %v4234 = vsel %vm893, %v4220, 0
        %v4237 = vsel %vm893, %v4221, 0
        %v4240 = vsel %vm893, %v4222, 0
        %v4243 = vsel %vm893, %v4223, 0
        %v4246 = vsel %vm893, %v4224, 0
        %v4249 = vsel %vm893, %v4225, 0
        %v4252 = vsel %vm893, %v4226, 0
        %4254 = vmatprep.subr.bf16.mxu0 %v4234
        %4255 = vmatpush1.bf16.msra.mxu0 %v4231
        %4256 = vmatprep.subr.bf16.mxu0 0
        %4257 = vmatpush1.bf16.msra.mxu0 0
        %4258 = vmatprep.subr.bf16.mxu0 0
        %4259 = vmatpush1.bf16.msra.mxu0 0
        %4260 = vmatprep.subr.bf16.mxu0 0
        %4261 = vmatpush1.bf16.msra.mxu0 0
        %4262 = vmatprep.subr.bf16.mxu0 0
        %4263 = vmatpush1.bf16.msra.mxu0 0
        %4264 = vmatprep.subr.bf16.mxu0 0
        %4265 = vmatpush1.bf16.msra.mxu0 0
        %4266 = vmatprep.subr.bf16.mxu0 0
        %4267 = vmatpush1.bf16.msra.mxu0 0
        %4268 = vmatprep.subr.bf16.mxu0 0
        %4269 = vmatpush1.bf16.msra.mxu0 0
        %4270 = vmatprep.subr.bf16.mxu0 0
        %4271 = vmatpush1.bf16.msra.mxu0 0
        %4272 = vmatprep.subr.bf16.mxu0 0
        %4273 = vmatpush1.bf16.msra.mxu0 0
        %4274 = vmatprep.subr.bf16.mxu0 0
        %4275 = vmatpush1.bf16.msra.mxu0 0
        %4276 = vmatprep.subr.bf16.mxu0 0
        %4277 = vmatpush1.bf16.msra.mxu0 0
        %4278 = vmatprep.subr.bf16.mxu0 0
        %4279 = vmatpush1.bf16.msra.mxu0 0
        %4280 = vmatprep.subr.bf16.mxu0 0
        %4281 = vmatpush1.bf16.msra.mxu0 0
        %4282 = vmatprep.subr.bf16.mxu0 0
        %4283 = vmatpush1.bf16.msra.mxu0 0
        %4284 = vmatprep.subr.bf16.mxu0 0
        %4285 = vmatpush1.bf16.msra.mxu0 0
        %4286 = vmatprep.mubr.bf16.mxu0 0
        %4287 = vmatmul.mubr.bf16.gmra.mrb[0].mxu0 %v4228
        %v4288 = vpop.f32.mrb[0].mxu0
        %v4289 = vadd.f32 0.0, %v4288
        %v4290 = vpop.f32.mrb[0].mxu0
        %v4291 = vadd.f32 0.0, %v4290
        %v4292 = vpop.f32.mrb[0].mxu0
        %v4293 = vpop.f32.mrb[0].mxu0
        %4294 = vdwg.mxu0
        %4295 = vmatprep.subr.bf16.mxu0 %v4240
        %4296 = vmatpush1.bf16.msra.mxu0 %v4237
        %4297 = vmatprep.subr.bf16.mxu0 0
        %4298 = vmatpush1.bf16.msra.mxu0 0
        %4299 = vmatprep.subr.bf16.mxu0 0
        %4300 = vmatpush1.bf16.msra.mxu0 0
        %4301 = vmatprep.subr.bf16.mxu0 0
        %4302 = vmatpush1.bf16.msra.mxu0 0
        %4303 = vmatprep.subr.bf16.mxu0 0
        %4304 = vmatpush1.bf16.msra.mxu0 0
        %4305 = vmatprep.subr.bf16.mxu0 0
        %4306 = vmatpush1.bf16.msra.mxu0 0
        %4307 = vmatprep.subr.bf16.mxu0 0
        %4308 = vmatpush1.bf16.msra.mxu0 0
        %4309 = vmatprep.subr.bf16.mxu0 0
        %4310 = vmatpush1.bf16.msra.mxu0 0
        %4311 = vmatprep.subr.bf16.mxu0 0
        %4312 = vmatpush1.bf16.msra.mxu0 0
        %4313 = vmatprep.subr.bf16.mxu0 0
        %4314 = vmatpush1.bf16.msra.mxu0 0
        %4315 = vmatprep.subr.bf16.mxu0 0
        %4316 = vmatpush1.bf16.msra.mxu0 0
        %4317 = vmatprep.subr.bf16.mxu0 0
        %4318 = vmatpush1.bf16.msra.mxu0 0
        %4319 = vmatprep.subr.bf16.mxu0 0
        %4320 = vmatpush1.bf16.msra.mxu0 0
        %4321 = vmatprep.subr.bf16.mxu0 0
        %4322 = vmatpush1.bf16.msra.mxu0 0
        %4323 = vmatprep.subr.bf16.mxu0 0
        %4324 = vmatpush1.bf16.msra.mxu0 0
        %4325 = vmatprep.subr.bf16.mxu0 0
        %4326 = vmatpush1.bf16.msra.mxu0 0
        %4327 = vmatprep.mubr.bf16.mxu0 0
        %4328 = vmatmul.mubr.bf16.gmra.mrb[0].mxu0 %v4228
        %v4329 = vpop.f32.mrb[0].mxu0
        %v4330 = vadd.f32 0.0, %v4329
        %v4331 = vpop.f32.mrb[0].mxu0
        %v4332 = vadd.f32 0.0, %v4331
        %v4333 = vpop.f32.mrb[0].mxu0
        %v4334 = vpop.f32.mrb[0].mxu0
        %4335 = vdwg.mxu0
        %4336 = vmatprep.subr.bf16.mxu0 %v4246
        %4337 = vmatpush1.bf16.msra.mxu0 %v4243
        %4338 = vmatprep.subr.bf16.mxu0 0
        %4339 = vmatpush1.bf16.msra.mxu0 0
        %4340 = vmatprep.subr.bf16.mxu0 0
        %4341 = vmatpush1.bf16.msra.mxu0 0
        %4342 = vmatprep.subr.bf16.mxu0 0
        %4343 = vmatpush1.bf16.msra.mxu0 0
        %4344 = vmatprep.subr.bf16.mxu0 0
        %4345 = vmatpush1.bf16.msra.mxu0 0
        %4346 = vmatprep.subr.bf16.mxu0 0
        %4347 = vmatpush1.bf16.msra.mxu0 0
        %4348 = vmatprep.subr.bf16.mxu0 0
        %4349 = vmatpush1.bf16.msra.mxu0 0
        %4350 = vmatprep.subr.bf16.mxu0 0
        %4351 = vmatpush1.bf16.msra.mxu0 0
        %4352 = vmatprep.subr.bf16.mxu0 0
        %4353 = vmatpush1.bf16.msra.mxu0 0
        %4354 = vmatprep.subr.bf16.mxu0 0
        %4355 = vmatpush1.bf16.msra.mxu0 0
        %4356 = vmatprep.subr.bf16.mxu0 0
        %4357 = vmatpush1.bf16.msra.mxu0 0
        %4358 = vmatprep.subr.bf16.mxu0 0
        %4359 = vmatpush1.bf16.msra.mxu0 0
        %4360 = vmatprep.subr.bf16.mxu0 0
        %4361 = vmatpush1.bf16.msra.mxu0 0
        %4362 = vmatprep.subr.bf16.mxu0 0
        %4363 = vmatpush1.bf16.msra.mxu0 0
        %4364 = vmatprep.subr.bf16.mxu0 0
        %4365 = vmatpush1.bf16.msra.mxu0 0
        %4366 = vmatprep.subr.bf16.mxu0 0
        %4367 = vmatpush1.bf16.msra.mxu0 0
        %4368 = vmatprep.mubr.bf16.mxu0 0
        %4369 = vmatmul.mubr.bf16.gmra.mrb[0].mxu0 %v4228
        %v4370 = vpop.f32.mrb[0].mxu0
        %v4371 = vadd.f32 0.0, %v4370
        %v4372 = vpop.f32.mrb[0].mxu0
        %v4373 = vadd.f32 0.0, %v4372
        %v4374 = vpop.f32.mrb[0].mxu0
        %v4375 = vpop.f32.mrb[0].mxu0
        %4376 = vdwg.mxu0
        %4377 = vmatprep.subr.bf16.mxu0 %v4252
        %4378 = vmatpush1.bf16.msra.mxu0 %v4249
        %4379 = vmatprep.subr.bf16.mxu0 0
        %4380 = vmatpush1.bf16.msra.mxu0 0
        %4381 = vmatprep.subr.bf16.mxu0 0
        %4382 = vmatpush1.bf16.msra.mxu0 0
        %4383 = vmatprep.subr.bf16.mxu0 0
        %4384 = vmatpush1.bf16.msra.mxu0 0
        %4385 = vmatprep.subr.bf16.mxu0 0
        %4386 = vmatpush1.bf16.msra.mxu0 0
        %4387 = vmatprep.subr.bf16.mxu0 0
        %4388 = vmatpush1.bf16.msra.mxu0 0
        %4389 = vmatprep.subr.bf16.mxu0 0
        %4390 = vmatpush1.bf16.msra.mxu0 0
        %4391 = vmatprep.subr.bf16.mxu0 0
        %4392 = vmatpush1.bf16.msra.mxu0 0
        %4393 = vmatprep.subr.bf16.mxu0 0
        %4394 = vmatpush1.bf16.msra.mxu0 0
        %4395 = vmatprep.subr.bf16.mxu0 0
        %4396 = vmatpush1.bf16.msra.mxu0 0
        %4397 = vmatprep.subr.bf16.mxu0 0
        %4398 = vmatpush1.bf16.msra.mxu0 0
        %4399 = vmatprep.subr.bf16.mxu0 0
        %4400 = vmatpush1.bf16.msra.mxu0 0
        %4401 = vmatprep.subr.bf16.mxu0 0
        %4402 = vmatpush1.bf16.msra.mxu0 0
        %4403 = vmatprep.subr.bf16.mxu0 0
        %4404 = vmatpush1.bf16.msra.mxu0 0
        %4405 = vmatprep.subr.bf16.mxu0 0
        %4406 = vmatpush1.bf16.msra.mxu0 0
        %4407 = vmatprep.subr.bf16.mxu0 0
        %4408 = vmatpush1.bf16.msra.mxu0 0
        %4409 = vmatprep.mubr.bf16.mxu0 0
        %4410 = vmatmul.mubr.bf16.gmra.mrb[0].mxu0 %v4228
        %v4411 = vpop.f32.mrb[0].mxu0
        %v4412 = vadd.f32 0.0, %v4411
        %v4413 = vpop.f32.mrb[0].mxu0
        %v4414 = vadd.f32 0.0, %v4413
        %v4415 = vpop.f32.mrb[0].mxu0
        %v4416 = vpop.f32.mrb[0].mxu0
        %4417 = vdwg.mxu0
        %v4418 = vadd.f32 %v4132, %v4289
        %v4419 = vadd.f32 %v4133, %v4291
        %v4420 = vadd.f32 %v4134, %v4330
        %v4421 = vadd.f32 %v4135, %v4332
        %v4422 = vadd.f32 %v4136, %v4371
        %v4423 = vadd.f32 %v4137, %v4373
        %v4424 = vadd.f32 %v4138, %v4412
        %v4425 = vadd.f32 %v4139, %v4414
        %v4426 = vld [vmem:[#allocation2 + $0x2] sm:$0xff]
        %v4427 = vld [vmem:[#allocation2 + $0xa] sm:$0xff]
        %v4428 = vld [vmem:[#allocation2 + $0x12] sm:$0x3]
        %v4429 = vmul.bf16 %v4426, %v799
        %v4430 = vmul.bf16 %v4427, %v801
        %v4431 = vmul.bf16 %v4428, %v797
        %v4432 = vld [vmem:[%s3] sm:$0x3]
        %v4435 = vunpack.c.l.s4 1983009808
        %v4436 = vunpack.c.0.s8 %v4435
        %v4437 = vlaneseq
        %v4438 = vshrl.u32 %v4437, 7
        %v4439 = vsub.s32 %v4436, %v4438
        %v4440 = vrot.slane %v4432, %v4439
        %4441 = vrot.lane.b32.xlu0 %v4440, 88
        %v4442 = vpop.permute.xlu0 %4441
        %v4446 = vcombine.high %v4429, %v4429
        %v4448 = vunpack.c.l.s4 1983009808
        %v4449 = vunpack.c.0.s8 %v4448
        %v4450 = vlaneseq
        %v4451 = vshrl.u32 %v4450, 7
        %v4452 = vsub.s32 %v4449, %v4451
        %v4453 = vrot.slane %v4429, %v4452
        %v4455 = vunpack.c.l.s4 1983009808
        %v4456 = vunpack.c.0.s8 %v4455
        %v4457 = vlaneseq
        %v4458 = vshrl.u32 %v4457, 7
        %v4459 = vsub.s32 %v4456, %v4458
        %v4460 = vrot.slane %v4446, %v4459
        %v4461 = vcombine.high %v4453, %v4453
        %v4462 = vcombine.high %v4460, %v4460
        %v4463 = vcombine.high %v4430, %v4430
        %v4465 = vunpack.c.l.s4 1983009808
        %v4466 = vunpack.c.0.s8 %v4465
        %v4467 = vlaneseq
        %v4468 = vshrl.u32 %v4467, 7
        %v4469 = vsub.s32 %v4466, %v4468
        %v4470 = vrot.slane %v4430, %v4469
        %v4472 = vunpack.c.l.s4 1983009808
        %v4473 = vunpack.c.0.s8 %v4472
        %v4474 = vlaneseq
        %v4475 = vshrl.u32 %v4474, 7
        %v4476 = vsub.s32 %v4473, %v4475
        %v4477 = vrot.slane %v4463, %v4476
        %v4478 = vcombine.high %v4470, %v4470
        %v4479 = vcombine.high %v4477, %v4477
        %v4481 = vunpack.c.l.s4 1983009808
        %v4482 = vunpack.c.0.s8 %v4481
        %v4483 = vlaneseq
        %v4484 = vshrl.u32 %v4483, 7
        %v4485 = vsub.s32 %v4482, %v4484
        %v4486 = vrot.slane %v4431, %v4485
        %4487 = vrot.lane.b32.xlu0 %v4453, 8
        %v4488 = vpop.permute.xlu0 %4487
        %4489 = vrot.lane.b32.xlu0 %v4461, 8
        %v4490 = vpop.permute.xlu0 %4489
        %4491 = vrot.lane.b32.xlu0 %v4460, 8
        %v4492 = vpop.permute.xlu0 %4491
        %4493 = vrot.lane.b32.xlu0 %v4462, 8
        %v4494 = vpop.permute.xlu0 %4493
        %4495 = vrot.lane.b32.xlu0 %v4470, 8
        %v4496 = vpop.permute.xlu0 %4495
        %4497 = vrot.lane.b32.xlu0 %v4478, 8
        %v4498 = vpop.permute.xlu0 %4497
        %4499 = vrot.lane.b32.xlu0 %v4477, 8
        %v4500 = vpop.permute.xlu0 %4499
        %4501 = vrot.lane.b32.xlu0 %v4479, 8
        %v4502 = vpop.permute.xlu0 %4501
        %4503 = vrot.lane.b32.xlu0 %v4486, 8
        %v4504 = vpop.permute.xlu0 %4503
        %v4505 = vsel %vm880, %v4488, %v4490
        %v4506 = vsel %vm880, %v4490, %v4492
        %v4507 = vsel %vm880, %v4492, %v4494
        %v4508 = vsel %vm880, %v4494, %v4496
        %v4509 = vsel %vm880, %v4496, %v4498
        %v4510 = vsel %vm880, %v4498, %v4500
        %v4511 = vsel %vm880, %v4500, %v4502
        %v4512 = vsel %vm880, %v4502, %v4504
        %v4514 = vsel %vm889, %v4442, 0
        %v4517 = vsel %vm893, %v4505, 0
        %v4520 = vsel %vm893, %v4506, 0
        %v4523 = vsel %vm893, %v4507, 0
        %v4526 = vsel %vm893, %v4508, 0
        %v4529 = vsel %vm893, %v4509, 0
        %v4532 = vsel %vm893, %v4510, 0
        %v4535 = vsel %vm893, %v4511, 0
        %v4538 = vsel %vm893, %v4512, 0
        %4540 = vmatprep.subr.bf16.mxu0 %v4520
        %4541 = vmatpush1.bf16.msra.mxu0 %v4517
        %4542 = vmatprep.subr.bf16.mxu0 0
        %4543 = vmatpush1.bf16.msra.mxu0 0
        %4544 = vmatprep.subr.bf16.mxu0 0
        %4545 = vmatpush1.bf16.msra.mxu0 0
        %4546 = vmatprep.subr.bf16.mxu0 0
        %4547 = vmatpush1.bf16.msra.mxu0 0
        %4548 = vmatprep.subr.bf16.mxu0 0
        %4549 = vmatpush1.bf16.msra.mxu0 0
        %4550 = vmatprep.subr.bf16.mxu0 0
        %4551 = vmatpush1.bf16.msra.mxu0 0
        %4552 = vmatprep.subr.bf16.mxu0 0
        %4553 = vmatpush1.bf16.msra.mxu0 0
        %4554 = vmatprep.subr.bf16.mxu0 0
        %4555 = vmatpush1.bf16.msra.mxu0 0
        %4556 = vmatprep.subr.bf16.mxu0 0
        %4557 = vmatpush1.bf16.msra.mxu0 0
        %4558 = vmatprep.subr.bf16.mxu0 0
        %4559 = vmatpush1.bf16.msra.mxu0 0
        %4560 = vmatprep.subr.bf16.mxu0 0
        %4561 = vmatpush1.bf16.msra.mxu0 0
        %4562 = vmatprep.subr.bf16.mxu0 0
        %4563 = vmatpush1.bf16.msra.mxu0 0
        %4564 = vmatprep.subr.bf16.mxu0 0
        %4565 = vmatpush1.bf16.msra.mxu0 0
        %4566 = vmatprep.subr.bf16.mxu0 0
        %4567 = vmatpush1.bf16.msra.mxu0 0
        %4568 = vmatprep.subr.bf16.mxu0 0
        %4569 = vmatpush1.bf16.msra.mxu0 0
        %4570 = vmatprep.subr.bf16.mxu0 0
        %4571 = vmatpush1.bf16.msra.mxu0 0
        %4572 = vmatprep.mubr.bf16.mxu0 0
        %4573 = vmatmul.mubr.bf16.gmra.mrb[0].mxu0 %v4514
        %v4574 = vpop.f32.mrb[0].mxu0
        %v4575 = vadd.f32 0.0, %v4574
        %v4576 = vpop.f32.mrb[0].mxu0
        %v4577 = vadd.f32 0.0, %v4576
        %v4578 = vpop.f32.mrb[0].mxu0
        %v4579 = vpop.f32.mrb[0].mxu0
        %4580 = vdwg.mxu0
        %4581 = vmatprep.subr.bf16.mxu0 %v4526
        %4582 = vmatpush1.bf16.msra.mxu0 %v4523
        %4583 = vmatprep.subr.bf16.mxu0 0
        %4584 = vmatpush1.bf16.msra.mxu0 0
        %4585 = vmatprep.subr.bf16.mxu0 0
        %4586 = vmatpush1.bf16.msra.mxu0 0
        %4587 = vmatprep.subr.bf16.mxu0 0
        %4588 = vmatpush1.bf16.msra.mxu0 0
        %4589 = vmatprep.subr.bf16.mxu0 0
        %4590 = vmatpush1.bf16.msra.mxu0 0
        %4591 = vmatprep.subr.bf16.mxu0 0
        %4592 = vmatpush1.bf16.msra.mxu0 0
        %4593 = vmatprep.subr.bf16.mxu0 0
        %4594 = vmatpush1.bf16.msra.mxu0 0
        %4595 = vmatprep.subr.bf16.mxu0 0
        %4596 = vmatpush1.bf16.msra.mxu0 0
        %4597 = vmatprep.subr.bf16.mxu0 0
        %4598 = vmatpush1.bf16.msra.mxu0 0
        %4599 = vmatprep.subr.bf16.mxu0 0
        %4600 = vmatpush1.bf16.msra.mxu0 0
        %4601 = vmatprep.subr.bf16.mxu0 0
        %4602 = vmatpush1.bf16.msra.mxu0 0
        %4603 = vmatprep.subr.bf16.mxu0 0
        %4604 = vmatpush1.bf16.msra.mxu0 0
        %4605 = vmatprep.subr.bf16.mxu0 0
        %4606 = vmatpush1.bf16.msra.mxu0 0
        %4607 = vmatprep.subr.bf16.mxu0 0
        %4608 = vmatpush1.bf16.msra.mxu0 0
        %4609 = vmatprep.subr.bf16.mxu0 0
        %4610 = vmatpush1.bf16.msra.mxu0 0
        %4611 = vmatprep.subr.bf16.mxu0 0
        %4612 = vmatpush1.bf16.msra.mxu0 0
        %4613 = vmatprep.mubr.bf16.mxu0 0
        %4614 = vmatmul.mubr.bf16.gmra.mrb[0].mxu0 %v4514
        %v4615 = vpop.f32.mrb[0].mxu0
        %v4616 = vadd.f32 0.0, %v4615
        %v4617 = vpop.f32.mrb[0].mxu0
        %v4618 = vadd.f32 0.0, %v4617
        %v4619 = vpop.f32.mrb[0].mxu0
        %v4620 = vpop.f32.mrb[0].mxu0
        %4621 = vdwg.mxu0
        %4622 = vmatprep.subr.bf16.mxu0 %v4532
        %4623 = vmatpush1.bf16.msra.mxu0 %v4529
        %4624 = vmatprep.subr.bf16.mxu0 0
        %4625 = vmatpush1.bf16.msra.mxu0 0
        %4626 = vmatprep.subr.bf16.mxu0 0
        %4627 = vmatpush1.bf16.msra.mxu0 0
        %4628 = vmatprep.subr.bf16.mxu0 0
        %4629 = vmatpush1.bf16.msra.mxu0 0
        %4630 = vmatprep.subr.bf16.mxu0 0
        %4631 = vmatpush1.bf16.msra.mxu0 0
        %4632 = vmatprep.subr.bf16.mxu0 0
        %4633 = vmatpush1.bf16.msra.mxu0 0
        %4634 = vmatprep.subr.bf16.mxu0 0
        %4635 = vmatpush1.bf16.msra.mxu0 0
        %4636 = vmatprep.subr.bf16.mxu0 0
        %4637 = vmatpush1.bf16.msra.mxu0 0
        %4638 = vmatprep.subr.bf16.mxu0 0
        %4639 = vmatpush1.bf16.msra.mxu0 0
        %4640 = vmatprep.subr.bf16.mxu0 0
        %4641 = vmatpush1.bf16.msra.mxu0 0
        %4642 = vmatprep.subr.bf16.mxu0 0
        %4643 = vmatpush1.bf16.msra.mxu0 0
        %4644 = vmatprep.subr.bf16.mxu0 0
        %4645 = vmatpush1.bf16.msra.mxu0 0
        %4646 = vmatprep.subr.bf16.mxu0 0
        %4647 = vmatpush1.bf16.msra.mxu0 0
        %4648 = vmatprep.subr.bf16.mxu0 0
        %4649 = vmatpush1.bf16.msra.mxu0 0
        %4650 = vmatprep.subr.bf16.mxu0 0
        %4651 = vmatpush1.bf16.msra.mxu0 0
        %4652 = vmatprep.subr.bf16.mxu0 0
        %4653 = vmatpush1.bf16.msra.mxu0 0
        %4654 = vmatprep.mubr.bf16.mxu0 0
        %4655 = vmatmul.mubr.bf16.gmra.mrb[0].mxu0 %v4514
        %v4656 = vpop.f32.mrb[0].mxu0
        %v4657 = vadd.f32 0.0, %v4656
        %v4658 = vpop.f32.mrb[0].mxu0
        %v4659 = vadd.f32 0.0, %v4658
        %v4660 = vpop.f32.mrb[0].mxu0
        %v4661 = vpop.f32.mrb[0].mxu0
        %4662 = vdwg.mxu0
        %4663 = vmatprep.subr.bf16.mxu0 %v4538
        %4664 = vmatpush1.bf16.msra.mxu0 %v4535
        %4665 = vmatprep.subr.bf16.mxu0 0
        %4666 = vmatpush1.bf16.msra.mxu0 0
        %4667 = vmatprep.subr.bf16.mxu0 0
        %4668 = vmatpush1.bf16.msra.mxu0 0
        %4669 = vmatprep.subr.bf16.mxu0 0
        %4670 = vmatpush1.bf16.msra.mxu0 0
        %4671 = vmatprep.subr.bf16.mxu0 0
        %4672 = vmatpush1.bf16.msra.mxu0 0
        %4673 = vmatprep.subr.bf16.mxu0 0
        %4674 = vmatpush1.bf16.msra.mxu0 0
        %4675 = vmatprep.subr.bf16.mxu0 0
        %4676 = vmatpush1.bf16.msra.mxu0 0
        %4677 = vmatprep.subr.bf16.mxu0 0
        %4678 = vmatpush1.bf16.msra.mxu0 0
        %4679 = vmatprep.subr.bf16.mxu0 0
        %4680 = vmatpush1.bf16.msra.mxu0 0
        %4681 = vmatprep.subr.bf16.mxu0 0
        %4682 = vmatpush1.bf16.msra.mxu0 0
        %4683 = vmatprep.subr.bf16.mxu0 0
        %4684 = vmatpush1.bf16.msra.mxu0 0
        %4685 = vmatprep.subr.bf16.mxu0 0
        %4686 = vmatpush1.bf16.msra.mxu0 0
        %4687 = vmatprep.subr.bf16.mxu0 0
        %4688 = vmatpush1.bf16.msra.mxu0 0
        %4689 = vmatprep.subr.bf16.mxu0 0
        %4690 = vmatpush1.bf16.msra.mxu0 0
        %4691 = vmatprep.subr.bf16.mxu0 0
        %4692 = vmatpush1.bf16.msra.mxu0 0
        %4693 = vmatprep.subr.bf16.mxu0 0
        %4694 = vmatpush1.bf16.msra.mxu0 0
        %4695 = vmatprep.mubr.bf16.mxu0 0
        %4696 = vmatmul.mubr.bf16.gmra.mrb[0].mxu0 %v4514
        %v4697 = vpop.f32.mrb[0].mxu0
        %v4698 = vadd.f32 0.0, %v4697
        %v4699 = vpop.f32.mrb[0].mxu0
        %v4700 = vadd.f32 0.0, %v4699
        %v4701 = vpop.f32.mrb[0].mxu0
        %v4702 = vpop.f32.mrb[0].mxu0
        %4703 = vdwg.mxu0
        %v4704 = vadd.f32 %v4418, %v4575
        %v4705 = vadd.f32 %v4419, %v4577
        %v4706 = vadd.f32 %v4420, %v4616
        %v4707 = vadd.f32 %v4421, %v4618
        %v4708 = vadd.f32 %v4422, %v4657
        %v4709 = vadd.f32 %v4423, %v4659
        %v4710 = vadd.f32 %v4424, %v4698
        %v4711 = vadd.f32 %v4425, %v4700
        %v4712 = vld [vmem:[#allocation2 + $0x2] sm:$0xff]
        %v4713 = vld [vmem:[#allocation2 + $0xa] sm:$0xff]
        %v4714 = vld [vmem:[#allocation2 + $0x12] sm:$0x3]
        %v4715 = vmul.bf16 %v4712, %v1476
        %v4716 = vmul.bf16 %v4713, %v1478
        %v4717 = vmul.bf16 %v4714, %v1474
        %v4718 = vld [vmem:[%s3] sm:$0x3]
        %v4721 = vunpack.c.l.s4 1983009808
        %v4722 = vunpack.c.0.s8 %v4721
        %v4723 = vlaneseq
        %v4724 = vshrl.u32 %v4723, 7
        %v4725 = vsub.s32 %v4722, %v4724
        %v4726 = vrot.slane %v4718, %v4725
        %4727 = vrot.lane.b32.xlu0 %v4726, 84
        %v4728 = vpop.permute.xlu0 %4727
        %v4732 = vcombine.high %v4715, %v4715
        %v4734 = vunpack.c.l.s4 1983009808
        %v4735 = vunpack.c.0.s8 %v4734
        %v4736 = vlaneseq
        %v4737 = vshrl.u32 %v4736, 7
        %v4738 = vsub.s32 %v4735, %v4737
        %v4739 = vrot.slane %v4715, %v4738
        %v4741 = vunpack.c.l.s4 1983009808
        %v4742 = vunpack.c.0.s8 %v4741
        %v4743 = vlaneseq
        %v4744 = vshrl.u32 %v4743, 7
        %v4745 = vsub.s32 %v4742, %v4744
        %v4746 = vrot.slane %v4732, %v4745
        %v4747 = vcombine.high %v4739, %v4739
        %v4748 = vcombine.high %v4746, %v4746
        %v4749 = vcombine.high %v4716, %v4716
        %v4751 = vunpack.c.l.s4 1983009808
        %v4752 = vunpack.c.0.s8 %v4751
        %v4753 = vlaneseq
        %v4754 = vshrl.u32 %v4753, 7
        %v4755 = vsub.s32 %v4752, %v4754
        %v4756 = vrot.slane %v4716, %v4755
        %v4758 = vunpack.c.l.s4 1983009808
        %v4759 = vunpack.c.0.s8 %v4758
        %v4760 = vlaneseq
        %v4761 = vshrl.u32 %v4760, 7
        %v4762 = vsub.s32 %v4759, %v4761
        %v4763 = vrot.slane %v4749, %v4762
        %v4764 = vcombine.high %v4756, %v4756
        %v4765 = vcombine.high %v4763, %v4763
        %v4767 = vunpack.c.l.s4 1983009808
        %v4768 = vunpack.c.0.s8 %v4767
        %v4769 = vlaneseq
        %v4770 = vshrl.u32 %v4769, 7
        %v4771 = vsub.s32 %v4768, %v4770
        %v4772 = vrot.slane %v4717, %v4771
        %4773 = vrot.lane.b32.xlu0 %v4739, 7
        %v4774 = vpop.permute.xlu0 %4773
        %4775 = vrot.lane.b32.xlu0 %v4747, 7
        %v4776 = vpop.permute.xlu0 %4775
        %4777 = vrot.lane.b32.xlu0 %v4746, 7
        %v4778 = vpop.permute.xlu0 %4777
        %4779 = vrot.lane.b32.xlu0 %v4748, 7
        %v4780 = vpop.permute.xlu0 %4779
        %4781 = vrot.lane.b32.xlu0 %v4756, 7
        %v4782 = vpop.permute.xlu0 %4781
        %4783 = vrot.lane.b32.xlu0 %v4764, 7
        %v4784 = vpop.permute.xlu0 %4783
        %4785 = vrot.lane.b32.xlu0 %v4763, 7
        %v4786 = vpop.permute.xlu0 %4785
        %4787 = vrot.lane.b32.xlu0 %v4765, 7
        %v4788 = vpop.permute.xlu0 %4787
        %4789 = vrot.lane.b32.xlu0 %v4772, 7
        %v4790 = vpop.permute.xlu0 %4789
        %v4791 = vsel %vm1558, %v4774, %v4776
        %v4792 = vsel %vm1558, %v4776, %v4778
        %v4793 = vsel %vm1558, %v4778, %v4780
        %v4794 = vsel %vm1558, %v4780, %v4782
        %v4795 = vsel %vm1558, %v4782, %v4784
        %v4796 = vsel %vm1558, %v4784, %v4786
        %v4797 = vsel %vm1558, %v4786, %v4788
        %v4798 = vsel %vm1558, %v4788, %v4790
        %v4800 = vsel %vm889, %v4728, 0
        %v4803 = vsel %vm893, %v4791, 0
        %v4806 = vsel %vm893, %v4792, 0
        %v4809 = vsel %vm893, %v4793, 0
        %v4812 = vsel %vm893, %v4794, 0
        %v4815 = vsel %vm893, %v4795, 0
        %v4818 = vsel %vm893, %v4796, 0
        %v4821 = vsel %vm893, %v4797, 0
        %v4824 = vsel %vm893, %v4798, 0
        %4826 = vmatprep.subr.bf16.mxu0 %v4806
        %4827 = vmatpush1.bf16.msra.mxu0 %v4803
        %4828 = vmatprep.subr.bf16.mxu0 0
        %4829 = vmatpush1.bf16.msra.mxu0 0
        %4830 = vmatprep.subr.bf16.mxu0 0
        %4831 = vmatpush1.bf16.msra.mxu0 0
        %4832 = vmatprep.subr.bf16.mxu0 0
        %4833 = vmatpush1.bf16.msra.mxu0 0
        %4834 = vmatprep.subr.bf16.mxu0 0
        %4835 = vmatpush1.bf16.msra.mxu0 0
        %4836 = vmatprep.subr.bf16.mxu0 0
        %4837 = vmatpush1.bf16.msra.mxu0 0
        %4838 = vmatprep.subr.bf16.mxu0 0
        %4839 = vmatpush1.bf16.msra.mxu0 0
        %4840 = vmatprep.subr.bf16.mxu0 0
        %4841 = vmatpush1.bf16.msra.mxu0 0
        %4842 = vmatprep.subr.bf16.mxu0 0
        %4843 = vmatpush1.bf16.msra.mxu0 0
        %4844 = vmatprep.subr.bf16.mxu0 0
        %4845 = vmatpush1.bf16.msra.mxu0 0
        %4846 = vmatprep.subr.bf16.mxu0 0
        %4847 = vmatpush1.bf16.msra.mxu0 0
        %4848 = vmatprep.subr.bf16.mxu0 0
        %4849 = vmatpush1.bf16.msra.mxu0 0
        %4850 = vmatprep.subr.bf16.mxu0 0
        %4851 = vmatpush1.bf16.msra.mxu0 0
        %4852 = vmatprep.subr.bf16.mxu0 0
        %4853 = vmatpush1.bf16.msra.mxu0 0
        %4854 = vmatprep.subr.bf16.mxu0 0
        %4855 = vmatpush1.bf16.msra.mxu0 0
        %4856 = vmatprep.subr.bf16.mxu0 0
        %4857 = vmatpush1.bf16.msra.mxu0 0
        %4858 = vmatprep.mubr.bf16.mxu0 0
        %4859 = vmatmul.mubr.bf16.gmra.mrb[0].mxu0 %v4800
        %v4860 = vpop.f32.mrb[0].mxu0
        %v4861 = vadd.f32 0.0, %v4860
        %v4862 = vpop.f32.mrb[0].mxu0
        %v4863 = vadd.f32 0.0, %v4862
        %v4864 = vpop.f32.mrb[0].mxu0
        %v4865 = vpop.f32.mrb[0].mxu0
        %4866 = vdwg.mxu0
        %4867 = vmatprep.subr.bf16.mxu0 %v4812
        %4868 = vmatpush1.bf16.msra.mxu0 %v4809
        %4869 = vmatprep.subr.bf16.mxu0 0
        %4870 = vmatpush1.bf16.msra.mxu0 0
        %4871 = vmatprep.subr.bf16.mxu0 0
        %4872 = vmatpush1.bf16.msra.mxu0 0
        %4873 = vmatprep.subr.bf16.mxu0 0
        %4874 = vmatpush1.bf16.msra.mxu0 0
        %4875 = vmatprep.subr.bf16.mxu0 0
        %4876 = vmatpush1.bf16.msra.mxu0 0
        %4877 = vmatprep.subr.bf16.mxu0 0
        %4878 = vmatpush1.bf16.msra.mxu0 0
        %4879 = vmatprep.subr.bf16.mxu0 0
        %4880 = vmatpush1.bf16.msra.mxu0 0
        %4881 = vmatprep.subr.bf16.mxu0 0
        %4882 = vmatpush1.bf16.msra.mxu0 0
        %4883 = vmatprep.subr.bf16.mxu0 0
        %4884 = vmatpush1.bf16.msra.mxu0 0
        %4885 = vmatprep.subr.bf16.mxu0 0
        %4886 = vmatpush1.bf16.msra.mxu0 0
        %4887 = vmatprep.subr.bf16.mxu0 0
        %4888 = vmatpush1.bf16.msra.mxu0 0
        %4889 = vmatprep.subr.bf16.mxu0 0
        %4890 = vmatpush1.bf16.msra.mxu0 0
        %4891 = vmatprep.subr.bf16.mxu0 0
        %4892 = vmatpush1.bf16.msra.mxu0 0
        %4893 = vmatprep.subr.bf16.mxu0 0
        %4894 = vmatpush1.bf16.msra.mxu0 0
        %4895 = vmatprep.subr.bf16.mxu0 0
        %4896 = vmatpush1.bf16.msra.mxu0 0
        %4897 = vmatprep.subr.bf16.mxu0 0
        %4898 = vmatpush1.bf16.msra.mxu0 0
        %4899 = vmatprep.mubr.bf16.mxu0 0
        %4900 = vmatmul.mubr.bf16.gmra.mrb[0].mxu0 %v4800
        %v4901 = vpop.f32.mrb[0].mxu0
        %v4902 = vadd.f32 0.0, %v4901
        %v4903 = vpop.f32.mrb[0].mxu0
        %v4904 = vadd.f32 0.0, %v4903
        %v4905 = vpop.f32.mrb[0].mxu0
        %v4906 = vpop.f32.mrb[0].mxu0
        %4907 = vdwg.mxu0
        %4908 = vmatprep.subr.bf16.mxu0 %v4818
        %4909 = vmatpush1.bf16.msra.mxu0 %v4815
        %4910 = vmatprep.subr.bf16.mxu0 0
        %4911 = vmatpush1.bf16.msra.mxu0 0
        %4912 = vmatprep.subr.bf16.mxu0 0
        %4913 = vmatpush1.bf16.msra.mxu0 0
        %4914 = vmatprep.subr.bf16.mxu0 0
        %4915 = vmatpush1.bf16.msra.mxu0 0
        %4916 = vmatprep.subr.bf16.mxu0 0
        %4917 = vmatpush1.bf16.msra.mxu0 0
        %4918 = vmatprep.subr.bf16.mxu0 0
        %4919 = vmatpush1.bf16.msra.mxu0 0
        %4920 = vmatprep.subr.bf16.mxu0 0
        %4921 = vmatpush1.bf16.msra.mxu0 0
        %4922 = vmatprep.subr.bf16.mxu0 0
        %4923 = vmatpush1.bf16.msra.mxu0 0
        %4924 = vmatprep.subr.bf16.mxu0 0
        %4925 = vmatpush1.bf16.msra.mxu0 0
        %4926 = vmatprep.subr.bf16.mxu0 0
        %4927 = vmatpush1.bf16.msra.mxu0 0
        %4928 = vmatprep.subr.bf16.mxu0 0
        %4929 = vmatpush1.bf16.msra.mxu0 0
        %4930 = vmatprep.subr.bf16.mxu0 0
        %4931 = vmatpush1.bf16.msra.mxu0 0
        %4932 = vmatprep.subr.bf16.mxu0 0
        %4933 = vmatpush1.bf16.msra.mxu0 0
        %4934 = vmatprep.subr.bf16.mxu0 0
        %4935 = vmatpush1.bf16.msra.mxu0 0
        %4936 = vmatprep.subr.bf16.mxu0 0
        %4937 = vmatpush1.bf16.msra.mxu0 0
        %4938 = vmatprep.subr.bf16.mxu0 0
        %4939 = vmatpush1.bf16.msra.mxu0 0
        %4940 = vmatprep.mubr.bf16.mxu0 0
        %4941 = vmatmul.mubr.bf16.gmra.mrb[0].mxu0 %v4800
        %v4942 = vpop.f32.mrb[0].mxu0
        %v4943 = vadd.f32 0.0, %v4942
        %v4944 = vpop.f32.mrb[0].mxu0
        %v4945 = vadd.f32 0.0, %v4944
        %v4946 = vpop.f32.mrb[0].mxu0
        %v4947 = vpop.f32.mrb[0].mxu0
        %4948 = vdwg.mxu0
        %4949 = vmatprep.subr.bf16.mxu0 %v4824
        %4950 = vmatpush1.bf16.msra.mxu0 %v4821
        %4951 = vmatprep.subr.bf16.mxu0 0
        %4952 = vmatpush1.bf16.msra.mxu0 0
        %4953 = vmatprep.subr.bf16.mxu0 0
        %4954 = vmatpush1.bf16.msra.mxu0 0
        %4955 = vmatprep.subr.bf16.mxu0 0
        %4956 = vmatpush1.bf16.msra.mxu0 0
        %4957 = vmatprep.subr.bf16.mxu0 0
        %4958 = vmatpush1.bf16.msra.mxu0 0
        %4959 = vmatprep.subr.bf16.mxu0 0
        %4960 = vmatpush1.bf16.msra.mxu0 0
        %4961 = vmatprep.subr.bf16.mxu0 0
        %4962 = vmatpush1.bf16.msra.mxu0 0
        %4963 = vmatprep.subr.bf16.mxu0 0
        %4964 = vmatpush1.bf16.msra.mxu0 0
        %4965 = vmatprep.subr.bf16.mxu0 0
        %4966 = vmatpush1.bf16.msra.mxu0 0
        %4967 = vmatprep.subr.bf16.mxu0 0
        %4968 = vmatpush1.bf16.msra.mxu0 0
        %4969 = vmatprep.subr.bf16.mxu0 0
        %4970 = vmatpush1.bf16.msra.mxu0 0
        %4971 = vmatprep.subr.bf16.mxu0 0
        %4972 = vmatpush1.bf16.msra.mxu0 0
        %4973 = vmatprep.subr.bf16.mxu0 0
        %4974 = vmatpush1.bf16.msra.mxu0 0
        %4975 = vmatprep.subr.bf16.mxu0 0
        %4976 = vmatpush1.bf16.msra.mxu0 0
        %4977 = vmatprep.subr.bf16.mxu0 0
        %4978 = vmatpush1.bf16.msra.mxu0 0
        %4979 = vmatprep.subr.bf16.mxu0 0
        %4980 = vmatpush1.bf16.msra.mxu0 0
        %4981 = vmatprep.mubr.bf16.mxu0 0
        %4982 = vmatmul.mubr.bf16.gmra.mrb[0].mxu0 %v4800
        %v4983 = vpop.f32.mrb[0].mxu0
        %v4984 = vadd.f32 0.0, %v4983
        %v4985 = vpop.f32.mrb[0].mxu0
        %v4986 = vadd.f32 0.0, %v4985
        %v4987 = vpop.f32.mrb[0].mxu0
        %v4988 = vpop.f32.mrb[0].mxu0
        %4989 = vdwg.mxu0
        %v4990 = vadd.f32 %v4704, %v4861
        %v4991 = vadd.f32 %v4705, %v4863
        %v4992 = vadd.f32 %v4706, %v4902
        %v4993 = vadd.f32 %v4707, %v4904
        %v4994 = vadd.f32 %v4708, %v4943
        %v4995 = vadd.f32 %v4709, %v4945
        %v4996 = vadd.f32 %v4710, %v4984
        %v4997 = vadd.f32 %v4711, %v4986
        %v4998 = vld [vmem:[#allocation2 + $0x2] sm:$0xff]
        %v4999 = vld [vmem:[#allocation2 + $0xa] sm:$0xff]
        %v5000 = vld [vmem:[#allocation2 + $0x12] sm:$0x3]
        %v5001 = vmul.bf16 %v4998, %v1906
        %v5002 = vmul.bf16 %v4999, %v1908
        %v5003 = vmul.bf16 %v5000, %v1904
        %v5004 = vld [vmem:[%s3] sm:$0x3]
        %v5007 = vunpack.c.l.s4 1983009808
        %v5008 = vunpack.c.0.s8 %v5007
        %v5009 = vlaneseq
        %v5010 = vshrl.u32 %v5009, 7
        %v5011 = vsub.s32 %v5008, %v5010
        %v5012 = vrot.slane %v5004, %v5011
        %5013 = vrot.lane.b32.xlu0 %v5012, 80
        %v5014 = vpop.permute.xlu0 %5013
        %v5018 = vcombine.high %v5001, %v5001
        %v5020 = vunpack.c.l.s4 1983009808
        %v5021 = vunpack.c.0.s8 %v5020
        %v5022 = vlaneseq
        %v5023 = vshrl.u32 %v5022, 7
        %v5024 = vsub.s32 %v5021, %v5023
        %v5025 = vrot.slane %v5001, %v5024
        %v5027 = vunpack.c.l.s4 1983009808
        %v5028 = vunpack.c.0.s8 %v5027
        %v5029 = vlaneseq
        %v5030 = vshrl.u32 %v5029, 7
        %v5031 = vsub.s32 %v5028, %v5030
        %v5032 = vrot.slane %v5018, %v5031
        %v5033 = vcombine.high %v5025, %v5025
        %v5034 = vcombine.high %v5032, %v5032
        %v5035 = vcombine.high %v5002, %v5002
        %v5037 = vunpack.c.l.s4 1983009808
        %v5038 = vunpack.c.0.s8 %v5037
        %v5039 = vlaneseq
        %v5040 = vshrl.u32 %v5039, 7
        %v5041 = vsub.s32 %v5038, %v5040
        %v5042 = vrot.slane %v5002, %v5041
        %v5044 = vunpack.c.l.s4 1983009808
        %v5045 = vunpack.c.0.s8 %v5044
        %v5046 = vlaneseq
        %v5047 = vshrl.u32 %v5046, 7
        %v5048 = vsub.s32 %v5045, %v5047
        %v5049 = vrot.slane %v5035, %v5048
        %v5050 = vcombine.high %v5042, %v5042
        %v5051 = vcombine.high %v5049, %v5049
        %v5053 = vunpack.c.l.s4 1983009808
        %v5054 = vunpack.c.0.s8 %v5053
        %v5055 = vlaneseq
        %v5056 = vshrl.u32 %v5055, 7
        %v5057 = vsub.s32 %v5054, %v5056
        %v5058 = vrot.slane %v5003, %v5057
        %5059 = vrot.lane.b32.xlu0 %v5025, 1
        %v5060 = vpop.permute.xlu0 %5059
        %5061 = vrot.lane.b32.xlu0 %v5033, 1
        %v5062 = vpop.permute.xlu0 %5061
        %5063 = vrot.lane.b32.xlu0 %v5032, 1
        %v5064 = vpop.permute.xlu0 %5063
        %5065 = vrot.lane.b32.xlu0 %v5034, 1
        %v5066 = vpop.permute.xlu0 %5065
        %5067 = vrot.lane.b32.xlu0 %v5042, 1
        %v5068 = vpop.permute.xlu0 %5067
        %5069 = vrot.lane.b32.xlu0 %v5050, 1
        %v5070 = vpop.permute.xlu0 %5069
        %5071 = vrot.lane.b32.xlu0 %v5049, 1
        %v5072 = vpop.permute.xlu0 %5071
        %5073 = vrot.lane.b32.xlu0 %v5051, 1
        %v5074 = vpop.permute.xlu0 %5073
        %5075 = vrot.lane.b32.xlu0 %v5058, 1
        %v5076 = vpop.permute.xlu0 %5075
        %v5077 = vsel %vm1988, %v5060, %v5062
        %v5078 = vsel %vm1988, %v5062, %v5064
        %v5079 = vsel %vm1988, %v5064, %v5066
        %v5080 = vsel %vm1988, %v5066, %v5068
        %v5081 = vsel %vm1988, %v5068, %v5070
        %v5082 = vsel %vm1988, %v5070, %v5072
        %v5083 = vsel %vm1988, %v5072, %v5074
        %v5084 = vsel %vm1988, %v5074, %v5076
        %v5086 = vsel %vm889, %v5014, 0
        %v5089 = vsel %vm893, %v5077, 0
        %v5092 = vsel %vm893, %v5078, 0
        %v5095 = vsel %vm893, %v5079, 0
        %v5098 = vsel %vm893, %v5080, 0
        %v5101 = vsel %vm893, %v5081, 0
        %v5104 = vsel %vm893, %v5082, 0
        %v5107 = vsel %vm893, %v5083, 0
        %v5110 = vsel %vm893, %v5084, 0
        %5112 = vmatprep.subr.bf16.mxu0 %v5092
        %5113 = vmatpush1.bf16.msra.mxu0 %v5089
        %5114 = vmatprep.subr.bf16.mxu0 0
        %5115 = vmatpush1.bf16.msra.mxu0 0
        %5116 = vmatprep.subr.bf16.mxu0 0
        %5117 = vmatpush1.bf16.msra.mxu0 0
        %5118 = vmatprep.subr.bf16.mxu0 0
        %5119 = vmatpush1.bf16.msra.mxu0 0
        %5120 = vmatprep.subr.bf16.mxu0 0
        %5121 = vmatpush1.bf16.msra.mxu0 0
        %5122 = vmatprep.subr.bf16.mxu0 0
        %5123 = vmatpush1.bf16.msra.mxu0 0
        %5124 = vmatprep.subr.bf16.mxu0 0
        %5125 = vmatpush1.bf16.msra.mxu0 0
        %5126 = vmatprep.subr.bf16.mxu0 0
        %5127 = vmatpush1.bf16.msra.mxu0 0
        %5128 = vmatprep.subr.bf16.mxu0 0
        %5129 = vmatpush1.bf16.msra.mxu0 0
        %5130 = vmatprep.subr.bf16.mxu0 0
        %5131 = vmatpush1.bf16.msra.mxu0 0
        %5132 = vmatprep.subr.bf16.mxu0 0
        %5133 = vmatpush1.bf16.msra.mxu0 0
        %5134 = vmatprep.subr.bf16.mxu0 0
        %5135 = vmatpush1.bf16.msra.mxu0 0
        %5136 = vmatprep.subr.bf16.mxu0 0
        %5137 = vmatpush1.bf16.msra.mxu0 0
        %5138 = vmatprep.subr.bf16.mxu0 0
        %5139 = vmatpush1.bf16.msra.mxu0 0
        %5140 = vmatprep.subr.bf16.mxu0 0
        %5141 = vmatpush1.bf16.msra.mxu0 0
        %5142 = vmatprep.subr.bf16.mxu0 0
        %5143 = vmatpush1.bf16.msra.mxu0 0
        %5144 = vmatprep.mubr.bf16.mxu0 0
        %5145 = vmatmul.mubr.bf16.gmra.mrb[0].mxu0 %v5086
        %v5146 = vpop.f32.mrb[0].mxu0
        %v5147 = vadd.f32 0.0, %v5146
        %v5148 = vpop.f32.mrb[0].mxu0
        %v5149 = vadd.f32 0.0, %v5148
        %v5150 = vpop.f32.mrb[0].mxu0
        %v5151 = vpop.f32.mrb[0].mxu0
        %5152 = vdwg.mxu0
        %5153 = vmatprep.subr.bf16.mxu0 %v5098
        %5154 = vmatpush1.bf16.msra.mxu0 %v5095
        %5155 = vmatprep.subr.bf16.mxu0 0
        %5156 = vmatpush1.bf16.msra.mxu0 0
        %5157 = vmatprep.subr.bf16.mxu0 0
        %5158 = vmatpush1.bf16.msra.mxu0 0
        %5159 = vmatprep.subr.bf16.mxu0 0
        %5160 = vmatpush1.bf16.msra.mxu0 0
        %5161 = vmatprep.subr.bf16.mxu0 0
        %5162 = vmatpush1.bf16.msra.mxu0 0
        %5163 = vmatprep.subr.bf16.mxu0 0
        %5164 = vmatpush1.bf16.msra.mxu0 0
        %5165 = vmatprep.subr.bf16.mxu0 0
        %5166 = vmatpush1.bf16.msra.mxu0 0
        %5167 = vmatprep.subr.bf16.mxu0 0
        %5168 = vmatpush1.bf16.msra.mxu0 0
        %5169 = vmatprep.subr.bf16.mxu0 0
        %5170 = vmatpush1.bf16.msra.mxu0 0
        %5171 = vmatprep.subr.bf16.mxu0 0
        %5172 = vmatpush1.bf16.msra.mxu0 0
        %5173 = vmatprep.subr.bf16.mxu0 0
        %5174 = vmatpush1.bf16.msra.mxu0 0
        %5175 = vmatprep.subr.bf16.mxu0 0
        %5176 = vmatpush1.bf16.msra.mxu0 0
        %5177 = vmatprep.subr.bf16.mxu0 0
        %5178 = vmatpush1.bf16.msra.mxu0 0
        %5179 = vmatprep.subr.bf16.mxu0 0
        %5180 = vmatpush1.bf16.msra.mxu0 0
        %5181 = vmatprep.subr.bf16.mxu0 0
        %5182 = vmatpush1.bf16.msra.mxu0 0
        %5183 = vmatprep.subr.bf16.mxu0 0
        %5184 = vmatpush1.bf16.msra.mxu0 0
        %5185 = vmatprep.mubr.bf16.mxu0 0
        %5186 = vmatmul.mubr.bf16.gmra.mrb[0].mxu0 %v5086
        %v5187 = vpop.f32.mrb[0].mxu0
        %v5188 = vadd.f32 0.0, %v5187
        %v5189 = vpop.f32.mrb[0].mxu0
        %v5190 = vadd.f32 0.0, %v5189
        %v5191 = vpop.f32.mrb[0].mxu0
        %v5192 = vpop.f32.mrb[0].mxu0
        %5193 = vdwg.mxu0
        %5194 = vmatprep.subr.bf16.mxu0 %v5104
        %5195 = vmatpush1.bf16.msra.mxu0 %v5101
        %5196 = vmatprep.subr.bf16.mxu0 0
        %5197 = vmatpush1.bf16.msra.mxu0 0
        %5198 = vmatprep.subr.bf16.mxu0 0
        %5199 = vmatpush1.bf16.msra.mxu0 0
        %5200 = vmatprep.subr.bf16.mxu0 0
        %5201 = vmatpush1.bf16.msra.mxu0 0
        %5202 = vmatprep.subr.bf16.mxu0 0
        %5203 = vmatpush1.bf16.msra.mxu0 0
        %5204 = vmatprep.subr.bf16.mxu0 0
        %5205 = vmatpush1.bf16.msra.mxu0 0
        %5206 = vmatprep.subr.bf16.mxu0 0
        %5207 = vmatpush1.bf16.msra.mxu0 0
        %5208 = vmatprep.subr.bf16.mxu0 0
        %5209 = vmatpush1.bf16.msra.mxu0 0
        %5210 = vmatprep.subr.bf16.mxu0 0
        %5211 = vmatpush1.bf16.msra.mxu0 0
        %5212 = vmatprep.subr.bf16.mxu0 0
        %5213 = vmatpush1.bf16.msra.mxu0 0
        %5214 = vmatprep.subr.bf16.mxu0 0
        %5215 = vmatpush1.bf16.msra.mxu0 0
        %5216 = vmatprep.subr.bf16.mxu0 0
        %5217 = vmatpush1.bf16.msra.mxu0 0
        %5218 = vmatprep.subr.bf16.mxu0 0
        %5219 = vmatpush1.bf16.msra.mxu0 0
        %5220 = vmatprep.subr.bf16.mxu0 0
        %5221 = vmatpush1.bf16.msra.mxu0 0
        %5222 = vmatprep.subr.bf16.mxu0 0
        %5223 = vmatpush1.bf16.msra.mxu0 0
        %5224 = vmatprep.subr.bf16.mxu0 0
        %5225 = vmatpush1.bf16.msra.mxu0 0
        %5226 = vmatprep.mubr.bf16.mxu0 0
        %5227 = vmatmul.mubr.bf16.gmra.mrb[0].mxu0 %v5086
        %v5228 = vpop.f32.mrb[0].mxu0
        %v5229 = vadd.f32 0.0, %v5228
        %v5230 = vpop.f32.mrb[0].mxu0
        %v5231 = vadd.f32 0.0, %v5230
        %v5232 = vpop.f32.mrb[0].mxu0
        %v5233 = vpop.f32.mrb[0].mxu0
        %5234 = vdwg.mxu0
        %5235 = vmatprep.subr.bf16.mxu0 %v5110
        %5236 = vmatpush1.bf16.msra.mxu0 %v5107
        %5237 = vmatprep.subr.bf16.mxu0 0
        %5238 = vmatpush1.bf16.msra.mxu0 0
        %5239 = vmatprep.subr.bf16.mxu0 0
        %5240 = vmatpush1.bf16.msra.mxu0 0
        %5241 = vmatprep.subr.bf16.mxu0 0
        %5242 = vmatpush1.bf16.msra.mxu0 0
        %5243 = vmatprep.subr.bf16.mxu0 0
        %5244 = vmatpush1.bf16.msra.mxu0 0
        %5245 = vmatprep.subr.bf16.mxu0 0
        %5246 = vmatpush1.bf16.msra.mxu0 0
        %5247 = vmatprep.subr.bf16.mxu0 0
        %5248 = vmatpush1.bf16.msra.mxu0 0
        %5249 = vmatprep.subr.bf16.mxu0 0
        %5250 = vmatpush1.bf16.msra.mxu0 0
        %5251 = vmatprep.subr.bf16.mxu0 0
        %5252 = vmatpush1.bf16.msra.mxu0 0
        %5253 = vmatprep.subr.bf16.mxu0 0
        %5254 = vmatpush1.bf16.msra.mxu0 0
        %5255 = vmatprep.subr.bf16.mxu0 0
        %5256 = vmatpush1.bf16.msra.mxu0 0
        %5257 = vmatprep.subr.bf16.mxu0 0
        %5258 = vmatpush1.bf16.msra.mxu0 0
        %5259 = vmatprep.subr.bf16.mxu0 0
        %5260 = vmatpush1.bf16.msra.mxu0 0
        %5261 = vmatprep.subr.bf16.mxu0 0
        %5262 = vmatpush1.bf16.msra.mxu0 0
        %5263 = vmatprep.subr.bf16.mxu0 0
        %5264 = vmatpush1.bf16.msra.mxu0 0
        %5265 = vmatprep.subr.bf16.mxu0 0
        %5266 = vmatpush1.bf16.msra.mxu0 0
        %5267 = vmatprep.mubr.bf16.mxu0 0
        %5268 = vmatmul.mubr.bf16.gmra.mrb[0].mxu0 %v5086
        %v5269 = vpop.f32.mrb[0].mxu0
        %v5270 = vadd.f32 0.0, %v5269
        %v5271 = vpop.f32.mrb[0].mxu0
        %v5272 = vadd.f32 0.0, %v5271
        %v5273 = vpop.f32.mrb[0].mxu0
        %v5274 = vpop.f32.mrb[0].mxu0
        %5275 = vdwg.mxu0
        %v5276 = vadd.f32 %v4990, %v5147
        %v5277 = vadd.f32 %v4991, %v5149
        %v5278 = vadd.f32 %v4992, %v5188
        %v5279 = vadd.f32 %v4993, %v5190
        %v5280 = vadd.f32 %v4994, %v5229
        %v5281 = vadd.f32 %v4995, %v5231
        %v5282 = vadd.f32 %v4996, %v5270
        %v5283 = vadd.f32 %v4997, %v5272
        %v5284 = vld [vmem:[#allocation2 + $0x4] sm:$0xff]
        %v5285 = vld [vmem:[#allocation2 + $0xc] sm:$0xff]
        %v5286 = vld [vmem:[%s3] sm:$0x3]
        %v5289 = vunpack.c.l.s4 1983009808
        %v5290 = vunpack.c.0.s8 %v5289
        %v5291 = vlaneseq
        %v5292 = vshrl.u32 %v5291, 7
        %v5293 = vsub.s32 %v5290, %v5292
        %v5294 = vrot.slane %v5286, %v5293
        %5295 = vrot.lane.b32.xlu0 %v5294, 76
        %v5296 = vpop.permute.xlu0 %5295
        %v5299 = vcombine.high %v5284, %v5284
        %v5301 = vunpack.c.l.s4 1983009808
        %v5302 = vunpack.c.0.s8 %v5301
        %v5303 = vlaneseq
        %v5304 = vshrl.u32 %v5303, 7
        %v5305 = vsub.s32 %v5302, %v5304
        %v5306 = vrot.slane %v5284, %v5305
        %v5308 = vunpack.c.l.s4 1983009808
        %v5309 = vunpack.c.0.s8 %v5308
        %v5310 = vlaneseq
        %v5311 = vshrl.u32 %v5310, 7
        %v5312 = vsub.s32 %v5309, %v5311
        %v5313 = vrot.slane %v5299, %v5312
        %v5314 = vcombine.high %v5306, %v5306
        %v5315 = vcombine.high %v5313, %v5313
        %v5316 = vcombine.high %v5285, %v5285
        %v5318 = vunpack.c.l.s4 1983009808
        %v5319 = vunpack.c.0.s8 %v5318
        %v5320 = vlaneseq
        %v5321 = vshrl.u32 %v5320, 7
        %v5322 = vsub.s32 %v5319, %v5321
        %v5323 = vrot.slane %v5285, %v5322
        %v5325 = vunpack.c.l.s4 1983009808
        %v5326 = vunpack.c.0.s8 %v5325
        %v5327 = vlaneseq
        %v5328 = vshrl.u32 %v5327, 7
        %v5329 = vsub.s32 %v5326, %v5328
        %v5330 = vrot.slane %v5316, %v5329
        %v5331 = vcombine.high %v5323, %v5323
        %v5332 = vcombine.high %v5330, %v5330
        %v5334 = vsel %vm889, %v5296, 0
        %v5337 = vsel %vm893, %v5306, 0
        %v5340 = vsel %vm893, %v5314, 0
        %v5343 = vsel %vm893, %v5313, 0
        %v5346 = vsel %vm893, %v5315, 0
        %v5349 = vsel %vm893, %v5323, 0
        %v5352 = vsel %vm893, %v5331, 0
        %v5355 = vsel %vm893, %v5330, 0
        %v5358 = vsel %vm893, %v5332, 0
        %5360 = vmatprep.subr.bf16.mxu0 %v5340
        %5361 = vmatpush1.bf16.msra.mxu0 %v5337
        %5362 = vmatprep.subr.bf16.mxu0 0
        %5363 = vmatpush1.bf16.msra.mxu0 0
        %5364 = vmatprep.subr.bf16.mxu0 0
        %5365 = vmatpush1.bf16.msra.mxu0 0
        %5366 = vmatprep.subr.bf16.mxu0 0
        %5367 = vmatpush1.bf16.msra.mxu0 0
        %5368 = vmatprep.subr.bf16.mxu0 0
        %5369 = vmatpush1.bf16.msra.mxu0 0
        %5370 = vmatprep.subr.bf16.mxu0 0
        %5371 = vmatpush1.bf16.msra.mxu0 0
        %5372 = vmatprep.subr.bf16.mxu0 0
        %5373 = vmatpush1.bf16.msra.mxu0 0
        %5374 = vmatprep.subr.bf16.mxu0 0
        %5375 = vmatpush1.bf16.msra.mxu0 0
        %5376 = vmatprep.subr.bf16.mxu0 0
        %5377 = vmatpush1.bf16.msra.mxu0 0
        %5378 = vmatprep.subr.bf16.mxu0 0
        %5379 = vmatpush1.bf16.msra.mxu0 0
        %5380 = vmatprep.subr.bf16.mxu0 0
        %5381 = vmatpush1.bf16.msra.mxu0 0
        %5382 = vmatprep.subr.bf16.mxu0 0
        %5383 = vmatpush1.bf16.msra.mxu0 0
        %5384 = vmatprep.subr.bf16.mxu0 0
        %5385 = vmatpush1.bf16.msra.mxu0 0
        %5386 = vmatprep.subr.bf16.mxu0 0
        %5387 = vmatpush1.bf16.msra.mxu0 0
        %5388 = vmatprep.subr.bf16.mxu0 0
        %5389 = vmatpush1.bf16.msra.mxu0 0
        %5390 = vmatprep.subr.bf16.mxu0 0
        %5391 = vmatpush1.bf16.msra.mxu0 0
        %5392 = vmatprep.mubr.bf16.mxu0 0
        %5393 = vmatmul.mubr.bf16.gmra.mrb[0].mxu0 %v5334
        %v5394 = vpop.f32.mrb[0].mxu0
        %v5395 = vadd.f32 0.0, %v5394
        %v5396 = vpop.f32.mrb[0].mxu0
        %v5397 = vadd.f32 0.0, %v5396
        %v5398 = vpop.f32.mrb[0].mxu0
        %v5399 = vpop.f32.mrb[0].mxu0
        %5400 = vdwg.mxu0
        %5401 = vmatprep.subr.bf16.mxu0 %v5346
        %5402 = vmatpush1.bf16.msra.mxu0 %v5343
        %5403 = vmatprep.subr.bf16.mxu0 0
        %5404 = vmatpush1.bf16.msra.mxu0 0
        %5405 = vmatprep.subr.bf16.mxu0 0
        %5406 = vmatpush1.bf16.msra.mxu0 0
        %5407 = vmatprep.subr.bf16.mxu0 0
        %5408 = vmatpush1.bf16.msra.mxu0 0
        %5409 = vmatprep.subr.bf16.mxu0 0
        %5410 = vmatpush1.bf16.msra.mxu0 0
        %5411 = vmatprep.subr.bf16.mxu0 0
        %5412 = vmatpush1.bf16.msra.mxu0 0
        %5413 = vmatprep.subr.bf16.mxu0 0
        %5414 = vmatpush1.bf16.msra.mxu0 0
        %5415 = vmatprep.subr.bf16.mxu0 0
        %5416 = vmatpush1.bf16.msra.mxu0 0
        %5417 = vmatprep.subr.bf16.mxu0 0
        %5418 = vmatpush1.bf16.msra.mxu0 0
        %5419 = vmatprep.subr.bf16.mxu0 0
        %5420 = vmatpush1.bf16.msra.mxu0 0
        %5421 = vmatprep.subr.bf16.mxu0 0
        %5422 = vmatpush1.bf16.msra.mxu0 0
        %5423 = vmatprep.subr.bf16.mxu0 0
        %5424 = vmatpush1.bf16.msra.mxu0 0
        %5425 = vmatprep.subr.bf16.mxu0 0
        %5426 = vmatpush1.bf16.msra.mxu0 0
        %5427 = vmatprep.subr.bf16.mxu0 0
        %5428 = vmatpush1.bf16.msra.mxu0 0
        %5429 = vmatprep.subr.bf16.mxu0 0
        %5430 = vmatpush1.bf16.msra.mxu0 0
        %5431 = vmatprep.subr.bf16.mxu0 0
        %5432 = vmatpush1.bf16.msra.mxu0 0
        %5433 = vmatprep.mubr.bf16.mxu0 0
        %5434 = vmatmul.mubr.bf16.gmra.mrb[0].mxu0 %v5334
        %v5435 = vpop.f32.mrb[0].mxu0
        %v5436 = vadd.f32 0.0, %v5435
        %v5437 = vpop.f32.mrb[0].mxu0
        %v5438 = vadd.f32 0.0, %v5437
        %v5439 = vpop.f32.mrb[0].mxu0
        %v5440 = vpop.f32.mrb[0].mxu0
        %5441 = vdwg.mxu0
        %5442 = vmatprep.subr.bf16.mxu0 %v5352
        %5443 = vmatpush1.bf16.msra.mxu0 %v5349
        %5444 = vmatprep.subr.bf16.mxu0 0
        %5445 = vmatpush1.bf16.msra.mxu0 0
        %5446 = vmatprep.subr.bf16.mxu0 0
        %5447 = vmatpush1.bf16.msra.mxu0 0
        %5448 = vmatprep.subr.bf16.mxu0 0
        %5449 = vmatpush1.bf16.msra.mxu0 0
        %5450 = vmatprep.subr.bf16.mxu0 0
        %5451 = vmatpush1.bf16.msra.mxu0 0
        %5452 = vmatprep.subr.bf16.mxu0 0
        %5453 = vmatpush1.bf16.msra.mxu0 0
        %5454 = vmatprep.subr.bf16.mxu0 0
        %5455 = vmatpush1.bf16.msra.mxu0 0
        %5456 = vmatprep.subr.bf16.mxu0 0
        %5457 = vmatpush1.bf16.msra.mxu0 0
        %5458 = vmatprep.subr.bf16.mxu0 0
        %5459 = vmatpush1.bf16.msra.mxu0 0
        %5460 = vmatprep.subr.bf16.mxu0 0
        %5461 = vmatpush1.bf16.msra.mxu0 0
        %5462 = vmatprep.subr.bf16.mxu0 0
        %5463 = vmatpush1.bf16.msra.mxu0 0
        %5464 = vmatprep.subr.bf16.mxu0 0
        %5465 = vmatpush1.bf16.msra.mxu0 0
        %5466 = vmatprep.subr.bf16.mxu0 0
        %5467 = vmatpush1.bf16.msra.mxu0 0
        %5468 = vmatprep.subr.bf16.mxu0 0
        %5469 = vmatpush1.bf16.msra.mxu0 0
        %5470 = vmatprep.subr.bf16.mxu0 0
        %5471 = vmatpush1.bf16.msra.mxu0 0
        %5472 = vmatprep.subr.bf16.mxu0 0
        %5473 = vmatpush1.bf16.msra.mxu0 0
        %5474 = vmatprep.mubr.bf16.mxu0 0
        %5475 = vmatmul.mubr.bf16.gmra.mrb[0].mxu0 %v5334
        %v5476 = vpop.f32.mrb[0].mxu0
        %v5477 = vadd.f32 0.0, %v5476
        %v5478 = vpop.f32.mrb[0].mxu0
        %v5479 = vadd.f32 0.0, %v5478
        %v5480 = vpop.f32.mrb[0].mxu0
        %v5481 = vpop.f32.mrb[0].mxu0
        %5482 = vdwg.mxu0
        %5483 = vmatprep.subr.bf16.mxu0 %v5358
        %5484 = vmatpush1.bf16.msra.mxu0 %v5355
        %5485 = vmatprep.subr.bf16.mxu0 0
        %5486 = vmatpush1.bf16.msra.mxu0 0
        %5487 = vmatprep.subr.bf16.mxu0 0
        %5488 = vmatpush1.bf16.msra.mxu0 0
        %5489 = vmatprep.subr.bf16.mxu0 0
        %5490 = vmatpush1.bf16.msra.mxu0 0
        %5491 = vmatprep.subr.bf16.mxu0 0
        %5492 = vmatpush1.bf16.msra.mxu0 0
        %5493 = vmatprep.subr.bf16.mxu0 0
        %5494 = vmatpush1.bf16.msra.mxu0 0
        %5495 = vmatprep.subr.bf16.mxu0 0
        %5496 = vmatpush1.bf16.msra.mxu0 0
        %5497 = vmatprep.subr.bf16.mxu0 0
        %5498 = vmatpush1.bf16.msra.mxu0 0
        %5499 = vmatprep.subr.bf16.mxu0 0
        %5500 = vmatpush1.bf16.msra.mxu0 0
        %5501 = vmatprep.subr.bf16.mxu0 0
        %5502 = vmatpush1.bf16.msra.mxu0 0
        %5503 = vmatprep.subr.bf16.mxu0 0
        %5504 = vmatpush1.bf16.msra.mxu0 0
        %5505 = vmatprep.subr.bf16.mxu0 0
        %5506 = vmatpush1.bf16.msra.mxu0 0
        %5507 = vmatprep.subr.bf16.mxu0 0
        %5508 = vmatpush1.bf16.msra.mxu0 0
        %5509 = vmatprep.subr.bf16.mxu0 0
        %5510 = vmatpush1.bf16.msra.mxu0 0
        %5511 = vmatprep.subr.bf16.mxu0 0
        %5512 = vmatpush1.bf16.msra.mxu0 0
        %5513 = vmatprep.subr.bf16.mxu0 0
        %5514 = vmatpush1.bf16.msra.mxu0 0
        %5515 = vmatprep.mubr.bf16.mxu0 0
        %5516 = vmatmul.mubr.bf16.gmra.mrb[0].mxu0 %v5334
        %v5517 = vpop.f32.mrb[0].mxu0
        %v5518 = vadd.f32 0.0, %v5517
        %v5519 = vpop.f32.mrb[0].mxu0
        %v5520 = vadd.f32 0.0, %v5519
        %v5521 = vpop.f32.mrb[0].mxu0
        %v5522 = vpop.f32.mrb[0].mxu0
        %5523 = vdwg.mxu0
        %v5524 = vadd.f32 %v5276, %v5395
        %v5525 = vadd.f32 %v5277, %v5397
        %v5526 = vadd.f32 %v5278, %v5436
        %v5527 = vadd.f32 %v5279, %v5438
        %v5528 = vadd.f32 %v5280, %v5477
        %v5529 = vadd.f32 %v5281, %v5479
        %v5530 = vadd.f32 %v5282, %v5518
        %v5531 = vadd.f32 %v5283, %v5520
        %v5532 = vld [vmem:[#allocation2 + $0x4] sm:$0xff]
        %v5533 = vld [vmem:[#allocation2 + $0xc] sm:$0xff]
        %v5534 = vld [vmem:[#allocation2 + $0x14] sm:$0x3]
        %v5535 = vmul.bf16 %v5532, %v2583
        %v5536 = vmul.bf16 %v5533, %v2585
        %v5537 = vmul.bf16 %v5534, %v2582
        %v5538 = vld [vmem:[%s3] sm:$0x3]
        %v5541 = vunpack.c.l.s4 1983009808
        %v5542 = vunpack.c.0.s8 %v5541
        %v5543 = vlaneseq
        %v5544 = vshrl.u32 %v5543, 7
        %v5545 = vsub.s32 %v5542, %v5544
        %v5546 = vrot.slane %v5538, %v5545
        %5547 = vrot.lane.b32.xlu0 %v5546, 72
        %v5548 = vpop.permute.xlu0 %5547
        %v5552 = vcombine.high %v5535, %v5535
        %v5554 = vunpack.c.l.s4 1983009808
        %v5555 = vunpack.c.0.s8 %v5554
        %v5556 = vlaneseq
        %v5557 = vshrl.u32 %v5556, 7
        %v5558 = vsub.s32 %v5555, %v5557
        %v5559 = vrot.slane %v5535, %v5558
        %v5561 = vunpack.c.l.s4 1983009808
        %v5562 = vunpack.c.0.s8 %v5561
        %v5563 = vlaneseq
        %v5564 = vshrl.u32 %v5563, 7
        %v5565 = vsub.s32 %v5562, %v5564
        %v5566 = vrot.slane %v5552, %v5565
        %v5567 = vcombine.high %v5559, %v5559
        %v5568 = vcombine.high %v5566, %v5566
        %v5569 = vcombine.high %v5536, %v5536
        %v5571 = vunpack.c.l.s4 1983009808
        %v5572 = vunpack.c.0.s8 %v5571
        %v5573 = vlaneseq
        %v5574 = vshrl.u32 %v5573, 7
        %v5575 = vsub.s32 %v5572, %v5574
        %v5576 = vrot.slane %v5536, %v5575
        %v5578 = vunpack.c.l.s4 1983009808
        %v5579 = vunpack.c.0.s8 %v5578
        %v5580 = vlaneseq
        %v5581 = vshrl.u32 %v5580, 7
        %v5582 = vsub.s32 %v5579, %v5581
        %v5583 = vrot.slane %v5569, %v5582
        %v5584 = vcombine.high %v5576, %v5576
        %v5585 = vcombine.high %v5583, %v5583
        %v5587 = vunpack.c.l.s4 1983009808
        %v5588 = vunpack.c.0.s8 %v5587
        %v5589 = vlaneseq
        %v5590 = vshrl.u32 %v5589, 7
        %v5591 = vsub.s32 %v5588, %v5590
        %v5592 = vrot.slane %v5537, %v5591
        %5593 = vrot.lane.b32.xlu0 %v5559, 127
        %v5594 = vpop.permute.xlu0 %5593
        %5595 = vrot.lane.b32.xlu0 %v5567, 127
        %v5596 = vpop.permute.xlu0 %5595
        %5597 = vrot.lane.b32.xlu0 %v5566, 127
        %v5598 = vpop.permute.xlu0 %5597
        %5599 = vrot.lane.b32.xlu0 %v5568, 127
        %v5600 = vpop.permute.xlu0 %5599
        %5601 = vrot.lane.b32.xlu0 %v5576, 127
        %v5602 = vpop.permute.xlu0 %5601
        %5603 = vrot.lane.b32.xlu0 %v5584, 127
        %v5604 = vpop.permute.xlu0 %5603
        %5605 = vrot.lane.b32.xlu0 %v5583, 127
        %v5606 = vpop.permute.xlu0 %5605
        %5607 = vrot.lane.b32.xlu0 %v5585, 127
        %v5608 = vpop.permute.xlu0 %5607
        %5609 = vrot.lane.b32.xlu0 %v5592, 127
        %v5610 = vpop.permute.xlu0 %5609
        %v5611 = vsel %vm1905, %v5594, %v5596
        %v5612 = vsel %vm1905, %v5596, %v5598
        %v5613 = vsel %vm1905, %v5598, %v5600
        %v5614 = vsel %vm1905, %v5600, %v5602
        %v5615 = vsel %vm1905, %v5602, %v5604
        %v5616 = vsel %vm1905, %v5604, %v5606
        %v5617 = vsel %vm1905, %v5606, %v5608
        %v5618 = vsel %vm1905, %v5608, %v5610
        %v5620 = vsel %vm889, %v5548, 0
        %v5623 = vsel %vm893, %v5611, 0
        %v5626 = vsel %vm893, %v5612, 0
        %v5629 = vsel %vm893, %v5613, 0
        %v5632 = vsel %vm893, %v5614, 0
        %v5635 = vsel %vm893, %v5615, 0
        %v5638 = vsel %vm893, %v5616, 0
        %v5641 = vsel %vm893, %v5617, 0
        %v5644 = vsel %vm893, %v5618, 0
        %5646 = vmatprep.subr.bf16.mxu0 %v5626
        %5647 = vmatpush1.bf16.msra.mxu0 %v5623
        %5648 = vmatprep.subr.bf16.mxu0 0
        %5649 = vmatpush1.bf16.msra.mxu0 0
        %5650 = vmatprep.subr.bf16.mxu0 0
        %5651 = vmatpush1.bf16.msra.mxu0 0
        %5652 = vmatprep.subr.bf16.mxu0 0
        %5653 = vmatpush1.bf16.msra.mxu0 0
        %5654 = vmatprep.subr.bf16.mxu0 0
        %5655 = vmatpush1.bf16.msra.mxu0 0
        %5656 = vmatprep.subr.bf16.mxu0 0
        %5657 = vmatpush1.bf16.msra.mxu0 0
        %5658 = vmatprep.subr.bf16.mxu0 0
        %5659 = vmatpush1.bf16.msra.mxu0 0
        %5660 = vmatprep.subr.bf16.mxu0 0
        %5661 = vmatpush1.bf16.msra.mxu0 0
        %5662 = vmatprep.subr.bf16.mxu0 0
        %5663 = vmatpush1.bf16.msra.mxu0 0
        %5664 = vmatprep.subr.bf16.mxu0 0
        %5665 = vmatpush1.bf16.msra.mxu0 0
        %5666 = vmatprep.subr.bf16.mxu0 0
        %5667 = vmatpush1.bf16.msra.mxu0 0
        %5668 = vmatprep.subr.bf16.mxu0 0
        %5669 = vmatpush1.bf16.msra.mxu0 0
        %5670 = vmatprep.subr.bf16.mxu0 0
        %5671 = vmatpush1.bf16.msra.mxu0 0
        %5672 = vmatprep.subr.bf16.mxu0 0
        %5673 = vmatpush1.bf16.msra.mxu0 0
        %5674 = vmatprep.subr.bf16.mxu0 0
        %5675 = vmatpush1.bf16.msra.mxu0 0
        %5676 = vmatprep.subr.bf16.mxu0 0
        %5677 = vmatpush1.bf16.msra.mxu0 0
        %5678 = vmatprep.mubr.bf16.mxu0 0
        %5679 = vmatmul.mubr.bf16.gmra.mrb[0].mxu0 %v5620
        %v5680 = vpop.f32.mrb[0].mxu0
        %v5681 = vadd.f32 0.0, %v5680
        %v5682 = vpop.f32.mrb[0].mxu0
        %v5683 = vadd.f32 0.0, %v5682
        %v5684 = vpop.f32.mrb[0].mxu0
        %v5685 = vpop.f32.mrb[0].mxu0
        %5686 = vdwg.mxu0
        %5687 = vmatprep.subr.bf16.mxu0 %v5632
        %5688 = vmatpush1.bf16.msra.mxu0 %v5629
        %5689 = vmatprep.subr.bf16.mxu0 0
        %5690 = vmatpush1.bf16.msra.mxu0 0
        %5691 = vmatprep.subr.bf16.mxu0 0
        %5692 = vmatpush1.bf16.msra.mxu0 0
        %5693 = vmatprep.subr.bf16.mxu0 0
        %5694 = vmatpush1.bf16.msra.mxu0 0
        %5695 = vmatprep.subr.bf16.mxu0 0
        %5696 = vmatpush1.bf16.msra.mxu0 0
        %5697 = vmatprep.subr.bf16.mxu0 0
        %5698 = vmatpush1.bf16.msra.mxu0 0
        %5699 = vmatprep.subr.bf16.mxu0 0
        %5700 = vmatpush1.bf16.msra.mxu0 0
        %5701 = vmatprep.subr.bf16.mxu0 0
        %5702 = vmatpush1.bf16.msra.mxu0 0
        %5703 = vmatprep.subr.bf16.mxu0 0
        %5704 = vmatpush1.bf16.msra.mxu0 0
        %5705 = vmatprep.subr.bf16.mxu0 0
        %5706 = vmatpush1.bf16.msra.mxu0 0
        %5707 = vmatprep.subr.bf16.mxu0 0
        %5708 = vmatpush1.bf16.msra.mxu0 0
        %5709 = vmatprep.subr.bf16.mxu0 0
        %5710 = vmatpush1.bf16.msra.mxu0 0
        %5711 = vmatprep.subr.bf16.mxu0 0
        %5712 = vmatpush1.bf16.msra.mxu0 0
        %5713 = vmatprep.subr.bf16.mxu0 0
        %5714 = vmatpush1.bf16.msra.mxu0 0
        %5715 = vmatprep.subr.bf16.mxu0 0
        %5716 = vmatpush1.bf16.msra.mxu0 0
        %5717 = vmatprep.subr.bf16.mxu0 0
        %5718 = vmatpush1.bf16.msra.mxu0 0
        %5719 = vmatprep.mubr.bf16.mxu0 0
        %5720 = vmatmul.mubr.bf16.gmra.mrb[0].mxu0 %v5620
        %v5721 = vpop.f32.mrb[0].mxu0
        %v5722 = vadd.f32 0.0, %v5721
        %v5723 = vpop.f32.mrb[0].mxu0
        %v5724 = vadd.f32 0.0, %v5723
        %v5725 = vpop.f32.mrb[0].mxu0
        %v5726 = vpop.f32.mrb[0].mxu0
        %5727 = vdwg.mxu0
        %5728 = vmatprep.subr.bf16.mxu0 %v5638
        %5729 = vmatpush1.bf16.msra.mxu0 %v5635
        %5730 = vmatprep.subr.bf16.mxu0 0
        %5731 = vmatpush1.bf16.msra.mxu0 0
        %5732 = vmatprep.subr.bf16.mxu0 0
        %5733 = vmatpush1.bf16.msra.mxu0 0
        %5734 = vmatprep.subr.bf16.mxu0 0
        %5735 = vmatpush1.bf16.msra.mxu0 0
        %5736 = vmatprep.subr.bf16.mxu0 0
        %5737 = vmatpush1.bf16.msra.mxu0 0
        %5738 = vmatprep.subr.bf16.mxu0 0
        %5739 = vmatpush1.bf16.msra.mxu0 0
        %5740 = vmatprep.subr.bf16.mxu0 0
        %5741 = vmatpush1.bf16.msra.mxu0 0
        %5742 = vmatprep.subr.bf16.mxu0 0
        %5743 = vmatpush1.bf16.msra.mxu0 0
        %5744 = vmatprep.subr.bf16.mxu0 0
        %5745 = vmatpush1.bf16.msra.mxu0 0
        %5746 = vmatprep.subr.bf16.mxu0 0
        %5747 = vmatpush1.bf16.msra.mxu0 0
        %5748 = vmatprep.subr.bf16.mxu0 0
        %5749 = vmatpush1.bf16.msra.mxu0 0
        %5750 = vmatprep.subr.bf16.mxu0 0
        %5751 = vmatpush1.bf16.msra.mxu0 0
        %5752 = vmatprep.subr.bf16.mxu0 0
        %5753 = vmatpush1.bf16.msra.mxu0 0
        %5754 = vmatprep.subr.bf16.mxu0 0
        %5755 = vmatpush1.bf16.msra.mxu0 0
        %5756 = vmatprep.subr.bf16.mxu0 0
        %5757 = vmatpush1.bf16.msra.mxu0 0
        %5758 = vmatprep.subr.bf16.mxu0 0
        %5759 = vmatpush1.bf16.msra.mxu0 0
        %5760 = vmatprep.mubr.bf16.mxu0 0
        %5761 = vmatmul.mubr.bf16.gmra.mrb[0].mxu0 %v5620
        %v5762 = vpop.f32.mrb[0].mxu0
        %v5763 = vadd.f32 0.0, %v5762
        %v5764 = vpop.f32.mrb[0].mxu0
        %v5765 = vadd.f32 0.0, %v5764
        %v5766 = vpop.f32.mrb[0].mxu0
        %v5767 = vpop.f32.mrb[0].mxu0
        %5768 = vdwg.mxu0
        %5769 = vmatprep.subr.bf16.mxu0 %v5644
        %5770 = vmatpush1.bf16.msra.mxu0 %v5641
        %5771 = vmatprep.subr.bf16.mxu0 0
        %5772 = vmatpush1.bf16.msra.mxu0 0
        %5773 = vmatprep.subr.bf16.mxu0 0
        %5774 = vmatpush1.bf16.msra.mxu0 0
        %5775 = vmatprep.subr.bf16.mxu0 0
        %5776 = vmatpush1.bf16.msra.mxu0 0
        %5777 = vmatprep.subr.bf16.mxu0 0
        %5778 = vmatpush1.bf16.msra.mxu0 0
        %5779 = vmatprep.subr.bf16.mxu0 0
        %5780 = vmatpush1.bf16.msra.mxu0 0
        %5781 = vmatprep.subr.bf16.mxu0 0
        %5782 = vmatpush1.bf16.msra.mxu0 0
        %5783 = vmatprep.subr.bf16.mxu0 0
        %5784 = vmatpush1.bf16.msra.mxu0 0
        %5785 = vmatprep.subr.bf16.mxu0 0
        %5786 = vmatpush1.bf16.msra.mxu0 0
        %5787 = vmatprep.subr.bf16.mxu0 0
        %5788 = vmatpush1.bf16.msra.mxu0 0
        %5789 = vmatprep.subr.bf16.mxu0 0
        %5790 = vmatpush1.bf16.msra.mxu0 0
        %5791 = vmatprep.subr.bf16.mxu0 0
        %5792 = vmatpush1.bf16.msra.mxu0 0
        %5793 = vmatprep.subr.bf16.mxu0 0
        %5794 = vmatpush1.bf16.msra.mxu0 0
        %5795 = vmatprep.subr.bf16.mxu0 0
        %5796 = vmatpush1.bf16.msra.mxu0 0
        %5797 = vmatprep.subr.bf16.mxu0 0
        %5798 = vmatpush1.bf16.msra.mxu0 0
        %5799 = vmatprep.subr.bf16.mxu0 0
        %5800 = vmatpush1.bf16.msra.mxu0 0
        %5801 = vmatprep.mubr.bf16.mxu0 0
        %5802 = vmatmul.mubr.bf16.gmra.mrb[0].mxu0 %v5620
        %v5803 = vpop.f32.mrb[0].mxu0
        %v5804 = vadd.f32 0.0, %v5803
        %v5805 = vpop.f32.mrb[0].mxu0
        %v5806 = vadd.f32 0.0, %v5805
        %v5807 = vpop.f32.mrb[0].mxu0
        %v5808 = vpop.f32.mrb[0].mxu0
        %5809 = vdwg.mxu0
        %v5810 = vadd.f32 %v5524, %v5681
        %v5811 = vadd.f32 %v5525, %v5683
        %v5812 = vadd.f32 %v5526, %v5722
        %v5813 = vadd.f32 %v5527, %v5724
        %v5814 = vadd.f32 %v5528, %v5763
        %v5815 = vadd.f32 %v5529, %v5765
        %v5816 = vadd.f32 %v5530, %v5804
        %v5817 = vadd.f32 %v5531, %v5806
        %v5818 = vld [vmem:[#allocation2 + $0x4] sm:$0xff]
        %v5819 = vld [vmem:[#allocation2 + $0xc] sm:$0xff]
        %v5820 = vld [vmem:[#allocation2 + $0x14] sm:$0x3]
        %v5821 = vmul.bf16 %v5818, %v3003
        %v5822 = vmul.bf16 %v5819, %v3005
        %v5823 = vmul.bf16 %v5820, %v3002
        %v5824 = vld [vmem:[%s3] sm:$0x3]
        %v5827 = vunpack.c.l.s4 1983009808
        %v5828 = vunpack.c.0.s8 %v5827
        %v5829 = vlaneseq
        %v5830 = vshrl.u32 %v5829, 7
        %v5831 = vsub.s32 %v5828, %v5830
        %v5832 = vrot.slane %v5824, %v5831
        %5833 = vrot.lane.b32.xlu0 %v5832, 68
        %v5834 = vpop.permute.xlu0 %5833
        %v5838 = vcombine.high %v5821, %v5821
        %v5840 = vunpack.c.l.s4 1983009808
        %v5841 = vunpack.c.0.s8 %v5840
        %v5842 = vlaneseq
        %v5843 = vshrl.u32 %v5842, 7
        %v5844 = vsub.s32 %v5841, %v5843
        %v5845 = vrot.slane %v5821, %v5844
        %v5847 = vunpack.c.l.s4 1983009808
        %v5848 = vunpack.c.0.s8 %v5847
        %v5849 = vlaneseq
        %v5850 = vshrl.u32 %v5849, 7
        %v5851 = vsub.s32 %v5848, %v5850
        %v5852 = vrot.slane %v5838, %v5851
        %v5853 = vcombine.high %v5845, %v5845
        %v5854 = vcombine.high %v5852, %v5852
        %v5855 = vcombine.high %v5822, %v5822
        %v5857 = vunpack.c.l.s4 1983009808
        %v5858 = vunpack.c.0.s8 %v5857
        %v5859 = vlaneseq
        %v5860 = vshrl.u32 %v5859, 7
        %v5861 = vsub.s32 %v5858, %v5860
        %v5862 = vrot.slane %v5822, %v5861
        %v5864 = vunpack.c.l.s4 1983009808
        %v5865 = vunpack.c.0.s8 %v5864
        %v5866 = vlaneseq
        %v5867 = vshrl.u32 %v5866, 7
        %v5868 = vsub.s32 %v5865, %v5867
        %v5869 = vrot.slane %v5855, %v5868
        %v5870 = vcombine.high %v5862, %v5862
        %v5871 = vcombine.high %v5869, %v5869
        %v5873 = vunpack.c.l.s4 1983009808
        %v5874 = vunpack.c.0.s8 %v5873
        %v5875 = vlaneseq
        %v5876 = vshrl.u32 %v5875, 7
        %v5877 = vsub.s32 %v5874, %v5876
        %v5878 = vrot.slane %v5823, %v5877
        %5879 = vrot.lane.b32.xlu0 %v5845, 121
        %v5880 = vpop.permute.xlu0 %5879
        %5881 = vrot.lane.b32.xlu0 %v5853, 121
        %v5882 = vpop.permute.xlu0 %5881
        %5883 = vrot.lane.b32.xlu0 %v5852, 121
        %v5884 = vpop.permute.xlu0 %5883
        %5885 = vrot.lane.b32.xlu0 %v5854, 121
        %v5886 = vpop.permute.xlu0 %5885
        %5887 = vrot.lane.b32.xlu0 %v5862, 121
        %v5888 = vpop.permute.xlu0 %5887
        %5889 = vrot.lane.b32.xlu0 %v5870, 121
        %v5890 = vpop.permute.xlu0 %5889
        %5891 = vrot.lane.b32.xlu0 %v5869, 121
        %v5892 = vpop.permute.xlu0 %5891
        %5893 = vrot.lane.b32.xlu0 %v5871, 121
        %v5894 = vpop.permute.xlu0 %5893
        %5895 = vrot.lane.b32.xlu0 %v5878, 121
        %v5896 = vpop.permute.xlu0 %5895
        %v5897 = vsel %vm1475, %v5880, %v5882
        %v5898 = vsel %vm1475, %v5882, %v5884
        %v5899 = vsel %vm1475, %v5884, %v5886
        %v5900 = vsel %vm1475, %v5886, %v5888
        %v5901 = vsel %vm1475, %v5888, %v5890
        %v5902 = vsel %vm1475, %v5890, %v5892
        %v5903 = vsel %vm1475, %v5892, %v5894
        %v5904 = vsel %vm1475, %v5894, %v5896
        %v5906 = vsel %vm889, %v5834, 0
        %v5909 = vsel %vm893, %v5897, 0
        %v5912 = vsel %vm893, %v5898, 0
        %v5915 = vsel %vm893, %v5899, 0
        %v5918 = vsel %vm893, %v5900, 0
        %v5921 = vsel %vm893, %v5901, 0
        %v5924 = vsel %vm893, %v5902, 0
        %v5927 = vsel %vm893, %v5903, 0
        %v5930 = vsel %vm893, %v5904, 0
        %5932 = vmatprep.subr.bf16.mxu0 %v5912
        %5933 = vmatpush1.bf16.msra.mxu0 %v5909
        %5934 = vmatprep.subr.bf16.mxu0 0
        %5935 = vmatpush1.bf16.msra.mxu0 0
        %5936 = vmatprep.subr.bf16.mxu0 0
        %5937 = vmatpush1.bf16.msra.mxu0 0
        %5938 = vmatprep.subr.bf16.mxu0 0
        %5939 = vmatpush1.bf16.msra.mxu0 0
        %5940 = vmatprep.subr.bf16.mxu0 0
        %5941 = vmatpush1.bf16.msra.mxu0 0
        %5942 = vmatprep.subr.bf16.mxu0 0
        %5943 = vmatpush1.bf16.msra.mxu0 0
        %5944 = vmatprep.subr.bf16.mxu0 0
        %5945 = vmatpush1.bf16.msra.mxu0 0
        %5946 = vmatprep.subr.bf16.mxu0 0
        %5947 = vmatpush1.bf16.msra.mxu0 0
        %5948 = vmatprep.subr.bf16.mxu0 0
        %5949 = vmatpush1.bf16.msra.mxu0 0
        %5950 = vmatprep.subr.bf16.mxu0 0
        %5951 = vmatpush1.bf16.msra.mxu0 0
        %5952 = vmatprep.subr.bf16.mxu0 0
        %5953 = vmatpush1.bf16.msra.mxu0 0
        %5954 = vmatprep.subr.bf16.mxu0 0
        %5955 = vmatpush1.bf16.msra.mxu0 0
        %5956 = vmatprep.subr.bf16.mxu0 0
        %5957 = vmatpush1.bf16.msra.mxu0 0
        %5958 = vmatprep.subr.bf16.mxu0 0
        %5959 = vmatpush1.bf16.msra.mxu0 0
        %5960 = vmatprep.subr.bf16.mxu0 0
        %5961 = vmatpush1.bf16.msra.mxu0 0
        %5962 = vmatprep.subr.bf16.mxu0 0
        %5963 = vmatpush1.bf16.msra.mxu0 0
        %5964 = vmatprep.mubr.bf16.mxu0 0
        %5965 = vmatmul.mubr.bf16.gmra.mrb[0].mxu0 %v5906
        %v5966 = vpop.f32.mrb[0].mxu0
        %v5967 = vadd.f32 0.0, %v5966
        %v5968 = vpop.f32.mrb[0].mxu0
        %v5969 = vadd.f32 0.0, %v5968
        %v5970 = vpop.f32.mrb[0].mxu0
        %v5971 = vpop.f32.mrb[0].mxu0
        %5972 = vdwg.mxu0
        %5973 = vmatprep.subr.bf16.mxu0 %v5918
        %5974 = vmatpush1.bf16.msra.mxu0 %v5915
        %5975 = vmatprep.subr.bf16.mxu0 0
        %5976 = vmatpush1.bf16.msra.mxu0 0
        %5977 = vmatprep.subr.bf16.mxu0 0
        %5978 = vmatpush1.bf16.msra.mxu0 0
        %5979 = vmatprep.subr.bf16.mxu0 0
        %5980 = vmatpush1.bf16.msra.mxu0 0
        %5981 = vmatprep.subr.bf16.mxu0 0
        %5982 = vmatpush1.bf16.msra.mxu0 0
        %5983 = vmatprep.subr.bf16.mxu0 0
        %5984 = vmatpush1.bf16.msra.mxu0 0
        %5985 = vmatprep.subr.bf16.mxu0 0
        %5986 = vmatpush1.bf16.msra.mxu0 0
        %5987 = vmatprep.subr.bf16.mxu0 0
        %5988 = vmatpush1.bf16.msra.mxu0 0
        %5989 = vmatprep.subr.bf16.mxu0 0
        %5990 = vmatpush1.bf16.msra.mxu0 0
        %5991 = vmatprep.subr.bf16.mxu0 0
        %5992 = vmatpush1.bf16.msra.mxu0 0
        %5993 = vmatprep.subr.bf16.mxu0 0
        %5994 = vmatpush1.bf16.msra.mxu0 0
        %5995 = vmatprep.subr.bf16.mxu0 0
        %5996 = vmatpush1.bf16.msra.mxu0 0
        %5997 = vmatprep.subr.bf16.mxu0 0
        %5998 = vmatpush1.bf16.msra.mxu0 0
        %5999 = vmatprep.subr.bf16.mxu0 0
        %6000 = vmatpush1.bf16.msra.mxu0 0
        %6001 = vmatprep.subr.bf16.mxu0 0
        %6002 = vmatpush1.bf16.msra.mxu0 0
        %6003 = vmatprep.subr.bf16.mxu0 0
        %6004 = vmatpush1.bf16.msra.mxu0 0
        %6005 = vmatprep.mubr.bf16.mxu0 0
        %6006 = vmatmul.mubr.bf16.gmra.mrb[0].mxu0 %v5906
        %v6007 = vpop.f32.mrb[0].mxu0
        %v6008 = vadd.f32 0.0, %v6007
        %v6009 = vpop.f32.mrb[0].mxu0
        %v6010 = vadd.f32 0.0, %v6009
        %v6011 = vpop.f32.mrb[0].mxu0
        %v6012 = vpop.f32.mrb[0].mxu0
        %6013 = vdwg.mxu0
        %6014 = vmatprep.subr.bf16.mxu0 %v5924
        %6015 = vmatpush1.bf16.msra.mxu0 %v5921
        %6016 = vmatprep.subr.bf16.mxu0 0
        %6017 = vmatpush1.bf16.msra.mxu0 0
        %6018 = vmatprep.subr.bf16.mxu0 0
        %6019 = vmatpush1.bf16.msra.mxu0 0
        %6020 = vmatprep.subr.bf16.mxu0 0
        %6021 = vmatpush1.bf16.msra.mxu0 0
        %6022 = vmatprep.subr.bf16.mxu0 0
        %6023 = vmatpush1.bf16.msra.mxu0 0
        %6024 = vmatprep.subr.bf16.mxu0 0
        %6025 = vmatpush1.bf16.msra.mxu0 0
        %6026 = vmatprep.subr.bf16.mxu0 0
        %6027 = vmatpush1.bf16.msra.mxu0 0
        %6028 = vmatprep.subr.bf16.mxu0 0
        %6029 = vmatpush1.bf16.msra.mxu0 0
        %6030 = vmatprep.subr.bf16.mxu0 0
        %6031 = vmatpush1.bf16.msra.mxu0 0
        %6032 = vmatprep.subr.bf16.mxu0 0
        %6033 = vmatpush1.bf16.msra.mxu0 0
        %6034 = vmatprep.subr.bf16.mxu0 0
        %6035 = vmatpush1.bf16.msra.mxu0 0
        %6036 = vmatprep.subr.bf16.mxu0 0
        %6037 = vmatpush1.bf16.msra.mxu0 0
        %6038 = vmatprep.subr.bf16.mxu0 0
        %6039 = vmatpush1.bf16.msra.mxu0 0
        %6040 = vmatprep.subr.bf16.mxu0 0
        %6041 = vmatpush1.bf16.msra.mxu0 0
        %6042 = vmatprep.subr.bf16.mxu0 0
        %6043 = vmatpush1.bf16.msra.mxu0 0
        %6044 = vmatprep.subr.bf16.mxu0 0
        %6045 = vmatpush1.bf16.msra.mxu0 0
        %6046 = vmatprep.mubr.bf16.mxu0 0
        %6047 = vmatmul.mubr.bf16.gmra.mrb[0].mxu0 %v5906
        %v6048 = vpop.f32.mrb[0].mxu0
        %v6049 = vadd.f32 0.0, %v6048
        %v6050 = vpop.f32.mrb[0].mxu0
        %v6051 = vadd.f32 0.0, %v6050
        %v6052 = vpop.f32.mrb[0].mxu0
        %v6053 = vpop.f32.mrb[0].mxu0
        %6054 = vdwg.mxu0
        %6055 = vmatprep.subr.bf16.mxu0 %v5930
        %6056 = vmatpush1.bf16.msra.mxu0 %v5927
        %6057 = vmatprep.subr.bf16.mxu0 0
        %6058 = vmatpush1.bf16.msra.mxu0 0
        %6059 = vmatprep.subr.bf16.mxu0 0
        %6060 = vmatpush1.bf16.msra.mxu0 0
        %6061 = vmatprep.subr.bf16.mxu0 0
        %6062 = vmatpush1.bf16.msra.mxu0 0
        %6063 = vmatprep.subr.bf16.mxu0 0
        %6064 = vmatpush1.bf16.msra.mxu0 0
        %6065 = vmatprep.subr.bf16.mxu0 0
        %6066 = vmatpush1.bf16.msra.mxu0 0
        %6067 = vmatprep.subr.bf16.mxu0 0
        %6068 = vmatpush1.bf16.msra.mxu0 0
        %6069 = vmatprep.subr.bf16.mxu0 0
        %6070 = vmatpush1.bf16.msra.mxu0 0
        %6071 = vmatprep.subr.bf16.mxu0 0
        %6072 = vmatpush1.bf16.msra.mxu0 0
        %6073 = vmatprep.subr.bf16.mxu0 0
        %6074 = vmatpush1.bf16.msra.mxu0 0
        %6075 = vmatprep.subr.bf16.mxu0 0
        %6076 = vmatpush1.bf16.msra.mxu0 0
        %6077 = vmatprep.subr.bf16.mxu0 0
        %6078 = vmatpush1.bf16.msra.mxu0 0
        %6079 = vmatprep.subr.bf16.mxu0 0
        %6080 = vmatpush1.bf16.msra.mxu0 0
        %6081 = vmatprep.subr.bf16.mxu0 0
        %6082 = vmatpush1.bf16.msra.mxu0 0
        %6083 = vmatprep.subr.bf16.mxu0 0
        %6084 = vmatpush1.bf16.msra.mxu0 0
        %6085 = vmatprep.subr.bf16.mxu0 0
        %6086 = vmatpush1.bf16.msra.mxu0 0
        %6087 = vmatprep.mubr.bf16.mxu0 0
        %6088 = vmatmul.mubr.bf16.gmra.mrb[0].mxu0 %v5906
        %v6089 = vpop.f32.mrb[0].mxu0
        %v6090 = vadd.f32 0.0, %v6089
        %v6091 = vpop.f32.mrb[0].mxu0
        %v6092 = vadd.f32 0.0, %v6091
        %v6093 = vpop.f32.mrb[0].mxu0
        %v6094 = vpop.f32.mrb[0].mxu0
        %6095 = vdwg.mxu0
        %v6096 = vadd.f32 %v5810, %v5967
        %v6097 = vadd.f32 %v5811, %v5969
        %v6098 = vadd.f32 %v5812, %v6008
        %v6099 = vadd.f32 %v5813, %v6010
        %v6100 = vadd.f32 %v5814, %v6049
        %v6101 = vadd.f32 %v5815, %v6051
        %v6102 = vadd.f32 %v5816, %v6090
        %v6103 = vadd.f32 %v5817, %v6092
        %v6104 = vld [vmem:[#allocation2 + $0x4] sm:$0xff]
        %v6105 = vld [vmem:[#allocation2 + $0xc] sm:$0xff]
        %v6106 = vld [vmem:[#allocation2 + $0x14] sm:$0x3]
        %v6107 = vmul.bf16 %v6104, %v3431
        %v6108 = vmul.bf16 %v6105, %v3433
        %v6109 = vmul.bf16 %v6106, %v3430
        %v6110 = vld [vmem:[%s3] sm:$0x3]
        %v6113 = vunpack.c.l.s4 1983009808
        %v6114 = vunpack.c.0.s8 %v6113
        %v6115 = vlaneseq
        %v6116 = vshrl.u32 %v6115, 7
        %v6117 = vsub.s32 %v6114, %v6116
        %v6118 = vrot.slane %v6110, %v6117
        %6119 = vrot.lane.b32.xlu0 %v6118, 64
        %v6120 = vpop.permute.xlu0 %6119
        %v6124 = vcombine.high %v6107, %v6107
        %v6126 = vunpack.c.l.s4 1983009808
        %v6127 = vunpack.c.0.s8 %v6126
        %v6128 = vlaneseq
        %v6129 = vshrl.u32 %v6128, 7
        %v6130 = vsub.s32 %v6127, %v6129
        %v6131 = vrot.slane %v6107, %v6130
        %v6133 = vunpack.c.l.s4 1983009808
        %v6134 = vunpack.c.0.s8 %v6133
        %v6135 = vlaneseq
        %v6136 = vshrl.u32 %v6135, 7
        %v6137 = vsub.s32 %v6134, %v6136
        %v6138 = vrot.slane %v6124, %v6137
        %v6139 = vcombine.high %v6131, %v6131
        %v6140 = vcombine.high %v6138, %v6138
        %v6141 = vcombine.high %v6108, %v6108
        %v6143 = vunpack.c.l.s4 1983009808
        %v6144 = vunpack.c.0.s8 %v6143
        %v6145 = vlaneseq
        %v6146 = vshrl.u32 %v6145, 7
        %v6147 = vsub.s32 %v6144, %v6146
        %v6148 = vrot.slane %v6108, %v6147
        %v6150 = vunpack.c.l.s4 1983009808
        %v6151 = vunpack.c.0.s8 %v6150
        %v6152 = vlaneseq
        %v6153 = vshrl.u32 %v6152, 7
        %v6154 = vsub.s32 %v6151, %v6153
        %v6155 = vrot.slane %v6141, %v6154
        %v6156 = vcombine.high %v6148, %v6148
        %v6157 = vcombine.high %v6155, %v6155
        %v6159 = vunpack.c.l.s4 1983009808
        %v6160 = vunpack.c.0.s8 %v6159
        %v6161 = vlaneseq
        %v6162 = vshrl.u32 %v6161, 7
        %v6163 = vsub.s32 %v6160, %v6162
        %v6164 = vrot.slane %v6109, %v6163
        %6165 = vrot.lane.b32.xlu0 %v6131, 120
        %v6166 = vpop.permute.xlu0 %6165
        %6167 = vrot.lane.b32.xlu0 %v6139, 120
        %v6168 = vpop.permute.xlu0 %6167
        %6169 = vrot.lane.b32.xlu0 %v6138, 120
        %v6170 = vpop.permute.xlu0 %6169
        %6171 = vrot.lane.b32.xlu0 %v6140, 120
        %v6172 = vpop.permute.xlu0 %6171
        %6173 = vrot.lane.b32.xlu0 %v6148, 120
        %v6174 = vpop.permute.xlu0 %6173
        %6175 = vrot.lane.b32.xlu0 %v6156, 120
        %v6176 = vpop.permute.xlu0 %6175
        %6177 = vrot.lane.b32.xlu0 %v6155, 120
        %v6178 = vpop.permute.xlu0 %6177
        %6179 = vrot.lane.b32.xlu0 %v6157, 120
        %v6180 = vpop.permute.xlu0 %6179
        %6181 = vrot.lane.b32.xlu0 %v6164, 120
        %v6182 = vpop.permute.xlu0 %6181
        %v6183 = vsel %vm798, %v6166, %v6168
        %v6184 = vsel %vm798, %v6168, %v6170
        %v6185 = vsel %vm798, %v6170, %v6172
        %v6186 = vsel %vm798, %v6172, %v6174
        %v6187 = vsel %vm798, %v6174, %v6176
        %v6188 = vsel %vm798, %v6176, %v6178
        %v6189 = vsel %vm798, %v6178, %v6180
        %v6190 = vsel %vm798, %v6180, %v6182
        %v6192 = vsel %vm889, %v6120, 0
        %v6195 = vsel %vm893, %v6183, 0
        %v6198 = vsel %vm893, %v6184, 0
        %v6201 = vsel %vm893, %v6185, 0
        %v6204 = vsel %vm893, %v6186, 0
        %v6207 = vsel %vm893, %v6187, 0
        %v6210 = vsel %vm893, %v6188, 0
        %v6213 = vsel %vm893, %v6189, 0
        %v6216 = vsel %vm893, %v6190, 0
        %6218 = vmatprep.subr.bf16.mxu0 %v6198
        %6219 = vmatpush1.bf16.msra.mxu0 %v6195
        %6220 = vmatprep.subr.bf16.mxu0 0
        %6221 = vmatpush1.bf16.msra.mxu0 0
        %6222 = vmatprep.subr.bf16.mxu0 0
        %6223 = vmatpush1.bf16.msra.mxu0 0
        %6224 = vmatprep.subr.bf16.mxu0 0
        %6225 = vmatpush1.bf16.msra.mxu0 0
        %6226 = vmatprep.subr.bf16.mxu0 0
        %6227 = vmatpush1.bf16.msra.mxu0 0
        %6228 = vmatprep.subr.bf16.mxu0 0
        %6229 = vmatpush1.bf16.msra.mxu0 0
        %6230 = vmatprep.subr.bf16.mxu0 0
        %6231 = vmatpush1.bf16.msra.mxu0 0
        %6232 = vmatprep.subr.bf16.mxu0 0
        %6233 = vmatpush1.bf16.msra.mxu0 0
        %6234 = vmatprep.subr.bf16.mxu0 0
        %6235 = vmatpush1.bf16.msra.mxu0 0
        %6236 = vmatprep.subr.bf16.mxu0 0
        %6237 = vmatpush1.bf16.msra.mxu0 0
        %6238 = vmatprep.subr.bf16.mxu0 0
        %6239 = vmatpush1.bf16.msra.mxu0 0
        %6240 = vmatprep.subr.bf16.mxu0 0
        %6241 = vmatpush1.bf16.msra.mxu0 0
        %6242 = vmatprep.subr.bf16.mxu0 0
        %6243 = vmatpush1.bf16.msra.mxu0 0
        %6244 = vmatprep.subr.bf16.mxu0 0
        %6245 = vmatpush1.bf16.msra.mxu0 0
        %6246 = vmatprep.subr.bf16.mxu0 0
        %6247 = vmatpush1.bf16.msra.mxu0 0
        %6248 = vmatprep.subr.bf16.mxu0 0
        %6249 = vmatpush1.bf16.msra.mxu0 0
        %6250 = vmatprep.mubr.bf16.mxu0 0
        %6251 = vmatmul.mubr.bf16.gmra.mrb[0].mxu0 %v6192
        %v6252 = vpop.f32.mrb[0].mxu0
        %v6253 = vadd.f32 0.0, %v6252
        %v6254 = vpop.f32.mrb[0].mxu0
        %v6255 = vadd.f32 0.0, %v6254
        %v6256 = vpop.f32.mrb[0].mxu0
        %v6257 = vpop.f32.mrb[0].mxu0
        %6258 = vdwg.mxu0
        %6259 = vmatprep.subr.bf16.mxu0 %v6204
        %6260 = vmatpush1.bf16.msra.mxu0 %v6201
        %6261 = vmatprep.subr.bf16.mxu0 0
        %6262 = vmatpush1.bf16.msra.mxu0 0
        %6263 = vmatprep.subr.bf16.mxu0 0
        %6264 = vmatpush1.bf16.msra.mxu0 0
        %6265 = vmatprep.subr.bf16.mxu0 0
        %6266 = vmatpush1.bf16.msra.mxu0 0
        %6267 = vmatprep.subr.bf16.mxu0 0
        %6268 = vmatpush1.bf16.msra.mxu0 0
        %6269 = vmatprep.subr.bf16.mxu0 0
        %6270 = vmatpush1.bf16.msra.mxu0 0
        %6271 = vmatprep.subr.bf16.mxu0 0
        %6272 = vmatpush1.bf16.msra.mxu0 0
        %6273 = vmatprep.subr.bf16.mxu0 0
        %6274 = vmatpush1.bf16.msra.mxu0 0
        %6275 = vmatprep.subr.bf16.mxu0 0
        %6276 = vmatpush1.bf16.msra.mxu0 0
        %6277 = vmatprep.subr.bf16.mxu0 0
        %6278 = vmatpush1.bf16.msra.mxu0 0
        %6279 = vmatprep.subr.bf16.mxu0 0
        %6280 = vmatpush1.bf16.msra.mxu0 0
        %6281 = vmatprep.subr.bf16.mxu0 0
        %6282 = vmatpush1.bf16.msra.mxu0 0
        %6283 = vmatprep.subr.bf16.mxu0 0
        %6284 = vmatpush1.bf16.msra.mxu0 0
        %6285 = vmatprep.subr.bf16.mxu0 0
        %6286 = vmatpush1.bf16.msra.mxu0 0
        %6287 = vmatprep.subr.bf16.mxu0 0
        %6288 = vmatpush1.bf16.msra.mxu0 0
        %6289 = vmatprep.subr.bf16.mxu0 0
        %6290 = vmatpush1.bf16.msra.mxu0 0
        %6291 = vmatprep.mubr.bf16.mxu0 0
        %6292 = vmatmul.mubr.bf16.gmra.mrb[0].mxu0 %v6192
        %v6293 = vpop.f32.mrb[0].mxu0
        %v6294 = vadd.f32 0.0, %v6293
        %v6295 = vpop.f32.mrb[0].mxu0
        %v6296 = vadd.f32 0.0, %v6295
        %v6297 = vpop.f32.mrb[0].mxu0
        %v6298 = vpop.f32.mrb[0].mxu0
        %6299 = vdwg.mxu0
        %6300 = vmatprep.subr.bf16.mxu0 %v6210
        %6301 = vmatpush1.bf16.msra.mxu0 %v6207
        %6302 = vmatprep.subr.bf16.mxu0 0
        %6303 = vmatpush1.bf16.msra.mxu0 0
        %6304 = vmatprep.subr.bf16.mxu0 0
        %6305 = vmatpush1.bf16.msra.mxu0 0
        %6306 = vmatprep.subr.bf16.mxu0 0
        %6307 = vmatpush1.bf16.msra.mxu0 0
        %6308 = vmatprep.subr.bf16.mxu0 0
        %6309 = vmatpush1.bf16.msra.mxu0 0
        %6310 = vmatprep.subr.bf16.mxu0 0
        %6311 = vmatpush1.bf16.msra.mxu0 0
        %6312 = vmatprep.subr.bf16.mxu0 0
        %6313 = vmatpush1.bf16.msra.mxu0 0
        %6314 = vmatprep.subr.bf16.mxu0 0
        %6315 = vmatpush1.bf16.msra.mxu0 0
        %6316 = vmatprep.subr.bf16.mxu0 0
        %6317 = vmatpush1.bf16.msra.mxu0 0
        %6318 = vmatprep.subr.bf16.mxu0 0
        %6319 = vmatpush1.bf16.msra.mxu0 0
        %6320 = vmatprep.subr.bf16.mxu0 0
        %6321 = vmatpush1.bf16.msra.mxu0 0
        %6322 = vmatprep.subr.bf16.mxu0 0
        %6323 = vmatpush1.bf16.msra.mxu0 0
        %6324 = vmatprep.subr.bf16.mxu0 0
        %6325 = vmatpush1.bf16.msra.mxu0 0
        %6326 = vmatprep.subr.bf16.mxu0 0
        %6327 = vmatpush1.bf16.msra.mxu0 0
        %6328 = vmatprep.subr.bf16.mxu0 0
        %6329 = vmatpush1.bf16.msra.mxu0 0
        %6330 = vmatprep.subr.bf16.mxu0 0
        %6331 = vmatpush1.bf16.msra.mxu0 0
        %6332 = vmatprep.mubr.bf16.mxu0 0
        %6333 = vmatmul.mubr.bf16.gmra.mrb[0].mxu0 %v6192
        %v6334 = vpop.f32.mrb[0].mxu0
        %v6335 = vadd.f32 0.0, %v6334
        %v6336 = vpop.f32.mrb[0].mxu0
        %v6337 = vadd.f32 0.0, %v6336
        %v6338 = vpop.f32.mrb[0].mxu0
        %v6339 = vpop.f32.mrb[0].mxu0
        %6340 = vdwg.mxu0
        %6341 = vmatprep.subr.bf16.mxu0 %v6216
        %6342 = vmatpush1.bf16.msra.mxu0 %v6213
        %6343 = vmatprep.subr.bf16.mxu0 0
        %6344 = vmatpush1.bf16.msra.mxu0 0
        %6345 = vmatprep.subr.bf16.mxu0 0
        %6346 = vmatpush1.bf16.msra.mxu0 0
        %6347 = vmatprep.subr.bf16.mxu0 0
        %6348 = vmatpush1.bf16.msra.mxu0 0
        %6349 = vmatprep.subr.bf16.mxu0 0
        %6350 = vmatpush1.bf16.msra.mxu0 0
        %6351 = vmatprep.subr.bf16.mxu0 0
        %6352 = vmatpush1.bf16.msra.mxu0 0
        %6353 = vmatprep.subr.bf16.mxu0 0
        %6354 = vmatpush1.bf16.msra.mxu0 0
        %6355 = vmatprep.subr.bf16.mxu0 0
        %6356 = vmatpush1.bf16.msra.mxu0 0
        %6357 = vmatprep.subr.bf16.mxu0 0
        %6358 = vmatpush1.bf16.msra.mxu0 0
        %6359 = vmatprep.subr.bf16.mxu0 0
        %6360 = vmatpush1.bf16.msra.mxu0 0
        %6361 = vmatprep.subr.bf16.mxu0 0
        %6362 = vmatpush1.bf16.msra.mxu0 0
        %6363 = vmatprep.subr.bf16.mxu0 0
        %6364 = vmatpush1.bf16.msra.mxu0 0
        %6365 = vmatprep.subr.bf16.mxu0 0
        %6366 = vmatpush1.bf16.msra.mxu0 0
        %6367 = vmatprep.subr.bf16.mxu0 0
        %6368 = vmatpush1.bf16.msra.mxu0 0
        %6369 = vmatprep.subr.bf16.mxu0 0
        %6370 = vmatpush1.bf16.msra.mxu0 0
        %6371 = vmatprep.subr.bf16.mxu0 0
        %6372 = vmatpush1.bf16.msra.mxu0 0
        %6373 = vmatprep.mubr.bf16.mxu0 0
        %6374 = vmatmul.mubr.bf16.gmra.mrb[0].mxu0 %v6192
        %v6375 = vpop.f32.mrb[0].mxu0
        %v6376 = vadd.f32 0.0, %v6375
        %v6377 = vpop.f32.mrb[0].mxu0
        %v6378 = vadd.f32 0.0, %v6377
        %v6379 = vpop.f32.mrb[0].mxu0
        %v6380 = vpop.f32.mrb[0].mxu0
        %6381 = vdwg.mxu0
        %v6382 = vadd.f32 %v6096, %v6253
        %v6383 = vadd.f32 %v6097, %v6255
        %v6384 = vadd.f32 %v6098, %v6294
        %v6385 = vadd.f32 %v6099, %v6296
        %v6386 = vadd.f32 %v6100, %v6335
        %v6387 = vadd.f32 %v6101, %v6337
        %v6388 = vadd.f32 %v6102, %v6376
        %v6389 = vadd.f32 %v6103, %v6378
        %v6390 = vld [vmem:[#allocation2 + $0x4] sm:$0xff]
        %v6391 = vld [vmem:[#allocation2 + $0xc] sm:$0xff]
        %v6392 = vld [vmem:[#allocation2 + $0x14] sm:$0x3]
        %v6393 = vmul.bf16 %v6390, %v3851
        %v6394 = vmul.bf16 %v6391, %v3853
        %v6395 = vmul.bf16 %v6392, %v3850
        %v6396 = vld [vmem:[%s3] sm:$0x3]
        %v6399 = vunpack.c.l.s4 1983009808
        %v6400 = vunpack.c.0.s8 %v6399
        %v6401 = vlaneseq
        %v6402 = vshrl.u32 %v6401, 7
        %v6403 = vsub.s32 %v6400, %v6402
        %v6404 = vrot.slane %v6396, %v6403
        %6405 = vrot.lane.b32.xlu0 %v6404, 60
        %v6406 = vpop.permute.xlu0 %6405
        %v6410 = vcombine.high %v6393, %v6393
        %v6412 = vunpack.c.l.s4 1983009808
        %v6413 = vunpack.c.0.s8 %v6412
        %v6414 = vlaneseq
        %v6415 = vshrl.u32 %v6414, 7
        %v6416 = vsub.s32 %v6413, %v6415
        %v6417 = vrot.slane %v6393, %v6416
        %v6419 = vunpack.c.l.s4 1983009808
        %v6420 = vunpack.c.0.s8 %v6419
        %v6421 = vlaneseq
        %v6422 = vshrl.u32 %v6421, 7
        %v6423 = vsub.s32 %v6420, %v6422
        %v6424 = vrot.slane %v6410, %v6423
        %v6425 = vcombine.high %v6417, %v6417
        %v6426 = vcombine.high %v6424, %v6424
        %v6427 = vcombine.high %v6394, %v6394
        %v6429 = vunpack.c.l.s4 1983009808
        %v6430 = vunpack.c.0.s8 %v6429
        %v6431 = vlaneseq
        %v6432 = vshrl.u32 %v6431, 7
        %v6433 = vsub.s32 %v6430, %v6432
        %v6434 = vrot.slane %v6394, %v6433
        %v6436 = vunpack.c.l.s4 1983009808
        %v6437 = vunpack.c.0.s8 %v6436
        %v6438 = vlaneseq
        %v6439 = vshrl.u32 %v6438, 7
        %v6440 = vsub.s32 %v6437, %v6439
        %v6441 = vrot.slane %v6427, %v6440
        %v6442 = vcombine.high %v6434, %v6434
        %v6443 = vcombine.high %v6441, %v6441
        %v6445 = vunpack.c.l.s4 1983009808
        %v6446 = vunpack.c.0.s8 %v6445
        %v6447 = vlaneseq
        %v6448 = vshrl.u32 %v6447, 7
        %v6449 = vsub.s32 %v6446, %v6448
        %v6450 = vrot.slane %v6395, %v6449
        %6451 = vrot.lane.b32.xlu0 %v6417, 119
        %v6452 = vpop.permute.xlu0 %6451
        %6453 = vrot.lane.b32.xlu0 %v6425, 119
        %v6454 = vpop.permute.xlu0 %6453
        %6455 = vrot.lane.b32.xlu0 %v6424, 119
        %v6456 = vpop.permute.xlu0 %6455
        %6457 = vrot.lane.b32.xlu0 %v6426, 119
        %v6458 = vpop.permute.xlu0 %6457
        %6459 = vrot.lane.b32.xlu0 %v6434, 119
        %v6460 = vpop.permute.xlu0 %6459
        %6461 = vrot.lane.b32.xlu0 %v6442, 119
        %v6462 = vpop.permute.xlu0 %6461
        %6463 = vrot.lane.b32.xlu0 %v6441, 119
        %v6464 = vpop.permute.xlu0 %6463
        %6465 = vrot.lane.b32.xlu0 %v6443, 119
        %v6466 = vpop.permute.xlu0 %6465
        %6467 = vrot.lane.b32.xlu0 %v6450, 119
        %v6468 = vpop.permute.xlu0 %6467
        %v6469 = vsel %vm682, %v6452, %v6454
        %v6470 = vsel %vm682, %v6454, %v6456
        %v6471 = vsel %vm682, %v6456, %v6458
        %v6472 = vsel %vm682, %v6458, %v6460
        %v6473 = vsel %vm682, %v6460, %v6462
        %v6474 = vsel %vm682, %v6462, %v6464
        %v6475 = vsel %vm682, %v6464, %v6466
        %v6476 = vsel %vm682, %v6466, %v6468
        %v6478 = vsel %vm889, %v6406, 0
        %v6481 = vsel %vm893, %v6469, 0
        %v6484 = vsel %vm893, %v6470, 0
        %v6487 = vsel %vm893, %v6471, 0
        %v6490 = vsel %vm893, %v6472, 0
        %v6493 = vsel %vm893, %v6473, 0
        %v6496 = vsel %vm893, %v6474, 0
        %v6499 = vsel %vm893, %v6475, 0
        %v6502 = vsel %vm893, %v6476, 0
        %6504 = vmatprep.subr.bf16.mxu0 %v6484
        %6505 = vmatpush1.bf16.msra.mxu0 %v6481
        %6506 = vmatprep.subr.bf16.mxu0 0
        %6507 = vmatpush1.bf16.msra.mxu0 0
        %6508 = vmatprep.subr.bf16.mxu0 0
        %6509 = vmatpush1.bf16.msra.mxu0 0
        %6510 = vmatprep.subr.bf16.mxu0 0
        %6511 = vmatpush1.bf16.msra.mxu0 0
        %6512 = vmatprep.subr.bf16.mxu0 0
        %6513 = vmatpush1.bf16.msra.mxu0 0
        %6514 = vmatprep.subr.bf16.mxu0 0
        %6515 = vmatpush1.bf16.msra.mxu0 0
        %6516 = vmatprep.subr.bf16.mxu0 0
        %6517 = vmatpush1.bf16.msra.mxu0 0
        %6518 = vmatprep.subr.bf16.mxu0 0
        %6519 = vmatpush1.bf16.msra.mxu0 0
        %6520 = vmatprep.subr.bf16.mxu0 0
        %6521 = vmatpush1.bf16.msra.mxu0 0
        %6522 = vmatprep.subr.bf16.mxu0 0
        %6523 = vmatpush1.bf16.msra.mxu0 0
        %6524 = vmatprep.subr.bf16.mxu0 0
        %6525 = vmatpush1.bf16.msra.mxu0 0
        %6526 = vmatprep.subr.bf16.mxu0 0
        %6527 = vmatpush1.bf16.msra.mxu0 0
        %6528 = vmatprep.subr.bf16.mxu0 0
        %6529 = vmatpush1.bf16.msra.mxu0 0
        %6530 = vmatprep.subr.bf16.mxu0 0
        %6531 = vmatpush1.bf16.msra.mxu0 0
        %6532 = vmatprep.subr.bf16.mxu0 0
        %6533 = vmatpush1.bf16.msra.mxu0 0
        %6534 = vmatprep.subr.bf16.mxu0 0
        %6535 = vmatpush1.bf16.msra.mxu0 0
        %6536 = vmatprep.mubr.bf16.mxu0 0
        %6537 = vmatmul.mubr.bf16.gmra.mrb[0].mxu0 %v6478
        %v6538 = vpop.f32.mrb[0].mxu0
        %v6539 = vadd.f32 0.0, %v6538
        %v6540 = vpop.f32.mrb[0].mxu0
        %v6541 = vadd.f32 0.0, %v6540
        %v6542 = vpop.f32.mrb[0].mxu0
        %v6543 = vpop.f32.mrb[0].mxu0
        %6544 = vdwg.mxu0
        %6545 = vmatprep.subr.bf16.mxu0 %v6490
        %6546 = vmatpush1.bf16.msra.mxu0 %v6487
        %6547 = vmatprep.subr.bf16.mxu0 0
        %6548 = vmatpush1.bf16.msra.mxu0 0
        %6549 = vmatprep.subr.bf16.mxu0 0
        %6550 = vmatpush1.bf16.msra.mxu0 0
        %6551 = vmatprep.subr.bf16.mxu0 0
        %6552 = vmatpush1.bf16.msra.mxu0 0
        %6553 = vmatprep.subr.bf16.mxu0 0
        %6554 = vmatpush1.bf16.msra.mxu0 0
        %6555 = vmatprep.subr.bf16.mxu0 0
        %6556 = vmatpush1.bf16.msra.mxu0 0
        %6557 = vmatprep.subr.bf16.mxu0 0
        %6558 = vmatpush1.bf16.msra.mxu0 0
        %6559 = vmatprep.subr.bf16.mxu0 0
        %6560 = vmatpush1.bf16.msra.mxu0 0
        %6561 = vmatprep.subr.bf16.mxu0 0
        %6562 = vmatpush1.bf16.msra.mxu0 0
        %6563 = vmatprep.subr.bf16.mxu0 0
        %6564 = vmatpush1.bf16.msra.mxu0 0
        %6565 = vmatprep.subr.bf16.mxu0 0
        %6566 = vmatpush1.bf16.msra.mxu0 0
        %6567 = vmatprep.subr.bf16.mxu0 0
        %6568 = vmatpush1.bf16.msra.mxu0 0
        %6569 = vmatprep.subr.bf16.mxu0 0
        %6570 = vmatpush1.bf16.msra.mxu0 0
        %6571 = vmatprep.subr.bf16.mxu0 0
        %6572 = vmatpush1.bf16.msra.mxu0 0
        %6573 = vmatprep.subr.bf16.mxu0 0
        %6574 = vmatpush1.bf16.msra.mxu0 0
        %6575 = vmatprep.subr.bf16.mxu0 0
        %6576 = vmatpush1.bf16.msra.mxu0 0
        %6577 = vmatprep.mubr.bf16.mxu0 0
        %6578 = vmatmul.mubr.bf16.gmra.mrb[0].mxu0 %v6478
        %v6579 = vpop.f32.mrb[0].mxu0
        %v6580 = vadd.f32 0.0, %v6579
        %v6581 = vpop.f32.mrb[0].mxu0
        %v6582 = vadd.f32 0.0, %v6581
        %v6583 = vpop.f32.mrb[0].mxu0
        %v6584 = vpop.f32.mrb[0].mxu0
        %6585 = vdwg.mxu0
        %6586 = vmatprep.subr.bf16.mxu0 %v6496
        %6587 = vmatpush1.bf16.msra.mxu0 %v6493
        %6588 = vmatprep.subr.bf16.mxu0 0
        %6589 = vmatpush1.bf16.msra.mxu0 0
        %6590 = vmatprep.subr.bf16.mxu0 0
        %6591 = vmatpush1.bf16.msra.mxu0 0
        %6592 = vmatprep.subr.bf16.mxu0 0
        %6593 = vmatpush1.bf16.msra.mxu0 0
        %6594 = vmatprep.subr.bf16.mxu0 0
        %6595 = vmatpush1.bf16.msra.mxu0 0
        %6596 = vmatprep.subr.bf16.mxu0 0
        %6597 = vmatpush1.bf16.msra.mxu0 0
        %6598 = vmatprep.subr.bf16.mxu0 0
        %6599 = vmatpush1.bf16.msra.mxu0 0
        %6600 = vmatprep.subr.bf16.mxu0 0
        %6601 = vmatpush1.bf16.msra.mxu0 0
        %6602 = vmatprep.subr.bf16.mxu0 0
        %6603 = vmatpush1.bf16.msra.mxu0 0
        %6604 = vmatprep.subr.bf16.mxu0 0
        %6605 = vmatpush1.bf16.msra.mxu0 0
        %6606 = vmatprep.subr.bf16.mxu0 0
        %6607 = vmatpush1.bf16.msra.mxu0 0
        %6608 = vmatprep.subr.bf16.mxu0 0
        %6609 = vmatpush1.bf16.msra.mxu0 0
        %6610 = vmatprep.subr.bf16.mxu0 0
        %6611 = vmatpush1.bf16.msra.mxu0 0
        %6612 = vmatprep.subr.bf16.mxu0 0
        %6613 = vmatpush1.bf16.msra.mxu0 0
        %6614 = vmatprep.subr.bf16.mxu0 0
        %6615 = vmatpush1.bf16.msra.mxu0 0
        %6616 = vmatprep.subr.bf16.mxu0 0
        %6617 = vmatpush1.bf16.msra.mxu0 0
        %6618 = vmatprep.mubr.bf16.mxu0 0
        %6619 = vmatmul.mubr.bf16.gmra.mrb[0].mxu0 %v6478
        %v6620 = vpop.f32.mrb[0].mxu0
        %v6621 = vadd.f32 0.0, %v6620
        %v6622 = vpop.f32.mrb[0].mxu0
        %v6623 = vadd.f32 0.0, %v6622
        %v6624 = vpop.f32.mrb[0].mxu0
        %v6625 = vpop.f32.mrb[0].mxu0
        %6626 = vdwg.mxu0
        %6627 = vmatprep.subr.bf16.mxu0 %v6502
        %6628 = vmatpush1.bf16.msra.mxu0 %v6499
        %6629 = vmatprep.subr.bf16.mxu0 0
        %6630 = vmatpush1.bf16.msra.mxu0 0
        %6631 = vmatprep.subr.bf16.mxu0 0
        %6632 = vmatpush1.bf16.msra.mxu0 0
        %6633 = vmatprep.subr.bf16.mxu0 0
        %6634 = vmatpush1.bf16.msra.mxu0 0
        %6635 = vmatprep.subr.bf16.mxu0 0
        %6636 = vmatpush1.bf16.msra.mxu0 0
        %6637 = vmatprep.subr.bf16.mxu0 0
        %6638 = vmatpush1.bf16.msra.mxu0 0
        %6639 = vmatprep.subr.bf16.mxu0 0
        %6640 = vmatpush1.bf16.msra.mxu0 0
        %6641 = vmatprep.subr.bf16.mxu0 0
        %6642 = vmatpush1.bf16.msra.mxu0 0
        %6643 = vmatprep.subr.bf16.mxu0 0
        %6644 = vmatpush1.bf16.msra.mxu0 0
        %6645 = vmatprep.subr.bf16.mxu0 0
        %6646 = vmatpush1.bf16.msra.mxu0 0
        %6647 = vmatprep.subr.bf16.mxu0 0
        %6648 = vmatpush1.bf16.msra.mxu0 0
        %6649 = vmatprep.subr.bf16.mxu0 0
        %6650 = vmatpush1.bf16.msra.mxu0 0
        %6651 = vmatprep.subr.bf16.mxu0 0
        %6652 = vmatpush1.bf16.msra.mxu0 0
        %6653 = vmatprep.subr.bf16.mxu0 0
        %6654 = vmatpush1.bf16.msra.mxu0 0
        %6655 = vmatprep.subr.bf16.mxu0 0
        %6656 = vmatpush1.bf16.msra.mxu0 0
        %6657 = vmatprep.subr.bf16.mxu0 0
        %6658 = vmatpush1.bf16.msra.mxu0 0
        %6659 = vmatprep.mubr.bf16.mxu0 0
        %6660 = vmatmul.mubr.bf16.gmra.mrb[0].mxu0 %v6478
        %v6661 = vpop.f32.mrb[0].mxu0
        %v6662 = vadd.f32 0.0, %v6661
        %v6663 = vpop.f32.mrb[0].mxu0
        %v6664 = vadd.f32 0.0, %v6663
        %v6665 = vpop.f32.mrb[0].mxu0
        %v6666 = vpop.f32.mrb[0].mxu0
        %6667 = vdwg.mxu0
        %v6668 = vadd.f32 %v6382, %v6539
        %v6669 = vadd.f32 %v6383, %v6541
        %v6670 = vadd.f32 %v6384, %v6580
        %v6671 = vadd.f32 %v6385, %v6582
        %v6672 = vadd.f32 %v6386, %v6621
        %v6673 = vadd.f32 %v6387, %v6623
        %v6674 = vadd.f32 %v6388, %v6662
        %v6675 = vadd.f32 %v6389, %v6664
        %v6676 = vld [vmem:[#allocation2 + $0x4] sm:$0xff]
        %v6677 = vld [vmem:[#allocation2 + $0xc] sm:$0xff]
        %v6678 = vld [vmem:[#allocation2 + $0x14] sm:$0x3]
        %v6679 = vmul.bf16 %v6676, %v683
        %v6680 = vmul.bf16 %v6677, %v686
        %v6681 = vmul.bf16 %v6678, %v681
        %v6682 = vld [vmem:[%s3] sm:$0x3]
        %v6685 = vunpack.c.l.s4 1983009808
        %v6686 = vunpack.c.0.s8 %v6685
        %v6687 = vlaneseq
        %v6688 = vshrl.u32 %v6687, 7
        %v6689 = vsub.s32 %v6686, %v6688
        %v6690 = vrot.slane %v6682, %v6689
        %6691 = vrot.lane.b32.xlu0 %v6690, 56
        %v6692 = vpop.permute.xlu0 %6691
        %v6696 = vcombine.high %v6679, %v6679
        %v6698 = vunpack.c.l.s4 1983009808
        %v6699 = vunpack.c.0.s8 %v6698
        %v6700 = vlaneseq
        %v6701 = vshrl.u32 %v6700, 7
        %v6702 = vsub.s32 %v6699, %v6701
        %v6703 = vrot.slane %v6679, %v6702
        %v6705 = vunpack.c.l.s4 1983009808
        %v6706 = vunpack.c.0.s8 %v6705
        %v6707 = vlaneseq
        %v6708 = vshrl.u32 %v6707, 7
        %v6709 = vsub.s32 %v6706, %v6708
        %v6710 = vrot.slane %v6696, %v6709
        %v6711 = vcombine.high %v6703, %v6703
        %v6712 = vcombine.high %v6710, %v6710
        %v6713 = vcombine.high %v6680, %v6680
        %v6715 = vunpack.c.l.s4 1983009808
        %v6716 = vunpack.c.0.s8 %v6715
        %v6717 = vlaneseq
        %v6718 = vshrl.u32 %v6717, 7
        %v6719 = vsub.s32 %v6716, %v6718
        %v6720 = vrot.slane %v6680, %v6719
        %v6722 = vunpack.c.l.s4 1983009808
        %v6723 = vunpack.c.0.s8 %v6722
        %v6724 = vlaneseq
        %v6725 = vshrl.u32 %v6724, 7
        %v6726 = vsub.s32 %v6723, %v6725
        %v6727 = vrot.slane %v6713, %v6726
        %v6728 = vcombine.high %v6720, %v6720
        %v6729 = vcombine.high %v6727, %v6727
        %v6731 = vunpack.c.l.s4 1983009808
        %v6732 = vunpack.c.0.s8 %v6731
        %v6733 = vlaneseq
        %v6734 = vshrl.u32 %v6733, 7
        %v6735 = vsub.s32 %v6732, %v6734
        %v6736 = vrot.slane %v6681, %v6735
        %6737 = vrot.lane.b32.xlu0 %v6703, 9
        %v6738 = vpop.permute.xlu0 %6737
        %6739 = vrot.lane.b32.xlu0 %v6711, 9
        %v6740 = vpop.permute.xlu0 %6739
        %6741 = vrot.lane.b32.xlu0 %v6710, 9
        %v6742 = vpop.permute.xlu0 %6741
        %6743 = vrot.lane.b32.xlu0 %v6712, 9
        %v6744 = vpop.permute.xlu0 %6743
        %6745 = vrot.lane.b32.xlu0 %v6720, 9
        %v6746 = vpop.permute.xlu0 %6745
        %6747 = vrot.lane.b32.xlu0 %v6728, 9
        %v6748 = vpop.permute.xlu0 %6747
        %6749 = vrot.lane.b32.xlu0 %v6727, 9
        %v6750 = vpop.permute.xlu0 %6749
        %6751 = vrot.lane.b32.xlu0 %v6729, 9
        %v6752 = vpop.permute.xlu0 %6751
        %6753 = vrot.lane.b32.xlu0 %v6736, 9
        %v6754 = vpop.permute.xlu0 %6753
        %v6755 = vsel %vm1144, %v6738, %v6740
        %v6756 = vsel %vm1144, %v6740, %v6742
        %v6757 = vsel %vm1144, %v6742, %v6744
        %v6758 = vsel %vm1144, %v6744, %v6746
        %v6759 = vsel %vm1144, %v6746, %v6748
        %v6760 = vsel %vm1144, %v6748, %v6750
        %v6761 = vsel %vm1144, %v6750, %v6752
        %v6762 = vsel %vm1144, %v6752, %v6754
        %v6764 = vsel %vm889, %v6692, 0
        %v6767 = vsel %vm893, %v6755, 0
        %v6770 = vsel %vm893, %v6756, 0
        %v6773 = vsel %vm893, %v6757, 0
        %v6776 = vsel %vm893, %v6758, 0
        %v6779 = vsel %vm893, %v6759, 0
        %v6782 = vsel %vm893, %v6760, 0
        %v6785 = vsel %vm893, %v6761, 0
        %v6788 = vsel %vm893, %v6762, 0
        %6790 = vmatprep.subr.bf16.mxu0 %v6770
        %6791 = vmatpush1.bf16.msra.mxu0 %v6767
        %6792 = vmatprep.subr.bf16.mxu0 0
        %6793 = vmatpush1.bf16.msra.mxu0 0
        %6794 = vmatprep.subr.bf16.mxu0 0
        %6795 = vmatpush1.bf16.msra.mxu0 0
        %6796 = vmatprep.subr.bf16.mxu0 0
        %6797 = vmatpush1.bf16.msra.mxu0 0
        %6798 = vmatprep.subr.bf16.mxu0 0
        %6799 = vmatpush1.bf16.msra.mxu0 0
        %6800 = vmatprep.subr.bf16.mxu0 0
        %6801 = vmatpush1.bf16.msra.mxu0 0
        %6802 = vmatprep.subr.bf16.mxu0 0
        %6803 = vmatpush1.bf16.msra.mxu0 0
        %6804 = vmatprep.subr.bf16.mxu0 0
        %6805 = vmatpush1.bf16.msra.mxu0 0
        %6806 = vmatprep.subr.bf16.mxu0 0
        %6807 = vmatpush1.bf16.msra.mxu0 0
        %6808 = vmatprep.subr.bf16.mxu0 0
        %6809 = vmatpush1.bf16.msra.mxu0 0
        %6810 = vmatprep.subr.bf16.mxu0 0
        %6811 = vmatpush1.bf16.msra.mxu0 0
        %6812 = vmatprep.subr.bf16.mxu0 0
        %6813 = vmatpush1.bf16.msra.mxu0 0
        %6814 = vmatprep.subr.bf16.mxu0 0
        %6815 = vmatpush1.bf16.msra.mxu0 0
        %6816 = vmatprep.subr.bf16.mxu0 0
        %6817 = vmatpush1.bf16.msra.mxu0 0
        %6818 = vmatprep.subr.bf16.mxu0 0
        %6819 = vmatpush1.bf16.msra.mxu0 0
        %6820 = vmatprep.subr.bf16.mxu0 0
        %6821 = vmatpush1.bf16.msra.mxu0 0
        %6822 = vmatprep.mubr.bf16.mxu0 0
        %6823 = vmatmul.mubr.bf16.gmra.mrb[0].mxu0 %v6764
        %v6824 = vpop.f32.mrb[0].mxu0
        %v6825 = vadd.f32 0.0, %v6824
        %v6826 = vpop.f32.mrb[0].mxu0
        %v6827 = vadd.f32 0.0, %v6826
        %v6828 = vpop.f32.mrb[0].mxu0
        %v6829 = vpop.f32.mrb[0].mxu0
        %6830 = vdwg.mxu0
        %6831 = vmatprep.subr.bf16.mxu0 %v6776
        %6832 = vmatpush1.bf16.msra.mxu0 %v6773
        %6833 = vmatprep.subr.bf16.mxu0 0
        %6834 = vmatpush1.bf16.msra.mxu0 0
        %6835 = vmatprep.subr.bf16.mxu0 0
        %6836 = vmatpush1.bf16.msra.mxu0 0
        %6837 = vmatprep.subr.bf16.mxu0 0
        %6838 = vmatpush1.bf16.msra.mxu0 0
        %6839 = vmatprep.subr.bf16.mxu0 0
        %6840 = vmatpush1.bf16.msra.mxu0 0
        %6841 = vmatprep.subr.bf16.mxu0 0
        %6842 = vmatpush1.bf16.msra.mxu0 0
        %6843 = vmatprep.subr.bf16.mxu0 0
        %6844 = vmatpush1.bf16.msra.mxu0 0
        %6845 = vmatprep.subr.bf16.mxu0 0
        %6846 = vmatpush1.bf16.msra.mxu0 0
        %6847 = vmatprep.subr.bf16.mxu0 0
        %6848 = vmatpush1.bf16.msra.mxu0 0
        %6849 = vmatprep.subr.bf16.mxu0 0
        %6850 = vmatpush1.bf16.msra.mxu0 0
        %6851 = vmatprep.subr.bf16.mxu0 0
        %6852 = vmatpush1.bf16.msra.mxu0 0
        %6853 = vmatprep.subr.bf16.mxu0 0
        %6854 = vmatpush1.bf16.msra.mxu0 0
        %6855 = vmatprep.subr.bf16.mxu0 0
        %6856 = vmatpush1.bf16.msra.mxu0 0
        %6857 = vmatprep.subr.bf16.mxu0 0
        %6858 = vmatpush1.bf16.msra.mxu0 0
        %6859 = vmatprep.subr.bf16.mxu0 0
        %6860 = vmatpush1.bf16.msra.mxu0 0
        %6861 = vmatprep.subr.bf16.mxu0 0
        %6862 = vmatpush1.bf16.msra.mxu0 0
        %6863 = vmatprep.mubr.bf16.mxu0 0
        %6864 = vmatmul.mubr.bf16.gmra.mrb[0].mxu0 %v6764
        %v6865 = vpop.f32.mrb[0].mxu0
        %v6866 = vadd.f32 0.0, %v6865
        %v6867 = vpop.f32.mrb[0].mxu0
        %v6868 = vadd.f32 0.0, %v6867
        %v6869 = vpop.f32.mrb[0].mxu0
        %v6870 = vpop.f32.mrb[0].mxu0
        %6871 = vdwg.mxu0
        %6872 = vmatprep.subr.bf16.mxu0 %v6782
        %6873 = vmatpush1.bf16.msra.mxu0 %v6779
        %6874 = vmatprep.subr.bf16.mxu0 0
        %6875 = vmatpush1.bf16.msra.mxu0 0
        %6876 = vmatprep.subr.bf16.mxu0 0
        %6877 = vmatpush1.bf16.msra.mxu0 0
        %6878 = vmatprep.subr.bf16.mxu0 0
        %6879 = vmatpush1.bf16.msra.mxu0 0
        %6880 = vmatprep.subr.bf16.mxu0 0
        %6881 = vmatpush1.bf16.msra.mxu0 0
        %6882 = vmatprep.subr.bf16.mxu0 0
        %6883 = vmatpush1.bf16.msra.mxu0 0
        %6884 = vmatprep.subr.bf16.mxu0 0
        %6885 = vmatpush1.bf16.msra.mxu0 0
        %6886 = vmatprep.subr.bf16.mxu0 0
        %6887 = vmatpush1.bf16.msra.mxu0 0
        %6888 = vmatprep.subr.bf16.mxu0 0
        %6889 = vmatpush1.bf16.msra.mxu0 0
        %6890 = vmatprep.subr.bf16.mxu0 0
        %6891 = vmatpush1.bf16.msra.mxu0 0
        %6892 = vmatprep.subr.bf16.mxu0 0
        %6893 = vmatpush1.bf16.msra.mxu0 0
        %6894 = vmatprep.subr.bf16.mxu0 0
        %6895 = vmatpush1.bf16.msra.mxu0 0
        %6896 = vmatprep.subr.bf16.mxu0 0
        %6897 = vmatpush1.bf16.msra.mxu0 0
        %6898 = vmatprep.subr.bf16.mxu0 0
        %6899 = vmatpush1.bf16.msra.mxu0 0
        %6900 = vmatprep.subr.bf16.mxu0 0
        %6901 = vmatpush1.bf16.msra.mxu0 0
        %6902 = vmatprep.subr.bf16.mxu0 0
        %6903 = vmatpush1.bf16.msra.mxu0 0
        %6904 = vmatprep.mubr.bf16.mxu0 0
        %6905 = vmatmul.mubr.bf16.gmra.mrb[0].mxu0 %v6764
        %v6906 = vpop.f32.mrb[0].mxu0
        %v6907 = vadd.f32 0.0, %v6906
        %v6908 = vpop.f32.mrb[0].mxu0
        %v6909 = vadd.f32 0.0, %v6908
        %v6910 = vpop.f32.mrb[0].mxu0
        %v6911 = vpop.f32.mrb[0].mxu0
        %6912 = vdwg.mxu0
        %6913 = vmatprep.subr.bf16.mxu0 %v6788
        %6914 = vmatpush1.bf16.msra.mxu0 %v6785
        %6915 = vmatprep.subr.bf16.mxu0 0
        %6916 = vmatpush1.bf16.msra.mxu0 0
        %6917 = vmatprep.subr.bf16.mxu0 0
        %6918 = vmatpush1.bf16.msra.mxu0 0
        %6919 = vmatprep.subr.bf16.mxu0 0
        %6920 = vmatpush1.bf16.msra.mxu0 0
        %6921 = vmatprep.subr.bf16.mxu0 0
        %6922 = vmatpush1.bf16.msra.mxu0 0
        %6923 = vmatprep.subr.bf16.mxu0 0
        %6924 = vmatpush1.bf16.msra.mxu0 0
        %6925 = vmatprep.subr.bf16.mxu0 0
        %6926 = vmatpush1.bf16.msra.mxu0 0
        %6927 = vmatprep.subr.bf16.mxu0 0
        %6928 = vmatpush1.bf16.msra.mxu0 0
        %6929 = vmatprep.subr.bf16.mxu0 0
        %6930 = vmatpush1.bf16.msra.mxu0 0
        %6931 = vmatprep.subr.bf16.mxu0 0
        %6932 = vmatpush1.bf16.msra.mxu0 0
        %6933 = vmatprep.subr.bf16.mxu0 0
        %6934 = vmatpush1.bf16.msra.mxu0 0
        %6935 = vmatprep.subr.bf16.mxu0 0
        %6936 = vmatpush1.bf16.msra.mxu0 0
        %6937 = vmatprep.subr.bf16.mxu0 0
        %6938 = vmatpush1.bf16.msra.mxu0 0
        %6939 = vmatprep.subr.bf16.mxu0 0
        %6940 = vmatpush1.bf16.msra.mxu0 0
        %6941 = vmatprep.subr.bf16.mxu0 0
        %6942 = vmatpush1.bf16.msra.mxu0 0
        %6943 = vmatprep.subr.bf16.mxu0 0
        %6944 = vmatpush1.bf16.msra.mxu0 0
        %6945 = vmatprep.mubr.bf16.mxu0 0
        %6946 = vmatmul.mubr.bf16.gmra.mrb[0].mxu0 %v6764
        %v6947 = vpop.f32.mrb[0].mxu0
        %v6948 = vadd.f32 0.0, %v6947
        %v6949 = vpop.f32.mrb[0].mxu0
        %v6950 = vadd.f32 0.0, %v6949
        %v6951 = vpop.f32.mrb[0].mxu0
        %v6952 = vpop.f32.mrb[0].mxu0
        %6953 = vdwg.mxu0
        %v6954 = vadd.f32 %v6668, %v6825
        %v6955 = vadd.f32 %v6669, %v6827
        %v6956 = vadd.f32 %v6670, %v6866
        %v6957 = vadd.f32 %v6671, %v6868
        %v6958 = vadd.f32 %v6672, %v6907
        %v6959 = vadd.f32 %v6673, %v6909
        %v6960 = vadd.f32 %v6674, %v6948
        %v6961 = vadd.f32 %v6675, %v6950
        %v6962 = vld [vmem:[#allocation2 + $0x4] sm:$0xff]
        %v6963 = vld [vmem:[#allocation2 + $0xc] sm:$0xff]
        %v6964 = vld [vmem:[#allocation2 + $0x14] sm:$0x3]
        %v6965 = vmul.bf16 %v6962, %v799
        %v6966 = vmul.bf16 %v6963, %v801
        %v6967 = vmul.bf16 %v6964, %v797
        %v6968 = vld [vmem:[%s3] sm:$0x3]
        %v6971 = vunpack.c.l.s4 1983009808
        %v6972 = vunpack.c.0.s8 %v6971
        %v6973 = vlaneseq
        %v6974 = vshrl.u32 %v6973, 7
        %v6975 = vsub.s32 %v6972, %v6974
        %v6976 = vrot.slane %v6968, %v6975
        %6977 = vrot.lane.b32.xlu0 %v6976, 52
        %v6978 = vpop.permute.xlu0 %6977
        %v6982 = vcombine.high %v6965, %v6965
        %v6984 = vunpack.c.l.s4 1983009808
        %v6985 = vunpack.c.0.s8 %v6984
        %v6986 = vlaneseq
        %v6987 = vshrl.u32 %v6986, 7
        %v6988 = vsub.s32 %v6985, %v6987
        %v6989 = vrot.slane %v6965, %v6988
        %v6991 = vunpack.c.l.s4 1983009808
        %v6992 = vunpack.c.0.s8 %v6991
        %v6993 = vlaneseq
        %v6994 = vshrl.u32 %v6993, 7
        %v6995 = vsub.s32 %v6992, %v6994
        %v6996 = vrot.slane %v6982, %v6995
        %v6997 = vcombine.high %v6989, %v6989
        %v6998 = vcombine.high %v6996, %v6996
        %v6999 = vcombine.high %v6966, %v6966
        %v7001 = vunpack.c.l.s4 1983009808
        %v7002 = vunpack.c.0.s8 %v7001
        %v7003 = vlaneseq
        %v7004 = vshrl.u32 %v7003, 7
        %v7005 = vsub.s32 %v7002, %v7004
        %v7006 = vrot.slane %v6966, %v7005
        %v7008 = vunpack.c.l.s4 1983009808
        %v7009 = vunpack.c.0.s8 %v7008
        %v7010 = vlaneseq
        %v7011 = vshrl.u32 %v7010, 7
        %v7012 = vsub.s32 %v7009, %v7011
        %v7013 = vrot.slane %v6999, %v7012
        %v7014 = vcombine.high %v7006, %v7006
        %v7015 = vcombine.high %v7013, %v7013
        %v7017 = vunpack.c.l.s4 1983009808
        %v7018 = vunpack.c.0.s8 %v7017
        %v7019 = vlaneseq
        %v7020 = vshrl.u32 %v7019, 7
        %v7021 = vsub.s32 %v7018, %v7020
        %v7022 = vrot.slane %v6967, %v7021
        %7023 = vrot.lane.b32.xlu0 %v6989, 8
        %v7024 = vpop.permute.xlu0 %7023
        %7025 = vrot.lane.b32.xlu0 %v6997, 8
        %v7026 = vpop.permute.xlu0 %7025
        %7027 = vrot.lane.b32.xlu0 %v6996, 8
        %v7028 = vpop.permute.xlu0 %7027
        %7029 = vrot.lane.b32.xlu0 %v6998, 8
        %v7030 = vpop.permute.xlu0 %7029
        %7031 = vrot.lane.b32.xlu0 %v7006, 8
        %v7032 = vpop.permute.xlu0 %7031
        %7033 = vrot.lane.b32.xlu0 %v7014, 8
        %v7034 = vpop.permute.xlu0 %7033
        %7035 = vrot.lane.b32.xlu0 %v7013, 8
        %v7036 = vpop.permute.xlu0 %7035
        %7037 = vrot.lane.b32.xlu0 %v7015, 8
        %v7038 = vpop.permute.xlu0 %7037
        %7039 = vrot.lane.b32.xlu0 %v7022, 8
        %v7040 = vpop.permute.xlu0 %7039
        %v7041 = vsel %vm880, %v7024, %v7026
        %v7042 = vsel %vm880, %v7026, %v7028
        %v7043 = vsel %vm880, %v7028, %v7030
        %v7044 = vsel %vm880, %v7030, %v7032
        %v7045 = vsel %vm880, %v7032, %v7034
        %v7046 = vsel %vm880, %v7034, %v7036
        %v7047 = vsel %vm880, %v7036, %v7038
        %v7048 = vsel %vm880, %v7038, %v7040
        %v7050 = vsel %vm889, %v6978, 0
        %v7053 = vsel %vm893, %v7041, 0
        %v7056 = vsel %vm893, %v7042, 0
        %v7059 = vsel %vm893, %v7043, 0
        %v7062 = vsel %vm893, %v7044, 0
        %v7065 = vsel %vm893, %v7045, 0
        %v7068 = vsel %vm893, %v7046, 0
        %v7071 = vsel %vm893, %v7047, 0
        %v7074 = vsel %vm893, %v7048, 0
        %7076 = vmatprep.subr.bf16.mxu0 %v7056
        %7077 = vmatpush1.bf16.msra.mxu0 %v7053
        %7078 = vmatprep.subr.bf16.mxu0 0
        %7079 = vmatpush1.bf16.msra.mxu0 0
        %7080 = vmatprep.subr.bf16.mxu0 0
        %7081 = vmatpush1.bf16.msra.mxu0 0
        %7082 = vmatprep.subr.bf16.mxu0 0
        %7083 = vmatpush1.bf16.msra.mxu0 0
        %7084 = vmatprep.subr.bf16.mxu0 0
        %7085 = vmatpush1.bf16.msra.mxu0 0
        %7086 = vmatprep.subr.bf16.mxu0 0
        %7087 = vmatpush1.bf16.msra.mxu0 0
        %7088 = vmatprep.subr.bf16.mxu0 0
        %7089 = vmatpush1.bf16.msra.mxu0 0
        %7090 = vmatprep.subr.bf16.mxu0 0
        %7091 = vmatpush1.bf16.msra.mxu0 0
        %7092 = vmatprep.subr.bf16.mxu0 0
        %7093 = vmatpush1.bf16.msra.mxu0 0
        %7094 = vmatprep.subr.bf16.mxu0 0
        %7095 = vmatpush1.bf16.msra.mxu0 0
        %7096 = vmatprep.subr.bf16.mxu0 0
        %7097 = vmatpush1.bf16.msra.mxu0 0
        %7098 = vmatprep.subr.bf16.mxu0 0
        %7099 = vmatpush1.bf16.msra.mxu0 0
        %7100 = vmatprep.subr.bf16.mxu0 0
        %7101 = vmatpush1.bf16.msra.mxu0 0
        %7102 = vmatprep.subr.bf16.mxu0 0
        %7103 = vmatpush1.bf16.msra.mxu0 0
        %7104 = vmatprep.subr.bf16.mxu0 0
        %7105 = vmatpush1.bf16.msra.mxu0 0
        %7106 = vmatprep.subr.bf16.mxu0 0
        %7107 = vmatpush1.bf16.msra.mxu0 0
        %7108 = vmatprep.mubr.bf16.mxu0 0
        %7109 = vmatmul.mubr.bf16.gmra.mrb[0].mxu0 %v7050
        %v7110 = vpop.f32.mrb[0].mxu0
        %v7111 = vadd.f32 0.0, %v7110
        %v7112 = vpop.f32.mrb[0].mxu0
        %v7113 = vadd.f32 0.0, %v7112
        %v7114 = vpop.f32.mrb[0].mxu0
        %v7115 = vpop.f32.mrb[0].mxu0
        %7116 = vdwg.mxu0
        %7117 = vmatprep.subr.bf16.mxu0 %v7062
        %7118 = vmatpush1.bf16.msra.mxu0 %v7059
        %7119 = vmatprep.subr.bf16.mxu0 0
        %7120 = vmatpush1.bf16.msra.mxu0 0
        %7121 = vmatprep.subr.bf16.mxu0 0
        %7122 = vmatpush1.bf16.msra.mxu0 0
        %7123 = vmatprep.subr.bf16.mxu0 0
        %7124 = vmatpush1.bf16.msra.mxu0 0
        %7125 = vmatprep.subr.bf16.mxu0 0
        %7126 = vmatpush1.bf16.msra.mxu0 0
        %7127 = vmatprep.subr.bf16.mxu0 0
        %7128 = vmatpush1.bf16.msra.mxu0 0
        %7129 = vmatprep.subr.bf16.mxu0 0
        %7130 = vmatpush1.bf16.msra.mxu0 0
        %7131 = vmatprep.subr.bf16.mxu0 0
        %7132 = vmatpush1.bf16.msra.mxu0 0
        %7133 = vmatprep.subr.bf16.mxu0 0
        %7134 = vmatpush1.bf16.msra.mxu0 0
        %7135 = vmatprep.subr.bf16.mxu0 0
        %7136 = vmatpush1.bf16.msra.mxu0 0
        %7137 = vmatprep.subr.bf16.mxu0 0
        %7138 = vmatpush1.bf16.msra.mxu0 0
        %7139 = vmatprep.subr.bf16.mxu0 0
        %7140 = vmatpush1.bf16.msra.mxu0 0
        %7141 = vmatprep.subr.bf16.mxu0 0
        %7142 = vmatpush1.bf16.msra.mxu0 0
        %7143 = vmatprep.subr.bf16.mxu0 0
        %7144 = vmatpush1.bf16.msra.mxu0 0
        %7145 = vmatprep.subr.bf16.mxu0 0
        %7146 = vmatpush1.bf16.msra.mxu0 0
        %7147 = vmatprep.subr.bf16.mxu0 0
        %7148 = vmatpush1.bf16.msra.mxu0 0
        %7149 = vmatprep.mubr.bf16.mxu0 0
        %7150 = vmatmul.mubr.bf16.gmra.mrb[0].mxu0 %v7050
        %v7151 = vpop.f32.mrb[0].mxu0
        %v7152 = vadd.f32 0.0, %v7151
        %v7153 = vpop.f32.mrb[0].mxu0
        %v7154 = vadd.f32 0.0, %v7153
        %v7155 = vpop.f32.mrb[0].mxu0
        %v7156 = vpop.f32.mrb[0].mxu0
        %7157 = vdwg.mxu0
        %7158 = vmatprep.subr.bf16.mxu0 %v7068
        %7159 = vmatpush1.bf16.msra.mxu0 %v7065
        %7160 = vmatprep.subr.bf16.mxu0 0
        %7161 = vmatpush1.bf16.msra.mxu0 0
        %7162 = vmatprep.subr.bf16.mxu0 0
        %7163 = vmatpush1.bf16.msra.mxu0 0
        %7164 = vmatprep.subr.bf16.mxu0 0
        %7165 = vmatpush1.bf16.msra.mxu0 0
        %7166 = vmatprep.subr.bf16.mxu0 0
        %7167 = vmatpush1.bf16.msra.mxu0 0
        %7168 = vmatprep.subr.bf16.mxu0 0
        %7169 = vmatpush1.bf16.msra.mxu0 0
        %7170 = vmatprep.subr.bf16.mxu0 0
        %7171 = vmatpush1.bf16.msra.mxu0 0
        %7172 = vmatprep.subr.bf16.mxu0 0
        %7173 = vmatpush1.bf16.msra.mxu0 0
        %7174 = vmatprep.subr.bf16.mxu0 0
        %7175 = vmatpush1.bf16.msra.mxu0 0
        %7176 = vmatprep.subr.bf16.mxu0 0
        %7177 = vmatpush1.bf16.msra.mxu0 0
        %7178 = vmatprep.subr.bf16.mxu0 0
        %7179 = vmatpush1.bf16.msra.mxu0 0
        %7180 = vmatprep.subr.bf16.mxu0 0
        %7181 = vmatpush1.bf16.msra.mxu0 0
        %7182 = vmatprep.subr.bf16.mxu0 0
        %7183 = vmatpush1.bf16.msra.mxu0 0
        %7184 = vmatprep.subr.bf16.mxu0 0
        %7185 = vmatpush1.bf16.msra.mxu0 0
        %7186 = vmatprep.subr.bf16.mxu0 0
        %7187 = vmatpush1.bf16.msra.mxu0 0
        %7188 = vmatprep.subr.bf16.mxu0 0
        %7189 = vmatpush1.bf16.msra.mxu0 0
        %7190 = vmatprep.mubr.bf16.mxu0 0
        %7191 = vmatmul.mubr.bf16.gmra.mrb[0].mxu0 %v7050
        %v7192 = vpop.f32.mrb[0].mxu0
        %v7193 = vadd.f32 0.0, %v7192
        %v7194 = vpop.f32.mrb[0].mxu0
        %v7195 = vadd.f32 0.0, %v7194
        %v7196 = vpop.f32.mrb[0].mxu0
        %v7197 = vpop.f32.mrb[0].mxu0
        %7198 = vdwg.mxu0
        %7199 = vmatprep.subr.bf16.mxu0 %v7074
        %7200 = vmatpush1.bf16.msra.mxu0 %v7071
        %7201 = vmatprep.subr.bf16.mxu0 0
        %7202 = vmatpush1.bf16.msra.mxu0 0
        %7203 = vmatprep.subr.bf16.mxu0 0
        %7204 = vmatpush1.bf16.msra.mxu0 0
        %7205 = vmatprep.subr.bf16.mxu0 0
        %7206 = vmatpush1.bf16.msra.mxu0 0
        %7207 = vmatprep.subr.bf16.mxu0 0
        %7208 = vmatpush1.bf16.msra.mxu0 0
        %7209 = vmatprep.subr.bf16.mxu0 0
        %7210 = vmatpush1.bf16.msra.mxu0 0
        %7211 = vmatprep.subr.bf16.mxu0 0
        %7212 = vmatpush1.bf16.msra.mxu0 0
        %7213 = vmatprep.subr.bf16.mxu0 0
        %7214 = vmatpush1.bf16.msra.mxu0 0
        %7215 = vmatprep.subr.bf16.mxu0 0
        %7216 = vmatpush1.bf16.msra.mxu0 0
        %7217 = vmatprep.subr.bf16.mxu0 0
        %7218 = vmatpush1.bf16.msra.mxu0 0
        %7219 = vmatprep.subr.bf16.mxu0 0
        %7220 = vmatpush1.bf16.msra.mxu0 0
        %7221 = vmatprep.subr.bf16.mxu0 0
        %7222 = vmatpush1.bf16.msra.mxu0 0
        %7223 = vmatprep.subr.bf16.mxu0 0
        %7224 = vmatpush1.bf16.msra.mxu0 0
        %7225 = vmatprep.subr.bf16.mxu0 0
        %7226 = vmatpush1.bf16.msra.mxu0 0
        %7227 = vmatprep.subr.bf16.mxu0 0
        %7228 = vmatpush1.bf16.msra.mxu0 0
        %7229 = vmatprep.subr.bf16.mxu0 0
        %7230 = vmatpush1.bf16.msra.mxu0 0
        %7231 = vmatprep.mubr.bf16.mxu0 0
        %7232 = vmatmul.mubr.bf16.gmra.mrb[0].mxu0 %v7050
        %v7233 = vpop.f32.mrb[0].mxu0
        %v7234 = vadd.f32 0.0, %v7233
        %v7235 = vpop.f32.mrb[0].mxu0
        %v7236 = vadd.f32 0.0, %v7235
        %v7237 = vpop.f32.mrb[0].mxu0
        %v7238 = vpop.f32.mrb[0].mxu0
        %7239 = vdwg.mxu0
        %v7240 = vadd.f32 %v6954, %v7111
        %v7241 = vadd.f32 %v6955, %v7113
        %v7242 = vadd.f32 %v6956, %v7152
        %v7243 = vadd.f32 %v6957, %v7154
        %v7244 = vadd.f32 %v6958, %v7193
        %v7245 = vadd.f32 %v6959, %v7195
        %v7246 = vadd.f32 %v6960, %v7234
        %v7247 = vadd.f32 %v6961, %v7236
        %v7248 = vld [vmem:[#allocation2 + $0x4] sm:$0xff]
        %v7249 = vld [vmem:[#allocation2 + $0xc] sm:$0xff]
        %v7250 = vld [vmem:[#allocation2 + $0x14] sm:$0x3]
        %v7251 = vmul.bf16 %v7248, %v1476
        %v7252 = vmul.bf16 %v7249, %v1478
        %v7253 = vmul.bf16 %v7250, %v1474
        %v7254 = vld [vmem:[%s3] sm:$0x3]
        %v7257 = vunpack.c.l.s4 1983009808
        %v7258 = vunpack.c.0.s8 %v7257
        %v7259 = vlaneseq
        %v7260 = vshrl.u32 %v7259, 7
        %v7261 = vsub.s32 %v7258, %v7260
        %v7262 = vrot.slane %v7254, %v7261
        %7263 = vrot.lane.b32.xlu0 %v7262, 48
        %v7264 = vpop.permute.xlu0 %7263
        %v7268 = vcombine.high %v7251, %v7251
        %v7270 = vunpack.c.l.s4 1983009808
        %v7271 = vunpack.c.0.s8 %v7270
        %v7272 = vlaneseq
        %v7273 = vshrl.u32 %v7272, 7
        %v7274 = vsub.s32 %v7271, %v7273
        %v7275 = vrot.slane %v7251, %v7274
        %v7277 = vunpack.c.l.s4 1983009808
        %v7278 = vunpack.c.0.s8 %v7277
        %v7279 = vlaneseq
        %v7280 = vshrl.u32 %v7279, 7
        %v7281 = vsub.s32 %v7278, %v7280
        %v7282 = vrot.slane %v7268, %v7281
        %v7283 = vcombine.high %v7275, %v7275
        %v7284 = vcombine.high %v7282, %v7282
        %v7285 = vcombine.high %v7252, %v7252
        %v7287 = vunpack.c.l.s4 1983009808
        %v7288 = vunpack.c.0.s8 %v7287
        %v7289 = vlaneseq
        %v7290 = vshrl.u32 %v7289, 7
        %v7291 = vsub.s32 %v7288, %v7290
        %v7292 = vrot.slane %v7252, %v7291
        %v7294 = vunpack.c.l.s4 1983009808
        %v7295 = vunpack.c.0.s8 %v7294
        %v7296 = vlaneseq
        %v7297 = vshrl.u32 %v7296, 7
        %v7298 = vsub.s32 %v7295, %v7297
        %v7299 = vrot.slane %v7285, %v7298
        %v7300 = vcombine.high %v7292, %v7292
        %v7301 = vcombine.high %v7299, %v7299
        %v7303 = vunpack.c.l.s4 1983009808
        %v7304 = vunpack.c.0.s8 %v7303
        %v7305 = vlaneseq
        %v7306 = vshrl.u32 %v7305, 7
        %v7307 = vsub.s32 %v7304, %v7306
        %v7308 = vrot.slane %v7253, %v7307
        %7309 = vrot.lane.b32.xlu0 %v7275, 7
        %v7310 = vpop.permute.xlu0 %7309
        %7311 = vrot.lane.b32.xlu0 %v7283, 7
        %v7312 = vpop.permute.xlu0 %7311
        %7313 = vrot.lane.b32.xlu0 %v7282, 7
        %v7314 = vpop.permute.xlu0 %7313
        %7315 = vrot.lane.b32.xlu0 %v7284, 7
        %v7316 = vpop.permute.xlu0 %7315
        %7317 = vrot.lane.b32.xlu0 %v7292, 7
        %v7318 = vpop.permute.xlu0 %7317
        %7319 = vrot.lane.b32.xlu0 %v7300, 7
        %v7320 = vpop.permute.xlu0 %7319
        %7321 = vrot.lane.b32.xlu0 %v7299, 7
        %v7322 = vpop.permute.xlu0 %7321
        %7323 = vrot.lane.b32.xlu0 %v7301, 7
        %v7324 = vpop.permute.xlu0 %7323
        %7325 = vrot.lane.b32.xlu0 %v7308, 7
        %v7326 = vpop.permute.xlu0 %7325
        %v7327 = vsel %vm1558, %v7310, %v7312
        %v7328 = vsel %vm1558, %v7312, %v7314
        %v7329 = vsel %vm1558, %v7314, %v7316
        %v7330 = vsel %vm1558, %v7316, %v7318
        %v7331 = vsel %vm1558, %v7318, %v7320
        %v7332 = vsel %vm1558, %v7320, %v7322
        %v7333 = vsel %vm1558, %v7322, %v7324
        %v7334 = vsel %vm1558, %v7324, %v7326
        %v7336 = vsel %vm889, %v7264, 0
        %v7339 = vsel %vm893, %v7327, 0
        %v7342 = vsel %vm893, %v7328, 0
        %v7345 = vsel %vm893, %v7329, 0
        %v7348 = vsel %vm893, %v7330, 0
        %v7351 = vsel %vm893, %v7331, 0
        %v7354 = vsel %vm893, %v7332, 0
        %v7357 = vsel %vm893, %v7333, 0
        %v7360 = vsel %vm893, %v7334, 0
        %7362 = vmatprep.subr.bf16.mxu0 %v7342
        %7363 = vmatpush1.bf16.msra.mxu0 %v7339
        %7364 = vmatprep.subr.bf16.mxu0 0
        %7365 = vmatpush1.bf16.msra.mxu0 0
        %7366 = vmatprep.subr.bf16.mxu0 0
        %7367 = vmatpush1.bf16.msra.mxu0 0
        %7368 = vmatprep.subr.bf16.mxu0 0
        %7369 = vmatpush1.bf16.msra.mxu0 0
        %7370 = vmatprep.subr.bf16.mxu0 0
        %7371 = vmatpush1.bf16.msra.mxu0 0
        %7372 = vmatprep.subr.bf16.mxu0 0
        %7373 = vmatpush1.bf16.msra.mxu0 0
        %7374 = vmatprep.subr.bf16.mxu0 0
        %7375 = vmatpush1.bf16.msra.mxu0 0
        %7376 = vmatprep.subr.bf16.mxu0 0
        %7377 = vmatpush1.bf16.msra.mxu0 0
        %7378 = vmatprep.subr.bf16.mxu0 0
        %7379 = vmatpush1.bf16.msra.mxu0 0
        %7380 = vmatprep.subr.bf16.mxu0 0
        %7381 = vmatpush1.bf16.msra.mxu0 0
        %7382 = vmatprep.subr.bf16.mxu0 0
        %7383 = vmatpush1.bf16.msra.mxu0 0
        %7384 = vmatprep.subr.bf16.mxu0 0
        %7385 = vmatpush1.bf16.msra.mxu0 0
        %7386 = vmatprep.subr.bf16.mxu0 0
        %7387 = vmatpush1.bf16.msra.mxu0 0
        %7388 = vmatprep.subr.bf16.mxu0 0
        %7389 = vmatpush1.bf16.msra.mxu0 0
        %7390 = vmatprep.subr.bf16.mxu0 0
        %7391 = vmatpush1.bf16.msra.mxu0 0
        %7392 = vmatprep.subr.bf16.mxu0 0
        %7393 = vmatpush1.bf16.msra.mxu0 0
        %7394 = vmatprep.mubr.bf16.mxu0 0
        %7395 = vmatmul.mubr.bf16.gmra.mrb[0].mxu0 %v7336
        %v7396 = vpop.f32.mrb[0].mxu0
        %v7397 = vadd.f32 0.0, %v7396
        %v7398 = vpop.f32.mrb[0].mxu0
        %v7399 = vadd.f32 0.0, %v7398
        %v7400 = vpop.f32.mrb[0].mxu0
        %v7401 = vpop.f32.mrb[0].mxu0
        %7402 = vdwg.mxu0
        %7403 = vmatprep.subr.bf16.mxu0 %v7348
        %7404 = vmatpush1.bf16.msra.mxu0 %v7345
        %7405 = vmatprep.subr.bf16.mxu0 0
        %7406 = vmatpush1.bf16.msra.mxu0 0
        %7407 = vmatprep.subr.bf16.mxu0 0
        %7408 = vmatpush1.bf16.msra.mxu0 0
        %7409 = vmatprep.subr.bf16.mxu0 0
        %7410 = vmatpush1.bf16.msra.mxu0 0
        %7411 = vmatprep.subr.bf16.mxu0 0
        %7412 = vmatpush1.bf16.msra.mxu0 0
        %7413 = vmatprep.subr.bf16.mxu0 0
        %7414 = vmatpush1.bf16.msra.mxu0 0
        %7415 = vmatprep.subr.bf16.mxu0 0
        %7416 = vmatpush1.bf16.msra.mxu0 0
        %7417 = vmatprep.subr.bf16.mxu0 0
        %7418 = vmatpush1.bf16.msra.mxu0 0
        %7419 = vmatprep.subr.bf16.mxu0 0
        %7420 = vmatpush1.bf16.msra.mxu0 0
        %7421 = vmatprep.subr.bf16.mxu0 0
        %7422 = vmatpush1.bf16.msra.mxu0 0
        %7423 = vmatprep.subr.bf16.mxu0 0
        %7424 = vmatpush1.bf16.msra.mxu0 0
        %7425 = vmatprep.subr.bf16.mxu0 0
        %7426 = vmatpush1.bf16.msra.mxu0 0
        %7427 = vmatprep.subr.bf16.mxu0 0
        %7428 = vmatpush1.bf16.msra.mxu0 0
        %7429 = vmatprep.subr.bf16.mxu0 0
        %7430 = vmatpush1.bf16.msra.mxu0 0
        %7431 = vmatprep.subr.bf16.mxu0 0
        %7432 = vmatpush1.bf16.msra.mxu0 0
        %7433 = vmatprep.subr.bf16.mxu0 0
        %7434 = vmatpush1.bf16.msra.mxu0 0
        %7435 = vmatprep.mubr.bf16.mxu0 0
        %7436 = vmatmul.mubr.bf16.gmra.mrb[0].mxu0 %v7336
        %v7437 = vpop.f32.mrb[0].mxu0
        %v7438 = vadd.f32 0.0, %v7437
        %v7439 = vpop.f32.mrb[0].mxu0
        %v7440 = vadd.f32 0.0, %v7439
        %v7441 = vpop.f32.mrb[0].mxu0
        %v7442 = vpop.f32.mrb[0].mxu0
        %7443 = vdwg.mxu0
        %7444 = vmatprep.subr.bf16.mxu0 %v7354
        %7445 = vmatpush1.bf16.msra.mxu0 %v7351
        %7446 = vmatprep.subr.bf16.mxu0 0
        %7447 = vmatpush1.bf16.msra.mxu0 0
        %7448 = vmatprep.subr.bf16.mxu0 0
        %7449 = vmatpush1.bf16.msra.mxu0 0
        %7450 = vmatprep.subr.bf16.mxu0 0
        %7451 = vmatpush1.bf16.msra.mxu0 0
        %7452 = vmatprep.subr.bf16.mxu0 0
        %7453 = vmatpush1.bf16.msra.mxu0 0
        %7454 = vmatprep.subr.bf16.mxu0 0
        %7455 = vmatpush1.bf16.msra.mxu0 0
        %7456 = vmatprep.subr.bf16.mxu0 0
        %7457 = vmatpush1.bf16.msra.mxu0 0
        %7458 = vmatprep.subr.bf16.mxu0 0
        %7459 = vmatpush1.bf16.msra.mxu0 0
        %7460 = vmatprep.subr.bf16.mxu0 0
        %7461 = vmatpush1.bf16.msra.mxu0 0
        %7462 = vmatprep.subr.bf16.mxu0 0
        %7463 = vmatpush1.bf16.msra.mxu0 0
        %7464 = vmatprep.subr.bf16.mxu0 0
        %7465 = vmatpush1.bf16.msra.mxu0 0
        %7466 = vmatprep.subr.bf16.mxu0 0
        %7467 = vmatpush1.bf16.msra.mxu0 0
        %7468 = vmatprep.subr.bf16.mxu0 0
        %7469 = vmatpush1.bf16.msra.mxu0 0
        %7470 = vmatprep.subr.bf16.mxu0 0
        %7471 = vmatpush1.bf16.msra.mxu0 0
        %7472 = vmatprep.subr.bf16.mxu0 0
        %7473 = vmatpush1.bf16.msra.mxu0 0
        %7474 = vmatprep.subr.bf16.mxu0 0
        %7475 = vmatpush1.bf16.msra.mxu0 0
        %7476 = vmatprep.mubr.bf16.mxu0 0
        %7477 = vmatmul.mubr.bf16.gmra.mrb[0].mxu0 %v7336
        %v7478 = vpop.f32.mrb[0].mxu0
        %v7479 = vadd.f32 0.0, %v7478
        %v7480 = vpop.f32.mrb[0].mxu0
        %v7481 = vadd.f32 0.0, %v7480
        %v7482 = vpop.f32.mrb[0].mxu0
        %v7483 = vpop.f32.mrb[0].mxu0
        %7484 = vdwg.mxu0
        %7485 = vmatprep.subr.bf16.mxu0 %v7360
        %7486 = vmatpush1.bf16.msra.mxu0 %v7357
        %7487 = vmatprep.subr.bf16.mxu0 0
        %7488 = vmatpush1.bf16.msra.mxu0 0
        %7489 = vmatprep.subr.bf16.mxu0 0
        %7490 = vmatpush1.bf16.msra.mxu0 0
        %7491 = vmatprep.subr.bf16.mxu0 0
        %7492 = vmatpush1.bf16.msra.mxu0 0
        %7493 = vmatprep.subr.bf16.mxu0 0
        %7494 = vmatpush1.bf16.msra.mxu0 0
        %7495 = vmatprep.subr.bf16.mxu0 0
        %7496 = vmatpush1.bf16.msra.mxu0 0
        %7497 = vmatprep.subr.bf16.mxu0 0
        %7498 = vmatpush1.bf16.msra.mxu0 0
        %7499 = vmatprep.subr.bf16.mxu0 0
        %7500 = vmatpush1.bf16.msra.mxu0 0
        %7501 = vmatprep.subr.bf16.mxu0 0
        %7502 = vmatpush1.bf16.msra.mxu0 0
        %7503 = vmatprep.subr.bf16.mxu0 0
        %7504 = vmatpush1.bf16.msra.mxu0 0
        %7505 = vmatprep.subr.bf16.mxu0 0
        %7506 = vmatpush1.bf16.msra.mxu0 0
        %7507 = vmatprep.subr.bf16.mxu0 0
        %7508 = vmatpush1.bf16.msra.mxu0 0
        %7509 = vmatprep.subr.bf16.mxu0 0
        %7510 = vmatpush1.bf16.msra.mxu0 0
        %7511 = vmatprep.subr.bf16.mxu0 0
        %7512 = vmatpush1.bf16.msra.mxu0 0
        %7513 = vmatprep.subr.bf16.mxu0 0
        %7514 = vmatpush1.bf16.msra.mxu0 0
        %7515 = vmatprep.subr.bf16.mxu0 0
        %7516 = vmatpush1.bf16.msra.mxu0 0
        %7517 = vmatprep.mubr.bf16.mxu0 0
        %7518 = vmatmul.mubr.bf16.gmra.mrb[0].mxu0 %v7336
        %v7519 = vpop.f32.mrb[0].mxu0
        %v7520 = vadd.f32 0.0, %v7519
        %v7521 = vpop.f32.mrb[0].mxu0
        %v7522 = vadd.f32 0.0, %v7521
        %v7523 = vpop.f32.mrb[0].mxu0
        %v7524 = vpop.f32.mrb[0].mxu0
        %7525 = vdwg.mxu0
        %v7526 = vadd.f32 %v7240, %v7397
        %v7527 = vadd.f32 %v7241, %v7399
        %v7528 = vadd.f32 %v7242, %v7438
        %v7529 = vadd.f32 %v7243, %v7440
        %v7530 = vadd.f32 %v7244, %v7479
        %v7531 = vadd.f32 %v7245, %v7481
        %v7532 = vadd.f32 %v7246, %v7520
        %v7533 = vadd.f32 %v7247, %v7522
        %v7534 = vld [vmem:[#allocation2 + $0x4] sm:$0xff]
        %v7535 = vld [vmem:[#allocation2 + $0xc] sm:$0xff]
        %v7536 = vld [vmem:[#allocation2 + $0x14] sm:$0x3]
        %v7537 = vmul.bf16 %v7534, %v1906
        %v7538 = vmul.bf16 %v7535, %v1908
        %v7539 = vmul.bf16 %v7536, %v1904
        %v7540 = vld [vmem:[%s3] sm:$0x3]
        %v7543 = vunpack.c.l.s4 1983009808
        %v7544 = vunpack.c.0.s8 %v7543
        %v7545 = vlaneseq
        %v7546 = vshrl.u32 %v7545, 7
        %v7547 = vsub.s32 %v7544, %v7546
        %v7548 = vrot.slane %v7540, %v7547
        %7549 = vrot.lane.b32.xlu0 %v7548, 44
        %v7550 = vpop.permute.xlu0 %7549
        %v7554 = vcombine.high %v7537, %v7537
        %v7556 = vunpack.c.l.s4 1983009808
        %v7557 = vunpack.c.0.s8 %v7556
        %v7558 = vlaneseq
        %v7559 = vshrl.u32 %v7558, 7
        %v7560 = vsub.s32 %v7557, %v7559
        %v7561 = vrot.slane %v7537, %v7560
        %v7563 = vunpack.c.l.s4 1983009808
        %v7564 = vunpack.c.0.s8 %v7563
        %v7565 = vlaneseq
        %v7566 = vshrl.u32 %v7565, 7
        %v7567 = vsub.s32 %v7564, %v7566
        %v7568 = vrot.slane %v7554, %v7567
        %v7569 = vcombine.high %v7561, %v7561
        %v7570 = vcombine.high %v7568, %v7568
        %v7571 = vcombine.high %v7538, %v7538
        %v7573 = vunpack.c.l.s4 1983009808
        %v7574 = vunpack.c.0.s8 %v7573
        %v7575 = vlaneseq
        %v7576 = vshrl.u32 %v7575, 7
        %v7577 = vsub.s32 %v7574, %v7576
        %v7578 = vrot.slane %v7538, %v7577
        %v7580 = vunpack.c.l.s4 1983009808
        %v7581 = vunpack.c.0.s8 %v7580
        %v7582 = vlaneseq
        %v7583 = vshrl.u32 %v7582, 7
        %v7584 = vsub.s32 %v7581, %v7583
        %v7585 = vrot.slane %v7571, %v7584
        %v7586 = vcombine.high %v7578, %v7578
        %v7587 = vcombine.high %v7585, %v7585
        %v7589 = vunpack.c.l.s4 1983009808
        %v7590 = vunpack.c.0.s8 %v7589
        %v7591 = vlaneseq
        %v7592 = vshrl.u32 %v7591, 7
        %v7593 = vsub.s32 %v7590, %v7592
        %v7594 = vrot.slane %v7539, %v7593
        %7595 = vrot.lane.b32.xlu0 %v7561, 1
        %v7596 = vpop.permute.xlu0 %7595
        %7597 = vrot.lane.b32.xlu0 %v7569, 1
        %v7598 = vpop.permute.xlu0 %7597
        %7599 = vrot.lane.b32.xlu0 %v7568, 1
        %v7600 = vpop.permute.xlu0 %7599
        %7601 = vrot.lane.b32.xlu0 %v7570, 1
        %v7602 = vpop.permute.xlu0 %7601
        %7603 = vrot.lane.b32.xlu0 %v7578, 1
        %v7604 = vpop.permute.xlu0 %7603
        %7605 = vrot.lane.b32.xlu0 %v7586, 1
        %v7606 = vpop.permute.xlu0 %7605
        %7607 = vrot.lane.b32.xlu0 %v7585, 1
        %v7608 = vpop.permute.xlu0 %7607
        %7609 = vrot.lane.b32.xlu0 %v7587, 1
        %v7610 = vpop.permute.xlu0 %7609
        %7611 = vrot.lane.b32.xlu0 %v7594, 1
        %v7612 = vpop.permute.xlu0 %7611
        %v7613 = vsel %vm1988, %v7596, %v7598
        %v7614 = vsel %vm1988, %v7598, %v7600
        %v7615 = vsel %vm1988, %v7600, %v7602
        %v7616 = vsel %vm1988, %v7602, %v7604
        %v7617 = vsel %vm1988, %v7604, %v7606
        %v7618 = vsel %vm1988, %v7606, %v7608
        %v7619 = vsel %vm1988, %v7608, %v7610
        %v7620 = vsel %vm1988, %v7610, %v7612
        %v7622 = vsel %vm889, %v7550, 0
        %v7625 = vsel %vm893, %v7613, 0
        %v7628 = vsel %vm893, %v7614, 0
        %v7631 = vsel %vm893, %v7615, 0
        %v7634 = vsel %vm893, %v7616, 0
        %v7637 = vsel %vm893, %v7617, 0
        %v7640 = vsel %vm893, %v7618, 0
        %v7643 = vsel %vm893, %v7619, 0
        %v7646 = vsel %vm893, %v7620, 0
        %7648 = vmatprep.subr.bf16.mxu0 %v7628
        %7649 = vmatpush1.bf16.msra.mxu0 %v7625
        %7650 = vmatprep.subr.bf16.mxu0 0
        %7651 = vmatpush1.bf16.msra.mxu0 0
        %7652 = vmatprep.subr.bf16.mxu0 0
        %7653 = vmatpush1.bf16.msra.mxu0 0
        %7654 = vmatprep.subr.bf16.mxu0 0
        %7655 = vmatpush1.bf16.msra.mxu0 0
        %7656 = vmatprep.subr.bf16.mxu0 0
        %7657 = vmatpush1.bf16.msra.mxu0 0
        %7658 = vmatprep.subr.bf16.mxu0 0
        %7659 = vmatpush1.bf16.msra.mxu0 0
        %7660 = vmatprep.subr.bf16.mxu0 0
        %7661 = vmatpush1.bf16.msra.mxu0 0
        %7662 = vmatprep.subr.bf16.mxu0 0
        %7663 = vmatpush1.bf16.msra.mxu0 0
        %7664 = vmatprep.subr.bf16.mxu0 0
        %7665 = vmatpush1.bf16.msra.mxu0 0
        %7666 = vmatprep.subr.bf16.mxu0 0
        %7667 = vmatpush1.bf16.msra.mxu0 0
        %7668 = vmatprep.subr.bf16.mxu0 0
        %7669 = vmatpush1.bf16.msra.mxu0 0
        %7670 = vmatprep.subr.bf16.mxu0 0
        %7671 = vmatpush1.bf16.msra.mxu0 0
        %7672 = vmatprep.subr.bf16.mxu0 0
        %7673 = vmatpush1.bf16.msra.mxu0 0
        %7674 = vmatprep.subr.bf16.mxu0 0
        %7675 = vmatpush1.bf16.msra.mxu0 0
        %7676 = vmatprep.subr.bf16.mxu0 0
        %7677 = vmatpush1.bf16.msra.mxu0 0
        %7678 = vmatprep.subr.bf16.mxu0 0
        %7679 = vmatpush1.bf16.msra.mxu0 0
        %7680 = vmatprep.mubr.bf16.mxu0 0
        %7681 = vmatmul.mubr.bf16.gmra.mrb[0].mxu0 %v7622
        %v7682 = vpop.f32.mrb[0].mxu0
        %v7683 = vadd.f32 0.0, %v7682
        %v7684 = vpop.f32.mrb[0].mxu0
        %v7685 = vadd.f32 0.0, %v7684
        %v7686 = vpop.f32.mrb[0].mxu0
        %v7687 = vpop.f32.mrb[0].mxu0
        %7688 = vdwg.mxu0
        %7689 = vmatprep.subr.bf16.mxu0 %v7634
        %7690 = vmatpush1.bf16.msra.mxu0 %v7631
        %7691 = vmatprep.subr.bf16.mxu0 0
        %7692 = vmatpush1.bf16.msra.mxu0 0
        %7693 = vmatprep.subr.bf16.mxu0 0
        %7694 = vmatpush1.bf16.msra.mxu0 0
        %7695 = vmatprep.subr.bf16.mxu0 0
        %7696 = vmatpush1.bf16.msra.mxu0 0
        %7697 = vmatprep.subr.bf16.mxu0 0
        %7698 = vmatpush1.bf16.msra.mxu0 0
        %7699 = vmatprep.subr.bf16.mxu0 0
        %7700 = vmatpush1.bf16.msra.mxu0 0
        %7701 = vmatprep.subr.bf16.mxu0 0
        %7702 = vmatpush1.bf16.msra.mxu0 0
        %7703 = vmatprep.subr.bf16.mxu0 0
        %7704 = vmatpush1.bf16.msra.mxu0 0
        %7705 = vmatprep.subr.bf16.mxu0 0
        %7706 = vmatpush1.bf16.msra.mxu0 0
        %7707 = vmatprep.subr.bf16.mxu0 0
        %7708 = vmatpush1.bf16.msra.mxu0 0
        %7709 = vmatprep.subr.bf16.mxu0 0
        %7710 = vmatpush1.bf16.msra.mxu0 0
        %7711 = vmatprep.subr.bf16.mxu0 0
        %7712 = vmatpush1.bf16.msra.mxu0 0
        %7713 = vmatprep.subr.bf16.mxu0 0
        %7714 = vmatpush1.bf16.msra.mxu0 0
        %7715 = vmatprep.subr.bf16.mxu0 0
        %7716 = vmatpush1.bf16.msra.mxu0 0
        %7717 = vmatprep.subr.bf16.mxu0 0
        %7718 = vmatpush1.bf16.msra.mxu0 0
        %7719 = vmatprep.subr.bf16.mxu0 0
        %7720 = vmatpush1.bf16.msra.mxu0 0
        %7721 = vmatprep.mubr.bf16.mxu0 0
        %7722 = vmatmul.mubr.bf16.gmra.mrb[0].mxu0 %v7622
        %v7723 = vpop.f32.mrb[0].mxu0
        %v7724 = vadd.f32 0.0, %v7723
        %v7725 = vpop.f32.mrb[0].mxu0
        %v7726 = vadd.f32 0.0, %v7725
        %v7727 = vpop.f32.mrb[0].mxu0
        %v7728 = vpop.f32.mrb[0].mxu0
        %7729 = vdwg.mxu0
        %7730 = vmatprep.subr.bf16.mxu0 %v7640
        %7731 = vmatpush1.bf16.msra.mxu0 %v7637
        %7732 = vmatprep.subr.bf16.mxu0 0
        %7733 = vmatpush1.bf16.msra.mxu0 0
        %7734 = vmatprep.subr.bf16.mxu0 0
        %7735 = vmatpush1.bf16.msra.mxu0 0
        %7736 = vmatprep.subr.bf16.mxu0 0
        %7737 = vmatpush1.bf16.msra.mxu0 0
        %7738 = vmatprep.subr.bf16.mxu0 0
        %7739 = vmatpush1.bf16.msra.mxu0 0
        %7740 = vmatprep.subr.bf16.mxu0 0
        %7741 = vmatpush1.bf16.msra.mxu0 0
        %7742 = vmatprep.subr.bf16.mxu0 0
        %7743 = vmatpush1.bf16.msra.mxu0 0
        %7744 = vmatprep.subr.bf16.mxu0 0
        %7745 = vmatpush1.bf16.msra.mxu0 0
        %7746 = vmatprep.subr.bf16.mxu0 0
        %7747 = vmatpush1.bf16.msra.mxu0 0
        %7748 = vmatprep.subr.bf16.mxu0 0
        %7749 = vmatpush1.bf16.msra.mxu0 0
        %7750 = vmatprep.subr.bf16.mxu0 0
        %7751 = vmatpush1.bf16.msra.mxu0 0
        %7752 = vmatprep.subr.bf16.mxu0 0
        %7753 = vmatpush1.bf16.msra.mxu0 0
        %7754 = vmatprep.subr.bf16.mxu0 0
        %7755 = vmatpush1.bf16.msra.mxu0 0
        %7756 = vmatprep.subr.bf16.mxu0 0
        %7757 = vmatpush1.bf16.msra.mxu0 0
        %7758 = vmatprep.subr.bf16.mxu0 0
        %7759 = vmatpush1.bf16.msra.mxu0 0
        %7760 = vmatprep.subr.bf16.mxu0 0
        %7761 = vmatpush1.bf16.msra.mxu0 0
        %7762 = vmatprep.mubr.bf16.mxu0 0
        %7763 = vmatmul.mubr.bf16.gmra.mrb[0].mxu0 %v7622
        %v7764 = vpop.f32.mrb[0].mxu0
        %v7765 = vadd.f32 0.0, %v7764
        %v7766 = vpop.f32.mrb[0].mxu0
        %v7767 = vadd.f32 0.0, %v7766
        %v7768 = vpop.f32.mrb[0].mxu0
        %v7769 = vpop.f32.mrb[0].mxu0
        %7770 = vdwg.mxu0
        %7771 = vmatprep.subr.bf16.mxu0 %v7646
        %7772 = vmatpush1.bf16.msra.mxu0 %v7643
        %7773 = vmatprep.subr.bf16.mxu0 0
        %7774 = vmatpush1.bf16.msra.mxu0 0
        %7775 = vmatprep.subr.bf16.mxu0 0
        %7776 = vmatpush1.bf16.msra.mxu0 0
        %7777 = vmatprep.subr.bf16.mxu0 0
        %7778 = vmatpush1.bf16.msra.mxu0 0
        %7779 = vmatprep.subr.bf16.mxu0 0
        %7780 = vmatpush1.bf16.msra.mxu0 0
        %7781 = vmatprep.subr.bf16.mxu0 0
        %7782 = vmatpush1.bf16.msra.mxu0 0
        %7783 = vmatprep.subr.bf16.mxu0 0
        %7784 = vmatpush1.bf16.msra.mxu0 0
        %7785 = vmatprep.subr.bf16.mxu0 0
        %7786 = vmatpush1.bf16.msra.mxu0 0
        %7787 = vmatprep.subr.bf16.mxu0 0
        %7788 = vmatpush1.bf16.msra.mxu0 0
        %7789 = vmatprep.subr.bf16.mxu0 0
        %7790 = vmatpush1.bf16.msra.mxu0 0
        %7791 = vmatprep.subr.bf16.mxu0 0
        %7792 = vmatpush1.bf16.msra.mxu0 0
        %7793 = vmatprep.subr.bf16.mxu0 0
        %7794 = vmatpush1.bf16.msra.mxu0 0
        %7795 = vmatprep.subr.bf16.mxu0 0
        %7796 = vmatpush1.bf16.msra.mxu0 0
        %7797 = vmatprep.subr.bf16.mxu0 0
        %7798 = vmatpush1.bf16.msra.mxu0 0
        %7799 = vmatprep.subr.bf16.mxu0 0
        %7800 = vmatpush1.bf16.msra.mxu0 0
        %7801 = vmatprep.subr.bf16.mxu0 0
        %7802 = vmatpush1.bf16.msra.mxu0 0
        %7803 = vmatprep.mubr.bf16.mxu0 0
        %7804 = vmatmul.mubr.bf16.gmra.mrb[0].mxu0 %v7622
        %v7805 = vpop.f32.mrb[0].mxu0
        %v7806 = vadd.f32 0.0, %v7805
        %v7807 = vpop.f32.mrb[0].mxu0
        %v7808 = vadd.f32 0.0, %v7807
        %v7809 = vpop.f32.mrb[0].mxu0
        %v7810 = vpop.f32.mrb[0].mxu0
        %7811 = vdwg.mxu0
        %v7812 = vadd.f32 %v7526, %v7683
        %v7813 = vadd.f32 %v7527, %v7685
        %v7814 = vadd.f32 %v7528, %v7724
        %v7815 = vadd.f32 %v7529, %v7726
        %v7816 = vadd.f32 %v7530, %v7765
        %v7817 = vadd.f32 %v7531, %v7767
        %v7818 = vadd.f32 %v7532, %v7806
        %v7819 = vadd.f32 %v7533, %v7808
        %v7820 = vld [vmem:[#allocation2 + $0x6] sm:$0xff]
        %v7821 = vld [vmem:[#allocation2 + $0xe] sm:$0xff]
        %v7822 = vld [vmem:[%s3] sm:$0x3]
        %v7825 = vunpack.c.l.s4 1983009808
        %v7826 = vunpack.c.0.s8 %v7825
        %v7827 = vlaneseq
        %v7828 = vshrl.u32 %v7827, 7
        %v7829 = vsub.s32 %v7826, %v7828
        %v7830 = vrot.slane %v7822, %v7829
        %7831 = vrot.lane.b32.xlu0 %v7830, 40
        %v7832 = vpop.permute.xlu0 %7831
        %v7835 = vcombine.high %v7820, %v7820
        %v7837 = vunpack.c.l.s4 1983009808
        %v7838 = vunpack.c.0.s8 %v7837
        %v7839 = vlaneseq
        %v7840 = vshrl.u32 %v7839, 7
        %v7841 = vsub.s32 %v7838, %v7840
        %v7842 = vrot.slane %v7820, %v7841
        %v7844 = vunpack.c.l.s4 1983009808
        %v7845 = vunpack.c.0.s8 %v7844
        %v7846 = vlaneseq
        %v7847 = vshrl.u32 %v7846, 7
        %v7848 = vsub.s32 %v7845, %v7847
        %v7849 = vrot.slane %v7835, %v7848
        %v7850 = vcombine.high %v7842, %v7842
        %v7851 = vcombine.high %v7849, %v7849
        %v7852 = vcombine.high %v7821, %v7821
        %v7854 = vunpack.c.l.s4 1983009808
        %v7855 = vunpack.c.0.s8 %v7854
        %v7856 = vlaneseq
        %v7857 = vshrl.u32 %v7856, 7
        %v7858 = vsub.s32 %v7855, %v7857
        %v7859 = vrot.slane %v7821, %v7858
        %v7861 = vunpack.c.l.s4 1983009808
        %v7862 = vunpack.c.0.s8 %v7861
        %v7863 = vlaneseq
        %v7864 = vshrl.u32 %v7863, 7
        %v7865 = vsub.s32 %v7862, %v7864
        %v7866 = vrot.slane %v7852, %v7865
        %v7867 = vcombine.high %v7859, %v7859
        %v7868 = vcombine.high %v7866, %v7866
        %v7870 = vsel %vm889, %v7832, 0
        %v7873 = vsel %vm893, %v7842, 0
        %v7876 = vsel %vm893, %v7850, 0
        %v7879 = vsel %vm893, %v7849, 0
        %v7882 = vsel %vm893, %v7851, 0
        %v7885 = vsel %vm893, %v7859, 0
        %v7888 = vsel %vm893, %v7867, 0
        %v7891 = vsel %vm893, %v7866, 0
        %v7894 = vsel %vm893, %v7868, 0
        %7896 = vmatprep.subr.bf16.mxu0 %v7876
        %7897 = vmatpush1.bf16.msra.mxu0 %v7873
        %7898 = vmatprep.subr.bf16.mxu0 0
        %7899 = vmatpush1.bf16.msra.mxu0 0
        %7900 = vmatprep.subr.bf16.mxu0 0
        %7901 = vmatpush1.bf16.msra.mxu0 0
        %7902 = vmatprep.subr.bf16.mxu0 0
        %7903 = vmatpush1.bf16.msra.mxu0 0
        %7904 = vmatprep.subr.bf16.mxu0 0
        %7905 = vmatpush1.bf16.msra.mxu0 0
        %7906 = vmatprep.subr.bf16.mxu0 0
        %7907 = vmatpush1.bf16.msra.mxu0 0
        %7908 = vmatprep.subr.bf16.mxu0 0
        %7909 = vmatpush1.bf16.msra.mxu0 0
        %7910 = vmatprep.subr.bf16.mxu0 0
        %7911 = vmatpush1.bf16.msra.mxu0 0
        %7912 = vmatprep.subr.bf16.mxu0 0
        %7913 = vmatpush1.bf16.msra.mxu0 0
        %7914 = vmatprep.subr.bf16.mxu0 0
        %7915 = vmatpush1.bf16.msra.mxu0 0
        %7916 = vmatprep.subr.bf16.mxu0 0
        %7917 = vmatpush1.bf16.msra.mxu0 0
        %7918 = vmatprep.subr.bf16.mxu0 0
        %7919 = vmatpush1.bf16.msra.mxu0 0
        %7920 = vmatprep.subr.bf16.mxu0 0
        %7921 = vmatpush1.bf16.msra.mxu0 0
        %7922 = vmatprep.subr.bf16.mxu0 0
        %7923 = vmatpush1.bf16.msra.mxu0 0
        %7924 = vmatprep.subr.bf16.mxu0 0
        %7925 = vmatpush1.bf16.msra.mxu0 0
        %7926 = vmatprep.subr.bf16.mxu0 0
        %7927 = vmatpush1.bf16.msra.mxu0 0
        %7928 = vmatprep.mubr.bf16.mxu0 0
        %7929 = vmatmul.mubr.bf16.gmra.mrb[0].mxu0 %v7870
        %v7930 = vpop.f32.mrb[0].mxu0
        %v7931 = vadd.f32 0.0, %v7930
        %v7932 = vpop.f32.mrb[0].mxu0
        %v7933 = vadd.f32 0.0, %v7932
        %v7934 = vpop.f32.mrb[0].mxu0
        %v7935 = vpop.f32.mrb[0].mxu0
        %7936 = vdwg.mxu0
        %7937 = vmatprep.subr.bf16.mxu0 %v7882
        %7938 = vmatpush1.bf16.msra.mxu0 %v7879
        %7939 = vmatprep.subr.bf16.mxu0 0
        %7940 = vmatpush1.bf16.msra.mxu0 0
        %7941 = vmatprep.subr.bf16.mxu0 0
        %7942 = vmatpush1.bf16.msra.mxu0 0
        %7943 = vmatprep.subr.bf16.mxu0 0
        %7944 = vmatpush1.bf16.msra.mxu0 0
        %7945 = vmatprep.subr.bf16.mxu0 0
        %7946 = vmatpush1.bf16.msra.mxu0 0
        %7947 = vmatprep.subr.bf16.mxu0 0
        %7948 = vmatpush1.bf16.msra.mxu0 0
        %7949 = vmatprep.subr.bf16.mxu0 0
        %7950 = vmatpush1.bf16.msra.mxu0 0
        %7951 = vmatprep.subr.bf16.mxu0 0
        %7952 = vmatpush1.bf16.msra.mxu0 0
        %7953 = vmatprep.subr.bf16.mxu0 0
        %7954 = vmatpush1.bf16.msra.mxu0 0
        %7955 = vmatprep.subr.bf16.mxu0 0
        %7956 = vmatpush1.bf16.msra.mxu0 0
        %7957 = vmatprep.subr.bf16.mxu0 0
        %7958 = vmatpush1.bf16.msra.mxu0 0
        %7959 = vmatprep.subr.bf16.mxu0 0
        %7960 = vmatpush1.bf16.msra.mxu0 0
        %7961 = vmatprep.subr.bf16.mxu0 0
        %7962 = vmatpush1.bf16.msra.mxu0 0
        %7963 = vmatprep.subr.bf16.mxu0 0
        %7964 = vmatpush1.bf16.msra.mxu0 0
        %7965 = vmatprep.subr.bf16.mxu0 0
        %7966 = vmatpush1.bf16.msra.mxu0 0
        %7967 = vmatprep.subr.bf16.mxu0 0
        %7968 = vmatpush1.bf16.msra.mxu0 0
        %7969 = vmatprep.mubr.bf16.mxu0 0
        %7970 = vmatmul.mubr.bf16.gmra.mrb[0].mxu0 %v7870
        %v7971 = vpop.f32.mrb[0].mxu0
        %v7972 = vadd.f32 0.0, %v7971
        %v7973 = vpop.f32.mrb[0].mxu0
        %v7974 = vadd.f32 0.0, %v7973
        %v7975 = vpop.f32.mrb[0].mxu0
        %v7976 = vpop.f32.mrb[0].mxu0
        %7977 = vdwg.mxu0
        %7978 = vmatprep.subr.bf16.mxu0 %v7888
        %7979 = vmatpush1.bf16.msra.mxu0 %v7885
        %7980 = vmatprep.subr.bf16.mxu0 0
        %7981 = vmatpush1.bf16.msra.mxu0 0
        %7982 = vmatprep.subr.bf16.mxu0 0
        %7983 = vmatpush1.bf16.msra.mxu0 0
        %7984 = vmatprep.subr.bf16.mxu0 0
        %7985 = vmatpush1.bf16.msra.mxu0 0
        %7986 = vmatprep.subr.bf16.mxu0 0
        %7987 = vmatpush1.bf16.msra.mxu0 0
        %7988 = vmatprep.subr.bf16.mxu0 0
        %7989 = vmatpush1.bf16.msra.mxu0 0
        %7990 = vmatprep.subr.bf16.mxu0 0
        %7991 = vmatpush1.bf16.msra.mxu0 0
        %7992 = vmatprep.subr.bf16.mxu0 0
        %7993 = vmatpush1.bf16.msra.mxu0 0
        %7994 = vmatprep.subr.bf16.mxu0 0
        %7995 = vmatpush1.bf16.msra.mxu0 0
        %7996 = vmatprep.subr.bf16.mxu0 0
        %7997 = vmatpush1.bf16.msra.mxu0 0
        %7998 = vmatprep.subr.bf16.mxu0 0
        %7999 = vmatpush1.bf16.msra.mxu0 0
        %8000 = vmatprep.subr.bf16.mxu0 0
        %8001 = vmatpush1.bf16.msra.mxu0 0
        %8002 = vmatprep.subr.bf16.mxu0 0
        %8003 = vmatpush1.bf16.msra.mxu0 0
        %8004 = vmatprep.subr.bf16.mxu0 0
        %8005 = vmatpush1.bf16.msra.mxu0 0
        %8006 = vmatprep.subr.bf16.mxu0 0
        %8007 = vmatpush1.bf16.msra.mxu0 0
        %8008 = vmatprep.subr.bf16.mxu0 0
        %8009 = vmatpush1.bf16.msra.mxu0 0
        %8010 = vmatprep.mubr.bf16.mxu0 0
        %8011 = vmatmul.mubr.bf16.gmra.mrb[0].mxu0 %v7870
        %v8012 = vpop.f32.mrb[0].mxu0
        %v8013 = vadd.f32 0.0, %v8012
        %v8014 = vpop.f32.mrb[0].mxu0
        %v8015 = vadd.f32 0.0, %v8014
        %v8016 = vpop.f32.mrb[0].mxu0
        %v8017 = vpop.f32.mrb[0].mxu0
        %8018 = vdwg.mxu0
        %8019 = vmatprep.subr.bf16.mxu0 %v7894
        %8020 = vmatpush1.bf16.msra.mxu0 %v7891
        %8021 = vmatprep.subr.bf16.mxu0 0
        %8022 = vmatpush1.bf16.msra.mxu0 0
        %8023 = vmatprep.subr.bf16.mxu0 0
        %8024 = vmatpush1.bf16.msra.mxu0 0
        %8025 = vmatprep.subr.bf16.mxu0 0
        %8026 = vmatpush1.bf16.msra.mxu0 0
        %8027 = vmatprep.subr.bf16.mxu0 0
        %8028 = vmatpush1.bf16.msra.mxu0 0
        %8029 = vmatprep.subr.bf16.mxu0 0
        %8030 = vmatpush1.bf16.msra.mxu0 0
        %8031 = vmatprep.subr.bf16.mxu0 0
        %8032 = vmatpush1.bf16.msra.mxu0 0
        %8033 = vmatprep.subr.bf16.mxu0 0
        %8034 = vmatpush1.bf16.msra.mxu0 0
        %8035 = vmatprep.subr.bf16.mxu0 0
        %8036 = vmatpush1.bf16.msra.mxu0 0
        %8037 = vmatprep.subr.bf16.mxu0 0
        %8038 = vmatpush1.bf16.msra.mxu0 0
        %8039 = vmatprep.subr.bf16.mxu0 0
        %8040 = vmatpush1.bf16.msra.mxu0 0
        %8041 = vmatprep.subr.bf16.mxu0 0
        %8042 = vmatpush1.bf16.msra.mxu0 0
        %8043 = vmatprep.subr.bf16.mxu0 0
        %8044 = vmatpush1.bf16.msra.mxu0 0
        %8045 = vmatprep.subr.bf16.mxu0 0
        %8046 = vmatpush1.bf16.msra.mxu0 0
        %8047 = vmatprep.subr.bf16.mxu0 0
        %8048 = vmatpush1.bf16.msra.mxu0 0
        %8049 = vmatprep.subr.bf16.mxu0 0
        %8050 = vmatpush1.bf16.msra.mxu0 0
        %8051 = vmatprep.mubr.bf16.mxu0 0
        %8052 = vmatmul.mubr.bf16.gmra.mrb[0].mxu0 %v7870
        %v8053 = vpop.f32.mrb[0].mxu0
        %v8054 = vadd.f32 0.0, %v8053
        %v8055 = vpop.f32.mrb[0].mxu0
        %v8056 = vadd.f32 0.0, %v8055
        %v8057 = vpop.f32.mrb[0].mxu0
        %v8058 = vpop.f32.mrb[0].mxu0
        %8059 = vdwg.mxu0
        %v8060 = vadd.f32 %v7812, %v7931
        %v8061 = vadd.f32 %v7813, %v7933
        %v8062 = vadd.f32 %v7814, %v7972
        %v8063 = vadd.f32 %v7815, %v7974
        %v8064 = vadd.f32 %v7816, %v8013
        %v8065 = vadd.f32 %v7817, %v8015
        %v8066 = vadd.f32 %v7818, %v8054
        %v8067 = vadd.f32 %v7819, %v8056
        %v8068 = vld [vmem:[#allocation2 + $0x6] sm:$0xff]
        %v8069 = vld [vmem:[#allocation2 + $0xe] sm:$0xff]
        %v8070 = vld [vmem:[#allocation2 + $0x16] sm:$0x3]
        %v8071 = vmul.bf16 %v8068, %v2583
        %v8072 = vmul.bf16 %v8069, %v2585
        %v8073 = vmul.bf16 %v8070, %v2582
        %v8074 = vld [vmem:[%s3] sm:$0x3]
        %v8077 = vunpack.c.l.s4 1983009808
        %v8078 = vunpack.c.0.s8 %v8077
        %v8079 = vlaneseq
        %v8080 = vshrl.u32 %v8079, 7
        %v8081 = vsub.s32 %v8078, %v8080
        %v8082 = vrot.slane %v8074, %v8081
        %8083 = vrot.lane.b32.xlu0 %v8082, 36
        %v8084 = vpop.permute.xlu0 %8083
        %v8088 = vcombine.high %v8071, %v8071
        %v8090 = vunpack.c.l.s4 1983009808
        %v8091 = vunpack.c.0.s8 %v8090
        %v8092 = vlaneseq
        %v8093 = vshrl.u32 %v8092, 7
        %v8094 = vsub.s32 %v8091, %v8093
        %v8095 = vrot.slane %v8071, %v8094
        %v8097 = vunpack.c.l.s4 1983009808
        %v8098 = vunpack.c.0.s8 %v8097
        %v8099 = vlaneseq
        %v8100 = vshrl.u32 %v8099, 7
        %v8101 = vsub.s32 %v8098, %v8100
        %v8102 = vrot.slane %v8088, %v8101
        %v8103 = vcombine.high %v8095, %v8095
        %v8104 = vcombine.high %v8102, %v8102
        %v8105 = vcombine.high %v8072, %v8072
        %v8107 = vunpack.c.l.s4 1983009808
        %v8108 = vunpack.c.0.s8 %v8107
        %v8109 = vlaneseq
        %v8110 = vshrl.u32 %v8109, 7
        %v8111 = vsub.s32 %v8108, %v8110
        %v8112 = vrot.slane %v8072, %v8111
        %v8114 = vunpack.c.l.s4 1983009808
        %v8115 = vunpack.c.0.s8 %v8114
        %v8116 = vlaneseq
        %v8117 = vshrl.u32 %v8116, 7
        %v8118 = vsub.s32 %v8115, %v8117
        %v8119 = vrot.slane %v8105, %v8118
        %v8120 = vcombine.high %v8112, %v8112
        %v8121 = vcombine.high %v8119, %v8119
        %v8123 = vunpack.c.l.s4 1983009808
        %v8124 = vunpack.c.0.s8 %v8123
        %v8125 = vlaneseq
        %v8126 = vshrl.u32 %v8125, 7
        %v8127 = vsub.s32 %v8124, %v8126
        %v8128 = vrot.slane %v8073, %v8127
        %8129 = vrot.lane.b32.xlu0 %v8095, 127
        %v8130 = vpop.permute.xlu0 %8129
        %8131 = vrot.lane.b32.xlu0 %v8103, 127
        %v8132 = vpop.permute.xlu0 %8131
        %8133 = vrot.lane.b32.xlu0 %v8102, 127
        %v8134 = vpop.permute.xlu0 %8133
        %8135 = vrot.lane.b32.xlu0 %v8104, 127
        %v8136 = vpop.permute.xlu0 %8135
        %8137 = vrot.lane.b32.xlu0 %v8112, 127
        %v8138 = vpop.permute.xlu0 %8137
        %8139 = vrot.lane.b32.xlu0 %v8120, 127
        %v8140 = vpop.permute.xlu0 %8139
        %8141 = vrot.lane.b32.xlu0 %v8119, 127
        %v8142 = vpop.permute.xlu0 %8141
        %8143 = vrot.lane.b32.xlu0 %v8121, 127
        %v8144 = vpop.permute.xlu0 %8143
        %8145 = vrot.lane.b32.xlu0 %v8128, 127
        %v8146 = vpop.permute.xlu0 %8145
        %v8147 = vsel %vm1905, %v8130, %v8132
        %v8148 = vsel %vm1905, %v8132, %v8134
        %v8149 = vsel %vm1905, %v8134, %v8136
        %v8150 = vsel %vm1905, %v8136, %v8138
        %v8151 = vsel %vm1905, %v8138, %v8140
        %v8152 = vsel %vm1905, %v8140, %v8142
        %v8153 = vsel %vm1905, %v8142, %v8144
        %v8154 = vsel %vm1905, %v8144, %v8146
        %v8156 = vsel %vm889, %v8084, 0
        %v8159 = vsel %vm893, %v8147, 0
        %v8162 = vsel %vm893, %v8148, 0
        %v8165 = vsel %vm893, %v8149, 0
        %v8168 = vsel %vm893, %v8150, 0
        %v8171 = vsel %vm893, %v8151, 0
        %v8174 = vsel %vm893, %v8152, 0
        %v8177 = vsel %vm893, %v8153, 0
        %v8180 = vsel %vm893, %v8154, 0
        %8182 = vmatprep.subr.bf16.mxu0 %v8162
        %8183 = vmatpush1.bf16.msra.mxu0 %v8159
        %8184 = vmatprep.subr.bf16.mxu0 0
        %8185 = vmatpush1.bf16.msra.mxu0 0
        %8186 = vmatprep.subr.bf16.mxu0 0
        %8187 = vmatpush1.bf16.msra.mxu0 0
        %8188 = vmatprep.subr.bf16.mxu0 0
        %8189 = vmatpush1.bf16.msra.mxu0 0
        %8190 = vmatprep.subr.bf16.mxu0 0
        %8191 = vmatpush1.bf16.msra.mxu0 0
        %8192 = vmatprep.subr.bf16.mxu0 0
        %8193 = vmatpush1.bf16.msra.mxu0 0
        %8194 = vmatprep.subr.bf16.mxu0 0
        %8195 = vmatpush1.bf16.msra.mxu0 0
        %8196 = vmatprep.subr.bf16.mxu0 0
        %8197 = vmatpush1.bf16.msra.mxu0 0
        %8198 = vmatprep.subr.bf16.mxu0 0
        %8199 = vmatpush1.bf16.msra.mxu0 0
        %8200 = vmatprep.subr.bf16.mxu0 0
        %8201 = vmatpush1.bf16.msra.mxu0 0
        %8202 = vmatprep.subr.bf16.mxu0 0
        %8203 = vmatpush1.bf16.msra.mxu0 0
        %8204 = vmatprep.subr.bf16.mxu0 0
        %8205 = vmatpush1.bf16.msra.mxu0 0
        %8206 = vmatprep.subr.bf16.mxu0 0
        %8207 = vmatpush1.bf16.msra.mxu0 0
        %8208 = vmatprep.subr.bf16.mxu0 0
        %8209 = vmatpush1.bf16.msra.mxu0 0
        %8210 = vmatprep.subr.bf16.mxu0 0
        %8211 = vmatpush1.bf16.msra.mxu0 0
        %8212 = vmatprep.subr.bf16.mxu0 0
        %8213 = vmatpush1.bf16.msra.mxu0 0
        %8214 = vmatprep.mubr.bf16.mxu0 0
        %8215 = vmatmul.mubr.bf16.gmra.mrb[0].mxu0 %v8156
        %v8216 = vpop.f32.mrb[0].mxu0
        %v8217 = vadd.f32 0.0, %v8216
        %v8218 = vpop.f32.mrb[0].mxu0
        %v8219 = vadd.f32 0.0, %v8218
        %v8220 = vpop.f32.mrb[0].mxu0
        %v8221 = vpop.f32.mrb[0].mxu0
        %8222 = vdwg.mxu0
        %8223 = vmatprep.subr.bf16.mxu0 %v8168
        %8224 = vmatpush1.bf16.msra.mxu0 %v8165
        %8225 = vmatprep.subr.bf16.mxu0 0
        %8226 = vmatpush1.bf16.msra.mxu0 0
        %8227 = vmatprep.subr.bf16.mxu0 0
        %8228 = vmatpush1.bf16.msra.mxu0 0
        %8229 = vmatprep.subr.bf16.mxu0 0
        %8230 = vmatpush1.bf16.msra.mxu0 0
        %8231 = vmatprep.subr.bf16.mxu0 0
        %8232 = vmatpush1.bf16.msra.mxu0 0
        %8233 = vmatprep.subr.bf16.mxu0 0
        %8234 = vmatpush1.bf16.msra.mxu0 0
        %8235 = vmatprep.subr.bf16.mxu0 0
        %8236 = vmatpush1.bf16.msra.mxu0 0
        %8237 = vmatprep.subr.bf16.mxu0 0
        %8238 = vmatpush1.bf16.msra.mxu0 0
        %8239 = vmatprep.subr.bf16.mxu0 0
        %8240 = vmatpush1.bf16.msra.mxu0 0
        %8241 = vmatprep.subr.bf16.mxu0 0
        %8242 = vmatpush1.bf16.msra.mxu0 0
        %8243 = vmatprep.subr.bf16.mxu0 0
        %8244 = vmatpush1.bf16.msra.mxu0 0
        %8245 = vmatprep.subr.bf16.mxu0 0
        %8246 = vmatpush1.bf16.msra.mxu0 0
        %8247 = vmatprep.subr.bf16.mxu0 0
        %8248 = vmatpush1.bf16.msra.mxu0 0
        %8249 = vmatprep.subr.bf16.mxu0 0
        %8250 = vmatpush1.bf16.msra.mxu0 0
        %8251 = vmatprep.subr.bf16.mxu0 0
        %8252 = vmatpush1.bf16.msra.mxu0 0
        %8253 = vmatprep.subr.bf16.mxu0 0
        %8254 = vmatpush1.bf16.msra.mxu0 0
        %8255 = vmatprep.mubr.bf16.mxu0 0
        %8256 = vmatmul.mubr.bf16.gmra.mrb[0].mxu0 %v8156
        %v8257 = vpop.f32.mrb[0].mxu0
        %v8258 = vadd.f32 0.0, %v8257
        %v8259 = vpop.f32.mrb[0].mxu0
        %v8260 = vadd.f32 0.0, %v8259
        %v8261 = vpop.f32.mrb[0].mxu0
        %v8262 = vpop.f32.mrb[0].mxu0
        %8263 = vdwg.mxu0
        %8264 = vmatprep.subr.bf16.mxu0 %v8174
        %8265 = vmatpush1.bf16.msra.mxu0 %v8171
        %8266 = vmatprep.subr.bf16.mxu0 0
        %8267 = vmatpush1.bf16.msra.mxu0 0
        %8268 = vmatprep.subr.bf16.mxu0 0
        %8269 = vmatpush1.bf16.msra.mxu0 0
        %8270 = vmatprep.subr.bf16.mxu0 0
        %8271 = vmatpush1.bf16.msra.mxu0 0
        %8272 = vmatprep.subr.bf16.mxu0 0
        %8273 = vmatpush1.bf16.msra.mxu0 0
        %8274 = vmatprep.subr.bf16.mxu0 0
        %8275 = vmatpush1.bf16.msra.mxu0 0
        %8276 = vmatprep.subr.bf16.mxu0 0
        %8277 = vmatpush1.bf16.msra.mxu0 0
        %8278 = vmatprep.subr.bf16.mxu0 0
        %8279 = vmatpush1.bf16.msra.mxu0 0
        %8280 = vmatprep.subr.bf16.mxu0 0
        %8281 = vmatpush1.bf16.msra.mxu0 0
        %8282 = vmatprep.subr.bf16.mxu0 0
        %8283 = vmatpush1.bf16.msra.mxu0 0
        %8284 = vmatprep.subr.bf16.mxu0 0
        %8285 = vmatpush1.bf16.msra.mxu0 0
        %8286 = vmatprep.subr.bf16.mxu0 0
        %8287 = vmatpush1.bf16.msra.mxu0 0
        %8288 = vmatprep.subr.bf16.mxu0 0
        %8289 = vmatpush1.bf16.msra.mxu0 0
        %8290 = vmatprep.subr.bf16.mxu0 0
        %8291 = vmatpush1.bf16.msra.mxu0 0
        %8292 = vmatprep.subr.bf16.mxu0 0
        %8293 = vmatpush1.bf16.msra.mxu0 0
        %8294 = vmatprep.subr.bf16.mxu0 0
        %8295 = vmatpush1.bf16.msra.mxu0 0
        %8296 = vmatprep.mubr.bf16.mxu0 0
        %8297 = vmatmul.mubr.bf16.gmra.mrb[0].mxu0 %v8156
        %v8298 = vpop.f32.mrb[0].mxu0
        %v8299 = vadd.f32 0.0, %v8298
        %v8300 = vpop.f32.mrb[0].mxu0
        %v8301 = vadd.f32 0.0, %v8300
        %v8302 = vpop.f32.mrb[0].mxu0
        %v8303 = vpop.f32.mrb[0].mxu0
        %8304 = vdwg.mxu0
        %8305 = vmatprep.subr.bf16.mxu0 %v8180
        %8306 = vmatpush1.bf16.msra.mxu0 %v8177
        %8307 = vmatprep.subr.bf16.mxu0 0
        %8308 = vmatpush1.bf16.msra.mxu0 0
        %8309 = vmatprep.subr.bf16.mxu0 0
        %8310 = vmatpush1.bf16.msra.mxu0 0
        %8311 = vmatprep.subr.bf16.mxu0 0
        %8312 = vmatpush1.bf16.msra.mxu0 0
        %8313 = vmatprep.subr.bf16.mxu0 0
        %8314 = vmatpush1.bf16.msra.mxu0 0
        %8315 = vmatprep.subr.bf16.mxu0 0
        %8316 = vmatpush1.bf16.msra.mxu0 0
        %8317 = vmatprep.subr.bf16.mxu0 0
        %8318 = vmatpush1.bf16.msra.mxu0 0
        %8319 = vmatprep.subr.bf16.mxu0 0
        %8320 = vmatpush1.bf16.msra.mxu0 0
        %8321 = vmatprep.subr.bf16.mxu0 0
        %8322 = vmatpush1.bf16.msra.mxu0 0
        %8323 = vmatprep.subr.bf16.mxu0 0
        %8324 = vmatpush1.bf16.msra.mxu0 0
        %8325 = vmatprep.subr.bf16.mxu0 0
        %8326 = vmatpush1.bf16.msra.mxu0 0
        %8327 = vmatprep.subr.bf16.mxu0 0
        %8328 = vmatpush1.bf16.msra.mxu0 0
        %8329 = vmatprep.subr.bf16.mxu0 0
        %8330 = vmatpush1.bf16.msra.mxu0 0
        %8331 = vmatprep.subr.bf16.mxu0 0
        %8332 = vmatpush1.bf16.msra.mxu0 0
        %8333 = vmatprep.subr.bf16.mxu0 0
        %8334 = vmatpush1.bf16.msra.mxu0 0
        %8335 = vmatprep.subr.bf16.mxu0 0
        %8336 = vmatpush1.bf16.msra.mxu0 0
        %8337 = vmatprep.mubr.bf16.mxu0 0
        %8338 = vmatmul.mubr.bf16.gmra.mrb[0].mxu0 %v8156
        %v8339 = vpop.f32.mrb[0].mxu0
        %v8340 = vadd.f32 0.0, %v8339
        %v8341 = vpop.f32.mrb[0].mxu0
        %v8342 = vadd.f32 0.0, %v8341
        %v8343 = vpop.f32.mrb[0].mxu0
        %v8344 = vpop.f32.mrb[0].mxu0
        %8345 = vdwg.mxu0
        %v8346 = vadd.f32 %v8060, %v8217
        %v8347 = vadd.f32 %v8061, %v8219
        %v8348 = vadd.f32 %v8062, %v8258
        %v8349 = vadd.f32 %v8063, %v8260
        %v8350 = vadd.f32 %v8064, %v8299
        %v8351 = vadd.f32 %v8065, %v8301
        %v8352 = vadd.f32 %v8066, %v8340
        %v8353 = vadd.f32 %v8067, %v8342
        %v8354 = vld [vmem:[#allocation2 + $0x6] sm:$0xff]
        %v8355 = vld [vmem:[#allocation2 + $0xe] sm:$0xff]
        %v8356 = vld [vmem:[#allocation2 + $0x16] sm:$0x3]
        %v8357 = vmul.bf16 %v8354, %v3003
        %v8358 = vmul.bf16 %v8355, %v3005
        %v8359 = vmul.bf16 %v8356, %v3002
        %v8360 = vld [vmem:[%s3] sm:$0x3]
        %v8363 = vunpack.c.l.s4 1983009808
        %v8364 = vunpack.c.0.s8 %v8363
        %v8365 = vlaneseq
        %v8366 = vshrl.u32 %v8365, 7
        %v8367 = vsub.s32 %v8364, %v8366
        %v8368 = vrot.slane %v8360, %v8367
        %8369 = vrot.lane.b32.xlu0 %v8368, 32
        %v8370 = vpop.permute.xlu0 %8369
        %v8374 = vcombine.high %v8357, %v8357
        %v8376 = vunpack.c.l.s4 1983009808
        %v8377 = vunpack.c.0.s8 %v8376
        %v8378 = vlaneseq
        %v8379 = vshrl.u32 %v8378, 7
        %v8380 = vsub.s32 %v8377, %v8379
        %v8381 = vrot.slane %v8357, %v8380
        %v8383 = vunpack.c.l.s4 1983009808
        %v8384 = vunpack.c.0.s8 %v8383
        %v8385 = vlaneseq
        %v8386 = vshrl.u32 %v8385, 7
        %v8387 = vsub.s32 %v8384, %v8386
        %v8388 = vrot.slane %v8374, %v8387
        %v8389 = vcombine.high %v8381, %v8381
        %v8390 = vcombine.high %v8388, %v8388
        %v8391 = vcombine.high %v8358, %v8358
        %v8393 = vunpack.c.l.s4 1983009808
        %v8394 = vunpack.c.0.s8 %v8393
        %v8395 = vlaneseq
        %v8396 = vshrl.u32 %v8395, 7
        %v8397 = vsub.s32 %v8394, %v8396
        %v8398 = vrot.slane %v8358, %v8397
        %v8400 = vunpack.c.l.s4 1983009808
        %v8401 = vunpack.c.0.s8 %v8400
        %v8402 = vlaneseq
        %v8403 = vshrl.u32 %v8402, 7
        %v8404 = vsub.s32 %v8401, %v8403
        %v8405 = vrot.slane %v8391, %v8404
        %v8406 = vcombine.high %v8398, %v8398
        %v8407 = vcombine.high %v8405, %v8405
        %v8409 = vunpack.c.l.s4 1983009808
        %v8410 = vunpack.c.0.s8 %v8409
        %v8411 = vlaneseq
        %v8412 = vshrl.u32 %v8411, 7
        %v8413 = vsub.s32 %v8410, %v8412
        %v8414 = vrot.slane %v8359, %v8413
        %8415 = vrot.lane.b32.xlu0 %v8381, 121
        %v8416 = vpop.permute.xlu0 %8415
        %8417 = vrot.lane.b32.xlu0 %v8389, 121
        %v8418 = vpop.permute.xlu0 %8417
        %8419 = vrot.lane.b32.xlu0 %v8388, 121
        %v8420 = vpop.permute.xlu0 %8419
        %8421 = vrot.lane.b32.xlu0 %v8390, 121
        %v8422 = vpop.permute.xlu0 %8421
        %8423 = vrot.lane.b32.xlu0 %v8398, 121
        %v8424 = vpop.permute.xlu0 %8423
        %8425 = vrot.lane.b32.xlu0 %v8406, 121
        %v8426 = vpop.permute.xlu0 %8425
        %8427 = vrot.lane.b32.xlu0 %v8405, 121
        %v8428 = vpop.permute.xlu0 %8427
        %8429 = vrot.lane.b32.xlu0 %v8407, 121
        %v8430 = vpop.permute.xlu0 %8429
        %8431 = vrot.lane.b32.xlu0 %v8414, 121
        %v8432 = vpop.permute.xlu0 %8431
        %v8433 = vsel %vm1475, %v8416, %v8418
        %v8434 = vsel %vm1475, %v8418, %v8420
        %v8435 = vsel %vm1475, %v8420, %v8422
        %v8436 = vsel %vm1475, %v8422, %v8424
        %v8437 = vsel %vm1475, %v8424, %v8426
        %v8438 = vsel %vm1475, %v8426, %v8428
        %v8439 = vsel %vm1475, %v8428, %v8430
        %v8440 = vsel %vm1475, %v8430, %v8432
        %v8442 = vsel %vm889, %v8370, 0
        %v8445 = vsel %vm893, %v8433, 0
        %v8448 = vsel %vm893, %v8434, 0
        %v8451 = vsel %vm893, %v8435, 0
        %v8454 = vsel %vm893, %v8436, 0
        %v8457 = vsel %vm893, %v8437, 0
        %v8460 = vsel %vm893, %v8438, 0
        %v8463 = vsel %vm893, %v8439, 0
        %v8466 = vsel %vm893, %v8440, 0
        %8468 = vmatprep.subr.bf16.mxu0 %v8448
        %8469 = vmatpush1.bf16.msra.mxu0 %v8445
        %8470 = vmatprep.subr.bf16.mxu0 0
        %8471 = vmatpush1.bf16.msra.mxu0 0
        %8472 = vmatprep.subr.bf16.mxu0 0
        %8473 = vmatpush1.bf16.msra.mxu0 0
        %8474 = vmatprep.subr.bf16.mxu0 0
        %8475 = vmatpush1.bf16.msra.mxu0 0
        %8476 = vmatprep.subr.bf16.mxu0 0
        %8477 = vmatpush1.bf16.msra.mxu0 0
        %8478 = vmatprep.subr.bf16.mxu0 0
        %8479 = vmatpush1.bf16.msra.mxu0 0
        %8480 = vmatprep.subr.bf16.mxu0 0
        %8481 = vmatpush1.bf16.msra.mxu0 0
        %8482 = vmatprep.subr.bf16.mxu0 0
        %8483 = vmatpush1.bf16.msra.mxu0 0
        %8484 = vmatprep.subr.bf16.mxu0 0
        %8485 = vmatpush1.bf16.msra.mxu0 0
        %8486 = vmatprep.subr.bf16.mxu0 0
        %8487 = vmatpush1.bf16.msra.mxu0 0
        %8488 = vmatprep.subr.bf16.mxu0 0
        %8489 = vmatpush1.bf16.msra.mxu0 0
        %8490 = vmatprep.subr.bf16.mxu0 0
        %8491 = vmatpush1.bf16.msra.mxu0 0
        %8492 = vmatprep.subr.bf16.mxu0 0
        %8493 = vmatpush1.bf16.msra.mxu0 0
        %8494 = vmatprep.subr.bf16.mxu0 0
        %8495 = vmatpush1.bf16.msra.mxu0 0
        %8496 = vmatprep.subr.bf16.mxu0 0
        %8497 = vmatpush1.bf16.msra.mxu0 0
        %8498 = vmatprep.subr.bf16.mxu0 0
        %8499 = vmatpush1.bf16.msra.mxu0 0
        %8500 = vmatprep.mubr.bf16.mxu0 0
        %8501 = vmatmul.mubr.bf16.gmra.mrb[0].mxu0 %v8442
        %v8502 = vpop.f32.mrb[0].mxu0
        %v8503 = vadd.f32 0.0, %v8502
        %v8504 = vpop.f32.mrb[0].mxu0
        %v8505 = vadd.f32 0.0, %v8504
        %v8506 = vpop.f32.mrb[0].mxu0
        %v8507 = vpop.f32.mrb[0].mxu0
        %8508 = vdwg.mxu0
        %8509 = vmatprep.subr.bf16.mxu0 %v8454
        %8510 = vmatpush1.bf16.msra.mxu0 %v8451
        %8511 = vmatprep.subr.bf16.mxu0 0
        %8512 = vmatpush1.bf16.msra.mxu0 0
        %8513 = vmatprep.subr.bf16.mxu0 0
        %8514 = vmatpush1.bf16.msra.mxu0 0
        %8515 = vmatprep.subr.bf16.mxu0 0
        %8516 = vmatpush1.bf16.msra.mxu0 0
        %8517 = vmatprep.subr.bf16.mxu0 0
        %8518 = vmatpush1.bf16.msra.mxu0 0
        %8519 = vmatprep.subr.bf16.mxu0 0
        %8520 = vmatpush1.bf16.msra.mxu0 0
        %8521 = vmatprep.subr.bf16.mxu0 0
        %8522 = vmatpush1.bf16.msra.mxu0 0
        %8523 = vmatprep.subr.bf16.mxu0 0
        %8524 = vmatpush1.bf16.msra.mxu0 0
        %8525 = vmatprep.subr.bf16.mxu0 0
        %8526 = vmatpush1.bf16.msra.mxu0 0
        %8527 = vmatprep.subr.bf16.mxu0 0
        %8528 = vmatpush1.bf16.msra.mxu0 0
        %8529 = vmatprep.subr.bf16.mxu0 0
        %8530 = vmatpush1.bf16.msra.mxu0 0
        %8531 = vmatprep.subr.bf16.mxu0 0
        %8532 = vmatpush1.bf16.msra.mxu0 0
        %8533 = vmatprep.subr.bf16.mxu0 0
        %8534 = vmatpush1.bf16.msra.mxu0 0
        %8535 = vmatprep.subr.bf16.mxu0 0
        %8536 = vmatpush1.bf16.msra.mxu0 0
        %8537 = vmatprep.subr.bf16.mxu0 0
        %8538 = vmatpush1.bf16.msra.mxu0 0
        %8539 = vmatprep.subr.bf16.mxu0 0
        %8540 = vmatpush1.bf16.msra.mxu0 0
        %8541 = vmatprep.mubr.bf16.mxu0 0
        %8542 = vmatmul.mubr.bf16.gmra.mrb[0].mxu0 %v8442
        %v8543 = vpop.f32.mrb[0].mxu0
        %v8544 = vadd.f32 0.0, %v8543
        %v8545 = vpop.f32.mrb[0].mxu0
        %v8546 = vadd.f32 0.0, %v8545
        %v8547 = vpop.f32.mrb[0].mxu0
        %v8548 = vpop.f32.mrb[0].mxu0
        %8549 = vdwg.mxu0
        %8550 = vmatprep.subr.bf16.mxu0 %v8460
        %8551 = vmatpush1.bf16.msra.mxu0 %v8457
        %8552 = vmatprep.subr.bf16.mxu0 0
        %8553 = vmatpush1.bf16.msra.mxu0 0
        %8554 = vmatprep.subr.bf16.mxu0 0
        %8555 = vmatpush1.bf16.msra.mxu0 0
        %8556 = vmatprep.subr.bf16.mxu0 0
        %8557 = vmatpush1.bf16.msra.mxu0 0
        %8558 = vmatprep.subr.bf16.mxu0 0
        %8559 = vmatpush1.bf16.msra.mxu0 0
        %8560 = vmatprep.subr.bf16.mxu0 0
        %8561 = vmatpush1.bf16.msra.mxu0 0
        %8562 = vmatprep.subr.bf16.mxu0 0
        %8563 = vmatpush1.bf16.msra.mxu0 0
        %8564 = vmatprep.subr.bf16.mxu0 0
        %8565 = vmatpush1.bf16.msra.mxu0 0
        %8566 = vmatprep.subr.bf16.mxu0 0
        %8567 = vmatpush1.bf16.msra.mxu0 0
        %8568 = vmatprep.subr.bf16.mxu0 0
        %8569 = vmatpush1.bf16.msra.mxu0 0
        %8570 = vmatprep.subr.bf16.mxu0 0
        %8571 = vmatpush1.bf16.msra.mxu0 0
        %8572 = vmatprep.subr.bf16.mxu0 0
        %8573 = vmatpush1.bf16.msra.mxu0 0
        %8574 = vmatprep.subr.bf16.mxu0 0
        %8575 = vmatpush1.bf16.msra.mxu0 0
        %8576 = vmatprep.subr.bf16.mxu0 0
        %8577 = vmatpush1.bf16.msra.mxu0 0
        %8578 = vmatprep.subr.bf16.mxu0 0
        %8579 = vmatpush1.bf16.msra.mxu0 0
        %8580 = vmatprep.subr.bf16.mxu0 0
        %8581 = vmatpush1.bf16.msra.mxu0 0
        %8582 = vmatprep.mubr.bf16.mxu0 0
        %8583 = vmatmul.mubr.bf16.gmra.mrb[0].mxu0 %v8442
        %v8584 = vpop.f32.mrb[0].mxu0
        %v8585 = vadd.f32 0.0, %v8584
        %v8586 = vpop.f32.mrb[0].mxu0
        %v8587 = vadd.f32 0.0, %v8586
        %v8588 = vpop.f32.mrb[0].mxu0
        %v8589 = vpop.f32.mrb[0].mxu0
        %8590 = vdwg.mxu0
        %8591 = vmatprep.subr.bf16.mxu0 %v8466
        %8592 = vmatpush1.bf16.msra.mxu0 %v8463
        %8593 = vmatprep.subr.bf16.mxu0 0
        %8594 = vmatpush1.bf16.msra.mxu0 0
        %8595 = vmatprep.subr.bf16.mxu0 0
        %8596 = vmatpush1.bf16.msra.mxu0 0
        %8597 = vmatprep.subr.bf16.mxu0 0
        %8598 = vmatpush1.bf16.msra.mxu0 0
        %8599 = vmatprep.subr.bf16.mxu0 0
        %8600 = vmatpush1.bf16.msra.mxu0 0
        %8601 = vmatprep.subr.bf16.mxu0 0
        %8602 = vmatpush1.bf16.msra.mxu0 0
        %8603 = vmatprep.subr.bf16.mxu0 0
        %8604 = vmatpush1.bf16.msra.mxu0 0
        %8605 = vmatprep.subr.bf16.mxu0 0
        %8606 = vmatpush1.bf16.msra.mxu0 0
        %8607 = vmatprep.subr.bf16.mxu0 0
        %8608 = vmatpush1.bf16.msra.mxu0 0
        %8609 = vmatprep.subr.bf16.mxu0 0
        %8610 = vmatpush1.bf16.msra.mxu0 0
        %8611 = vmatprep.subr.bf16.mxu0 0
        %8612 = vmatpush1.bf16.msra.mxu0 0
        %8613 = vmatprep.subr.bf16.mxu0 0
        %8614 = vmatpush1.bf16.msra.mxu0 0
        %8615 = vmatprep.subr.bf16.mxu0 0
        %8616 = vmatpush1.bf16.msra.mxu0 0
        %8617 = vmatprep.subr.bf16.mxu0 0
        %8618 = vmatpush1.bf16.msra.mxu0 0
        %8619 = vmatprep.subr.bf16.mxu0 0
        %8620 = vmatpush1.bf16.msra.mxu0 0
        %8621 = vmatprep.subr.bf16.mxu0 0
        %8622 = vmatpush1.bf16.msra.mxu0 0
        %8623 = vmatprep.mubr.bf16.mxu0 0
        %8624 = vmatmul.mubr.bf16.gmra.mrb[0].mxu0 %v8442
        %v8625 = vpop.f32.mrb[0].mxu0
        %v8626 = vadd.f32 0.0, %v8625
        %v8627 = vpop.f32.mrb[0].mxu0
        %v8628 = vadd.f32 0.0, %v8627
        %v8629 = vpop.f32.mrb[0].mxu0
        %v8630 = vpop.f32.mrb[0].mxu0
        %8631 = vdwg.mxu0
        %v8632 = vadd.f32 %v8346, %v8503
        %v8633 = vadd.f32 %v8347, %v8505
        %v8634 = vadd.f32 %v8348, %v8544
        %v8635 = vadd.f32 %v8349, %v8546
        %v8636 = vadd.f32 %v8350, %v8585
        %v8637 = vadd.f32 %v8351, %v8587
        %v8638 = vadd.f32 %v8352, %v8626
        %v8639 = vadd.f32 %v8353, %v8628
        %v8640 = vld [vmem:[#allocation2 + $0x6] sm:$0xff]
        %v8641 = vld [vmem:[#allocation2 + $0xe] sm:$0xff]
        %v8642 = vld [vmem:[#allocation2 + $0x16] sm:$0x3]
        %v8643 = vmul.bf16 %v8640, %v3431
        %v8644 = vmul.bf16 %v8641, %v3433
        %v8645 = vmul.bf16 %v8642, %v3430
        %v8646 = vld [vmem:[%s3] sm:$0x3]
        %v8649 = vunpack.c.l.s4 1983009808
        %v8650 = vunpack.c.0.s8 %v8649
        %v8651 = vlaneseq
        %v8652 = vshrl.u32 %v8651, 7
        %v8653 = vsub.s32 %v8650, %v8652
        %v8654 = vrot.slane %v8646, %v8653
        %8655 = vrot.lane.b32.xlu0 %v8654, 28
        %v8656 = vpop.permute.xlu0 %8655
        %v8660 = vcombine.high %v8643, %v8643
        %v8662 = vunpack.c.l.s4 1983009808
        %v8663 = vunpack.c.0.s8 %v8662
        %v8664 = vlaneseq
        %v8665 = vshrl.u32 %v8664, 7
        %v8666 = vsub.s32 %v8663, %v8665
        %v8667 = vrot.slane %v8643, %v8666
        %v8669 = vunpack.c.l.s4 1983009808
        %v8670 = vunpack.c.0.s8 %v8669
        %v8671 = vlaneseq
        %v8672 = vshrl.u32 %v8671, 7
        %v8673 = vsub.s32 %v8670, %v8672
        %v8674 = vrot.slane %v8660, %v8673
        %v8675 = vcombine.high %v8667, %v8667
        %v8676 = vcombine.high %v8674, %v8674
        %v8677 = vcombine.high %v8644, %v8644
        %v8679 = vunpack.c.l.s4 1983009808
        %v8680 = vunpack.c.0.s8 %v8679
        %v8681 = vlaneseq
        %v8682 = vshrl.u32 %v8681, 7
        %v8683 = vsub.s32 %v8680, %v8682
        %v8684 = vrot.slane %v8644, %v8683
        %v8686 = vunpack.c.l.s4 1983009808
        %v8687 = vunpack.c.0.s8 %v8686
        %v8688 = vlaneseq
        %v8689 = vshrl.u32 %v8688, 7
        %v8690 = vsub.s32 %v8687, %v8689
        %v8691 = vrot.slane %v8677, %v8690
        %v8692 = vcombine.high %v8684, %v8684
        %v8693 = vcombine.high %v8691, %v8691
        %v8695 = vunpack.c.l.s4 1983009808
        %v8696 = vunpack.c.0.s8 %v8695
        %v8697 = vlaneseq
        %v8698 = vshrl.u32 %v8697, 7
        %v8699 = vsub.s32 %v8696, %v8698
        %v8700 = vrot.slane %v8645, %v8699
        %8701 = vrot.lane.b32.xlu0 %v8667, 120
        %v8702 = vpop.permute.xlu0 %8701
        %8703 = vrot.lane.b32.xlu0 %v8675, 120
        %v8704 = vpop.permute.xlu0 %8703
        %8705 = vrot.lane.b32.xlu0 %v8674, 120
        %v8706 = vpop.permute.xlu0 %8705
        %8707 = vrot.lane.b32.xlu0 %v8676, 120
        %v8708 = vpop.permute.xlu0 %8707
        %8709 = vrot.lane.b32.xlu0 %v8684, 120
        %v8710 = vpop.permute.xlu0 %8709
        %8711 = vrot.lane.b32.xlu0 %v8692, 120
        %v8712 = vpop.permute.xlu0 %8711
        %8713 = vrot.lane.b32.xlu0 %v8691, 120
        %v8714 = vpop.permute.xlu0 %8713
        %8715 = vrot.lane.b32.xlu0 %v8693, 120
        %v8716 = vpop.permute.xlu0 %8715
        %8717 = vrot.lane.b32.xlu0 %v8700, 120
        %v8718 = vpop.permute.xlu0 %8717
        %v8719 = vsel %vm798, %v8702, %v8704
        %v8720 = vsel %vm798, %v8704, %v8706
        %v8721 = vsel %vm798, %v8706, %v8708
        %v8722 = vsel %vm798, %v8708, %v8710
        %v8723 = vsel %vm798, %v8710, %v8712
        %v8724 = vsel %vm798, %v8712, %v8714
        %v8725 = vsel %vm798, %v8714, %v8716
        %v8726 = vsel %vm798, %v8716, %v8718
        %v8728 = vsel %vm889, %v8656, 0
        %v8731 = vsel %vm893, %v8719, 0
        %v8734 = vsel %vm893, %v8720, 0
        %v8737 = vsel %vm893, %v8721, 0
        %v8740 = vsel %vm893, %v8722, 0
        %v8743 = vsel %vm893, %v8723, 0
        %v8746 = vsel %vm893, %v8724, 0
        %v8749 = vsel %vm893, %v8725, 0
        %v8752 = vsel %vm893, %v8726, 0
        %8754 = vmatprep.subr.bf16.mxu0 %v8734
        %8755 = vmatpush1.bf16.msra.mxu0 %v8731
        %8756 = vmatprep.subr.bf16.mxu0 0
        %8757 = vmatpush1.bf16.msra.mxu0 0
        %8758 = vmatprep.subr.bf16.mxu0 0
        %8759 = vmatpush1.bf16.msra.mxu0 0
        %8760 = vmatprep.subr.bf16.mxu0 0
        %8761 = vmatpush1.bf16.msra.mxu0 0
        %8762 = vmatprep.subr.bf16.mxu0 0
        %8763 = vmatpush1.bf16.msra.mxu0 0
        %8764 = vmatprep.subr.bf16.mxu0 0
        %8765 = vmatpush1.bf16.msra.mxu0 0
        %8766 = vmatprep.subr.bf16.mxu0 0
        %8767 = vmatpush1.bf16.msra.mxu0 0
        %8768 = vmatprep.subr.bf16.mxu0 0
        %8769 = vmatpush1.bf16.msra.mxu0 0
        %8770 = vmatprep.subr.bf16.mxu0 0
        %8771 = vmatpush1.bf16.msra.mxu0 0
        %8772 = vmatprep.subr.bf16.mxu0 0
        %8773 = vmatpush1.bf16.msra.mxu0 0
        %8774 = vmatprep.subr.bf16.mxu0 0
        %8775 = vmatpush1.bf16.msra.mxu0 0
        %8776 = vmatprep.subr.bf16.mxu0 0
        %8777 = vmatpush1.bf16.msra.mxu0 0
        %8778 = vmatprep.subr.bf16.mxu0 0
        %8779 = vmatpush1.bf16.msra.mxu0 0
        %8780 = vmatprep.subr.bf16.mxu0 0
        %8781 = vmatpush1.bf16.msra.mxu0 0
        %8782 = vmatprep.subr.bf16.mxu0 0
        %8783 = vmatpush1.bf16.msra.mxu0 0
        %8784 = vmatprep.subr.bf16.mxu0 0
        %8785 = vmatpush1.bf16.msra.mxu0 0
        %8786 = vmatprep.mubr.bf16.mxu0 0
        %8787 = vmatmul.mubr.bf16.gmra.mrb[0].mxu0 %v8728
        %v8788 = vpop.f32.mrb[0].mxu0
        %v8789 = vadd.f32 0.0, %v8788
        %v8790 = vpop.f32.mrb[0].mxu0
        %v8791 = vadd.f32 0.0, %v8790
        %v8792 = vpop.f32.mrb[0].mxu0
        %v8793 = vpop.f32.mrb[0].mxu0
        %8794 = vdwg.mxu0
        %8795 = vmatprep.subr.bf16.mxu0 %v8740
        %8796 = vmatpush1.bf16.msra.mxu0 %v8737
        %8797 = vmatprep.subr.bf16.mxu0 0
        %8798 = vmatpush1.bf16.msra.mxu0 0
        %8799 = vmatprep.subr.bf16.mxu0 0
        %8800 = vmatpush1.bf16.msra.mxu0 0
        %8801 = vmatprep.subr.bf16.mxu0 0
        %8802 = vmatpush1.bf16.msra.mxu0 0
        %8803 = vmatprep.subr.bf16.mxu0 0
        %8804 = vmatpush1.bf16.msra.mxu0 0
        %8805 = vmatprep.subr.bf16.mxu0 0
        %8806 = vmatpush1.bf16.msra.mxu0 0
        %8807 = vmatprep.subr.bf16.mxu0 0
        %8808 = vmatpush1.bf16.msra.mxu0 0
        %8809 = vmatprep.subr.bf16.mxu0 0
        %8810 = vmatpush1.bf16.msra.mxu0 0
        %8811 = vmatprep.subr.bf16.mxu0 0
        %8812 = vmatpush1.bf16.msra.mxu0 0
        %8813 = vmatprep.subr.bf16.mxu0 0
        %8814 = vmatpush1.bf16.msra.mxu0 0
        %8815 = vmatprep.subr.bf16.mxu0 0
        %8816 = vmatpush1.bf16.msra.mxu0 0
        %8817 = vmatprep.subr.bf16.mxu0 0
        %8818 = vmatpush1.bf16.msra.mxu0 0
        %8819 = vmatprep.subr.bf16.mxu0 0
        %8820 = vmatpush1.bf16.msra.mxu0 0
        %8821 = vmatprep.subr.bf16.mxu0 0
        %8822 = vmatpush1.bf16.msra.mxu0 0
        %8823 = vmatprep.subr.bf16.mxu0 0
        %8824 = vmatpush1.bf16.msra.mxu0 0
        %8825 = vmatprep.subr.bf16.mxu0 0
        %8826 = vmatpush1.bf16.msra.mxu0 0
        %8827 = vmatprep.mubr.bf16.mxu0 0
        %8828 = vmatmul.mubr.bf16.gmra.mrb[0].mxu0 %v8728
        %v8829 = vpop.f32.mrb[0].mxu0
        %v8830 = vadd.f32 0.0, %v8829
        %v8831 = vpop.f32.mrb[0].mxu0
        %v8832 = vadd.f32 0.0, %v8831
        %v8833 = vpop.f32.mrb[0].mxu0
        %v8834 = vpop.f32.mrb[0].mxu0
        %8835 = vdwg.mxu0
        %8836 = vmatprep.subr.bf16.mxu0 %v8746
        %8837 = vmatpush1.bf16.msra.mxu0 %v8743
        %8838 = vmatprep.subr.bf16.mxu0 0
        %8839 = vmatpush1.bf16.msra.mxu0 0
        %8840 = vmatprep.subr.bf16.mxu0 0
        %8841 = vmatpush1.bf16.msra.mxu0 0
        %8842 = vmatprep.subr.bf16.mxu0 0
        %8843 = vmatpush1.bf16.msra.mxu0 0
        %8844 = vmatprep.subr.bf16.mxu0 0
        %8845 = vmatpush1.bf16.msra.mxu0 0
        %8846 = vmatprep.subr.bf16.mxu0 0
        %8847 = vmatpush1.bf16.msra.mxu0 0
        %8848 = vmatprep.subr.bf16.mxu0 0
        %8849 = vmatpush1.bf16.msra.mxu0 0
        %8850 = vmatprep.subr.bf16.mxu0 0
        %8851 = vmatpush1.bf16.msra.mxu0 0
        %8852 = vmatprep.subr.bf16.mxu0 0
        %8853 = vmatpush1.bf16.msra.mxu0 0
        %8854 = vmatprep.subr.bf16.mxu0 0
        %8855 = vmatpush1.bf16.msra.mxu0 0
        %8856 = vmatprep.subr.bf16.mxu0 0
        %8857 = vmatpush1.bf16.msra.mxu0 0
        %8858 = vmatprep.subr.bf16.mxu0 0
        %8859 = vmatpush1.bf16.msra.mxu0 0
        %8860 = vmatprep.subr.bf16.mxu0 0
        %8861 = vmatpush1.bf16.msra.mxu0 0
        %8862 = vmatprep.subr.bf16.mxu0 0
        %8863 = vmatpush1.bf16.msra.mxu0 0
        %8864 = vmatprep.subr.bf16.mxu0 0
        %8865 = vmatpush1.bf16.msra.mxu0 0
        %8866 = vmatprep.subr.bf16.mxu0 0
        %8867 = vmatpush1.bf16.msra.mxu0 0
        %8868 = vmatprep.mubr.bf16.mxu0 0
        %8869 = vmatmul.mubr.bf16.gmra.mrb[0].mxu0 %v8728
        %v8870 = vpop.f32.mrb[0].mxu0
        %v8871 = vadd.f32 0.0, %v8870
        %v8872 = vpop.f32.mrb[0].mxu0
        %v8873 = vadd.f32 0.0, %v8872
        %v8874 = vpop.f32.mrb[0].mxu0
        %v8875 = vpop.f32.mrb[0].mxu0
        %8876 = vdwg.mxu0
        %8877 = vmatprep.subr.bf16.mxu0 %v8752
        %8878 = vmatpush1.bf16.msra.mxu0 %v8749
        %8879 = vmatprep.subr.bf16.mxu0 0
        %8880 = vmatpush1.bf16.msra.mxu0 0
        %8881 = vmatprep.subr.bf16.mxu0 0
        %8882 = vmatpush1.bf16.msra.mxu0 0
        %8883 = vmatprep.subr.bf16.mxu0 0
        %8884 = vmatpush1.bf16.msra.mxu0 0
        %8885 = vmatprep.subr.bf16.mxu0 0
        %8886 = vmatpush1.bf16.msra.mxu0 0
        %8887 = vmatprep.subr.bf16.mxu0 0
        %8888 = vmatpush1.bf16.msra.mxu0 0
        %8889 = vmatprep.subr.bf16.mxu0 0
        %8890 = vmatpush1.bf16.msra.mxu0 0
        %8891 = vmatprep.subr.bf16.mxu0 0
        %8892 = vmatpush1.bf16.msra.mxu0 0
        %8893 = vmatprep.subr.bf16.mxu0 0
        %8894 = vmatpush1.bf16.msra.mxu0 0
        %8895 = vmatprep.subr.bf16.mxu0 0
        %8896 = vmatpush1.bf16.msra.mxu0 0
        %8897 = vmatprep.subr.bf16.mxu0 0
        %8898 = vmatpush1.bf16.msra.mxu0 0
        %8899 = vmatprep.subr.bf16.mxu0 0
        %8900 = vmatpush1.bf16.msra.mxu0 0
        %8901 = vmatprep.subr.bf16.mxu0 0
        %8902 = vmatpush1.bf16.msra.mxu0 0
        %8903 = vmatprep.subr.bf16.mxu0 0
        %8904 = vmatpush1.bf16.msra.mxu0 0
        %8905 = vmatprep.subr.bf16.mxu0 0
        %8906 = vmatpush1.bf16.msra.mxu0 0
        %8907 = vmatprep.subr.bf16.mxu0 0
        %8908 = vmatpush1.bf16.msra.mxu0 0
        %8909 = vmatprep.mubr.bf16.mxu0 0
        %8910 = vmatmul.mubr.bf16.gmra.mrb[0].mxu0 %v8728
        %v8911 = vpop.f32.mrb[0].mxu0
        %v8912 = vadd.f32 0.0, %v8911
        %v8913 = vpop.f32.mrb[0].mxu0
        %v8914 = vadd.f32 0.0, %v8913
        %v8915 = vpop.f32.mrb[0].mxu0
        %v8916 = vpop.f32.mrb[0].mxu0
        %8917 = vdwg.mxu0
        %v8918 = vadd.f32 %v8632, %v8789
        %v8919 = vadd.f32 %v8633, %v8791
        %v8920 = vadd.f32 %v8634, %v8830
        %v8921 = vadd.f32 %v8635, %v8832
        %v8922 = vadd.f32 %v8636, %v8871
        %v8923 = vadd.f32 %v8637, %v8873
        %v8924 = vadd.f32 %v8638, %v8912
        %v8925 = vadd.f32 %v8639, %v8914
        %v8926 = vld [vmem:[#allocation2 + $0x6] sm:$0xff]
        %v8927 = vld [vmem:[#allocation2 + $0xe] sm:$0xff]
        %v8928 = vld [vmem:[#allocation2 + $0x16] sm:$0x3]
        %v8929 = vmul.bf16 %v8926, %v3851
        %v8930 = vmul.bf16 %v8927, %v3853
        %v8931 = vmul.bf16 %v8928, %v3850
        %v8932 = vld [vmem:[%s3] sm:$0x3]
        %v8935 = vunpack.c.l.s4 1983009808
        %v8936 = vunpack.c.0.s8 %v8935
        %v8937 = vlaneseq
        %v8938 = vshrl.u32 %v8937, 7
        %v8939 = vsub.s32 %v8936, %v8938
        %v8940 = vrot.slane %v8932, %v8939
        %8941 = vrot.lane.b32.xlu0 %v8940, 24
        %v8942 = vpop.permute.xlu0 %8941
        %v8946 = vcombine.high %v8929, %v8929
        %v8948 = vunpack.c.l.s4 1983009808
        %v8949 = vunpack.c.0.s8 %v8948
        %v8950 = vlaneseq
        %v8951 = vshrl.u32 %v8950, 7
        %v8952 = vsub.s32 %v8949, %v8951
        %v8953 = vrot.slane %v8929, %v8952
        %v8955 = vunpack.c.l.s4 1983009808
        %v8956 = vunpack.c.0.s8 %v8955
        %v8957 = vlaneseq
        %v8958 = vshrl.u32 %v8957, 7
        %v8959 = vsub.s32 %v8956, %v8958
        %v8960 = vrot.slane %v8946, %v8959
        %v8961 = vcombine.high %v8953, %v8953
        %v8962 = vcombine.high %v8960, %v8960
        %v8963 = vcombine.high %v8930, %v8930
        %v8965 = vunpack.c.l.s4 1983009808
        %v8966 = vunpack.c.0.s8 %v8965
        %v8967 = vlaneseq
        %v8968 = vshrl.u32 %v8967, 7
        %v8969 = vsub.s32 %v8966, %v8968
        %v8970 = vrot.slane %v8930, %v8969
        %v8972 = vunpack.c.l.s4 1983009808
        %v8973 = vunpack.c.0.s8 %v8972
        %v8974 = vlaneseq
        %v8975 = vshrl.u32 %v8974, 7
        %v8976 = vsub.s32 %v8973, %v8975
        %v8977 = vrot.slane %v8963, %v8976
        %v8978 = vcombine.high %v8970, %v8970
        %v8979 = vcombine.high %v8977, %v8977
        %v8981 = vunpack.c.l.s4 1983009808
        %v8982 = vunpack.c.0.s8 %v8981
        %v8983 = vlaneseq
        %v8984 = vshrl.u32 %v8983, 7
        %v8985 = vsub.s32 %v8982, %v8984
        %v8986 = vrot.slane %v8931, %v8985
        %8987 = vrot.lane.b32.xlu0 %v8953, 119
        %v8988 = vpop.permute.xlu0 %8987
        %8989 = vrot.lane.b32.xlu0 %v8961, 119
        %v8990 = vpop.permute.xlu0 %8989
        %8991 = vrot.lane.b32.xlu0 %v8960, 119
        %v8992 = vpop.permute.xlu0 %8991
        %8993 = vrot.lane.b32.xlu0 %v8962, 119
        %v8994 = vpop.permute.xlu0 %8993
        %8995 = vrot.lane.b32.xlu0 %v8970, 119
        %v8996 = vpop.permute.xlu0 %8995
        %8997 = vrot.lane.b32.xlu0 %v8978, 119
        %v8998 = vpop.permute.xlu0 %8997
        %8999 = vrot.lane.b32.xlu0 %v8977, 119
        %v9000 = vpop.permute.xlu0 %8999
        %9001 = vrot.lane.b32.xlu0 %v8979, 119
        %v9002 = vpop.permute.xlu0 %9001
        %9003 = vrot.lane.b32.xlu0 %v8986, 119
        %v9004 = vpop.permute.xlu0 %9003
        %v9005 = vsel %vm682, %v8988, %v8990
        %v9006 = vsel %vm682, %v8990, %v8992
        %v9007 = vsel %vm682, %v8992, %v8994
        %v9008 = vsel %vm682, %v8994, %v8996
        %v9009 = vsel %vm682, %v8996, %v8998
        %v9010 = vsel %vm682, %v8998, %v9000
        %v9011 = vsel %vm682, %v9000, %v9002
        %v9012 = vsel %vm682, %v9002, %v9004
        %v9014 = vsel %vm889, %v8942, 0
        %v9017 = vsel %vm893, %v9005, 0
        %v9020 = vsel %vm893, %v9006, 0
        %v9023 = vsel %vm893, %v9007, 0
        %v9026 = vsel %vm893, %v9008, 0
        %v9029 = vsel %vm893, %v9009, 0
        %v9032 = vsel %vm893, %v9010, 0
        %v9035 = vsel %vm893, %v9011, 0
        %v9038 = vsel %vm893, %v9012, 0
        %9040 = vmatprep.subr.bf16.mxu0 %v9020
        %9041 = vmatpush1.bf16.msra.mxu0 %v9017
        %9042 = vmatprep.subr.bf16.mxu0 0
        %9043 = vmatpush1.bf16.msra.mxu0 0
        %9044 = vmatprep.subr.bf16.mxu0 0
        %9045 = vmatpush1.bf16.msra.mxu0 0
        %9046 = vmatprep.subr.bf16.mxu0 0
        %9047 = vmatpush1.bf16.msra.mxu0 0
        %9048 = vmatprep.subr.bf16.mxu0 0
        %9049 = vmatpush1.bf16.msra.mxu0 0
        %9050 = vmatprep.subr.bf16.mxu0 0
        %9051 = vmatpush1.bf16.msra.mxu0 0
        %9052 = vmatprep.subr.bf16.mxu0 0
        %9053 = vmatpush1.bf16.msra.mxu0 0
        %9054 = vmatprep.subr.bf16.mxu0 0
        %9055 = vmatpush1.bf16.msra.mxu0 0
        %9056 = vmatprep.subr.bf16.mxu0 0
        %9057 = vmatpush1.bf16.msra.mxu0 0
        %9058 = vmatprep.subr.bf16.mxu0 0
        %9059 = vmatpush1.bf16.msra.mxu0 0
        %9060 = vmatprep.subr.bf16.mxu0 0
        %9061 = vmatpush1.bf16.msra.mxu0 0
        %9062 = vmatprep.subr.bf16.mxu0 0
        %9063 = vmatpush1.bf16.msra.mxu0 0
        %9064 = vmatprep.subr.bf16.mxu0 0
        %9065 = vmatpush1.bf16.msra.mxu0 0
        %9066 = vmatprep.subr.bf16.mxu0 0
        %9067 = vmatpush1.bf16.msra.mxu0 0
        %9068 = vmatprep.subr.bf16.mxu0 0
        %9069 = vmatpush1.bf16.msra.mxu0 0
        %9070 = vmatprep.subr.bf16.mxu0 0
        %9071 = vmatpush1.bf16.msra.mxu0 0
        %9072 = vmatprep.mubr.bf16.mxu0 0
        %9073 = vmatmul.mubr.bf16.gmra.mrb[0].mxu0 %v9014
        %v9074 = vpop.f32.mrb[0].mxu0
        %v9075 = vadd.f32 0.0, %v9074
        %v9076 = vpop.f32.mrb[0].mxu0
        %v9077 = vadd.f32 0.0, %v9076
        %v9078 = vpop.f32.mrb[0].mxu0
        %v9079 = vpop.f32.mrb[0].mxu0
        %9080 = vdwg.mxu0
        %9081 = vmatprep.subr.bf16.mxu0 %v9026
        %9082 = vmatpush1.bf16.msra.mxu0 %v9023
        %9083 = vmatprep.subr.bf16.mxu0 0
        %9084 = vmatpush1.bf16.msra.mxu0 0
        %9085 = vmatprep.subr.bf16.mxu0 0
        %9086 = vmatpush1.bf16.msra.mxu0 0
        %9087 = vmatprep.subr.bf16.mxu0 0
        %9088 = vmatpush1.bf16.msra.mxu0 0
        %9089 = vmatprep.subr.bf16.mxu0 0
        %9090 = vmatpush1.bf16.msra.mxu0 0
        %9091 = vmatprep.subr.bf16.mxu0 0
        %9092 = vmatpush1.bf16.msra.mxu0 0
        %9093 = vmatprep.subr.bf16.mxu0 0
        %9094 = vmatpush1.bf16.msra.mxu0 0
        %9095 = vmatprep.subr.bf16.mxu0 0
        %9096 = vmatpush1.bf16.msra.mxu0 0
        %9097 = vmatprep.subr.bf16.mxu0 0
        %9098 = vmatpush1.bf16.msra.mxu0 0
        %9099 = vmatprep.subr.bf16.mxu0 0
        %9100 = vmatpush1.bf16.msra.mxu0 0
        %9101 = vmatprep.subr.bf16.mxu0 0
        %9102 = vmatpush1.bf16.msra.mxu0 0
        %9103 = vmatprep.subr.bf16.mxu0 0
        %9104 = vmatpush1.bf16.msra.mxu0 0
        %9105 = vmatprep.subr.bf16.mxu0 0
        %9106 = vmatpush1.bf16.msra.mxu0 0
        %9107 = vmatprep.subr.bf16.mxu0 0
        %9108 = vmatpush1.bf16.msra.mxu0 0
        %9109 = vmatprep.subr.bf16.mxu0 0
        %9110 = vmatpush1.bf16.msra.mxu0 0
        %9111 = vmatprep.subr.bf16.mxu0 0
        %9112 = vmatpush1.bf16.msra.mxu0 0
        %9113 = vmatprep.mubr.bf16.mxu0 0
        %9114 = vmatmul.mubr.bf16.gmra.mrb[0].mxu0 %v9014
        %v9115 = vpop.f32.mrb[0].mxu0
        %v9116 = vadd.f32 0.0, %v9115
        %v9117 = vpop.f32.mrb[0].mxu0
        %v9118 = vadd.f32 0.0, %v9117
        %v9119 = vpop.f32.mrb[0].mxu0
        %v9120 = vpop.f32.mrb[0].mxu0
        %9121 = vdwg.mxu0
        %9122 = vmatprep.subr.bf16.mxu0 %v9032
        %9123 = vmatpush1.bf16.msra.mxu0 %v9029
        %9124 = vmatprep.subr.bf16.mxu0 0
        %9125 = vmatpush1.bf16.msra.mxu0 0
        %9126 = vmatprep.subr.bf16.mxu0 0
        %9127 = vmatpush1.bf16.msra.mxu0 0
        %9128 = vmatprep.subr.bf16.mxu0 0
        %9129 = vmatpush1.bf16.msra.mxu0 0
        %9130 = vmatprep.subr.bf16.mxu0 0
        %9131 = vmatpush1.bf16.msra.mxu0 0
        %9132 = vmatprep.subr.bf16.mxu0 0
        %9133 = vmatpush1.bf16.msra.mxu0 0
        %9134 = vmatprep.subr.bf16.mxu0 0
        %9135 = vmatpush1.bf16.msra.mxu0 0
        %9136 = vmatprep.subr.bf16.mxu0 0
        %9137 = vmatpush1.bf16.msra.mxu0 0
        %9138 = vmatprep.subr.bf16.mxu0 0
        %9139 = vmatpush1.bf16.msra.mxu0 0
        %9140 = vmatprep.subr.bf16.mxu0 0
        %9141 = vmatpush1.bf16.msra.mxu0 0
        %9142 = vmatprep.subr.bf16.mxu0 0
        %9143 = vmatpush1.bf16.msra.mxu0 0
        %9144 = vmatprep.subr.bf16.mxu0 0
        %9145 = vmatpush1.bf16.msra.mxu0 0
        %9146 = vmatprep.subr.bf16.mxu0 0
        %9147 = vmatpush1.bf16.msra.mxu0 0
        %9148 = vmatprep.subr.bf16.mxu0 0
        %9149 = vmatpush1.bf16.msra.mxu0 0
        %9150 = vmatprep.subr.bf16.mxu0 0
        %9151 = vmatpush1.bf16.msra.mxu0 0
        %9152 = vmatprep.subr.bf16.mxu0 0
        %9153 = vmatpush1.bf16.msra.mxu0 0
        %9154 = vmatprep.mubr.bf16.mxu0 0
        %9155 = vmatmul.mubr.bf16.gmra.mrb[0].mxu0 %v9014
        %v9156 = vpop.f32.mrb[0].mxu0
        %v9157 = vadd.f32 0.0, %v9156
        %v9158 = vpop.f32.mrb[0].mxu0
        %v9159 = vadd.f32 0.0, %v9158
        %v9160 = vpop.f32.mrb[0].mxu0
        %v9161 = vpop.f32.mrb[0].mxu0
        %9162 = vdwg.mxu0
        %9163 = vmatprep.subr.bf16.mxu0 %v9038
        %9164 = vmatpush1.bf16.msra.mxu0 %v9035
        %9165 = vmatprep.subr.bf16.mxu0 0
        %9166 = vmatpush1.bf16.msra.mxu0 0
        %9167 = vmatprep.subr.bf16.mxu0 0
        %9168 = vmatpush1.bf16.msra.mxu0 0
        %9169 = vmatprep.subr.bf16.mxu0 0
        %9170 = vmatpush1.bf16.msra.mxu0 0
        %9171 = vmatprep.subr.bf16.mxu0 0
        %9172 = vmatpush1.bf16.msra.mxu0 0
        %9173 = vmatprep.subr.bf16.mxu0 0
        %9174 = vmatpush1.bf16.msra.mxu0 0
        %9175 = vmatprep.subr.bf16.mxu0 0
        %9176 = vmatpush1.bf16.msra.mxu0 0
        %9177 = vmatprep.subr.bf16.mxu0 0
        %9178 = vmatpush1.bf16.msra.mxu0 0
        %9179 = vmatprep.subr.bf16.mxu0 0
        %9180 = vmatpush1.bf16.msra.mxu0 0
        %9181 = vmatprep.subr.bf16.mxu0 0
        %9182 = vmatpush1.bf16.msra.mxu0 0
        %9183 = vmatprep.subr.bf16.mxu0 0
        %9184 = vmatpush1.bf16.msra.mxu0 0
        %9185 = vmatprep.subr.bf16.mxu0 0
        %9186 = vmatpush1.bf16.msra.mxu0 0
        %9187 = vmatprep.subr.bf16.mxu0 0
        %9188 = vmatpush1.bf16.msra.mxu0 0
        %9189 = vmatprep.subr.bf16.mxu0 0
        %9190 = vmatpush1.bf16.msra.mxu0 0
        %9191 = vmatprep.subr.bf16.mxu0 0
        %9192 = vmatpush1.bf16.msra.mxu0 0
        %9193 = vmatprep.subr.bf16.mxu0 0
        %9194 = vmatpush1.bf16.msra.mxu0 0
        %9195 = vmatprep.mubr.bf16.mxu0 0
        %9196 = vmatmul.mubr.bf16.gmra.mrb[0].mxu0 %v9014
        %v9197 = vpop.f32.mrb[0].mxu0
        %v9198 = vadd.f32 0.0, %v9197
        %v9199 = vpop.f32.mrb[0].mxu0
        %v9200 = vadd.f32 0.0, %v9199
        %v9201 = vpop.f32.mrb[0].mxu0
        %v9202 = vpop.f32.mrb[0].mxu0
        %9203 = vdwg.mxu0
        %v9204 = vadd.f32 %v8918, %v9075
        %v9205 = vadd.f32 %v8919, %v9077
        %v9206 = vadd.f32 %v8920, %v9116
        %v9207 = vadd.f32 %v8921, %v9118
        %v9208 = vadd.f32 %v8922, %v9157
        %v9209 = vadd.f32 %v8923, %v9159
        %v9210 = vadd.f32 %v8924, %v9198
        %v9211 = vadd.f32 %v8925, %v9200
        %9212 = vset.pattern.permute.xlu0 1
        %9213 = vperm.xlu0 %9212, %v286
        %v9214 = vpop.permute.xlu0 %9213
        %v9216 = vadd.f32 %v9204, %v9214
        %v9217 = vadd.f32 %v9205, %v9214
        %v9218 = vadd.f32 %v9206, %v9214
        %v9219 = vadd.f32 %v9207, %v9214
        %v9220 = vadd.f32 %v9208, %v9214
        %v9221 = vadd.f32 %v9209, %v9214
        %v9222 = vadd.f32 %v9210, %v9214
        %v9223 = vadd.f32 %v9211, %v9214
        %v9224 = vmax.f32 %v9216, 0.0
        %v9225 = vmax.f32 %v9217, 0.0
        %v9226 = vmax.f32 %v9218, 0.0
        %v9227 = vmax.f32 %v9219, 0.0
        %v9228 = vmax.f32 %v9220, 0.0
        %v9229 = vmax.f32 %v9221, 0.0
        %v9230 = vmax.f32 %v9222, 0.0
        %v9231 = vmax.f32 %v9223, 0.0
        %v9232 = vld [vmem:[%s4] sm:$0xf]
        %v9233 = vld [vmem:[%s4 + $0x4] sm:$0xf]
        %v9234 = vpack.c.bf16 %v9224, %v9224
        %v9235 = vpack.c.bf16 %v9225, %v9225
        %v9236 = vpack.c.bf16 %v9226, %v9226
        %v9237 = vpack.c.bf16 %v9227, %v9227
        %v9238 = vpack.c.bf16 %v9228, %v9228
        %v9239 = vpack.c.bf16 %v9229, %v9229
        %v9240 = vpack.c.bf16 %v9230, %v9230
        %v9241 = vpack.c.bf16 %v9231, %v9231
        %9243 = vset.pattern.permute.xlu0 2
        %9244 = vperm.xlu0 %9243, %v287
        %v9245 = vpop.permute.xlu0 %9244
        %9248 = vset.pattern.permute.xlu0 2
        %9249 = vperm.xlu0 %9248, %v288
        %v9250 = vpop.permute.xlu0 %9249
        %v9254 = vunpack.c.l.b16 %v9232
        %v9255 = vunpack.c.l.b16 %v9233
        %v9256 = vpack.c.b16 %v9255, %v9254
        %v9258 = vsel %vm889, %v9256, 0
        %v9261 = vsel %vm893, %v9234, 0
        %v9264 = vsel %vm893, %v9235, 0
        %v9267 = vsel %vm893, %v9236, 0
        %v9270 = vsel %vm893, %v9237, 0
        %v9273 = vsel %vm893, %v9238, 0
        %v9276 = vsel %vm893, %v9239, 0
        %v9279 = vsel %vm893, %v9240, 0
        %v9282 = vsel %vm893, %v9241, 0
        %9284 = vmatprep.subr.bf16.mxu0 %v9264
        %9285 = vmatpush1.bf16.msra.mxu0 %v9261
        %9286 = vmatprep.subr.bf16.mxu0 0
        %9287 = vmatpush1.bf16.msra.mxu0 0
        %9288 = vmatprep.subr.bf16.mxu0 0
        %9289 = vmatpush1.bf16.msra.mxu0 0
        %9290 = vmatprep.subr.bf16.mxu0 0
        %9291 = vmatpush1.bf16.msra.mxu0 0
        %9292 = vmatprep.subr.bf16.mxu0 0
        %9293 = vmatpush1.bf16.msra.mxu0 0
        %9294 = vmatprep.subr.bf16.mxu0 0
        %9295 = vmatpush1.bf16.msra.mxu0 0
        %9296 = vmatprep.subr.bf16.mxu0 0
        %9297 = vmatpush1.bf16.msra.mxu0 0
        %9298 = vmatprep.subr.bf16.mxu0 0
        %9299 = vmatpush1.bf16.msra.mxu0 0
        %9300 = vmatprep.subr.bf16.mxu0 0
        %9301 = vmatpush1.bf16.msra.mxu0 0
        %9302 = vmatprep.subr.bf16.mxu0 0
        %9303 = vmatpush1.bf16.msra.mxu0 0
        %9304 = vmatprep.subr.bf16.mxu0 0
        %9305 = vmatpush1.bf16.msra.mxu0 0
        %9306 = vmatprep.subr.bf16.mxu0 0
        %9307 = vmatpush1.bf16.msra.mxu0 0
        %9308 = vmatprep.subr.bf16.mxu0 0
        %9309 = vmatpush1.bf16.msra.mxu0 0
        %9310 = vmatprep.subr.bf16.mxu0 0
        %9311 = vmatpush1.bf16.msra.mxu0 0
        %9312 = vmatprep.subr.bf16.mxu0 0
        %9313 = vmatpush1.bf16.msra.mxu0 0
        %9314 = vmatprep.subr.bf16.mxu0 0
        %9315 = vmatpush1.bf16.msra.mxu0 0
        %9316 = vmatprep.mubr.bf16.mxu0 0
        %9317 = vmatmul.mubr.bf16.gmra.mrb[0].mxu0 %v9258
        %v9318 = vpop.f32.mrb[0].mxu0
        %v9319 = vadd.f32 %v9245, %v9318
        %v9320 = vpop.f32.mrb[0].mxu0
        %v9321 = vadd.f32 %v9245, %v9320
        %v9322 = vpop.f32.mrb[0].mxu0
        %v9323 = vadd.f32 %v9250, %v9322
        %v9324 = vpop.f32.mrb[0].mxu0
        %v9325 = vadd.f32 %v9250, %v9324
        %9326 = vdwg.mxu0
        %9327 = vmatprep.subr.bf16.mxu0 %v9270
        %9328 = vmatpush1.bf16.msra.mxu0 %v9267
        %9329 = vmatprep.subr.bf16.mxu0 0
        %9330 = vmatpush1.bf16.msra.mxu0 0
        %9331 = vmatprep.subr.bf16.mxu0 0
        %9332 = vmatpush1.bf16.msra.mxu0 0
        %9333 = vmatprep.subr.bf16.mxu0 0
        %9334 = vmatpush1.bf16.msra.mxu0 0
        %9335 = vmatprep.subr.bf16.mxu0 0
        %9336 = vmatpush1.bf16.msra.mxu0 0
        %9337 = vmatprep.subr.bf16.mxu0 0
        %9338 = vmatpush1.bf16.msra.mxu0 0
        %9339 = vmatprep.subr.bf16.mxu0 0
        %9340 = vmatpush1.bf16.msra.mxu0 0
        %9341 = vmatprep.subr.bf16.mxu0 0
        %9342 = vmatpush1.bf16.msra.mxu0 0
        %9343 = vmatprep.subr.bf16.mxu0 0
        %9344 = vmatpush1.bf16.msra.mxu0 0
        %9345 = vmatprep.subr.bf16.mxu0 0
        %9346 = vmatpush1.bf16.msra.mxu0 0
        %9347 = vmatprep.subr.bf16.mxu0 0
        %9348 = vmatpush1.bf16.msra.mxu0 0
        %9349 = vmatprep.subr.bf16.mxu0 0
        %9350 = vmatpush1.bf16.msra.mxu0 0
        %9351 = vmatprep.subr.bf16.mxu0 0
        %9352 = vmatpush1.bf16.msra.mxu0 0
        %9353 = vmatprep.subr.bf16.mxu0 0
        %9354 = vmatpush1.bf16.msra.mxu0 0
        %9355 = vmatprep.subr.bf16.mxu0 0
        %9356 = vmatpush1.bf16.msra.mxu0 0
        %9357 = vmatprep.subr.bf16.mxu0 0
        %9358 = vmatpush1.bf16.msra.mxu0 0
        %9359 = vmatprep.mubr.bf16.mxu0 0
        %9360 = vmatmul.mubr.bf16.gmra.mrb[0].mxu0 %v9258
        %v9361 = vpop.f32.mrb[0].mxu0
        %v9362 = vadd.f32 %v9245, %v9361
        %v9363 = vpop.f32.mrb[0].mxu0
        %v9364 = vadd.f32 %v9245, %v9363
        %v9365 = vpop.f32.mrb[0].mxu0
        %v9366 = vadd.f32 %v9250, %v9365
        %v9367 = vpop.f32.mrb[0].mxu0
        %v9368 = vadd.f32 %v9250, %v9367
        %9369 = vdwg.mxu0
        %9370 = vmatprep.subr.bf16.mxu0 %v9276
        %9371 = vmatpush1.bf16.msra.mxu0 %v9273
        %9372 = vmatprep.subr.bf16.mxu0 0
        %9373 = vmatpush1.bf16.msra.mxu0 0
        %9374 = vmatprep.subr.bf16.mxu0 0
        %9375 = vmatpush1.bf16.msra.mxu0 0
        %9376 = vmatprep.subr.bf16.mxu0 0
        %9377 = vmatpush1.bf16.msra.mxu0 0
        %9378 = vmatprep.subr.bf16.mxu0 0
        %9379 = vmatpush1.bf16.msra.mxu0 0
        %9380 = vmatprep.subr.bf16.mxu0 0
        %9381 = vmatpush1.bf16.msra.mxu0 0
        %9382 = vmatprep.subr.bf16.mxu0 0
        %9383 = vmatpush1.bf16.msra.mxu0 0
        %9384 = vmatprep.subr.bf16.mxu0 0
        %9385 = vmatpush1.bf16.msra.mxu0 0
        %9386 = vmatprep.subr.bf16.mxu0 0
        %9387 = vmatpush1.bf16.msra.mxu0 0
        %9388 = vmatprep.subr.bf16.mxu0 0
        %9389 = vmatpush1.bf16.msra.mxu0 0
        %9390 = vmatprep.subr.bf16.mxu0 0
        %9391 = vmatpush1.bf16.msra.mxu0 0
        %9392 = vmatprep.subr.bf16.mxu0 0
        %9393 = vmatpush1.bf16.msra.mxu0 0
        %9394 = vmatprep.subr.bf16.mxu0 0
        %9395 = vmatpush1.bf16.msra.mxu0 0
        %9396 = vmatprep.subr.bf16.mxu0 0
        %9397 = vmatpush1.bf16.msra.mxu0 0
        %9398 = vmatprep.subr.bf16.mxu0 0
        %9399 = vmatpush1.bf16.msra.mxu0 0
        %9400 = vmatprep.subr.bf16.mxu0 0
        %9401 = vmatpush1.bf16.msra.mxu0 0
        %9402 = vmatprep.mubr.bf16.mxu0 0
        %9403 = vmatmul.mubr.bf16.gmra.mrb[0].mxu0 %v9258
        %v9404 = vpop.f32.mrb[0].mxu0
        %v9405 = vadd.f32 %v9245, %v9404
        %v9406 = vpop.f32.mrb[0].mxu0
        %v9407 = vadd.f32 %v9245, %v9406
        %v9408 = vpop.f32.mrb[0].mxu0
        %v9409 = vadd.f32 %v9250, %v9408
        %v9410 = vpop.f32.mrb[0].mxu0
        %v9411 = vadd.f32 %v9250, %v9410
        %9412 = vdwg.mxu0
        %9413 = vmatprep.subr.bf16.mxu0 %v9282
        %9414 = vmatpush1.bf16.msra.mxu0 %v9279
        %9415 = vmatprep.subr.bf16.mxu0 0
        %9416 = vmatpush1.bf16.msra.mxu0 0
        %9417 = vmatprep.subr.bf16.mxu0 0
        %9418 = vmatpush1.bf16.msra.mxu0 0
        %9419 = vmatprep.subr.bf16.mxu0 0
        %9420 = vmatpush1.bf16.msra.mxu0 0
        %9421 = vmatprep.subr.bf16.mxu0 0
        %9422 = vmatpush1.bf16.msra.mxu0 0
        %9423 = vmatprep.subr.bf16.mxu0 0
        %9424 = vmatpush1.bf16.msra.mxu0 0
        %9425 = vmatprep.subr.bf16.mxu0 0
        %9426 = vmatpush1.bf16.msra.mxu0 0
        %9427 = vmatprep.subr.bf16.mxu0 0
        %9428 = vmatpush1.bf16.msra.mxu0 0
        %9429 = vmatprep.subr.bf16.mxu0 0
        %9430 = vmatpush1.bf16.msra.mxu0 0
        %9431 = vmatprep.subr.bf16.mxu0 0
        %9432 = vmatpush1.bf16.msra.mxu0 0
        %9433 = vmatprep.subr.bf16.mxu0 0
        %9434 = vmatpush1.bf16.msra.mxu0 0
        %9435 = vmatprep.subr.bf16.mxu0 0
        %9436 = vmatpush1.bf16.msra.mxu0 0
        %9437 = vmatprep.subr.bf16.mxu0 0
        %9438 = vmatpush1.bf16.msra.mxu0 0
        %9439 = vmatprep.subr.bf16.mxu0 0
        %9440 = vmatpush1.bf16.msra.mxu0 0
        %9441 = vmatprep.subr.bf16.mxu0 0
        %9442 = vmatpush1.bf16.msra.mxu0 0
        %9443 = vmatprep.subr.bf16.mxu0 0
        %9444 = vmatpush1.bf16.msra.mxu0 0
        %9445 = vmatprep.mubr.bf16.mxu0 0
        %9446 = vmatmul.mubr.bf16.gmra.mrb[0].mxu0 %v9258
        %v9447 = vpop.f32.mrb[0].mxu0
        %v9448 = vadd.f32 %v9245, %v9447
        %v9449 = vpop.f32.mrb[0].mxu0
        %v9450 = vadd.f32 %v9245, %v9449
        %v9451 = vpop.f32.mrb[0].mxu0
        %v9452 = vadd.f32 %v9250, %v9451
        %v9453 = vpop.f32.mrb[0].mxu0
        %v9454 = vadd.f32 %v9250, %v9453
        %9455 = vdwg.mxu0
        %v9456 = vld [vmem:[%s252] sm:$0xff]
        %v9457 = vld [vmem:[%s252 + $0x8] sm:$0xff]
        %v9458 = vld [vmem:[%s252 + $0x10] sm:$0xff]
        %v9459 = vld [vmem:[%s252 + $0x18] sm:$0xff]
        %v9460 = vld [vmem:[%s252 + $0x20] sm:$0xff]
        %v9461 = vld [vmem:[%s252 + $0x28] sm:$0xff]
        %v9462 = vld [vmem:[%s252 + $0x30] sm:$0xff]
        %v9463 = vld [vmem:[%s252 + $0x38] sm:$0xff]
        %v9464 = vld [vmem:[%s252 + $0x40] sm:$0xff]
        %v9465 = vld [vmem:[%s252 + $0x48] sm:$0xff]
        %v9466 = vld [vmem:[%s252 + $0x50] sm:$0xff]
        %v9467 = vld [vmem:[%s252 + $0x58] sm:$0xff]
        %v9468 = vld [vmem:[%s252 + $0x60] sm:$0xff]
        %v9469 = vld [vmem:[%s252 + $0x68] sm:$0xff]
        %v9470 = vld [vmem:[%s252 + $0x70] sm:$0xff]
        %v9471 = vld [vmem:[%s252 + $0x78] sm:$0xff]
        %v9472 = vadd.f32 %v9319, %v9456
        %v9473 = vadd.f32 %v9321, %v9457
        %v9474 = vadd.f32 %v9362, %v9458
        %v9475 = vadd.f32 %v9364, %v9459
        %v9476 = vadd.f32 %v9405, %v9460
        %v9477 = vadd.f32 %v9407, %v9461
        %v9478 = vadd.f32 %v9448, %v9462
        %v9479 = vadd.f32 %v9450, %v9463
        %v9480 = vadd.f32 %v9323, %v9464
        %v9481 = vadd.f32 %v9325, %v9465
        %v9482 = vadd.f32 %v9366, %v9466
        %v9483 = vadd.f32 %v9368, %v9467
        %v9484 = vadd.f32 %v9409, %v9468
        %v9485 = vadd.f32 %v9411, %v9469
        %v9486 = vadd.f32 %v9452, %v9470
        %v9487 = vadd.f32 %v9454, %v9471
        %v9488 = vmax.f32 %v9472, 0.0
        %v9489 = vmax.f32 %v9473, 0.0
        %v9490 = vmax.f32 %v9474, 0.0
        %v9491 = vmax.f32 %v9475, 0.0
        %v9492 = vmax.f32 %v9476, 0.0
        %v9493 = vmax.f32 %v9477, 0.0
        %v9494 = vmax.f32 %v9478, 0.0
        %v9495 = vmax.f32 %v9479, 0.0
        %v9496 = vmax.f32 %v9480, 0.0
        %v9497 = vmax.f32 %v9481, 0.0
        %v9498 = vmax.f32 %v9482, 0.0
        %v9499 = vmax.f32 %v9483, 0.0
        %v9500 = vmax.f32 %v9484, 0.0
        %v9501 = vmax.f32 %v9485, 0.0
        %v9502 = vmax.f32 %v9486, 0.0
        %v9503 = vmax.f32 %v9487, 0.0
        %9504 = vst [vmem:[%s284] sm:$0xff] %v9488
        %9505 = vst [vmem:[%s284 + $0x8] sm:$0xff] %v9489
        %9506 = vst [vmem:[%s284 + $0x10] sm:$0xff] %v9490
        %9507 = vst [vmem:[%s284 + $0x18] sm:$0xff] %v9491
        %9508 = vst [vmem:[%s284 + $0x20] sm:$0xff] %v9492
        %9509 = vst [vmem:[%s284 + $0x28] sm:$0xff] %v9493
        %9510 = vst [vmem:[%s284 + $0x30] sm:$0xff] %v9494
        %9511 = vst [vmem:[%s284 + $0x38] sm:$0xff] %v9495
        %9512 = vst [vmem:[%s284 + $0x40] sm:$0xff] %v9496
        %9513 = vst [vmem:[%s284 + $0x48] sm:$0xff] %v9497
        %9514 = vst [vmem:[%s284 + $0x50] sm:$0xff] %v9498
        %9515 = vst [vmem:[%s284 + $0x58] sm:$0xff] %v9499
        %9516 = vst [vmem:[%s284 + $0x60] sm:$0xff] %v9500
        %9517 = vst [vmem:[%s284 + $0x68] sm:$0xff] %v9501
        %9518 = vst [vmem:[%s284 + $0x70] sm:$0xff] %v9502
        %9519 = vst [vmem:[%s284 + $0x78] sm:$0xff] %v9503
        %s9520 = sand.u32 %s163, 1
        %s9521 = scalar_lea.sflag [#allocation5], %s9520
        %s9522 = sand.u32 %s163, 1
        %s9523 = smul.addr %s9522, 128
        %s9524 = scalar_lea.vmem [#allocation8], %s9523
        // Predicated region
        $region53: #{tpu_custom_call.1} parent=43 // pred_check
          %p9525 = pneg %p173
        $region54: #{tpu_custom_call.1} parent=43 // pred_check_branch
          %9527 = sbr.rel (%p9525) target = $region56
        $region55: #{tpu_custom_call.1} parent=43 // pred_region
          %s9529 = ssub.s32 2048, 2048
          %9530 = vsyncadd %s9521, %s9529
          %s9531 = smul.addr %s24, 16
          %s9532 = smul.addr %s9531, 128
          %s9533 = scalar_lea.hbm %s6, %s9532
          %s9534 = sshll.u32 %s9524, 4
          %s9535 = int_to_ptr.vmem [resolvable:$true] %s9534
          %9540 = dma.vmem_to_hbm [thread:$0]  %s9535, 2048, %s9533, %s9521, 1024, 1024, 64
        $region56: #{tpu_custom_call.1} parent=43 // pred_fallthru
          _
      $region44: #{tpu_custom_call.1} parent=5 // pred_fallthru
        _
      %p9541 = scmp.le.s32.totalorder 2, %s19
      // Predicated region
      $region57: #{tpu_custom_call.1} parent=5 // pred_check
        %p9542 = pneg %p9541
      $region58: #{tpu_custom_call.1} parent=5 // pred_check_branch
        %9544 = sbr.rel (%p9542) target = $region60
      $region59: #{tpu_custom_call.1} parent=5 // pred_region
        %s9545 = ssub.s32 %s19, 2
        // Predicated region
        $region61: #{tpu_custom_call.1} parent=59 // pred_check
          %p9546 = pneg %p179
        $region62: #{tpu_custom_call.1} parent=59 // pred_check_branch
          %9548 = sbr.rel (%p9546) target = $region64
        $region63: #{tpu_custom_call.1} parent=59 // pred_region
          %s9549 = sand.u32 %s164, 1
          %s9550 = scalar_lea.sflag [#allocation5], %s9549
          %s9551 = sand.u32 %s164, 1
          %s9552 = smul.addr %s9551, 128
          %s9553 = scalar_lea.vmem [#allocation8], %s9552
          %9554 = dma.done %s9550, 2048
        $region64: #{tpu_custom_call.1} parent=59 // pred_fallthru
          _
      $region60: #{tpu_custom_call.1} parent=5 // pred_fallthru
        _
    $region6: #{tpu_custom_call.1} parent=1 // loop_footer
      %s23 = sadd.s32 1, %s19
    $region7: #{tpu_custom_call.1} parent=1 // loop_footer_branch
      %18 = sbr.rel target = $region3
    $region8: #{tpu_custom_call.1} parent=1 // loop_exit
      _
    %9555 = vsyncpa [#allocation4], 1
    %s9556 = scalar_lea.sflag [#allocation4], 1
    %9557 = vsyncpa %s9556, 1
    %9558 = vsyncpa [#allocation7], 1
    %9559 = vsyncpa [#allocation5], 1
    %s9560 = scalar_lea.sflag [#allocation5], 1
    %9561 = vsyncpa %s9560, 1

</llo_original>
